<compile_context>
chip_gen: v6e
topology: v6e:2x2x1
jax: 0.10.0
libtpu: 0.0.40
codegen_flags: <defaults>
</compile_context>

<pallas_src>
import functools

import jax
import jax.numpy as jnp
from jax.experimental import pallas as pl
from jax.experimental.pallas import tpu as pltpu


IMAGENET_MEAN = jnp.array([0.485, 0.456, 0.406], jnp.float32).reshape(1, 3, 1, 1)
IMAGENET_STD = jnp.array([0.229, 0.224, 0.225], jnp.float32).reshape(1, 3, 1, 1)


def _round_up(x, m):
    return -(-x // m) * m


# --------------------------------------------------------------------------
# Pallas kernels
# --------------------------------------------------------------------------
def _conv_kernel(p_ref, w_ref, o_ref):
    """Fused im2col-matmul conv with folded bias:  o = relu(W' @ P').

    p_ref: (1, Kp, tm) bf16  im2col patches (+ a constant-1 bias row)
    w_ref: (1, N,  Kp) bf16  flattened conv weights (+ bias column)
    o_ref: (1, N,  tm) bf16  lane-dense output (M = B*Ho*Wo in lanes)
    """
    acc = jnp.dot(w_ref[0], p_ref[0], preferred_element_type=jnp.float32)
    o_ref[0] = jnp.maximum(acc, 0.0).astype(o_ref.dtype)


def _anomaly_kernel(f1_ref, f2_ref, p1_ref, p2_ref, u1_ref, u2_ref, o_ref, *,
                    c1, c2):
    """Fused AvgPool(3,1,1) + F.normalize + 0.5*||t-s||^2 + bilinear + product.

    Everything stays in the conv-native flat layout (channels in sublanes,
    B*h*w in lanes); pooling and upsampling are single 2D MXU matmuls.
    f1_ref: (2*c1, B*h1*w1) bf16   teacher|student stage-1 features
    f2_ref: (2*c2, B*h2*w2) bf16   teacher|student stage-2 features
    p*_ref: (B*h*w, B*h*w)  f32    kron(I_B, Ah (x) Aw) pooling matrix (symmetric)
    u*_ref: (B*h*w, tile)   f32    kron(I_B, Rh (x) Rw)^T bilinear matrix block
    o_ref:  (1, tile)       f32    lane-dense anomaly-map block
    """
    def layer_map(f, c, pmat, umat):
        f = f.astype(jnp.float32)
        pooled = jnp.dot(f, pmat, preferred_element_type=jnp.float32)   # (2c, BHW)
        t = pooled[:c]
        s = pooled[c:]
        # F.normalize(dim=channel): x / max(||x||_2, 1e-12)
        tn = t * jax.lax.rsqrt(jnp.maximum(jnp.sum(t * t, axis=0, keepdims=True), 1e-24))
        sn = s * jax.lax.rsqrt(jnp.maximum(jnp.sum(s * s, axis=0, keepdims=True), 1e-24))
        d = tn - sn
        lm = 0.5 * jnp.sum(d * d, axis=0, keepdims=True)                # (1, BHW)
        # bilinear upsample of this lane block: (1, BHW) @ (BHW, tile)
        return jnp.dot(lm, umat, preferred_element_type=jnp.float32)

    m1 = layer_map(f1_ref[...], c1, p1_ref[...], u1_ref[...])
    m2 = layer_map(f2_ref[...], c2, p2_ref[...], u2_ref[...])
    o_ref[...] = m1 * m2


# --------------------------------------------------------------------------
# Wrappers around pallas_call
# --------------------------------------------------------------------------
def grouped_conv_relu(patches_g, w_g, b_g, out_dtype=jnp.bfloat16):
    """Grouped fused conv matmul with folded bias:  relu(W'_g @ P'_g) per group.

    patches_g: (G, K, M)  im2col patches, M = B*Ho*Wo in lanes
    w_g:       (G, N, K)  flattened conv weights
    b_g:       (G, N)     bias (folded into an extra K row/column)
    returns    (G, N, M)  out_dtype
    """
    G, K, M = patches_g.shape
    N = w_g.shape[1]
    Kp = _round_up(K + 1, 32)              # +1 bias row, pad for bf16 sublane packing
    Mp = _round_up(M, 128)

    # Lane tile: as large as possible (per-step overhead dominates these micro
    # matmuls on single-TC v5e/v6e) while keeping >= 2 total grid steps so both
    # v7x TensorCores get work.  VMEM use stays far below any generation's limit.
    tm = min(Mp, 2048)
    if G == 1 and Mp == tm and tm > 128:
        tm = _round_up(tm // 2, 128)
    Mp = _round_up(Mp, tm)

    # Fold the bias: patches row K := 1.0, weight column K := bias.
    p_b = jnp.zeros((G, Kp, Mp), jnp.bfloat16)
    p_b = p_b.at[:, :K, :M].set(patches_g.astype(jnp.bfloat16))
    p_b = p_b.at[:, K, :M].set(1.0)
    w_b = jnp.zeros((G, N, Kp), jnp.bfloat16)
    w_b = w_b.at[:, :, :K].set(w_g.astype(jnp.bfloat16))
    w_b = w_b.at[:, :, K].set(b_g.astype(jnp.bfloat16))

    out = pl.pallas_call(
        _conv_kernel,
        out_shape=jax.ShapeDtypeStruct((G, N, Mp), out_dtype),
        grid=(G, Mp // tm),
        in_specs=[
            pl.BlockSpec((1, Kp, tm), lambda g, m: (g, 0, m)),
            pl.BlockSpec((1, N, Kp), lambda g, m: (g, 0, 0)),
        ],
        out_specs=pl.BlockSpec((1, N, tm), lambda g, m: (g, 0, m)),
        compiler_params=pltpu.CompilerParams(
            dimension_semantics=("parallel", "parallel")),
    )(p_b, w_b)
    return out[:, :, :M]


def _im2col_s2_cm(x):
    """3x3 stride-2 pad-1 im2col on channel-major input.

    x: (C, B, H, W) -> patches (C*9, B*Ho*Wo), Ho, Wo.  No transpose needed.
    """
    C, B, H, W = x.shape
    Ho, Wo = (H + 1) // 2, (W + 1) // 2
    xp = jnp.pad(x, ((0, 0), (0, 0), (1, 1), (1, 1)))
    cols = []
    for dh in range(3):
        for dw in range(3):
            cols.append(xp[:, :, dh:dh + 2 * Ho:2, dw:dw + 2 * Wo:2])
    p = jnp.stack(cols, axis=1)                          # (C, 9, B, Ho, Wo)
    return p.reshape(C * 9, B * Ho * Wo), Ho, Wo


def _pool_matrix(n):
    """Separable AvgPool2d(3,1,1) (count_include_pad=True): 1/3 on tri-diagonal."""
    idx = jnp.arange(n)
    return jnp.where(jnp.abs(idx[:, None] - idx[None, :]) <= 1, 1.0 / 3.0, 0.0
                     ).astype(jnp.float32)


def _bilinear_matrix(out_size, in_size):
    """Row-interp matrix matching F.interpolate(mode='bilinear', align_corners=False)."""
    i = jnp.arange(out_size, dtype=jnp.float32)
    scale = in_size / out_size
    src = jnp.clip((i + 0.5) * scale - 0.5, 0.0, in_size - 1)
    i0 = jnp.floor(src).astype(jnp.int32)
    i1 = jnp.minimum(i0 + 1, in_size - 1)
    w1 = src - i0.astype(jnp.float32)
    rows = jnp.arange(out_size)
    mat = jnp.zeros((out_size, in_size), jnp.float32)
    mat = mat.at[rows, i0].add(1.0 - w1)
    mat = mat.at[rows, i1].add(w1)
    return mat


def _pool_kron(B, h, w, enabled):
    """kron(I_B, Ah (x) Aw): block-diagonal per-batch 2D avg-pool matrix (symmetric)."""
    if enabled:
        ah, aw = _pool_matrix(h), _pool_matrix(w)
    else:
        ah = jnp.eye(h, dtype=jnp.float32)
        aw = jnp.eye(w, dtype=jnp.float32)
    return jnp.kron(jnp.eye(B, dtype=jnp.float32), jnp.kron(ah, aw))


def _upsample_kron_t(B, h, w, Hout, Wout):
    """kron(I_B, Rh (x) Rw)^T : flat-lane bilinear upsample matrix, (B*h*w, B*Hout*Wout)."""
    rh = _bilinear_matrix(Hout, h)
    rw = _bilinear_matrix(Wout, w)
    return jnp.kron(jnp.eye(B, dtype=jnp.float32), jnp.kron(rh, rw)).T


# --------------------------------------------------------------------------
# STFPM model (synthetic backbone), eval-mode forward
# --------------------------------------------------------------------------
LAYERS = ("layer1", "layer2")
CHANNELS = {"layer1": 8, "layer2": 16}


def init_feature_extractor_params(key):
    k1, k2, k3, k4 = jax.random.split(key, 4)
    w1 = jax.random.normal(k1, (CHANNELS["layer1"], 3, 3, 3), jnp.float32) * 0.1
    b1 = jax.random.normal(k2, (CHANNELS["layer1"],), jnp.float32) * 0.01
    w2 = jax.random.normal(k3, (CHANNELS["layer2"], CHANNELS["layer1"], 3, 3),
                           jnp.float32) * 0.1
    b2 = jax.random.normal(k4, (CHANNELS["layer2"],), jnp.float32) * 0.01
    return {"layer1": (w1, b1), "layer2": (w2, b2)}


def stfpm_forward(teacher_params, student_params, images, input_size,
                  use_feature_pooler=True):
    """Eval-mode STFPM.forward: returns anomaly map of shape (B, H_in, W_in)."""
    x = (images - IMAGENET_MEAN) / IMAGENET_STD                 # transforms.Normalize
    B = x.shape[0]
    Hout, Wout = input_size

    # Single tiny transpose up front -> channel-major everywhere afterwards.
    x_cm = jnp.transpose(x, (1, 0, 2, 3))                       # (3, B, H, W)

    # ---- stage 1 conv: one shared im2col; teacher & student fused along N ----
    wt1, bt1 = teacher_params["layer1"]
    ws1, bs1 = student_params["layer1"]
    C1 = wt1.shape[0]
    p1, h1, w1 = _im2col_s2_cm(x_cm)                            # (27, B*h1*w1)
    wcat = jnp.concatenate([wt1.reshape(C1, -1), ws1.reshape(C1, -1)], axis=0)
    bcat = jnp.concatenate([bt1, bs1], axis=0)
    f1 = grouped_conv_relu(p1[None], wcat[None], bcat[None])    # (1, 2*C1, B*h1*w1) bf16
    M1 = B * h1 * w1

    # ---- stage 2 conv: teacher / student as two groups of a single call ------
    wt2, bt2 = teacher_params["layer2"]
    ws2, bs2 = student_params["layer2"]
    C2 = wt2.shape[0]
    f1_cm = f1.reshape(2, C1, B, h1, w1)                        # free reshape, no transpose
    pt2, h2, w2 = _im2col_s2_cm(f1_cm[0])                       # teacher patches
    ps2, _, _ = _im2col_s2_cm(f1_cm[1])                         # student patches
    p2 = jnp.stack([pt2, ps2], axis=0)                          # (2, C1*9, B*h2*w2)
    w2m = jnp.stack([wt2.reshape(C2, -1), ws2.reshape(C2, -1)], axis=0)
    b2m = jnp.stack([bt2, bs2], axis=0)
    f2 = grouped_conv_relu(p2, w2m, b2m)                        # (2, C2, B*h2*w2) bf16
    M2 = B * h2 * w2

    # ---- fused anomaly map: pool + normalize + distance + upsample + product --
    f1_flat = f1.reshape(2 * C1, M1)                            # conv-native, lane-dense
    f2_flat = f2.reshape(2 * C2, M2)
    p1m = _pool_kron(B, h1, w1, use_feature_pooler)             # (M1, M1)
    p2m = _pool_kron(B, h2, w2, use_feature_pooler)             # (M2, M2)
    u1t = _upsample_kron_t(B, h1, w1, Hout, Wout)               # (M1, B*Hout*Wout)
    u2t = _upsample_kron_t(B, h2, w2, Hout, Wout)               # (M2, B*Hout*Wout)

    Mo = B * Hout * Wout
    split = 2 if Mo % 256 == 0 else 1                           # >=2 steps for dual-TC v7x
    to = Mo // split

    amap = pl.pallas_call(
        functools.partial(_anomaly_kernel, c1=C1, c2=C2),
        out_shape=jax.ShapeDtypeStruct((1, Mo), jnp.float32),
        grid=(split,),
        in_specs=[
            pl.BlockSpec((2 * C1, M1), lambda j: (0, 0)),
            pl.BlockSpec((2 * C2, M2), lambda j: (0, 0)),
            pl.BlockSpec((M1, M1), lambda j: (0, 0)),
            pl.BlockSpec((M2, M2), lambda j: (0, 0)),
            pl.BlockSpec((M1, to), lambda j: (0, j)),
            pl.BlockSpec((M2, to), lambda j: (0, j)),
        ],
        out_specs=pl.BlockSpec((1, to), lambda j: (0, j)),
        compiler_params=pltpu.CompilerParams(dimension_semantics=("parallel",)),
    )(f1_flat, f2_flat, p1m, p2m, u1t, u2t)

    return amap.reshape(B, Hout, Wout)


if __name__ == "__main__":
    key = jax.random.PRNGKey(0)
    k_img, k_teacher, k_student = jax.random.split(key, 3)

    B, H, W = 2, 32, 32
    images = jax.random.uniform(k_img, (B, 3, H, W), jnp.float32)

    teacher_params = init_feature_extractor_params(k_teacher)   # "pretrained" teacher
    student_params = init_feature_extractor_params(k_student)   # random-init student

    fwd = jax.jit(functools.partial(stfpm_forward, input_size=(H, W)))
    out = jax.block_until_ready(fwd(teacher_params, student_params, images))

    assert out.shape == (B, H, W), out.shape
    assert out.dtype == jnp.float32
    assert bool(jnp.all(jnp.isfinite(out)))
    print("KERNEL_OK")
</pallas_src>

<mosaic_0001>
module attributes {stable_mosaic.version = 11 : i64} {
  func.func private @main(%arg0: i32) attributes {dimension_semantics = [#tpu.dimension_semantics<core_parallel>], iteration_bounds = array<i64: 2>, tpu.core_type = #tpu.core_type<sc_scalar_subcore>, window_params = []} {
    return
  }
}

module attributes {stable_mosaic.version = 11 : i64} {
  func.func private @main(%arg0: i32) attributes {dimension_semantics = [#tpu.dimension_semantics<core_parallel>], iteration_bounds = array<i64: 2>, tpu.core_type = #tpu.core_type<sc_scalar_subcore>, window_params = []} {
    return
  }
}

module attributes {stable_mosaic.version = 11 : i64} {
  func.func @_conv_kernel(%arg0: i32, %arg1: i32, %arg2: memref<1x32x256xbf16, #tpu.memory_space<vmem>>, %arg3: memref<1x16x32xbf16, #tpu.memory_space<vmem>>, %arg4: memref<1x16x256xbf16, #tpu.memory_space<vmem>>) attributes {dimension_semantics = [#tpu.dimension_semantics<parallel>, #tpu.dimension_semantics<parallel>], iteration_bounds = array<i64: 1, 2>, scalar_prefetch = 0 : i64, scratch_operands = 0 : i64, tpu.core_type = #tpu.core_type<tc>, window_params = [{transform_indices = @transform_0, window_bounds = array<i64: 1, 32, 256>}, {transform_indices = @transform_1, window_bounds = array<i64: 1, 16, 32>}, {transform_indices = @transform_2, window_bounds = array<i64: 1, 16, 256>}]} {
    %c0 = arith.constant 0 : index
    %c0_0 = arith.constant 0 : index
    %c0_1 = arith.constant 0 : index
    %0 = vector.load %arg3[%c0, %c0_0, %c0_1] : memref<1x16x32xbf16, #tpu.memory_space<vmem>>, vector<1x16x32xbf16>
    %1 = vector.shape_cast %0 : vector<1x16x32xbf16> to vector<16x32xbf16>
    %c0_2 = arith.constant 0 : index
    %c0_3 = arith.constant 0 : index
    %c0_4 = arith.constant 0 : index
    %2 = vector.load %arg2[%c0_2, %c0_3, %c0_4] : memref<1x32x256xbf16, #tpu.memory_space<vmem>>, vector<1x32x256xbf16>
    %3 = vector.shape_cast %2 : vector<1x32x256xbf16> to vector<32x256xbf16>
    %cst = arith.constant dense<0.000000e+00> : vector<16x256xf32>
    %4 = tpu.matmul %1, %3, %cst {dimension_numbers = #tpu.dot_dimension_numbers<[1], [0], [0], [1], [0, 0, 1, 1], [], []>} : vector<16x32xbf16>, vector<32x256xbf16>, vector<16x256xf32> -> vector<16x256xf32>
    %cst_5 = arith.constant 0.000000e+00 : f32
    %5 = vector.broadcast %cst_5 : f32 to vector<16x256xf32>
    %6 = arith.maximumf %4, %5 : vector<16x256xf32>
    %7 = arith.truncf %6 : vector<16x256xf32> to vector<16x256xbf16>
    %c0_6 = arith.constant 0 : index
    %c0_7 = arith.constant 0 : index
    %c0_8 = arith.constant 0 : index
    %8 = vector.load %arg4[%c0_6, %c0_7, %c0_8] : memref<1x16x256xbf16, #tpu.memory_space<vmem>>, vector<1x16x256xbf16>
    %9 = vector.shape_cast %8 : vector<1x16x256xbf16> to vector<16x256xbf16>
    %10 = vector.shape_cast %7 : vector<16x256xbf16> to vector<1x16x256xbf16>
    tpu.vector_store %arg4[%c0_6, %c0_7, %c0_8], %10 {strides = array<i32>} : memref<1x16x256xbf16, #tpu.memory_space<vmem>>, vector<1x16x256xbf16>,
    return
  }
  func.func @transform_0(%arg0: i32, %arg1: i32) -> (i32, i32, i32) {
    %c0_i32 = arith.constant 0 : i32
    %c0_i32_0 = arith.constant 0 : i32
    return %arg0, %c0_i32, %arg1 : i32, i32, i32
  }
  func.func @transform_1(%arg0: i32, %arg1: i32) -> (i32, i32, i32) {
    %c0_i32 = arith.constant 0 : i32
    %c0_i32_0 = arith.constant 0 : i32
    %c0_i32_1 = arith.constant 0 : i32
    return %arg0, %c0_i32, %c0_i32_0 : i32, i32, i32
  }
  func.func @transform_2(%arg0: i32, %arg1: i32) -> (i32, i32, i32) {
    %c0_i32 = arith.constant 0 : i32
    %c0_i32_0 = arith.constant 0 : i32
    return %arg0, %c0_i32, %arg1 : i32, i32, i32
  }
}

module attributes {stable_mosaic.version = 11 : i64} {
  func.func @_conv_kernel(%arg0: i32, %arg1: i32, %arg2: memref<1x96x128xbf16, #tpu.memory_space<vmem>>, %arg3: memref<1x16x96xbf16, #tpu.memory_space<vmem>>, %arg4: memref<1x16x128xbf16, #tpu.memory_space<vmem>>) attributes {dimension_semantics = [#tpu.dimension_semantics<parallel>, #tpu.dimension_semantics<parallel>], iteration_bounds = array<i64: 2, 1>, scalar_prefetch = 0 : i64, scratch_operands = 0 : i64, tpu.core_type = #tpu.core_type<tc>, window_params = [{transform_indices = @transform_0, window_bounds = array<i64: 1, 96, 128>}, {transform_indices = @transform_1, window_bounds = array<i64: 1, 16, 96>}, {transform_indices = @transform_2, window_bounds = array<i64: 1, 16, 128>}]} {
    %c0 = arith.constant 0 : index
    %c0_0 = arith.constant 0 : index
    %c0_1 = arith.constant 0 : index
    %0 = vector.load %arg3[%c0, %c0_0, %c0_1] : memref<1x16x96xbf16, #tpu.memory_space<vmem>>, vector<1x16x96xbf16>
    %1 = vector.shape_cast %0 : vector<1x16x96xbf16> to vector<16x96xbf16>
    %c0_2 = arith.constant 0 : index
    %c0_3 = arith.constant 0 : index
    %c0_4 = arith.constant 0 : index
    %2 = vector.load %arg2[%c0_2, %c0_3, %c0_4] : memref<1x96x128xbf16, #tpu.memory_space<vmem>>, vector<1x96x128xbf16>
    %3 = vector.shape_cast %2 : vector<1x96x128xbf16> to vector<96x128xbf16>
    %cst = arith.constant dense<0.000000e+00> : vector<16x128xf32>
    %4 = tpu.matmul %1, %3, %cst {dimension_numbers = #tpu.dot_dimension_numbers<[1], [0], [0], [1], [0, 0, 1, 1], [], []>} : vector<16x96xbf16>, vector<96x128xbf16>, vector<16x128xf32> -> vector<16x128xf32>
    %cst_5 = arith.constant 0.000000e+00 : f32
    %5 = vector.broadcast %cst_5 : f32 to vector<16x128xf32>
    %6 = arith.maximumf %4, %5 : vector<16x128xf32>
    %7 = arith.truncf %6 : vector<16x128xf32> to vector<16x128xbf16>
    %c0_6 = arith.constant 0 : index
    %c0_7 = arith.constant 0 : index
    %c0_8 = arith.constant 0 : index
    %8 = vector.load %arg4[%c0_6, %c0_7, %c0_8] : memref<1x16x128xbf16, #tpu.memory_space<vmem>>, vector<1x16x128xbf16>
    %9 = vector.shape_cast %8 : vector<1x16x128xbf16> to vector<16x128xbf16>
    %10 = vector.shape_cast %7 : vector<16x128xbf16> to vector<1x16x128xbf16>
    tpu.vector_store %arg4[%c0_6, %c0_7, %c0_8], %10 {strides = array<i32>} : memref<1x16x128xbf16, #tpu.memory_space<vmem>>, vector<1x16x128xbf16>,
    return
  }
  func.func @transform_0(%arg0: i32, %arg1: i32) -> (i32, i32, i32) {
    %c0_i32 = arith.constant 0 : i32
    %c0_i32_0 = arith.constant 0 : i32
    return %arg0, %c0_i32, %arg1 : i32, i32, i32
  }
  func.func @transform_1(%arg0: i32, %arg1: i32) -> (i32, i32, i32) {
    %c0_i32 = arith.constant 0 : i32
    %c0_i32_0 = arith.constant 0 : i32
    %c0_i32_1 = arith.constant 0 : i32
    return %arg0, %c0_i32, %c0_i32_0 : i32, i32, i32
  }
  func.func @transform_2(%arg0: i32, %arg1: i32) -> (i32, i32, i32) {
    %c0_i32 = arith.constant 0 : i32
    %c0_i32_0 = arith.constant 0 : i32
    return %arg0, %c0_i32, %arg1 : i32, i32, i32
  }
}

module attributes {stable_mosaic.version = 11 : i64} {
  func.func @_anomaly_kernel(%arg0: i32, %arg1: memref<16x512xbf16, #tpu.memory_space<vmem>>, %arg2: memref<32x128xbf16, #tpu.memory_space<vmem>>, %arg3: memref<512x512xf32, #tpu.memory_space<vmem>>, %arg4: memref<128x128xf32, #tpu.memory_space<vmem>>, %arg5: memref<512x1024xf32, #tpu.memory_space<vmem>>, %arg6: memref<128x1024xf32, #tpu.memory_space<vmem>>, %arg7: memref<1x1024xf32, #tpu.memory_space<vmem>>) attributes {dimension_semantics = [#tpu.dimension_semantics<parallel>], iteration_bounds = array<i64: 2>, scalar_prefetch = 0 : i64, scratch_operands = 0 : i64, tpu.core_type = #tpu.core_type<tc>, window_params = [{pipeline_mode = #tpu.pipeline_mode<synchronous>, transform_indices = @transform_0, window_bounds = array<i64: 16, 512>}, {pipeline_mode = #tpu.pipeline_mode<synchronous>, transform_indices = @transform_1, window_bounds = array<i64: 32, 128>}, {pipeline_mode = #tpu.pipeline_mode<synchronous>, transform_indices = @transform_2, window_bounds = array<i64: 512, 512>}, {pipeline_mode = #tpu.pipeline_mode<synchronous>, transform_indices = @transform_3, window_bounds = array<i64: 128, 128>}, {transform_indices = @transform_4, window_bounds = array<i64: 512, 1024>}, {transform_indices = @transform_5, window_bounds = array<i64: 128, 1024>}, {transform_indices = @transform_6, window_bounds = array<i64: 1, 1024>}]} {
    %c0 = arith.constant 0 : index
    %c0_0 = arith.constant 0 : index
    %0 = vector.load %arg1[%c0, %c0_0] : memref<16x512xbf16, #tpu.memory_space<vmem>>, vector<16x512xbf16>
    %c0_1 = arith.constant 0 : index
    %c0_2 = arith.constant 0 : index
    %1 = vector.load %arg3[%c0_1, %c0_2] : memref<512x512xf32, #tpu.memory_space<vmem>>, vector<512x512xf32>
    %c0_3 = arith.constant 0 : index
    %c0_4 = arith.constant 0 : index
    %2 = vector.load %arg5[%c0_3, %c0_4] : memref<512x1024xf32, #tpu.memory_space<vmem>>, vector<512x1024xf32>
    %3 = arith.extf %0 : vector<16x512xbf16> to vector<16x512xf32>
    %cst = arith.constant dense<0.000000e+00> : vector<16x512xf32>
    %4 = tpu.matmul %3, %1, %cst {dimension_numbers = #tpu.dot_dimension_numbers<[1], [0], [0], [1], [0, 0, 1, 1], [], []>} : vector<16x512xf32>, vector<512x512xf32>, vector<16x512xf32> -> vector<16x512xf32>
    %5 = vector.extract_strided_slice %4 {offsets = [0, 0], sizes = [8, 512], strides = [1, 1]} : vector<16x512xf32> to vector<8x512xf32>
    %6 = vector.extract_strided_slice %4 {offsets = [8, 0], sizes = [8, 512], strides = [1, 1]} : vector<16x512xf32> to vector<8x512xf32>
    %7 = arith.mulf %5, %5 : vector<8x512xf32>
    %cst_5 = arith.constant dense<0.000000e+00> : vector<512xf32>
    %8 = vector.multi_reduction <add>, %7, %cst_5 [0] : vector<8x512xf32> to vector<512xf32>
    %9 = vector.shape_cast %8 : vector<512xf32> to vector<1x512xf32>
    %cst_6 = arith.constant 1.000000e-24 : f32
    %10 = vector.broadcast %cst_6 : f32 to vector<1x512xf32>
    %11 = arith.maximumf %9, %10 : vector<1x512xf32>
    %12 = math.rsqrt %11 : vector<1x512xf32>
    %13 = vector.broadcast %12 : vector<1x512xf32> to vector<8x512xf32>
    %14 = arith.mulf %5, %13 : vector<8x512xf32>
    %15 = arith.mulf %6, %6 : vector<8x512xf32>
    %cst_7 = arith.constant dense<0.000000e+00> : vector<512xf32>
    %16 = vector.multi_reduction <add>, %15, %cst_7 [0] : vector<8x512xf32> to vector<512xf32>
    %17 = vector.shape_cast %16 : vector<512xf32> to vector<1x512xf32>
    %cst_8 = arith.constant 1.000000e-24 : f32
    %18 = vector.broadcast %cst_8 : f32 to vector<1x512xf32>
    %19 = arith.maximumf %17, %18 : vector<1x512xf32>
    %20 = math.rsqrt %19 : vector<1x512xf32>
    %21 = vector.broadcast %20 : vector<1x512xf32> to vector<8x512xf32>
    %22 = arith.mulf %6, %21 : vector<8x512xf32>
    %23 = arith.subf %14, %22 : vector<8x512xf32>
    %24 = arith.mulf %23, %23 : vector<8x512xf32>
    %cst_9 = arith.constant dense<0.000000e+00> : vector<512xf32>
    %25 = vector.multi_reduction <add>, %24, %cst_9 [0] : vector<8x512xf32> to vector<512xf32>
    %26 = vector.shape_cast %25 : vector<512xf32> to vector<1x512xf32>
    %cst_10 = arith.constant 5.000000e-01 : f32
    %27 = vector.broadcast %cst_10 : f32 to vector<1x512xf32>
    %28 = arith.mulf %27, %26 : vector<1x512xf32>
    %cst_11 = arith.constant dense<0.000000e+00> : vector<1x1024xf32>
    %29 = tpu.matmul %28, %2, %cst_11 {dimension_numbers = #tpu.dot_dimension_numbers<[1], [0], [0], [1], [0, 0, 1, 1], [], []>} : vector<1x512xf32>, vector<512x1024xf32>, vector<1x1024xf32> -> vector<1x1024xf32>
    %c0_12 = arith.constant 0 : index
    %c0_13 = arith.constant 0 : index
    %30 = vector.load %arg2[%c0_12, %c0_13] : memref<32x128xbf16, #tpu.memory_space<vmem>>, vector<32x128xbf16>
    %c0_14 = arith.constant 0 : index
    %c0_15 = arith.constant 0 : index
    %31 = vector.load %arg4[%c0_14, %c0_15] : memref<128x128xf32, #tpu.memory_space<vmem>>, vector<128x128xf32>
    %c0_16 = arith.constant 0 : index
    %c0_17 = arith.constant 0 : index
    %32 = vector.load %arg6[%c0_16, %c0_17] : memref<128x1024xf32, #tpu.memory_space<vmem>>, vector<128x1024xf32>
    %33 = arith.extf %30 : vector<32x128xbf16> to vector<32x128xf32>
    %cst_18 = arith.constant dense<0.000000e+00> : vector<32x128xf32>
    %34 = tpu.matmul %33, %31, %cst_18 {dimension_numbers = #tpu.dot_dimension_numbers<[1], [0], [0], [1], [0, 0, 1, 1], [], []>} : vector<32x128xf32>, vector<128x128xf32>, vector<32x128xf32> -> vector<32x128xf32>
    %35 = vector.extract_strided_slice %34 {offsets = [0, 0], sizes = [16, 128], strides = [1, 1]} : vector<32x128xf32> to vector<16x128xf32>
    %36 = vector.extract_strided_slice %34 {offsets = [16, 0], sizes = [16, 128], strides = [1, 1]} : vector<32x128xf32> to vector<16x128xf32>
    %37 = arith.mulf %35, %35 : vector<16x128xf32>
    %cst_19 = arith.constant dense<0.000000e+00> : vector<128xf32>
    %38 = vector.multi_reduction <add>, %37, %cst_19 [0] : vector<16x128xf32> to vector<128xf32>
    %39 = vector.shape_cast %38 : vector<128xf32> to vector<1x128xf32>
    %cst_20 = arith.constant 1.000000e-24 : f32
    %40 = vector.broadcast %cst_20 : f32 to vector<1x128xf32>
    %41 = arith.maximumf %39, %40 : vector<1x128xf32>
    %42 = math.rsqrt %41 : vector<1x128xf32>
    %43 = vector.broadcast %42 : vector<1x128xf32> to vector<16x128xf32>
    %44 = arith.mulf %35, %43 : vector<16x128xf32>
    %45 = arith.mulf %36, %36 : vector<16x128xf32>
    %cst_21 = arith.constant dense<0.000000e+00> : vector<128xf32>
    %46 = vector.multi_reduction <add>, %45, %cst_21 [0] : vector<16x128xf32> to vector<128xf32>
    %47 = vector.shape_cast %46 : vector<128xf32> to vector<1x128xf32>
    %cst_22 = arith.constant 1.000000e-24 : f32
    %48 = vector.broadcast %cst_22 : f32 to vector<1x128xf32>
    %49 = arith.maximumf %47, %48 : vector<1x128xf32>
    %50 = math.rsqrt %49 : vector<1x128xf32>
    %51 = vector.broadcast %50 : vector<1x128xf32> to vector<16x128xf32>
    %52 = arith.mulf %36, %51 : vector<16x128xf32>
    %53 = arith.subf %44, %52 : vector<16x128xf32>
    %54 = arith.mulf %53, %53 : vector<16x128xf32>
    %cst_23 = arith.constant dense<0.000000e+00> : vector<128xf32>
    %55 = vector.multi_reduction <add>, %54, %cst_23 [0] : vector<16x128xf32> to vector<128xf32>
    %56 = vector.shape_cast %55 : vector<128xf32> to vector<1x128xf32>
    %cst_24 = arith.constant 5.000000e-01 : f32
    %57 = vector.broadcast %cst_24 : f32 to vector<1x128xf32>
    %58 = arith.mulf %57, %56 : vector<1x128xf32>
    %cst_25 = arith.constant dense<0.000000e+00> : vector<1x1024xf32>
    %59 = tpu.matmul %58, %32, %cst_25 {dimension_numbers = #tpu.dot_dimension_numbers<[1], [0], [0], [1], [0, 0, 1, 1], [], []>} : vector<1x128xf32>, vector<128x1024xf32>, vector<1x1024xf32> -> vector<1x1024xf32>
    %60 = arith.mulf %29, %59 : vector<1x1024xf32>
    %c0_26 = arith.constant 0 : index
    %c0_27 = arith.constant 0 : index
    %61 = vector.load %arg7[%c0_26, %c0_27] : memref<1x1024xf32, #tpu.memory_space<vmem>>, vector<1x1024xf32>
    tpu.vector_store %arg7[%c0_26, %c0_27], %60 {strides = array<i32>} : memref<1x1024xf32, #tpu.memory_space<vmem>>, vector<1x1024xf32>,
    return
  }
  func.func @transform_0(%arg0: i32) -> (i32, i32) {
    %c0_i32 = arith.constant 0 : i32
    %c0_i32_0 = arith.constant 0 : i32
    %c0_i32_1 = arith.constant 0 : i32
    return %c0_i32, %c0_i32_0 : i32, i32
  }
  func.func @transform_1(%arg0: i32) -> (i32, i32) {
    %c0_i32 = arith.constant 0 : i32
    %c0_i32_0 = arith.constant 0 : i32
    %c0_i32_1 = arith.constant 0 : i32
    return %c0_i32, %c0_i32_0 : i32, i32
  }
  func.func @transform_2(%arg0: i32) -> (i32, i32) {
    %c0_i32 = arith.constant 0 : i32
    %c0_i32_0 = arith.constant 0 : i32
    %c0_i32_1 = arith.constant 0 : i32
    return %c0_i32, %c0_i32_0 : i32, i32
  }
  func.func @transform_3(%arg0: i32) -> (i32, i32) {
    %c0_i32 = arith.constant 0 : i32
    %c0_i32_0 = arith.constant 0 : i32
    %c0_i32_1 = arith.constant 0 : i32
    return %c0_i32, %c0_i32_0 : i32, i32
  }
  func.func @transform_4(%arg0: i32) -> (i32, i32) {
    %c0_i32 = arith.constant 0 : i32
    %c0_i32_0 = arith.constant 0 : i32
    return %c0_i32, %arg0 : i32, i32
  }
  func.func @transform_5(%arg0: i32) -> (i32, i32) {
    %c0_i32 = arith.constant 0 : i32
    %c0_i32_0 = arith.constant 0 : i32
    return %c0_i32, %arg0 : i32, i32
  }
  func.func @transform_6(%arg0: i32) -> (i32, i32) {
    %c0_i32 = arith.constant 0 : i32
    %c0_i32_0 = arith.constant 0 : i32
    return %c0_i32, %arg0 : i32, i32
  }
}

</mosaic_0001>

<llo_original>
// kernel: squeeze.2
$region0: #{squeeze.2}
  %s0 = inlined_call_operand.vmem [shape: bf16[1,8,512], index: 0, kind: input, shape index: {}]
  %s1 = inlined_call_operand.vmem [shape: bf16[8,2,16,16], index: 1, kind: output, shape index: {}]
  $region1: #{squeeze.2} parent=0
    #allocation0 [shape = 'u8[131072]{0}', space=vmem, size = 0x20000, scoped, tag = 'scoped mem for output reshape']
    #allocation1 [shape = 'u8[16384]{0}', space=vmem, size = 0x4000, scoped, tag = 'scoped mem for input reshape']
    %s3 = smul.u32 4, 2
    %s4 = sshll.u32 1, %s3
    %s5 = ssub.s32 %s4, 1
    %s6 = smul.addr 4, 3
    %s7 = scalar_lea.vmem %s0, %s6
    %s8 = sshrl.u32 %s5, 1
    %s9 = sor.u32 %s5, %s8
    %s10 = sand.u32 %s9, 85
    %s11 = sshrl.u32 %s10, 1
    %s12 = sor.u32 %s10, %s11
    %s13 = sand.u32 51, %s12
    %s14 = sshrl.u32 %s13, 2
    %s15 = sor.u32 %s13, %s14
    %s16 = sand.u32 15, %s15
    %v17 = vld [vmem:[%s7] sm:%s16]
    %v18 = vunpack.c.l.bf16 %v17
    %v19 = vunpack.c.h.bf16 %v17
    %s20 = scalar_lea.vmem [#allocation1], 24
    %21 = vst [vmem:[%s20] sm:%s5] %v18
    %s22 = smul.addr 4, 2
    %s23 = scalar_lea.vmem %s0, %s22
    %s24 = sshrl.u32 %s5, 1
    %s25 = sor.u32 %s5, %s24
    %s26 = sand.u32 %s25, 85
    %s27 = sshrl.u32 %s26, 1
    %s28 = sor.u32 %s26, %s27
    %s29 = sand.u32 51, %s28
    %s30 = sshrl.u32 %s29, 2
    %s31 = sor.u32 %s29, %s30
    %s32 = sand.u32 15, %s31
    %v33 = vld [vmem:[%s23] sm:%s32]
    %v34 = vunpack.c.l.bf16 %v33
    %v35 = vunpack.c.h.bf16 %v33
    %s36 = scalar_lea.vmem [#allocation1], 16
    %37 = vst [vmem:[%s36] sm:%s5] %v34
    %s38 = scalar_lea.vmem %s0, 4
    %s39 = sshrl.u32 %s5, 1
    %s40 = sor.u32 %s5, %s39
    %s41 = sand.u32 %s40, 85
    %s42 = sshrl.u32 %s41, 1
    %s43 = sor.u32 %s41, %s42
    %s44 = sand.u32 51, %s43
    %s45 = sshrl.u32 %s44, 2
    %s46 = sor.u32 %s44, %s45
    %s47 = sand.u32 15, %s46
    %v48 = vld [vmem:[%s38] sm:%s47]
    %v49 = vunpack.c.l.bf16 %v48
    %v50 = vunpack.c.h.bf16 %v48
    %s51 = scalar_lea.vmem [#allocation1], 8
    %52 = vst [vmem:[%s51] sm:%s5] %v49
    %s53 = sshrl.u32 %s5, 1
    %s54 = sor.u32 %s5, %s53
    %s55 = sand.u32 %s54, 85
    %s56 = sshrl.u32 %s55, 1
    %s57 = sor.u32 %s55, %s56
    %s58 = sand.u32 51, %s57
    %s59 = sshrl.u32 %s58, 2
    %s60 = sor.u32 %s58, %s59
    %s61 = sand.u32 15, %s60
    %v62 = vld [vmem:[%s0] sm:%s61]
    %v63 = vunpack.c.l.bf16 %v62
    %v64 = vunpack.c.h.bf16 %v62
    %65 = vst [vmem:[#allocation1] sm:%s5] %v63
    %v66 = vld [vmem:[#allocation1] sm:$0xff]
    %vm67 = vcmask 130048
    %68 = vst.msk [vmem:[#allocation0] sm:$0x1] %vm67, %v66
    %s69 = scalar_lea.vmem [#allocation0], 31
    %70 = vst.msk [vmem:[%s69] sm:$0x2] %vm67, %v66
    %s71 = scalar_lea.vmem [#allocation0], 62
    %72 = vst.msk [vmem:[%s71] sm:$0x4] %vm67, %v66
    %s73 = scalar_lea.vmem [#allocation0], 93
    %74 = vst.msk [vmem:[%s73] sm:$0x8] %vm67, %v66
    %s75 = scalar_lea.vmem [#allocation0], 124
    %76 = vst.msk [vmem:[%s75] sm:$0x10] %vm67, %v66
    %s77 = scalar_lea.vmem [#allocation0], 155
    %78 = vst.msk [vmem:[%s77] sm:$0x20] %vm67, %v66
    %s79 = scalar_lea.vmem [#allocation0], 186
    %80 = vst.msk [vmem:[%s79] sm:$0x40] %vm67, %v66
    %s81 = scalar_lea.vmem [#allocation0], 217
    %82 = vst.msk [vmem:[%s81] sm:$0x80] %vm67, %v66
    %s83 = scalar_lea.vmem [#allocation1], 8
    %v84 = vld [vmem:[%s83] sm:$0xff]
    %vm85 = vcmask 130048
    %s86 = scalar_lea.vmem [#allocation0], 8
    %87 = vst.msk [vmem:[%s86] sm:$0x1] %vm85, %v84
    %s88 = scalar_lea.vmem [#allocation0], 39
    %89 = vst.msk [vmem:[%s88] sm:$0x2] %vm85, %v84
    %s90 = scalar_lea.vmem [#allocation0], 70
    %91 = vst.msk [vmem:[%s90] sm:$0x4] %vm85, %v84
    %s92 = scalar_lea.vmem [#allocation0], 101
    %93 = vst.msk [vmem:[%s92] sm:$0x8] %vm85, %v84
    %s94 = scalar_lea.vmem [#allocation0], 132
    %95 = vst.msk [vmem:[%s94] sm:$0x10] %vm85, %v84
    %s96 = scalar_lea.vmem [#allocation0], 163
    %97 = vst.msk [vmem:[%s96] sm:$0x20] %vm85, %v84
    %s98 = scalar_lea.vmem [#allocation0], 194
    %99 = vst.msk [vmem:[%s98] sm:$0x40] %vm85, %v84
    %s100 = scalar_lea.vmem [#allocation0], 225
    %101 = vst.msk [vmem:[%s100] sm:$0x80] %vm85, %v84
    %s102 = scalar_lea.vmem [#allocation1], 16
    %v103 = vld [vmem:[%s102] sm:$0xff]
    %vm104 = vcmask 130048
    %s105 = scalar_lea.vmem [#allocation0], 16
    %106 = vst.msk [vmem:[%s105] sm:$0x1] %vm104, %v103
    %s107 = scalar_lea.vmem [#allocation0], 47
    %108 = vst.msk [vmem:[%s107] sm:$0x2] %vm104, %v103
    %s109 = scalar_lea.vmem [#allocation0], 78
    %110 = vst.msk [vmem:[%s109] sm:$0x4] %vm104, %v103
    %s111 = scalar_lea.vmem [#allocation0], 109
    %112 = vst.msk [vmem:[%s111] sm:$0x8] %vm104, %v103
    %s113 = scalar_lea.vmem [#allocation0], 140
    %114 = vst.msk [vmem:[%s113] sm:$0x10] %vm104, %v103
    %s115 = scalar_lea.vmem [#allocation0], 171
    %116 = vst.msk [vmem:[%s115] sm:$0x20] %vm104, %v103
    %s117 = scalar_lea.vmem [#allocation0], 202
    %118 = vst.msk [vmem:[%s117] sm:$0x40] %vm104, %v103
    %s119 = scalar_lea.vmem [#allocation0], 233
    %120 = vst.msk [vmem:[%s119] sm:$0x80] %vm104, %v103
    %s121 = scalar_lea.vmem [#allocation1], 24
    %v122 = vld [vmem:[%s121] sm:$0xff]
    %vm123 = vcmask 130048
    %s124 = scalar_lea.vmem [#allocation0], 24
    %125 = vst.msk [vmem:[%s124] sm:$0x1] %vm123, %v122
    %s126 = scalar_lea.vmem [#allocation0], 55
    %127 = vst.msk [vmem:[%s126] sm:$0x2] %vm123, %v122
    %s128 = scalar_lea.vmem [#allocation0], 86
    %129 = vst.msk [vmem:[%s128] sm:$0x4] %vm123, %v122
    %s130 = scalar_lea.vmem [#allocation0], 117
    %131 = vst.msk [vmem:[%s130] sm:$0x8] %vm123, %v122
    %s132 = scalar_lea.vmem [#allocation0], 148
    %133 = vst.msk [vmem:[%s132] sm:$0x10] %vm123, %v122
    %s134 = scalar_lea.vmem [#allocation0], 179
    %135 = vst.msk [vmem:[%s134] sm:$0x20] %vm123, %v122
    %s136 = scalar_lea.vmem [#allocation0], 210
    %137 = vst.msk [vmem:[%s136] sm:$0x40] %vm123, %v122
    %s138 = scalar_lea.vmem [#allocation0], 241
    %139 = vst.msk [vmem:[%s138] sm:$0x80] %vm123, %v122
    %v140 = vld [vmem:[#allocation1] ss:$8 sm:$0xf]
    %s141 = scalar_lea.vmem [#allocation1], 4294967265
    %v142 = vld [vmem:[%s141] ss:$8 sm:$0xf0]
    %vm143 = vcmask 1047556
    %v144 = vsel %vm143, %v142, %v140
    %145 = vrot.lane.b32.xlu0 %v144, 112
    %v146 = vpop.permute.xlu0 %145
    %vm147 = vcmask 130048
    %s148 = scalar_lea.vmem [#allocation0], 1
    %149 = vst.msk [vmem:[%s148] ss:$8 sm:$0xf] %vm147, %v146
    %s150 = scalar_lea.vmem [#allocation0], 1
    %151 = vst.msk [vmem:[%s150] ss:$8 sm:$0xf0] %vm147, %v146
    %s152 = scalar_lea.vmem [#allocation1], 2
    %v153 = vld [vmem:[%s152] ss:$8 sm:$0xf]
    %s154 = scalar_lea.vmem [#allocation1], 4294967267
    %v155 = vld [vmem:[%s154] ss:$8 sm:$0xf0]
    %vm156 = vcmask 1047556
    %v157 = vsel %vm156, %v155, %v153
    %158 = vrot.lane.b32.xlu0 %v157, 112
    %v159 = vpop.permute.xlu0 %158
    %vm160 = vcmask 130048
    %s161 = scalar_lea.vmem [#allocation0], 65
    %162 = vst.msk [vmem:[%s161] ss:$8 sm:$0xf] %vm160, %v159
    %s163 = scalar_lea.vmem [#allocation0], 65
    %164 = vst.msk [vmem:[%s163] ss:$8 sm:$0xf0] %vm160, %v159
    %s165 = scalar_lea.vmem [#allocation1], 4
    %v166 = vld [vmem:[%s165] ss:$8 sm:$0xf]
    %s167 = scalar_lea.vmem [#allocation1], 4294967269
    %v168 = vld [vmem:[%s167] ss:$8 sm:$0xf0]
    %vm169 = vcmask 1047556
    %v170 = vsel %vm169, %v168, %v166
    %171 = vrot.lane.b32.xlu0 %v170, 112
    %v172 = vpop.permute.xlu0 %171
    %vm173 = vcmask 130048
    %s174 = scalar_lea.vmem [#allocation0], 129
    %175 = vst.msk [vmem:[%s174] ss:$8 sm:$0xf] %vm173, %v172
    %s176 = scalar_lea.vmem [#allocation0], 129
    %177 = vst.msk [vmem:[%s176] ss:$8 sm:$0xf0] %vm173, %v172
    %s178 = scalar_lea.vmem [#allocation1], 6
    %v179 = vld [vmem:[%s178] ss:$8 sm:$0xf]
    %s180 = scalar_lea.vmem [#allocation1], 4294967271
    %v181 = vld [vmem:[%s180] ss:$8 sm:$0xf0]
    %vm182 = vcmask 1047556
    %v183 = vsel %vm182, %v181, %v179
    %184 = vrot.lane.b32.xlu0 %v183, 112
    %v185 = vpop.permute.xlu0 %184
    %vm186 = vcmask 130048
    %s187 = scalar_lea.vmem [#allocation0], 193
    %188 = vst.msk [vmem:[%s187] ss:$8 sm:$0xf] %vm186, %v185
    %s189 = scalar_lea.vmem [#allocation0], 193
    %190 = vst.msk [vmem:[%s189] ss:$8 sm:$0xf0] %vm186, %v185
    %v191 = vld [vmem:[#allocation1] ss:$8 sm:$0xf]
    %s192 = scalar_lea.vmem [#allocation1], 4294967265
    %v193 = vld [vmem:[%s192] ss:$8 sm:$0xf0]
    %vm194 = vcmask 1047556
    %v195 = vsel %vm194, %v193, %v191
    %196 = vrot.lane.b32.xlu0 %v195, 96
    %v197 = vpop.permute.xlu0 %196
    %vm198 = vcmask 130048
    %s199 = scalar_lea.vmem [#allocation0], 2
    %200 = vst.msk [vmem:[%s199] ss:$8 sm:$0xf] %vm198, %v197
    %s201 = scalar_lea.vmem [#allocation0], 2
    %202 = vst.msk [vmem:[%s201] ss:$8 sm:$0xf0] %vm198, %v197
    %s203 = scalar_lea.vmem [#allocation1], 2
    %v204 = vld [vmem:[%s203] ss:$8 sm:$0xf]
    %s205 = scalar_lea.vmem [#allocation1], 4294967267
    %v206 = vld [vmem:[%s205] ss:$8 sm:$0xf0]
    %vm207 = vcmask 1047556
    %v208 = vsel %vm207, %v206, %v204
    %209 = vrot.lane.b32.xlu0 %v208, 96
    %v210 = vpop.permute.xlu0 %209
    %vm211 = vcmask 130048
    %s212 = scalar_lea.vmem [#allocation0], 66
    %213 = vst.msk [vmem:[%s212] ss:$8 sm:$0xf] %vm211, %v210
    %s214 = scalar_lea.vmem [#allocation0], 66
    %215 = vst.msk [vmem:[%s214] ss:$8 sm:$0xf0] %vm211, %v210
    %s216 = scalar_lea.vmem [#allocation1], 4
    %v217 = vld [vmem:[%s216] ss:$8 sm:$0xf]
    %s218 = scalar_lea.vmem [#allocation1], 4294967269
    %v219 = vld [vmem:[%s218] ss:$8 sm:$0xf0]
    %vm220 = vcmask 1047556
    %v221 = vsel %vm220, %v219, %v217
    %222 = vrot.lane.b32.xlu0 %v221, 96
    %v223 = vpop.permute.xlu0 %222
    %vm224 = vcmask 130048
    %s225 = scalar_lea.vmem [#allocation0], 130
    %226 = vst.msk [vmem:[%s225] ss:$8 sm:$0xf] %vm224, %v223
    %s227 = scalar_lea.vmem [#allocation0], 130
    %228 = vst.msk [vmem:[%s227] ss:$8 sm:$0xf0] %vm224, %v223
    %s229 = scalar_lea.vmem [#allocation1], 6
    %v230 = vld [vmem:[%s229] ss:$8 sm:$0xf]
    %s231 = scalar_lea.vmem [#allocation1], 4294967271
    %v232 = vld [vmem:[%s231] ss:$8 sm:$0xf0]
    %vm233 = vcmask 1047556
    %v234 = vsel %vm233, %v232, %v230
    %235 = vrot.lane.b32.xlu0 %v234, 96
    %v236 = vpop.permute.xlu0 %235
    %vm237 = vcmask 130048
    %s238 = scalar_lea.vmem [#allocation0], 194
    %239 = vst.msk [vmem:[%s238] ss:$8 sm:$0xf] %vm237, %v236
    %s240 = scalar_lea.vmem [#allocation0], 194
    %241 = vst.msk [vmem:[%s240] ss:$8 sm:$0xf0] %vm237, %v236
    %v242 = vld [vmem:[#allocation1] ss:$8 sm:$0xf]
    %s243 = scalar_lea.vmem [#allocation1], 4294967265
    %v244 = vld [vmem:[%s243] ss:$8 sm:$0xf0]
    %vm245 = vcmask 1047556
    %v246 = vsel %vm245, %v244, %v242
    %247 = vrot.lane.b32.xlu0 %v246, 80
    %v248 = vpop.permute.xlu0 %247
    %vm249 = vcmask 130048
    %s250 = scalar_lea.vmem [#allocation0], 3
    %251 = vst.msk [vmem:[%s250] ss:$8 sm:$0xf] %vm249, %v248
    %s252 = scalar_lea.vmem [#allocation0], 3
    %253 = vst.msk [vmem:[%s252] ss:$8 sm:$0xf0] %vm249, %v248
    %s254 = scalar_lea.vmem [#allocation1], 2
    %v255 = vld [vmem:[%s254] ss:$8 sm:$0xf]
    %s256 = scalar_lea.vmem [#allocation1], 4294967267
    %v257 = vld [vmem:[%s256] ss:$8 sm:$0xf0]
    %vm258 = vcmask 1047556
    %v259 = vsel %vm258, %v257, %v255
    %260 = vrot.lane.b32.xlu0 %v259, 80
    %v261 = vpop.permute.xlu0 %260
    %vm262 = vcmask 130048
    %s263 = scalar_lea.vmem [#allocation0], 67
    %264 = vst.msk [vmem:[%s263] ss:$8 sm:$0xf] %vm262, %v261
    %s265 = scalar_lea.vmem [#allocation0], 67
    %266 = vst.msk [vmem:[%s265] ss:$8 sm:$0xf0] %vm262, %v261
    %s267 = scalar_lea.vmem [#allocation1], 4
    %v268 = vld [vmem:[%s267] ss:$8 sm:$0xf]
    %s269 = scalar_lea.vmem [#allocation1], 4294967269
    %v270 = vld [vmem:[%s269] ss:$8 sm:$0xf0]
    %vm271 = vcmask 1047556
    %v272 = vsel %vm271, %v270, %v268
    %273 = vrot.lane.b32.xlu0 %v272, 80
    %v274 = vpop.permute.xlu0 %273
    %vm275 = vcmask 130048
    %s276 = scalar_lea.vmem [#allocation0], 131
    %277 = vst.msk [vmem:[%s276] ss:$8 sm:$0xf] %vm275, %v274
    %s278 = scalar_lea.vmem [#allocation0], 131
    %279 = vst.msk [vmem:[%s278] ss:$8 sm:$0xf0] %vm275, %v274
    %s280 = scalar_lea.vmem [#allocation1], 6
    %v281 = vld [vmem:[%s280] ss:$8 sm:$0xf]
    %s282 = scalar_lea.vmem [#allocation1], 4294967271
    %v283 = vld [vmem:[%s282] ss:$8 sm:$0xf0]
    %vm284 = vcmask 1047556
    %v285 = vsel %vm284, %v283, %v281
    %286 = vrot.lane.b32.xlu0 %v285, 80
    %v287 = vpop.permute.xlu0 %286
    %vm288 = vcmask 130048
    %s289 = scalar_lea.vmem [#allocation0], 195
    %290 = vst.msk [vmem:[%s289] ss:$8 sm:$0xf] %vm288, %v287
    %s291 = scalar_lea.vmem [#allocation0], 195
    %292 = vst.msk [vmem:[%s291] ss:$8 sm:$0xf0] %vm288, %v287
    %v293 = vld [vmem:[#allocation1] ss:$8 sm:$0xf]
    %s294 = scalar_lea.vmem [#allocation1], 4294967265
    %v295 = vld [vmem:[%s294] ss:$8 sm:$0xf0]
    %vm296 = vcmask 1047556
    %v297 = vsel %vm296, %v295, %v293
    %298 = vrot.lane.b32.xlu0 %v297, 64
    %v299 = vpop.permute.xlu0 %298
    %vm300 = vcmask 130048
    %s301 = scalar_lea.vmem [#allocation0], 4
    %302 = vst.msk [vmem:[%s301] ss:$8 sm:$0xf] %vm300, %v299
    %s303 = scalar_lea.vmem [#allocation0], 4
    %304 = vst.msk [vmem:[%s303] ss:$8 sm:$0xf0] %vm300, %v299
    %s305 = scalar_lea.vmem [#allocation1], 2
    %v306 = vld [vmem:[%s305] ss:$8 sm:$0xf]
    %s307 = scalar_lea.vmem [#allocation1], 4294967267
    %v308 = vld [vmem:[%s307] ss:$8 sm:$0xf0]
    %vm309 = vcmask 1047556
    %v310 = vsel %vm309, %v308, %v306
    %311 = vrot.lane.b32.xlu0 %v310, 64
    %v312 = vpop.permute.xlu0 %311
    %vm313 = vcmask 130048
    %s314 = scalar_lea.vmem [#allocation0], 68
    %315 = vst.msk [vmem:[%s314] ss:$8 sm:$0xf] %vm313, %v312
    %s316 = scalar_lea.vmem [#allocation0], 68
    %317 = vst.msk [vmem:[%s316] ss:$8 sm:$0xf0] %vm313, %v312
    %s318 = scalar_lea.vmem [#allocation1], 4
    %v319 = vld [vmem:[%s318] ss:$8 sm:$0xf]
    %s320 = scalar_lea.vmem [#allocation1], 4294967269
    %v321 = vld [vmem:[%s320] ss:$8 sm:$0xf0]
    %vm322 = vcmask 1047556
    %v323 = vsel %vm322, %v321, %v319
    %324 = vrot.lane.b32.xlu0 %v323, 64
    %v325 = vpop.permute.xlu0 %324
    %vm326 = vcmask 130048
    %s327 = scalar_lea.vmem [#allocation0], 132
    %328 = vst.msk [vmem:[%s327] ss:$8 sm:$0xf] %vm326, %v325
    %s329 = scalar_lea.vmem [#allocation0], 132
    %330 = vst.msk [vmem:[%s329] ss:$8 sm:$0xf0] %vm326, %v325
    %s331 = scalar_lea.vmem [#allocation1], 6
    %v332 = vld [vmem:[%s331] ss:$8 sm:$0xf]
    %s333 = scalar_lea.vmem [#allocation1], 4294967271
    %v334 = vld [vmem:[%s333] ss:$8 sm:$0xf0]
    %vm335 = vcmask 1047556
    %v336 = vsel %vm335, %v334, %v332
    %337 = vrot.lane.b32.xlu0 %v336, 64
    %v338 = vpop.permute.xlu0 %337
    %vm339 = vcmask 130048
    %s340 = scalar_lea.vmem [#allocation0], 196
    %341 = vst.msk [vmem:[%s340] ss:$8 sm:$0xf] %vm339, %v338
    %s342 = scalar_lea.vmem [#allocation0], 196
    %343 = vst.msk [vmem:[%s342] ss:$8 sm:$0xf0] %vm339, %v338
    %v344 = vld [vmem:[#allocation1] ss:$8 sm:$0xf]
    %s345 = scalar_lea.vmem [#allocation1], 4294967265
    %v346 = vld [vmem:[%s345] ss:$8 sm:$0xf0]
    %vm347 = vcmask 1047556
    %v348 = vsel %vm347, %v346, %v344
    %349 = vrot.lane.b32.xlu0 %v348, 48
    %v350 = vpop.permute.xlu0 %349
    %vm351 = vcmask 130048
    %s352 = scalar_lea.vmem [#allocation0], 5
    %353 = vst.msk [vmem:[%s352] ss:$8 sm:$0xf] %vm351, %v350
    %s354 = scalar_lea.vmem [#allocation0], 5
    %355 = vst.msk [vmem:[%s354] ss:$8 sm:$0xf0] %vm351, %v350
    %s356 = scalar_lea.vmem [#allocation1], 2
    %v357 = vld [vmem:[%s356] ss:$8 sm:$0xf]
    %s358 = scalar_lea.vmem [#allocation1], 4294967267
    %v359 = vld [vmem:[%s358] ss:$8 sm:$0xf0]
    %vm360 = vcmask 1047556
    %v361 = vsel %vm360, %v359, %v357
    %362 = vrot.lane.b32.xlu0 %v361, 48
    %v363 = vpop.permute.xlu0 %362
    %vm364 = vcmask 130048
    %s365 = scalar_lea.vmem [#allocation0], 69
    %366 = vst.msk [vmem:[%s365] ss:$8 sm:$0xf] %vm364, %v363
    %s367 = scalar_lea.vmem [#allocation0], 69
    %368 = vst.msk [vmem:[%s367] ss:$8 sm:$0xf0] %vm364, %v363
    %s369 = scalar_lea.vmem [#allocation1], 4
    %v370 = vld [vmem:[%s369] ss:$8 sm:$0xf]
    %s371 = scalar_lea.vmem [#allocation1], 4294967269
    %v372 = vld [vmem:[%s371] ss:$8 sm:$0xf0]
    %vm373 = vcmask 1047556
    %v374 = vsel %vm373, %v372, %v370
    %375 = vrot.lane.b32.xlu0 %v374, 48
    %v376 = vpop.permute.xlu0 %375
    %vm377 = vcmask 130048
    %s378 = scalar_lea.vmem [#allocation0], 133
    %379 = vst.msk [vmem:[%s378] ss:$8 sm:$0xf] %vm377, %v376
    %s380 = scalar_lea.vmem [#allocation0], 133
    %381 = vst.msk [vmem:[%s380] ss:$8 sm:$0xf0] %vm377, %v376
    %s382 = scalar_lea.vmem [#allocation1], 6
    %v383 = vld [vmem:[%s382] ss:$8 sm:$0xf]
    %s384 = scalar_lea.vmem [#allocation1], 4294967271
    %v385 = vld [vmem:[%s384] ss:$8 sm:$0xf0]
    %vm386 = vcmask 1047556
    %v387 = vsel %vm386, %v385, %v383
    %388 = vrot.lane.b32.xlu0 %v387, 48
    %v389 = vpop.permute.xlu0 %388
    %vm390 = vcmask 130048
    %s391 = scalar_lea.vmem [#allocation0], 197
    %392 = vst.msk [vmem:[%s391] ss:$8 sm:$0xf] %vm390, %v389
    %s393 = scalar_lea.vmem [#allocation0], 197
    %394 = vst.msk [vmem:[%s393] ss:$8 sm:$0xf0] %vm390, %v389
    %v395 = vld [vmem:[#allocation1] ss:$8 sm:$0xf]
    %s396 = scalar_lea.vmem [#allocation1], 4294967265
    %v397 = vld [vmem:[%s396] ss:$8 sm:$0xf0]
    %vm398 = vcmask 1047556
    %v399 = vsel %vm398, %v397, %v395
    %400 = vrot.lane.b32.xlu0 %v399, 32
    %v401 = vpop.permute.xlu0 %400
    %vm402 = vcmask 130048
    %s403 = scalar_lea.vmem [#allocation0], 6
    %404 = vst.msk [vmem:[%s403] ss:$8 sm:$0xf] %vm402, %v401
    %s405 = scalar_lea.vmem [#allocation0], 6
    %406 = vst.msk [vmem:[%s405] ss:$8 sm:$0xf0] %vm402, %v401
    %s407 = scalar_lea.vmem [#allocation1], 2
    %v408 = vld [vmem:[%s407] ss:$8 sm:$0xf]
    %s409 = scalar_lea.vmem [#allocation1], 4294967267
    %v410 = vld [vmem:[%s409] ss:$8 sm:$0xf0]
    %vm411 = vcmask 1047556
    %v412 = vsel %vm411, %v410, %v408
    %413 = vrot.lane.b32.xlu0 %v412, 32
    %v414 = vpop.permute.xlu0 %413
    %vm415 = vcmask 130048
    %s416 = scalar_lea.vmem [#allocation0], 70
    %417 = vst.msk [vmem:[%s416] ss:$8 sm:$0xf] %vm415, %v414
    %s418 = scalar_lea.vmem [#allocation0], 70
    %419 = vst.msk [vmem:[%s418] ss:$8 sm:$0xf0] %vm415, %v414
    %s420 = scalar_lea.vmem [#allocation1], 4
    %v421 = vld [vmem:[%s420] ss:$8 sm:$0xf]
    %s422 = scalar_lea.vmem [#allocation1], 4294967269
    %v423 = vld [vmem:[%s422] ss:$8 sm:$0xf0]
    %vm424 = vcmask 1047556
    %v425 = vsel %vm424, %v423, %v421
    %426 = vrot.lane.b32.xlu0 %v425, 32
    %v427 = vpop.permute.xlu0 %426
    %vm428 = vcmask 130048
    %s429 = scalar_lea.vmem [#allocation0], 134
    %430 = vst.msk [vmem:[%s429] ss:$8 sm:$0xf] %vm428, %v427
    %s431 = scalar_lea.vmem [#allocation0], 134
    %432 = vst.msk [vmem:[%s431] ss:$8 sm:$0xf0] %vm428, %v427
    %s433 = scalar_lea.vmem [#allocation1], 6
    %v434 = vld [vmem:[%s433] ss:$8 sm:$0xf]
    %s435 = scalar_lea.vmem [#allocation1], 4294967271
    %v436 = vld [vmem:[%s435] ss:$8 sm:$0xf0]
    %vm437 = vcmask 1047556
    %v438 = vsel %vm437, %v436, %v434
    %439 = vrot.lane.b32.xlu0 %v438, 32
    %v440 = vpop.permute.xlu0 %439
    %vm441 = vcmask 130048
    %s442 = scalar_lea.vmem [#allocation0], 198
    %443 = vst.msk [vmem:[%s442] ss:$8 sm:$0xf] %vm441, %v440
    %s444 = scalar_lea.vmem [#allocation0], 198
    %445 = vst.msk [vmem:[%s444] ss:$8 sm:$0xf0] %vm441, %v440
    %v446 = vld [vmem:[#allocation1] ss:$8 sm:$0xf]
    %s447 = scalar_lea.vmem [#allocation1], 4294967265
    %v448 = vld [vmem:[%s447] ss:$8 sm:$0xf0]
    %vm449 = vcmask 1047556
    %v450 = vsel %vm449, %v448, %v446
    %451 = vrot.lane.b32.xlu0 %v450, 16
    %v452 = vpop.permute.xlu0 %451
    %vm453 = vcmask 130048
    %s454 = scalar_lea.vmem [#allocation0], 7
    %455 = vst.msk [vmem:[%s454] ss:$8 sm:$0xf] %vm453, %v452
    %s456 = scalar_lea.vmem [#allocation0], 7
    %457 = vst.msk [vmem:[%s456] ss:$8 sm:$0xf0] %vm453, %v452
    %s458 = scalar_lea.vmem [#allocation1], 2
    %v459 = vld [vmem:[%s458] ss:$8 sm:$0xf]
    %s460 = scalar_lea.vmem [#allocation1], 4294967267
    %v461 = vld [vmem:[%s460] ss:$8 sm:$0xf0]
    %vm462 = vcmask 1047556
    %v463 = vsel %vm462, %v461, %v459
    %464 = vrot.lane.b32.xlu0 %v463, 16
    %v465 = vpop.permute.xlu0 %464
    %vm466 = vcmask 130048
    %s467 = scalar_lea.vmem [#allocation0], 71
    %468 = vst.msk [vmem:[%s467] ss:$8 sm:$0xf] %vm466, %v465
    %s469 = scalar_lea.vmem [#allocation0], 71
    %470 = vst.msk [vmem:[%s469] ss:$8 sm:$0xf0] %vm466, %v465
    %s471 = scalar_lea.vmem [#allocation1], 4
    %v472 = vld [vmem:[%s471] ss:$8 sm:$0xf]
    %s473 = scalar_lea.vmem [#allocation1], 4294967269
    %v474 = vld [vmem:[%s473] ss:$8 sm:$0xf0]
    %vm475 = vcmask 1047556
    %v476 = vsel %vm475, %v474, %v472
    %477 = vrot.lane.b32.xlu0 %v476, 16
    %v478 = vpop.permute.xlu0 %477
    %vm479 = vcmask 130048
    %s480 = scalar_lea.vmem [#allocation0], 135
    %481 = vst.msk [vmem:[%s480] ss:$8 sm:$0xf] %vm479, %v478
    %s482 = scalar_lea.vmem [#allocation0], 135
    %483 = vst.msk [vmem:[%s482] ss:$8 sm:$0xf0] %vm479, %v478
    %s484 = scalar_lea.vmem [#allocation1], 6
    %v485 = vld [vmem:[%s484] ss:$8 sm:$0xf]
    %s486 = scalar_lea.vmem [#allocation1], 4294967271
    %v487 = vld [vmem:[%s486] ss:$8 sm:$0xf0]
    %vm488 = vcmask 1047556
    %v489 = vsel %vm488, %v487, %v485
    %490 = vrot.lane.b32.xlu0 %v489, 16
    %v491 = vpop.permute.xlu0 %490
    %vm492 = vcmask 130048
    %s493 = scalar_lea.vmem [#allocation0], 199
    %494 = vst.msk [vmem:[%s493] ss:$8 sm:$0xf] %vm492, %v491
    %s495 = scalar_lea.vmem [#allocation0], 199
    %496 = vst.msk [vmem:[%s495] ss:$8 sm:$0xf0] %vm492, %v491
    %s498 = smul.u32 4, 2
    %s499 = sshll.u32 1, %s498
    %s500 = ssub.s32 %s499, 1
    %s501 = sshrl.u32 %s498, 1
    %v502 = vld [vmem:[#allocation0] sm:%s500]
    %v503 = vpack.c.bf16 0.0, %v502
    %s504 = sshll.u32 1, %s501
    %s505 = ssub.s32 %s504, 1
    %506 = vst [vmem:[%s1] sm:%s505] %v503
    %s507 = scalar_lea.vmem [#allocation0], 8
    %v508 = vld [vmem:[%s507] sm:%s500]
    %v509 = vpack.c.bf16 0.0, %v508
    %s510 = sshll.u32 1, %s501
    %s511 = ssub.s32 %s510, 1
    %s512 = scalar_lea.vmem %s1, 4
    %513 = vst [vmem:[%s512] sm:%s511] %v509
    %s514 = scalar_lea.vmem [#allocation0], 16
    %v515 = vld [vmem:[%s514] sm:%s500]
    %v516 = vpack.c.bf16 0.0, %v515
    %s517 = sshll.u32 1, %s501
    %s518 = ssub.s32 %s517, 1
    %s519 = smul.addr 4, 2
    %s520 = scalar_lea.vmem %s1, %s519
    %521 = vst [vmem:[%s520] sm:%s518] %v516
    %s522 = scalar_lea.vmem [#allocation0], 24
    %v523 = vld [vmem:[%s522] sm:%s500]
    %v524 = vpack.c.bf16 0.0, %v523
    %s525 = sshll.u32 1, %s501
    %s526 = ssub.s32 %s525, 1
    %s527 = smul.addr 4, 3
    %s528 = scalar_lea.vmem %s1, %s527
    %529 = vst [vmem:[%s528] sm:%s526] %v524
    %s530 = scalar_lea.vmem [#allocation0], 32
    %v531 = vld [vmem:[%s530] sm:%s500]
    %v532 = vpack.c.bf16 0.0, %v531
    %s533 = sshll.u32 1, %s501
    %s534 = ssub.s32 %s533, 1
    %s535 = smul.addr 4, 4
    %s536 = scalar_lea.vmem %s1, %s535
    %537 = vst [vmem:[%s536] sm:%s534] %v532
    %s538 = scalar_lea.vmem [#allocation0], 40
    %v539 = vld [vmem:[%s538] sm:%s500]
    %v540 = vpack.c.bf16 0.0, %v539
    %s541 = sshll.u32 1, %s501
    %s542 = ssub.s32 %s541, 1
    %s543 = smul.addr 4, 5
    %s544 = scalar_lea.vmem %s1, %s543
    %545 = vst [vmem:[%s544] sm:%s542] %v540
    %s546 = scalar_lea.vmem [#allocation0], 48
    %v547 = vld [vmem:[%s546] sm:%s500]
    %v548 = vpack.c.bf16 0.0, %v547
    %s549 = sshll.u32 1, %s501
    %s550 = ssub.s32 %s549, 1
    %s551 = smul.addr 4, 6
    %s552 = scalar_lea.vmem %s1, %s551
    %553 = vst [vmem:[%s552] sm:%s550] %v548
    %s554 = scalar_lea.vmem [#allocation0], 56
    %v555 = vld [vmem:[%s554] sm:%s500]
    %v556 = vpack.c.bf16 0.0, %v555
    %s557 = sshll.u32 1, %s501
    %s558 = ssub.s32 %s557, 1
    %s559 = smul.addr 4, 7
    %s560 = scalar_lea.vmem %s1, %s559
    %561 = vst [vmem:[%s560] sm:%s558] %v556
    %s562 = scalar_lea.vmem [#allocation0], 64
    %v563 = vld [vmem:[%s562] sm:%s500]
    %v564 = vpack.c.bf16 0.0, %v563
    %s565 = sshll.u32 1, %s501
    %s566 = ssub.s32 %s565, 1
    %s567 = smul.addr 4, 8
    %s568 = scalar_lea.vmem %s1, %s567
    %569 = vst [vmem:[%s568] sm:%s566] %v564
    %s570 = scalar_lea.vmem [#allocation0], 72
    %v571 = vld [vmem:[%s570] sm:%s500]
    %v572 = vpack.c.bf16 0.0, %v571
    %s573 = sshll.u32 1, %s501
    %s574 = ssub.s32 %s573, 1
    %s575 = smul.addr 4, 9
    %s576 = scalar_lea.vmem %s1, %s575
    %577 = vst [vmem:[%s576] sm:%s574] %v572
    %s578 = scalar_lea.vmem [#allocation0], 80
    %v579 = vld [vmem:[%s578] sm:%s500]
    %v580 = vpack.c.bf16 0.0, %v579
    %s581 = sshll.u32 1, %s501
    %s582 = ssub.s32 %s581, 1
    %s583 = smul.addr 4, 10
    %s584 = scalar_lea.vmem %s1, %s583
    %585 = vst [vmem:[%s584] sm:%s582] %v580
    %s586 = scalar_lea.vmem [#allocation0], 88
    %v587 = vld [vmem:[%s586] sm:%s500]
    %v588 = vpack.c.bf16 0.0, %v587
    %s589 = sshll.u32 1, %s501
    %s590 = ssub.s32 %s589, 1
    %s591 = smul.addr 4, 11
    %s592 = scalar_lea.vmem %s1, %s591
    %593 = vst [vmem:[%s592] sm:%s590] %v588
    %s594 = scalar_lea.vmem [#allocation0], 96
    %v595 = vld [vmem:[%s594] sm:%s500]
    %v596 = vpack.c.bf16 0.0, %v595
    %s597 = sshll.u32 1, %s501
    %s598 = ssub.s32 %s597, 1
    %s599 = smul.addr 4, 12
    %s600 = scalar_lea.vmem %s1, %s599
    %601 = vst [vmem:[%s600] sm:%s598] %v596
    %s602 = scalar_lea.vmem [#allocation0], 104
    %v603 = vld [vmem:[%s602] sm:%s500]
    %v604 = vpack.c.bf16 0.0, %v603
    %s605 = sshll.u32 1, %s501
    %s606 = ssub.s32 %s605, 1
    %s607 = smul.addr 4, 13
    %s608 = scalar_lea.vmem %s1, %s607
    %609 = vst [vmem:[%s608] sm:%s606] %v604
    %s610 = scalar_lea.vmem [#allocation0], 112
    %v611 = vld [vmem:[%s610] sm:%s500]
    %v612 = vpack.c.bf16 0.0, %v611
    %s613 = sshll.u32 1, %s501
    %s614 = ssub.s32 %s613, 1
    %s615 = smul.addr 4, 14
    %s616 = scalar_lea.vmem %s1, %s615
    %617 = vst [vmem:[%s616] sm:%s614] %v612
    %s618 = scalar_lea.vmem [#allocation0], 120
    %v619 = vld [vmem:[%s618] sm:%s500]
    %v620 = vpack.c.bf16 0.0, %v619
    %s621 = sshll.u32 1, %s501
    %s622 = ssub.s32 %s621, 1
    %s623 = smul.addr 4, 15
    %s624 = scalar_lea.vmem %s1, %s623
    %625 = vst [vmem:[%s624] sm:%s622] %v620
    %s626 = scalar_lea.vmem [#allocation0], 128
    %v627 = vld [vmem:[%s626] sm:%s500]
    %v628 = vpack.c.bf16 0.0, %v627
    %s629 = sshll.u32 1, %s501
    %s630 = ssub.s32 %s629, 1
    %s631 = smul.addr 4, 16
    %s632 = scalar_lea.vmem %s1, %s631
    %633 = vst [vmem:[%s632] sm:%s630] %v628
    %s634 = scalar_lea.vmem [#allocation0], 136
    %v635 = vld [vmem:[%s634] sm:%s500]
    %v636 = vpack.c.bf16 0.0, %v635
    %s637 = sshll.u32 1, %s501
    %s638 = ssub.s32 %s637, 1
    %s639 = smul.addr 4, 17
    %s640 = scalar_lea.vmem %s1, %s639
    %641 = vst [vmem:[%s640] sm:%s638] %v636
    %s642 = scalar_lea.vmem [#allocation0], 144
    %v643 = vld [vmem:[%s642] sm:%s500]
    %v644 = vpack.c.bf16 0.0, %v643
    %s645 = sshll.u32 1, %s501
    %s646 = ssub.s32 %s645, 1
    %s647 = smul.addr 4, 18
    %s648 = scalar_lea.vmem %s1, %s647
    %649 = vst [vmem:[%s648] sm:%s646] %v644
    %s650 = scalar_lea.vmem [#allocation0], 152
    %v651 = vld [vmem:[%s650] sm:%s500]
    %v652 = vpack.c.bf16 0.0, %v651
    %s653 = sshll.u32 1, %s501
    %s654 = ssub.s32 %s653, 1
    %s655 = smul.addr 4, 19
    %s656 = scalar_lea.vmem %s1, %s655
    %657 = vst [vmem:[%s656] sm:%s654] %v652
    %s658 = scalar_lea.vmem [#allocation0], 160
    %v659 = vld [vmem:[%s658] sm:%s500]
    %v660 = vpack.c.bf16 0.0, %v659
    %s661 = sshll.u32 1, %s501
    %s662 = ssub.s32 %s661, 1
    %s663 = smul.addr 4, 20
    %s664 = scalar_lea.vmem %s1, %s663
    %665 = vst [vmem:[%s664] sm:%s662] %v660
    %s666 = scalar_lea.vmem [#allocation0], 168
    %v667 = vld [vmem:[%s666] sm:%s500]
    %v668 = vpack.c.bf16 0.0, %v667
    %s669 = sshll.u32 1, %s501
    %s670 = ssub.s32 %s669, 1
    %s671 = smul.addr 4, 21
    %s672 = scalar_lea.vmem %s1, %s671
    %673 = vst [vmem:[%s672] sm:%s670] %v668
    %s674 = scalar_lea.vmem [#allocation0], 176
    %v675 = vld [vmem:[%s674] sm:%s500]
    %v676 = vpack.c.bf16 0.0, %v675
    %s677 = sshll.u32 1, %s501
    %s678 = ssub.s32 %s677, 1
    %s679 = smul.addr 4, 22
    %s680 = scalar_lea.vmem %s1, %s679
    %681 = vst [vmem:[%s680] sm:%s678] %v676
    %s682 = scalar_lea.vmem [#allocation0], 184
    %v683 = vld [vmem:[%s682] sm:%s500]
    %v684 = vpack.c.bf16 0.0, %v683
    %s685 = sshll.u32 1, %s501
    %s686 = ssub.s32 %s685, 1
    %s687 = smul.addr 4, 23
    %s688 = scalar_lea.vmem %s1, %s687
    %689 = vst [vmem:[%s688] sm:%s686] %v684
    %s690 = scalar_lea.vmem [#allocation0], 192
    %v691 = vld [vmem:[%s690] sm:%s500]
    %v692 = vpack.c.bf16 0.0, %v691
    %s693 = sshll.u32 1, %s501
    %s694 = ssub.s32 %s693, 1
    %s695 = smul.addr 4, 24
    %s696 = scalar_lea.vmem %s1, %s695
    %697 = vst [vmem:[%s696] sm:%s694] %v692
    %s698 = scalar_lea.vmem [#allocation0], 200
    %v699 = vld [vmem:[%s698] sm:%s500]
    %v700 = vpack.c.bf16 0.0, %v699
    %s701 = sshll.u32 1, %s501
    %s702 = ssub.s32 %s701, 1
    %s703 = smul.addr 4, 25
    %s704 = scalar_lea.vmem %s1, %s703
    %705 = vst [vmem:[%s704] sm:%s702] %v700
    %s706 = scalar_lea.vmem [#allocation0], 208
    %v707 = vld [vmem:[%s706] sm:%s500]
    %v708 = vpack.c.bf16 0.0, %v707
    %s709 = sshll.u32 1, %s501
    %s710 = ssub.s32 %s709, 1
    %s711 = smul.addr 4, 26
    %s712 = scalar_lea.vmem %s1, %s711
    %713 = vst [vmem:[%s712] sm:%s710] %v708
    %s714 = scalar_lea.vmem [#allocation0], 216
    %v715 = vld [vmem:[%s714] sm:%s500]
    %v716 = vpack.c.bf16 0.0, %v715
    %s717 = sshll.u32 1, %s501
    %s718 = ssub.s32 %s717, 1
    %s719 = smul.addr 4, 27
    %s720 = scalar_lea.vmem %s1, %s719
    %721 = vst [vmem:[%s720] sm:%s718] %v716
    %s722 = scalar_lea.vmem [#allocation0], 224
    %v723 = vld [vmem:[%s722] sm:%s500]
    %v724 = vpack.c.bf16 0.0, %v723
    %s725 = sshll.u32 1, %s501
    %s726 = ssub.s32 %s725, 1
    %s727 = smul.addr 4, 28
    %s728 = scalar_lea.vmem %s1, %s727
    %729 = vst [vmem:[%s728] sm:%s726] %v724
    %s730 = scalar_lea.vmem [#allocation0], 232
    %v731 = vld [vmem:[%s730] sm:%s500]
    %v732 = vpack.c.bf16 0.0, %v731
    %s733 = sshll.u32 1, %s501
    %s734 = ssub.s32 %s733, 1
    %s735 = smul.addr 4, 29
    %s736 = scalar_lea.vmem %s1, %s735
    %737 = vst [vmem:[%s736] sm:%s734] %v732
    %s738 = scalar_lea.vmem [#allocation0], 240
    %v739 = vld [vmem:[%s738] sm:%s500]
    %v740 = vpack.c.bf16 0.0, %v739
    %s741 = sshll.u32 1, %s501
    %s742 = ssub.s32 %s741, 1
    %s743 = smul.addr 4, 30
    %s744 = scalar_lea.vmem %s1, %s743
    %745 = vst [vmem:[%s744] sm:%s742] %v740
    %s746 = scalar_lea.vmem [#allocation0], 248
    %v747 = vld [vmem:[%s746] sm:%s500]
    %v748 = vpack.c.bf16 0.0, %v747
    %s749 = sshll.u32 1, %s501
    %s750 = ssub.s32 %s749, 1
    %s751 = smul.addr 4, 31
    %s752 = scalar_lea.vmem %s1, %s751
    %753 = vst [vmem:[%s752] sm:%s750] %v748

// kernel: stfpm_forward.3
$region0: #{stfpm_forward.3}
  #allocation0 [shape = 'u32[]', space=smem, size = 0x4, offset = 0x4, fixed_abs, tag = 'smem constant byte address 0x4 - core index']
  #allocation1 [shape = 'u32[144,128]{1,0:T(1,128)}', space=vmem, size = 0x12000, scoped, tag = 'internal scratch']
  %s0 = inlined_call_operand.vmem [shape: bf16[1,32,512], index: 0, kind: input, shape index: {}]
  %s1 = inlined_call_operand.vmem [shape: bf16[1,16,32], index: 1, kind: input, shape index: {}]
  %s2 = inlined_call_operand.vmem [shape: bf16[1,16,512], index: 2, kind: output, shape index: {}]
  %s3 = sld [smem:[#allocation0]]
  $region113: #{stfpm_forward.3} parent=0
    _
  %s5 = ssub.s32 1, %s3
  %s6 = scalar_select 0, %s5, %s3
  $region1: #{stfpm_forward.3} parent=0
    #allocation2 [shape = 'u8[32768]{0}', space=vmem, size = 0x8000, scoped, tag = 'input window, operand 0']
    #allocation3 [shape = 'u8[16384]{0}', space=vmem, size = 0x4000, scoped, tag = 'output window, operand 0']
    loop: start=0, step=1, limit=4
    $region2: #{stfpm_forward.3} parent=1 // loop_pre_header
      _
    $region3: #{stfpm_forward.3} parent=1 // loop_header
      %s8 = sphi 0, %s12
      %p9 = scmp.ge.s32.totalorder %s8, 4
      %s15 = sphi 0, %s27
      %s16 = sphi 0, %s23
      %s17 = sphi 0, %s15
      %s18 = sphi 0, %s16
      %s19 = sphi 0, %s17
      %s20 = sphi 0, %s18
      %s32 = sphi 0, %s34
      %s35 = sphi 0, %s32
      %s36 = sphi 0, %s35
      %s52 = sphi 0, %s36
      %s58 = sphi 0, %s60
      %s61 = sphi 0, %s58
      %s62 = sphi 0, %s61
      %s78 = sphi 0, %s62
      %s86 = sphi 0, %s88
      %s89 = sphi 0, %s86
      %s90 = sphi 0, %s89
      %s106 = sphi 0, %s90
    $region4: #{stfpm_forward.3} parent=1 // loop_header_branch
      %11 = sbr.rel (%p9) target = $region8
    $region5: #{stfpm_forward.3} parent=1 // loop_body
      %s13 = ssub.s32 %s8, 1
      %s14 = ssub.s32 %s8, 2
      %s21 = sadd.s32 1, %s16
      %p22 = scmp.ge.s32.totalorder %s21, 2
      %s23 = scalar_select %p22, 0, %s21
      %s24 = sadd.s32 1, %s15
      %s25 = scalar_select %p22, %s24, %s15
      %p26 = scmp.ge.s32.totalorder %s25, 1
      %s27 = scalar_select %p26, 0, %s25
      %s28 = ssub.s32 %s15, %s27
      %s29 = ssub.s32 %s16, %s23
      %s30 = sor.u32 %s28, %s29
      %p31 = scmp.eq.s32.totalorder %s30, 0
      %s33 = sadd.s32 %s32, 1
      %s34 = scalar_select %p31, %s32, %s33
      %p37 = pneg %p31
      %p38 = scmp.eq.s32.totalorder %s8, 1
      %p39 = por %p37, %p38
      %p40 = scmp.ne.s32.totalorder %s32, %s35
      %p41 = scmp.eq.s32.totalorder %s8, 0
      %p42 = por %p40, %p41
      %p43 = scmp.ne.s32.totalorder %s32, %s35
      %p44 = scmp.eq.s32.totalorder %s13, 1
      %p45 = por %p43, %p44
      %p46 = scmp.ne.s32.totalorder %s35, %s36
      %p47 = scmp.eq.s32.totalorder %s13, 0
      %p48 = por %p46, %p47
      %p49 = scmp.ne.s32.totalorder %s35, %s36
      %p50 = scmp.eq.s32.totalorder %s14, 1
      %p51 = por %p49, %p50
      %p53 = scmp.ne.s32.totalorder %s36, %s52
      %p54 = scmp.eq.s32.totalorder %s14, 0
      %p55 = por %p53, %p54
      %s56 = ssub.s32 %s15, %s27
      %p57 = scmp.eq.s32.totalorder %s56, 0
      %s59 = sadd.s32 %s58, 1
      %s60 = scalar_select %p57, %s58, %s59
      %p63 = pneg %p57
      %p64 = scmp.eq.s32.totalorder %s8, 1
      %p65 = por %p63, %p64
      %p66 = scmp.ne.s32.totalorder %s58, %s61
      %p67 = scmp.eq.s32.totalorder %s8, 0
      %p68 = por %p66, %p67
      %p69 = scmp.ne.s32.totalorder %s58, %s61
      %p70 = scmp.eq.s32.totalorder %s13, 1
      %p71 = por %p69, %p70
      %p72 = scmp.ne.s32.totalorder %s61, %s62
      %p73 = scmp.eq.s32.totalorder %s13, 0
      %p74 = por %p72, %p73
      %p75 = scmp.ne.s32.totalorder %s61, %s62
      %p76 = scmp.eq.s32.totalorder %s14, 1
      %p77 = por %p75, %p76
      %p79 = scmp.ne.s32.totalorder %s62, %s78
      %p80 = scmp.eq.s32.totalorder %s14, 0
      %p81 = por %p79, %p80
      %s82 = ssub.s32 %s15, %s27
      %s83 = ssub.s32 %s16, %s23
      %s84 = sor.u32 %s82, %s83
      %p85 = scmp.eq.s32.totalorder %s84, 0
      %s87 = sadd.s32 %s86, 1
      %s88 = scalar_select %p85, %s86, %s87
      %p91 = pneg %p85
      %p92 = scmp.eq.s32.totalorder %s8, 1
      %p93 = por %p91, %p92
      %p94 = scmp.ne.s32.totalorder %s86, %s89
      %p95 = scmp.eq.s32.totalorder %s8, 0
      %p96 = por %p94, %p95
      %p97 = scmp.ne.s32.totalorder %s86, %s89
      %p98 = scmp.eq.s32.totalorder %s13, 1
      %p99 = por %p97, %p98
      %p100 = scmp.ne.s32.totalorder %s89, %s90
      %p101 = scmp.eq.s32.totalorder %s13, 0
      %p102 = por %p100, %p101
      %p103 = scmp.ne.s32.totalorder %s89, %s90
      %p104 = scmp.eq.s32.totalorder %s14, 1
      %p105 = por %p103, %p104
      %p107 = scmp.ne.s32.totalorder %s90, %s106
      %p108 = scmp.eq.s32.totalorder %s14, 0
      %p109 = por %p107, %p108
      %p110 = scmp.le.s32.totalorder 1, %s8
      %p111 = scmp.lt.s32.totalorder %s8, 3
      %p112 = pnand %p110, %p111
      %p113 = pneg %p112
      // Predicated region
      $region9: #{stfpm_forward.3} parent=5 // pred_check
        _
      $region10: #{stfpm_forward.3} parent=5 // pred_check_branch
        %115 = sbr.rel (%p112) target = $region12
      $region11: #{stfpm_forward.3} parent=5 // pred_region
        %s116 = ssub.s32 %s8, 1
        // Predicated region
        $region13: #{stfpm_forward.3} parent=11 // pred_check
          %p117 = pneg %p74
        $region14: #{stfpm_forward.3} parent=11 // pred_check_branch
          %119 = sbr.rel (%p117) target = $region16
        $region15: #{stfpm_forward.3} parent=11 // pred_region
          %p120 = scmp.lt.s32.totalorder %s17, 0
          %s121 = scalar_select %p120, %s17, 0
          %s122 = smul.addr %s121, 2
          %s123 = smul.addr %s122, 4
          %s124 = scalar_lea.vmem %s1, %s123
        $region16: #{stfpm_forward.3} parent=11 // pred_fallthru
          _
      $region12: #{stfpm_forward.3} parent=5 // pred_fallthru
        _
      %p125 = scmp.lt.s32.totalorder %s8, 2
      // Predicated region
      $region17: #{stfpm_forward.3} parent=5 // pred_check
        %p126 = pneg %p125
      $region18: #{stfpm_forward.3} parent=5 // pred_check_branch
        %128 = sbr.rel (%p126) target = $region20
      $region19: #{stfpm_forward.3} parent=5 // pred_region
        // Predicated region
        $region21: #{stfpm_forward.3} parent=19 // pred_check
          %p129 = pneg %p42
        $region22: #{stfpm_forward.3} parent=19 // pred_check_branch
          %131 = sbr.rel (%p129) target = $region24
        $region23: #{stfpm_forward.3} parent=19 // pred_region
          %s132 = sand.u32 %s32, 1
          %s133 = sand.u32 %s32, 1
          %s134 = smul.addr %s133, 32
          %s135 = scalar_lea.vmem [#allocation2], %s134
          %s136 = smul.u32 2, %s16
          %s137 = smul.addr %s15, 16
          %s138 = sadd.s32 %s136, %s137
          %s139 = smul.addr %s138, 4
          %s140 = scalar_lea.vmem %s0, %s139
          // Predicated region
          $region25: #{stfpm_forward.3} parent=23 // pred_check
            _
          $region26: #{stfpm_forward.3} parent=23 // pred_check_branch
            %142 = sbr.rel (0) target = $region28
          $region27: #{stfpm_forward.3} parent=23 // pred_region
            // Predicated region
            $region29: #{stfpm_forward.3} parent=27 // pred_check
              _
            $region30: #{stfpm_forward.3} parent=27 // pred_check_branch
              %144 = sbr.rel (0) target = $region32
            $region31: #{stfpm_forward.3} parent=27 // pred_region
              // Predicated region
              $region44: #{stfpm_forward.3} parent=31 // pred_check
                _
              $region45: #{stfpm_forward.3} parent=31 // pred_check_branch
                %166 = sbr.rel (0) target = $region47
              $region46: #{stfpm_forward.3} parent=31 // pred_region
                loop: start=0, step=1, limit=1
                $region48: #{stfpm_forward.3} parent=46 // loop_pre_header
                  _
                $region49: #{stfpm_forward.3} parent=46 // loop_header
                  %s168 = sphi 0, %s172
                  %p169 = scmp.ge.s32.totalorder %s168, 1
                  %s173 = sphi %s140, %s140
                  %s174 = sphi %s135, %s135
                $region50: #{stfpm_forward.3} parent=46 // loop_header_branch
                  %171 = sbr.rel (%p169) target = $region54
                $region51: #{stfpm_forward.3} parent=46 // loop_body
                  %v175 = vld [vmem:[%s173] sm:$0xff]
                  %176 = vst [vmem:[%s174] sm:$0xff] %v175
                  %v177 = vld [vmem:[%s173 + $0x10] sm:$0xff]
                  %178 = vst [vmem:[%s174 + $0x8] sm:$0xff] %v177
                  %v179 = vld [vmem:[%s173 + $0x20] sm:$0xff]
                  %180 = vst [vmem:[%s174 + $0x10] sm:$0xff] %v179
                  %v181 = vld [vmem:[%s173 + $0x30] sm:$0xff]
                  %182 = vst [vmem:[%s174 + $0x18] sm:$0xff] %v181
                $region52: #{stfpm_forward.3} parent=46 // loop_footer
                  %s172 = sadd.s32 1, %s168
                $region53: #{stfpm_forward.3} parent=46 // loop_footer_branch
                  %167 = sbr.rel target = $region49
                $region54: #{stfpm_forward.3} parent=46 // loop_exit
                  _
              $region47: #{stfpm_forward.3} parent=31 // pred_fallthru
                _
              // Predicated region
              $region55: #{stfpm_forward.3} parent=31 // pred_check
                _
              $region56: #{stfpm_forward.3} parent=31 // pred_check_branch
                %184 = sbr.rel target = $region58
              $region57: #{stfpm_forward.3} parent=31 // pred_region
                _
              $region58: #{stfpm_forward.3} parent=31 // pred_fallthru
                _
            $region32: #{stfpm_forward.3} parent=27 // pred_fallthru
              _
            // Predicated region
            $region33: #{stfpm_forward.3} parent=27 // pred_check
              _
            $region34: #{stfpm_forward.3} parent=27 // pred_check_branch
              %146 = sbr.rel target = $region36
            $region35: #{stfpm_forward.3} parent=27 // pred_region
              %s148 = ssub.s32 256, 1
              loop: start=0, step=1, limit=1
              $region37: #{stfpm_forward.3} parent=35 // loop_pre_header
                _
              $region38: #{stfpm_forward.3} parent=35 // loop_header
                %s150 = sphi 0, %s154
                %p151 = scmp.ge.s32.totalorder %s150, 1
                %s155 = sphi %s140, %s140
                %s156 = sphi %s135, %s135
              $region39: #{stfpm_forward.3} parent=35 // loop_header_branch
                %153 = sbr.rel (%p151) target = $region43
              $region40: #{stfpm_forward.3} parent=35 // loop_body
                %v157 = vld [vmem:[%s155] sm:%s148]
                %158 = vst [vmem:[%s156] sm:%s148] %v157
                %v159 = vld [vmem:[%s155 + $0x10] sm:%s148]
                %160 = vst [vmem:[%s156 + $0x8] sm:%s148] %v159
                %v161 = vld [vmem:[%s155 + $0x20] sm:%s148]
                %162 = vst [vmem:[%s156 + $0x10] sm:%s148] %v161
                %v163 = vld [vmem:[%s155 + $0x30] sm:%s148]
                %164 = vst [vmem:[%s156 + $0x18] sm:%s148] %v163
              $region41: #{stfpm_forward.3} parent=35 // loop_footer
                %s154 = sadd.s32 1, %s150
              $region42: #{stfpm_forward.3} parent=35 // loop_footer_branch
                %149 = sbr.rel target = $region38
              $region43: #{stfpm_forward.3} parent=35 // loop_exit
                _
            $region36: #{stfpm_forward.3} parent=27 // pred_fallthru
              _
          $region28: #{stfpm_forward.3} parent=23 // pred_fallthru
            _
          %185 = vnop
        $region24: #{stfpm_forward.3} parent=19 // pred_fallthru
          _
      $region20: #{stfpm_forward.3} parent=5 // pred_fallthru
        _
      %p186 = scmp.le.s32.totalorder 1, %s8
      %p187 = scmp.lt.s32.totalorder %s8, 3
      %p188 = pnand %p186, %p187
      %p189 = pneg %p188
      // Predicated region
      $region59: #{stfpm_forward.3} parent=5 // pred_check
        _
      $region60: #{stfpm_forward.3} parent=5 // pred_check_branch
        %191 = sbr.rel (%p188) target = $region62
      $region61: #{stfpm_forward.3} parent=5 // pred_region
        %s192 = ssub.s32 %s8, 1
        %s193 = sand.u32 %s35, 1
        %s194 = sand.u32 %s35, 1
        %s195 = smul.addr %s194, 32
        %s196 = scalar_lea.vmem [#allocation2], %s195
        // Predicated region
        $region63: #{stfpm_forward.3} parent=61 // pred_check
          %p197 = pneg %p48
        $region64: #{stfpm_forward.3} parent=61 // pred_check_branch
          %199 = sbr.rel (%p197) target = $region66
        $region65: #{stfpm_forward.3} parent=61 // pred_region
          _
        $region66: #{stfpm_forward.3} parent=61 // pred_fallthru
          _
        %s200 = sand.u32 %s35, 1
        %s201 = sand.u32 %s35, 1
        %s202 = smul.addr %s201, 32
        %s203 = scalar_lea.vmem [#allocation2], %s202
        %p204 = pneg %p48
        %p205 = pneg %p45
        %p206 = scmp.lt.s32.totalorder %s17, 0
        %s207 = scalar_select %p206, %s17, 0
        %s208 = smul.addr %s207, 2
        %s209 = smul.addr %s208, 4
        %s210 = scalar_lea.vmem %s1, %s209
        %p211 = pneg %p74
        %p212 = pneg %p71
        %p213 = pneg %p102
        %p214 = pneg %p99
        %s215 = sand.u32 %s89, 1
        %s216 = sand.u32 %s89, 1
        %s217 = smul.addr %s216, 16
        %s218 = scalar_lea.vmem [#allocation3], %s217
        %s219 = smul.u32 2, %s18
        %p220 = scmp.lt.s32.totalorder %s17, 0
        %s221 = scalar_select %p220, %s17, 0
        %s222 = smul.addr %s221, 2
        %s223 = smul.addr %s222, 4
        %s224 = scalar_lea.vmem %s1, %s223
        %s225 = smul.u32 2, %s18
        %v227 = vld [vmem:[%s224] sm:$0xf]
        %v228 = vld [vmem:[%s224 + $0x4] sm:$0xf]
        %v229 = vld [vmem:[%s196] sm:$0xff]
        %v230 = vld [vmem:[%s196 + $0x8] sm:$0xff]
        %v231 = vld [vmem:[%s196 + $0x10] sm:$0xff]
        %v232 = vld [vmem:[%s196 + $0x18] sm:$0xff]
        %v235 = vunpack.c.l.b16 %v227
        %v236 = vunpack.c.l.b16 %v228
        %v237 = vpack.c.b16 %v236, %v235
        %v242 = vunpack.c.l.b16 %v229
        %v243 = vunpack.c.h.b16 %v229
        %v244 = vunpack.c.l.b16 %v230
        %v245 = vunpack.c.h.b16 %v230
        %v246 = vunpack.c.l.b16 %v231
        %v247 = vunpack.c.h.b16 %v231
        %v248 = vunpack.c.l.b16 %v232
        %v249 = vunpack.c.h.b16 %v232
        %v250 = vpack.c.b16 %v244, %v242
        %v251 = vpack.c.b16 %v245, %v243
        %v252 = vpack.c.b16 %v248, %v246
        %v253 = vpack.c.b16 %v249, %v247
        %vm258 = vcmask 261120
        %v260 = vsel %vm258, %v237, 0
        %262 = vmatprep.subr.bf16.mxu0 0
        %263 = vmatpush1.bf16.msra.mxu0 0
        %264 = vmatprep.subr.bf16.mxu0 0
        %265 = vmatpush1.bf16.msra.mxu0 0
        %266 = vmatprep.subr.bf16.mxu0 0
        %267 = vmatpush1.bf16.msra.mxu0 0
        %268 = vmatprep.subr.bf16.mxu0 0
        %269 = vmatpush1.bf16.msra.mxu0 0
        %270 = vmatprep.subr.bf16.mxu0 0
        %271 = vmatpush1.bf16.msra.mxu0 0
        %272 = vmatprep.subr.bf16.mxu0 0
        %273 = vmatpush1.bf16.msra.mxu0 0
        %274 = vmatprep.subr.bf16.mxu0 %v253
        %275 = vmatpush1.bf16.msra.mxu0 %v252
        %276 = vmatprep.subr.bf16.mxu0 %v251
        %277 = vmatpush1.bf16.msra.mxu0 %v250
        %278 = vmatprep.subr.bf16.mxu0 0
        %279 = vmatpush2.bf16.msra.mxu0 0
        %280 = vmatprep.subr.bf16.mxu0 0
        %281 = vmatpush2.bf16.msra.mxu0 0
        %282 = vmatprep.subr.bf16.mxu0 0
        %283 = vmatpush2.bf16.msra.mxu0 0
        %284 = vmatprep.subr.bf16.mxu0 0
        %285 = vmatpush2.bf16.msra.mxu0 0
        %286 = vmatprep.subr.bf16.mxu0 0
        %287 = vmatpush2.bf16.msra.mxu0 0
        %288 = vmatprep.subr.bf16.mxu0 0
        %289 = vmatpush2.bf16.msra.mxu0 0
        %290 = vmatprep.subr.bf16.mxu0 0
        %291 = vmatpush2.bf16.msra.mxu0 0
        %292 = vmatprep.subr.bf16.mxu0 0
        %293 = vmatpush2.bf16.msra.mxu0 0
        %294 = vmatprep.mubr.bf16.mxu0 0
        %295 = vmatmul.mubr.bf16.gmra.mxu0 %v260
        %v296 = vpop.f32.mrf.mxu0
        %v297 = vadd.f32 0.0, %v296
        %v298 = vpop.f32.mrf.mxu0
        %v299 = vadd.f32 0.0, %v298
        %v300 = vpop.f32.mrf.mxu0
        %v301 = vadd.f32 0.0, %v300
        %v302 = vpop.f32.mrf.mxu0
        %v303 = vadd.f32 0.0, %v302
        %304 = vdwg.mxu0
        %v305 = vmax.f32 %v297, 0.0
        %v306 = vmax.f32 %v299, 0.0
        %v307 = vmax.f32 %v301, 0.0
        %v308 = vmax.f32 %v303, 0.0
        %v309 = vpack.c.bf16 %v307, %v305
        %v310 = vpack.c.bf16 %v308, %v306
        %v313 = vunpack.c.l.b16 %v309
        %v314 = vunpack.c.l.b16 %v310
        %v315 = vunpack.c.h.b16 %v309
        %v316 = vunpack.c.h.b16 %v310
        %v317 = vpack.c.b16 %v314, %v313
        %v318 = vpack.c.b16 %v316, %v315
        %321 = vst [vmem:[%s218] sm:$0xff] %v317
        %322 = vst [vmem:[%s218 + $0x8] sm:$0xff] %v318
        %s323 = sand.u32 %s89, 1
        %s324 = sand.u32 %s89, 1
        %s325 = smul.addr %s324, 16
        %s326 = scalar_lea.vmem [#allocation3], %s325
        // Predicated region
        $region67: #{stfpm_forward.3} parent=61 // pred_check
          %p327 = pneg %p99
        $region68: #{stfpm_forward.3} parent=61 // pred_check_branch
          %329 = sbr.rel (%p327) target = $region70
        $region69: #{stfpm_forward.3} parent=61 // pred_region
          %s330 = smul.u32 2, %s18
          %s331 = smul.addr %s17, 8
          %s332 = sadd.s32 %s330, %s331
          %s333 = smul.addr %s332, 4
          %s334 = scalar_lea.vmem %s2, %s333
          // Predicated region
          $region71: #{stfpm_forward.3} parent=69 // pred_check
            _
          $region72: #{stfpm_forward.3} parent=69 // pred_check_branch
            %336 = sbr.rel (0) target = $region74
          $region73: #{stfpm_forward.3} parent=69 // pred_region
            // Predicated region
            $region75: #{stfpm_forward.3} parent=73 // pred_check
              _
            $region76: #{stfpm_forward.3} parent=73 // pred_check_branch
              %338 = sbr.rel (0) target = $region78
            $region77: #{stfpm_forward.3} parent=73 // pred_region
              // Predicated region
              $region90: #{stfpm_forward.3} parent=77 // pred_check
                _
              $region91: #{stfpm_forward.3} parent=77 // pred_check_branch
                %356 = sbr.rel (0) target = $region93
              $region92: #{stfpm_forward.3} parent=77 // pred_region
                loop: start=0, step=1, limit=1
                $region94: #{stfpm_forward.3} parent=92 // loop_pre_header
                  _
                $region95: #{stfpm_forward.3} parent=92 // loop_header
                  %s358 = sphi 0, %s362
                  %p359 = scmp.ge.s32.totalorder %s358, 1
                  %s363 = sphi %s326, %s326
                  %s364 = sphi %s334, %s334
                $region96: #{stfpm_forward.3} parent=92 // loop_header_branch
                  %361 = sbr.rel (%p359) target = $region100
                $region97: #{stfpm_forward.3} parent=92 // loop_body
                  %v365 = vld [vmem:[%s363] sm:$0xff]
                  %366 = vst [vmem:[%s364] sm:$0xff] %v365
                  %v367 = vld [vmem:[%s363 + $0x8] sm:$0xff]
                  %368 = vst [vmem:[%s364 + $0x10] sm:$0xff] %v367
                $region98: #{stfpm_forward.3} parent=92 // loop_footer
                  %s362 = sadd.s32 1, %s358
                $region99: #{stfpm_forward.3} parent=92 // loop_footer_branch
                  %357 = sbr.rel target = $region95
                $region100: #{stfpm_forward.3} parent=92 // loop_exit
                  _
              $region93: #{stfpm_forward.3} parent=77 // pred_fallthru
                _
              // Predicated region
              $region101: #{stfpm_forward.3} parent=77 // pred_check
                _
              $region102: #{stfpm_forward.3} parent=77 // pred_check_branch
                %370 = sbr.rel target = $region104
              $region103: #{stfpm_forward.3} parent=77 // pred_region
                _
              $region104: #{stfpm_forward.3} parent=77 // pred_fallthru
                _
            $region78: #{stfpm_forward.3} parent=73 // pred_fallthru
              _
            // Predicated region
            $region79: #{stfpm_forward.3} parent=73 // pred_check
              _
            $region80: #{stfpm_forward.3} parent=73 // pred_check_branch
              %340 = sbr.rel target = $region82
            $region81: #{stfpm_forward.3} parent=73 // pred_region
              %s342 = ssub.s32 256, 1
              loop: start=0, step=1, limit=1
              $region83: #{stfpm_forward.3} parent=81 // loop_pre_header
                _
              $region84: #{stfpm_forward.3} parent=81 // loop_header
                %s344 = sphi 0, %s348
                %p345 = scmp.ge.s32.totalorder %s344, 1
                %s349 = sphi %s326, %s326
                %s350 = sphi %s334, %s334
              $region85: #{stfpm_forward.3} parent=81 // loop_header_branch
                %347 = sbr.rel (%p345) target = $region89
              $region86: #{stfpm_forward.3} parent=81 // loop_body
                %v351 = vld [vmem:[%s349] sm:%s342]
                %352 = vst [vmem:[%s350] sm:%s342] %v351
                %v353 = vld [vmem:[%s349 + $0x8] sm:%s342]
                %354 = vst [vmem:[%s350 + $0x10] sm:%s342] %v353
              $region87: #{stfpm_forward.3} parent=81 // loop_footer
                %s348 = sadd.s32 1, %s344
              $region88: #{stfpm_forward.3} parent=81 // loop_footer_branch
                %343 = sbr.rel target = $region84
              $region89: #{stfpm_forward.3} parent=81 // loop_exit
                _
            $region82: #{stfpm_forward.3} parent=73 // pred_fallthru
              _
          $region74: #{stfpm_forward.3} parent=69 // pred_fallthru
            _
          %371 = vnop
        $region70: #{stfpm_forward.3} parent=61 // pred_fallthru
          _
      $region62: #{stfpm_forward.3} parent=5 // pred_fallthru
        _
      %p372 = scmp.le.s32.totalorder 2, %s8
      // Predicated region
      $region105: #{stfpm_forward.3} parent=5 // pred_check
        %p373 = pneg %p372
      $region106: #{stfpm_forward.3} parent=5 // pred_check_branch
        %375 = sbr.rel (%p373) target = $region108
      $region107: #{stfpm_forward.3} parent=5 // pred_region
        %s376 = ssub.s32 %s8, 2
        // Predicated region
        $region109: #{stfpm_forward.3} parent=107 // pred_check
          %p377 = pneg %p105
        $region110: #{stfpm_forward.3} parent=107 // pred_check_branch
          %379 = sbr.rel (%p377) target = $region112
        $region111: #{stfpm_forward.3} parent=107 // pred_region
          %s380 = sand.u32 %s90, 1
          %s381 = sand.u32 %s90, 1
          %s382 = smul.addr %s381, 16
          %s383 = scalar_lea.vmem [#allocation3], %s382
        $region112: #{stfpm_forward.3} parent=107 // pred_fallthru
          _
      $region108: #{stfpm_forward.3} parent=5 // pred_fallthru
        _
    $region6: #{stfpm_forward.3} parent=1 // loop_footer
      %s12 = sadd.s32 1, %s8
    $region7: #{stfpm_forward.3} parent=1 // loop_footer_branch
      %7 = sbr.rel target = $region3
    $region8: #{stfpm_forward.3} parent=1 // loop_exit
      _

// kernel: stfpm_forward.4
$region0: #{stfpm_forward.4}
  #allocation0 [shape = 'u32[]', space=smem, size = 0x4, offset = 0x4, fixed_abs, tag = 'smem constant byte address 0x4 - core index']
  #allocation1 [shape = 'u32[144,128]{1,0:T(1,128)}', space=vmem, size = 0x12000, scoped, tag = 'internal scratch']
  %s0 = inlined_call_operand.vmem [shape: bf16[2,96,128], index: 0, kind: input, shape index: {}]
  %s1 = inlined_call_operand.vmem [shape: bf16[2,16,96], index: 1, kind: input, shape index: {}]
  %s2 = inlined_call_operand.vmem [shape: bf16[2,16,128], index: 2, kind: output, shape index: {}]
  %s3 = sld [smem:[#allocation0]]
  $region41: #{stfpm_forward.4} parent=0
    _
  %s5 = ssub.s32 1, %s3
  %s6 = scalar_select 0, %s5, %s3
  loop: start=0, step=1, limit=4
  $region2: #{stfpm_forward.4} parent=0 // loop_pre_header
    _
  $region3: #{stfpm_forward.4} parent=0 // loop_header
    %s8 = sphi 0, %s12
    %p9 = scmp.ge.s32.totalorder %s8, 4
    %s15 = sphi 0, %s27
    %s16 = sphi 0, %s23
    %s17 = sphi 0, %s15
    %s18 = sphi 0, %s16
    %s19 = sphi 0, %s17
    %s20 = sphi 0, %s18
    %s32 = sphi 0, %s34
    %s35 = sphi 0, %s32
    %s36 = sphi 0, %s35
    %s52 = sphi 0, %s36
    %s58 = sphi 0, %s60
    %s61 = sphi 0, %s58
    %s62 = sphi 0, %s61
    %s78 = sphi 0, %s62
    %s86 = sphi 0, %s88
    %s89 = sphi 0, %s86
    %s90 = sphi 0, %s89
    %s106 = sphi 0, %s90
  $region4: #{stfpm_forward.4} parent=0 // loop_header_branch
    %11 = sbr.rel (%p9) target = $region8
  $region5: #{stfpm_forward.4} parent=0 // loop_body
    %s13 = ssub.s32 %s8, 1
    %s14 = ssub.s32 %s8, 2
    %s21 = sadd.s32 1, %s16
    %p22 = scmp.ge.s32.totalorder %s21, 1
    %s23 = scalar_select %p22, 0, %s21
    %s24 = sadd.s32 1, %s15
    %s25 = scalar_select %p22, %s24, %s15
    %p26 = scmp.ge.s32.totalorder %s25, 2
    %s27 = scalar_select %p26, 0, %s25
    %s28 = ssub.s32 %s15, %s27
    %s29 = ssub.s32 %s16, %s23
    %s30 = sor.u32 %s28, %s29
    %p31 = scmp.eq.s32.totalorder %s30, 0
    %s33 = sadd.s32 %s32, 1
    %s34 = scalar_select %p31, %s32, %s33
    %p37 = pneg %p31
    %p38 = scmp.eq.s32.totalorder %s8, 1
    %p39 = por %p37, %p38
    %p40 = scmp.ne.s32.totalorder %s32, %s35
    %p41 = scmp.eq.s32.totalorder %s8, 0
    %p42 = por %p40, %p41
    %p43 = scmp.ne.s32.totalorder %s32, %s35
    %p44 = scmp.eq.s32.totalorder %s13, 1
    %p45 = por %p43, %p44
    %p46 = scmp.ne.s32.totalorder %s35, %s36
    %p47 = scmp.eq.s32.totalorder %s13, 0
    %p48 = por %p46, %p47
    %p49 = scmp.ne.s32.totalorder %s35, %s36
    %p50 = scmp.eq.s32.totalorder %s14, 1
    %p51 = por %p49, %p50
    %p53 = scmp.ne.s32.totalorder %s36, %s52
    %p54 = scmp.eq.s32.totalorder %s14, 0
    %p55 = por %p53, %p54
    %s56 = ssub.s32 %s15, %s27
    %p57 = scmp.eq.s32.totalorder %s56, 0
    %s59 = sadd.s32 %s58, 1
    %s60 = scalar_select %p57, %s58, %s59
    %p63 = pneg %p57
    %p64 = scmp.eq.s32.totalorder %s8, 1
    %p65 = por %p63, %p64
    %p66 = scmp.ne.s32.totalorder %s58, %s61
    %p67 = scmp.eq.s32.totalorder %s8, 0
    %p68 = por %p66, %p67
    %p69 = scmp.ne.s32.totalorder %s58, %s61
    %p70 = scmp.eq.s32.totalorder %s13, 1
    %p71 = por %p69, %p70
    %p72 = scmp.ne.s32.totalorder %s61, %s62
    %p73 = scmp.eq.s32.totalorder %s13, 0
    %p74 = por %p72, %p73
    %p75 = scmp.ne.s32.totalorder %s61, %s62
    %p76 = scmp.eq.s32.totalorder %s14, 1
    %p77 = por %p75, %p76
    %p79 = scmp.ne.s32.totalorder %s62, %s78
    %p80 = scmp.eq.s32.totalorder %s14, 0
    %p81 = por %p79, %p80
    %s82 = ssub.s32 %s15, %s27
    %s83 = ssub.s32 %s16, %s23
    %s84 = sor.u32 %s82, %s83
    %p85 = scmp.eq.s32.totalorder %s84, 0
    %s87 = sadd.s32 %s86, 1
    %s88 = scalar_select %p85, %s86, %s87
    %p91 = pneg %p85
    %p92 = scmp.eq.s32.totalorder %s8, 1
    %p93 = por %p91, %p92
    %p94 = scmp.ne.s32.totalorder %s86, %s89
    %p95 = scmp.eq.s32.totalorder %s8, 0
    %p96 = por %p94, %p95
    %p97 = scmp.ne.s32.totalorder %s86, %s89
    %p98 = scmp.eq.s32.totalorder %s13, 1
    %p99 = por %p97, %p98
    %p100 = scmp.ne.s32.totalorder %s89, %s90
    %p101 = scmp.eq.s32.totalorder %s13, 0
    %p102 = por %p100, %p101
    %p103 = scmp.ne.s32.totalorder %s89, %s90
    %p104 = scmp.eq.s32.totalorder %s14, 1
    %p105 = por %p103, %p104
    %p107 = scmp.ne.s32.totalorder %s90, %s106
    %p108 = scmp.eq.s32.totalorder %s14, 0
    %p109 = por %p107, %p108
    %p110 = scmp.le.s32.totalorder 1, %s8
    %p111 = scmp.lt.s32.totalorder %s8, 3
    %p112 = pnand %p110, %p111
    %p113 = pneg %p112
    // Predicated region
    $region9: #{stfpm_forward.4} parent=5 // pred_check
      _
    $region10: #{stfpm_forward.4} parent=5 // pred_check_branch
      %115 = sbr.rel (%p112) target = $region12
    $region11: #{stfpm_forward.4} parent=5 // pred_region
      %s116 = ssub.s32 %s8, 1
    $region12: #{stfpm_forward.4} parent=5 // pred_fallthru
      _
    %p117 = scmp.lt.s32.totalorder %s8, 2
    // Predicated region
    $region13: #{stfpm_forward.4} parent=5 // pred_check
      %p118 = pneg %p117
    $region14: #{stfpm_forward.4} parent=5 // pred_check_branch
      %120 = sbr.rel (%p118) target = $region16
    $region15: #{stfpm_forward.4} parent=5 // pred_region
      // Predicated region
      $region17: #{stfpm_forward.4} parent=15 // pred_check
        %p121 = pneg %p42
      $region18: #{stfpm_forward.4} parent=15 // pred_check_branch
        %123 = sbr.rel (%p121) target = $region20
      $region19: #{stfpm_forward.4} parent=15 // pred_region
        %p124 = scmp.lt.s32.totalorder %s15, 1
        %s125 = scalar_select %p124, %s15, 1
        %p126 = scmp.lt.s32.totalorder %s16, 0
        %s127 = scalar_select %p126, %s16, 0
        %s128 = smul.addr %s125, 12
        %s129 = sadd.s32 %s127, %s128
        %s130 = smul.addr %s129, 4
        %s131 = scalar_lea.vmem %s0, %s130
      $region20: #{stfpm_forward.4} parent=15 // pred_fallthru
        _
      // Predicated region
      $region21: #{stfpm_forward.4} parent=15 // pred_check
        %p132 = pneg %p68
      $region22: #{stfpm_forward.4} parent=15 // pred_check_branch
        %134 = sbr.rel (%p132) target = $region24
      $region23: #{stfpm_forward.4} parent=15 // pred_region
        %p135 = scmp.lt.s32.totalorder %s15, 1
        %s136 = scalar_select %p135, %s15, 1
        %s137 = smul.addr %s136, 2
        %s138 = smul.addr %s137, 4
        %s139 = scalar_lea.vmem %s1, %s138
      $region24: #{stfpm_forward.4} parent=15 // pred_fallthru
        _
    $region16: #{stfpm_forward.4} parent=5 // pred_fallthru
      _
    %p140 = scmp.le.s32.totalorder 1, %s8
    %p141 = scmp.lt.s32.totalorder %s8, 3
    %p142 = pnand %p140, %p141
    %p143 = pneg %p142
    // Predicated region
    $region25: #{stfpm_forward.4} parent=5 // pred_check
      _
    $region26: #{stfpm_forward.4} parent=5 // pred_check_branch
      %145 = sbr.rel (%p142) target = $region28
    $region27: #{stfpm_forward.4} parent=5 // pred_region
      %s146 = ssub.s32 %s8, 1
      %p147 = scmp.lt.s32.totalorder %s17, 1
      %s148 = scalar_select %p147, %s17, 1
      %p149 = scmp.lt.s32.totalorder %s18, 0
      %s150 = scalar_select %p149, %s18, 0
      %s151 = smul.addr %s148, 12
      %s152 = sadd.s32 %s150, %s151
      %s153 = smul.addr %s152, 4
      %s154 = scalar_lea.vmem %s0, %s153
      %p155 = pneg %p48
      %p156 = pneg %p45
      %p157 = scmp.lt.s32.totalorder %s17, 1
      %s158 = scalar_select %p157, %s17, 1
      %s159 = smul.addr %s158, 2
      %s160 = smul.addr %s159, 4
      %s161 = scalar_lea.vmem %s1, %s160
      %p162 = pneg %p74
      %p163 = pneg %p71
      %p164 = pneg %p102
      %p165 = pneg %p99
      %p166 = scmp.lt.s32.totalorder %s17, 1
      %s167 = scalar_select %p166, %s17, 1
      %p168 = scmp.lt.s32.totalorder %s18, 0
      %s169 = scalar_select %p168, %s18, 0
      %s170 = smul.addr %s167, 2
      %s171 = sadd.s32 %s169, %s170
      %s172 = smul.addr %s171, 4
      %s173 = scalar_lea.vmem %s2, %s172
      %p174 = scmp.lt.s32.totalorder %s17, 1
      %s175 = scalar_select %p174, %s17, 1
      %p176 = scmp.lt.s32.totalorder %s18, 0
      %s177 = scalar_select %p176, %s18, 0
      %s178 = smul.addr %s175, 12
      %s179 = sadd.s32 %s177, %s178
      %s180 = smul.addr %s179, 4
      %s181 = scalar_lea.vmem %s0, %s180
      %p182 = scmp.lt.s32.totalorder %s17, 1
      %s183 = scalar_select %p182, %s17, 1
      %s184 = smul.addr %s183, 2
      %s185 = smul.addr %s184, 4
      %s186 = scalar_lea.vmem %s1, %s185
      %p187 = scmp.lt.s32.totalorder %s17, 1
      %s188 = scalar_select %p187, %s17, 1
      %p189 = scmp.lt.s32.totalorder %s18, 0
      %s190 = scalar_select %p189, %s18, 0
      %s191 = smul.addr %s188, 2
      %s192 = sadd.s32 %s190, %s191
      %s193 = smul.addr %s192, 4
      %s194 = scalar_lea.vmem %s2, %s193
      %v196 = vld [vmem:[%s186] sm:$0xf]
      %v197 = vld [vmem:[%s186 + $0x4] sm:$0xf]
      %v198 = vld [vmem:[%s181] sm:$0xf]
      %v199 = vld [vmem:[%s181 + $0x4] sm:$0xf]
      %v200 = vld [vmem:[%s181 + $0x8] sm:$0xf]
      %v201 = vld [vmem:[%s181 + $0xc] sm:$0xf]
      %v202 = vld [vmem:[%s181 + $0x10] sm:$0xf]
      %v203 = vld [vmem:[%s181 + $0x14] sm:$0xf]
      %v204 = vld [vmem:[%s181 + $0x18] sm:$0xf]
      %v205 = vld [vmem:[%s181 + $0x1c] sm:$0xf]
      %v206 = vld [vmem:[%s181 + $0x20] sm:$0xf]
      %v207 = vld [vmem:[%s181 + $0x24] sm:$0xf]
      %v208 = vld [vmem:[%s181 + $0x28] sm:$0xf]
      %v209 = vld [vmem:[%s181 + $0x2c] sm:$0xf]
      %v212 = vunpack.c.l.b16 %v196
      %v213 = vunpack.c.l.b16 %v197
      %v214 = vpack.c.b16 %v213, %v212
      %v227 = vunpack.c.l.b16 %v198
      %v228 = vunpack.c.l.b16 %v199
      %v229 = vunpack.c.l.b16 %v200
      %v230 = vunpack.c.l.b16 %v201
      %v231 = vunpack.c.l.b16 %v202
      %v232 = vunpack.c.l.b16 %v203
      %v233 = vunpack.c.l.b16 %v204
      %v234 = vunpack.c.l.b16 %v205
      %v235 = vunpack.c.l.b16 %v206
      %v236 = vunpack.c.l.b16 %v207
      %v237 = vunpack.c.l.b16 %v208
      %v238 = vunpack.c.l.b16 %v209
      %v239 = vpack.c.b16 %v228, %v227
      %v240 = vpack.c.b16 %v230, %v229
      %v241 = vpack.c.b16 %v232, %v231
      %v242 = vpack.c.b16 %v234, %v233
      %v243 = vpack.c.b16 %v236, %v235
      %v244 = vpack.c.b16 %v238, %v237
      %vm251 = vcmask 785408
      %v253 = vsel %vm251, %v214, 0
      %255 = vmatprep.subr.bf16.mxu0 0
      %256 = vmatpush1.bf16.msra.mxu0 0
      %257 = vmatprep.subr.bf16.mxu0 0
      %258 = vmatpush1.bf16.msra.mxu0 0
      %259 = vmatprep.subr.bf16.mxu0 0
      %260 = vmatpush1.bf16.msra.mxu0 %v244
      %261 = vmatprep.subr.bf16.mxu0 0
      %262 = vmatpush1.bf16.msra.mxu0 %v243
      %263 = vmatprep.subr.bf16.mxu0 0
      %264 = vmatpush1.bf16.msra.mxu0 %v242
      %265 = vmatprep.subr.bf16.mxu0 0
      %266 = vmatpush1.bf16.msra.mxu0 %v241
      %267 = vmatprep.subr.bf16.mxu0 0
      %268 = vmatpush1.bf16.msra.mxu0 %v240
      %269 = vmatprep.subr.bf16.mxu0 0
      %270 = vmatpush1.bf16.msra.mxu0 %v239
      %271 = vmatprep.subr.bf16.mxu0 0
      %272 = vmatpush2.bf16.msra.mxu0 0
      %273 = vmatprep.subr.bf16.mxu0 0
      %274 = vmatpush2.bf16.msra.mxu0 0
      %275 = vmatprep.subr.bf16.mxu0 0
      %276 = vmatpush2.bf16.msra.mxu0 0
      %277 = vmatprep.subr.bf16.mxu0 0
      %278 = vmatpush2.bf16.msra.mxu0 0
      %279 = vmatprep.subr.bf16.mxu0 0
      %280 = vmatpush2.bf16.msra.mxu0 0
      %281 = vmatprep.subr.bf16.mxu0 0
      %282 = vmatpush2.bf16.msra.mxu0 0
      %283 = vmatprep.subr.bf16.mxu0 0
      %284 = vmatpush2.bf16.msra.mxu0 0
      %285 = vmatprep.subr.bf16.mxu0 0
      %286 = vmatpush2.bf16.msra.mxu0 0
      %287 = vmatprep.mubr.bf16.mxu0 0
      %288 = vmatmul.mubr.bf16.gmra.mxu0 %v253
      %v289 = vpop.f32.mrf.mxu0
      %v290 = vadd.f32 0.0, %v289
      %v291 = vpop.f32.mrf.mxu0
      %v292 = vpop.f32.mrf.mxu0
      %v293 = vadd.f32 0.0, %v292
      %v294 = vpop.f32.mrf.mxu0
      %295 = vdwg.mxu0
      %v296 = vmax.f32 %v290, 0.0
      %v297 = vmax.f32 %v293, 0.0
      %v298 = vpack.c.bf16 %v297, %v296
      %v300 = vunpack.c.l.b16 %v298
      %v301 = vunpack.c.h.b16 %v298
      %v302 = vpack.c.b16 %v300, %v300
      %v303 = vpack.c.b16 %v301, %v301
      %306 = vst [vmem:[%s194] sm:$0xf] %v302
      %307 = vst [vmem:[%s194 + $0x4] sm:$0xf] %v303
      %p308 = scmp.lt.s32.totalorder %s17, 1
      %s309 = scalar_select %p308, %s17, 1
      %p310 = scmp.lt.s32.totalorder %s18, 0
      %s311 = scalar_select %p310, %s18, 0
      %s312 = smul.addr %s309, 2
      %s313 = sadd.s32 %s311, %s312
      %s314 = smul.addr %s313, 4
      %s315 = scalar_lea.vmem %s2, %s314
      // Predicated region
      $region29: #{stfpm_forward.4} parent=27 // pred_check
        %p316 = pneg %p99
      $region30: #{stfpm_forward.4} parent=27 // pred_check_branch
        %318 = sbr.rel (%p316) target = $region32
      $region31: #{stfpm_forward.4} parent=27 // pred_region
        _
      $region32: #{stfpm_forward.4} parent=27 // pred_fallthru
        _
    $region28: #{stfpm_forward.4} parent=5 // pred_fallthru
      _
    %p319 = scmp.le.s32.totalorder 2, %s8
    // Predicated region
    $region33: #{stfpm_forward.4} parent=5 // pred_check
      %p320 = pneg %p319
    $region34: #{stfpm_forward.4} parent=5 // pred_check_branch
      %322 = sbr.rel (%p320) target = $region36
    $region35: #{stfpm_forward.4} parent=5 // pred_region
      %s323 = ssub.s32 %s8, 2
      // Predicated region
      $region37: #{stfpm_forward.4} parent=35 // pred_check
        %p324 = pneg %p105
      $region38: #{stfpm_forward.4} parent=35 // pred_check_branch
        %326 = sbr.rel (%p324) target = $region40
      $region39: #{stfpm_forward.4} parent=35 // pred_region
        %p327 = scmp.lt.s32.totalorder %s19, 1
        %s328 = scalar_select %p327, %s19, 1
        %p329 = scmp.lt.s32.totalorder %s20, 0
        %s330 = scalar_select %p329, %s20, 0
        %s331 = smul.addr %s328, 2
        %s332 = sadd.s32 %s330, %s331
        %s333 = smul.addr %s332, 4
        %s334 = scalar_lea.vmem %s2, %s333
      $region40: #{stfpm_forward.4} parent=35 // pred_fallthru
        _
    $region36: #{stfpm_forward.4} parent=5 // pred_fallthru
      _
  $region6: #{stfpm_forward.4} parent=0 // loop_footer
    %s12 = sadd.s32 1, %s8
  $region7: #{stfpm_forward.4} parent=0 // loop_footer_branch
    %7 = sbr.rel target = $region3
  $region8: #{stfpm_forward.4} parent=0 // loop_exit
    _

// kernel: stfpm_forward.5
$region0: #{stfpm_forward.5}
  #allocation0 [shape = 'u32[]', space=smem, size = 0x4, offset = 0x4, fixed_abs, tag = 'smem constant byte address 0x4 - core index']
  #allocation1 [shape = 'u32[144,128]{1,0:T(1,128)}', space=vmem, size = 0x12000, scoped, tag = 'internal scratch']
  %s0 = inlined_call_operand.vmem [shape: bf16[16,512], index: 0, kind: input, shape index: {}]
  %s1 = inlined_call_operand.vmem [shape: bf16[32,128], index: 1, kind: input, shape index: {}]
  %s2 = inlined_call_operand.vmem [shape: f32[512,512], index: 2, kind: input, shape index: {}]
  %s3 = inlined_call_operand.vmem [shape: f32[128,128], index: 3, kind: input, shape index: {}]
  %s4 = inlined_call_operand.vmem [shape: f32[512,2048], index: 4, kind: input, shape index: {}]
  %s5 = inlined_call_operand.vmem [shape: f32[128,2048], index: 5, kind: input, shape index: {}]
  %s6 = inlined_call_operand.vmem [shape: f32[1,2048], index: 6, kind: output, shape index: {}]
  %s7 = sld [smem:[#allocation0]]
  $region103: #{stfpm_forward.5} parent=0
    _
  %s9 = ssub.s32 1, %s7
  %s10 = scalar_select 0, %s9, %s7
  $region1: #{stfpm_forward.5} parent=0
    #allocation2 [shape = 'u8[4194304]{0}', space=vmem, size = 0x400000, scoped, tag = 'input window, operand 4']
    #allocation3 [shape = 'u8[1048576]{0}', space=vmem, size = 0x100000, scoped, tag = 'input window, operand 5']
    loop: start=0, step=1, limit=4
    $region2: #{stfpm_forward.5} parent=1 // loop_pre_header
      _
    $region3: #{stfpm_forward.5} parent=1 // loop_header
      %s12 = sphi 0, %s16
      %p13 = scmp.ge.s32.totalorder %s12, 4
      %s20 = sphi 0, %s20
      %s22 = sphi 0, %s20
      %s23 = sphi 0, %s22
      %s37 = sphi 0, %s23
      %s41 = sphi 0, %s41
      %s43 = sphi 0, %s41
      %s44 = sphi 0, %s43
      %s58 = sphi 0, %s44
      %s62 = sphi 0, %s62
      %s64 = sphi 0, %s62
      %s65 = sphi 0, %s64
      %s79 = sphi 0, %s65
      %s83 = sphi 0, %s83
      %s85 = sphi 0, %s83
      %s86 = sphi 0, %s85
      %s100 = sphi 0, %s86
      %s106 = sphi 0, %s108
      %s109 = sphi 0, %s106
      %s110 = sphi 0, %s109
      %s126 = sphi 0, %s110
      %s132 = sphi 0, %s134
      %s135 = sphi 0, %s132
      %s136 = sphi 0, %s135
      %s152 = sphi 0, %s136
      %s158 = sphi 0, %s160
      %s161 = sphi 0, %s158
      %s162 = sphi 0, %s161
      %s178 = sphi 0, %s162
    $region4: #{stfpm_forward.5} parent=1 // loop_header_branch
      %15 = sbr.rel (%p13) target = $region8
    $region5: #{stfpm_forward.5} parent=1 // loop_body
      %s17 = ssub.s32 %s12, 1
      %s18 = ssub.s32 %s12, 2
      %s19 = sadd.s32 %s12, 1
      %s21 = sadd.s32 %s20, 1
      %p24 = scmp.eq.s32.totalorder %s12, 1
      %p25 = scmp.ne.s32.totalorder %s20, %s22
      %p26 = scmp.eq.s32.totalorder %s12, 0
      %p27 = por %p25, %p26
      %p28 = scmp.ne.s32.totalorder %s20, %s22
      %p29 = scmp.eq.s32.totalorder %s17, 1
      %p30 = por %p28, %p29
      %p31 = scmp.ne.s32.totalorder %s22, %s23
      %p32 = scmp.eq.s32.totalorder %s17, 0
      %p33 = por %p31, %p32
      %p34 = scmp.ne.s32.totalorder %s22, %s23
      %p35 = scmp.eq.s32.totalorder %s18, 1
      %p36 = por %p34, %p35
      %p38 = scmp.ne.s32.totalorder %s23, %s37
      %p39 = scmp.eq.s32.totalorder %s18, 0
      %p40 = por %p38, %p39
      %s42 = sadd.s32 %s41, 1
      %p45 = scmp.eq.s32.totalorder %s12, 1
      %p46 = scmp.ne.s32.totalorder %s41, %s43
      %p47 = scmp.eq.s32.totalorder %s12, 0
      %p48 = por %p46, %p47
      %p49 = scmp.ne.s32.totalorder %s41, %s43
      %p50 = scmp.eq.s32.totalorder %s17, 1
      %p51 = por %p49, %p50
      %p52 = scmp.ne.s32.totalorder %s43, %s44
      %p53 = scmp.eq.s32.totalorder %s17, 0
      %p54 = por %p52, %p53
      %p55 = scmp.ne.s32.totalorder %s43, %s44
      %p56 = scmp.eq.s32.totalorder %s18, 1
      %p57 = por %p55, %p56
      %p59 = scmp.ne.s32.totalorder %s44, %s58
      %p60 = scmp.eq.s32.totalorder %s18, 0
      %p61 = por %p59, %p60
      %s63 = sadd.s32 %s62, 1
      %p66 = scmp.eq.s32.totalorder %s12, 1
      %p67 = scmp.ne.s32.totalorder %s62, %s64
      %p68 = scmp.eq.s32.totalorder %s12, 0
      %p69 = por %p67, %p68
      %p70 = scmp.ne.s32.totalorder %s62, %s64
      %p71 = scmp.eq.s32.totalorder %s17, 1
      %p72 = por %p70, %p71
      %p73 = scmp.ne.s32.totalorder %s64, %s65
      %p74 = scmp.eq.s32.totalorder %s17, 0
      %p75 = por %p73, %p74
      %p76 = scmp.ne.s32.totalorder %s64, %s65
      %p77 = scmp.eq.s32.totalorder %s18, 1
      %p78 = por %p76, %p77
      %p80 = scmp.ne.s32.totalorder %s65, %s79
      %p81 = scmp.eq.s32.totalorder %s18, 0
      %p82 = por %p80, %p81
      %s84 = sadd.s32 %s83, 1
      %p87 = scmp.eq.s32.totalorder %s12, 1
      %p88 = scmp.ne.s32.totalorder %s83, %s85
      %p89 = scmp.eq.s32.totalorder %s12, 0
      %p90 = por %p88, %p89
      %p91 = scmp.ne.s32.totalorder %s83, %s85
      %p92 = scmp.eq.s32.totalorder %s17, 1
      %p93 = por %p91, %p92
      %p94 = scmp.ne.s32.totalorder %s85, %s86
      %p95 = scmp.eq.s32.totalorder %s17, 0
      %p96 = por %p94, %p95
      %p97 = scmp.ne.s32.totalorder %s85, %s86
      %p98 = scmp.eq.s32.totalorder %s18, 1
      %p99 = por %p97, %p98
      %p101 = scmp.ne.s32.totalorder %s86, %s100
      %p102 = scmp.eq.s32.totalorder %s18, 0
      %p103 = por %p101, %p102
      %s104 = ssub.s32 %s12, %s19
      %p105 = scmp.eq.s32.totalorder %s104, 0
      %s107 = sadd.s32 %s106, 1
      %s108 = scalar_select %p105, %s106, %s107
      %p111 = pneg %p105
      %p112 = scmp.eq.s32.totalorder %s12, 1
      %p113 = por %p111, %p112
      %p114 = scmp.ne.s32.totalorder %s106, %s109
      %p115 = scmp.eq.s32.totalorder %s12, 0
      %p116 = por %p114, %p115
      %p117 = scmp.ne.s32.totalorder %s106, %s109
      %p118 = scmp.eq.s32.totalorder %s17, 1
      %p119 = por %p117, %p118
      %p120 = scmp.ne.s32.totalorder %s109, %s110
      %p121 = scmp.eq.s32.totalorder %s17, 0
      %p122 = por %p120, %p121
      %p123 = scmp.ne.s32.totalorder %s109, %s110
      %p124 = scmp.eq.s32.totalorder %s18, 1
      %p125 = por %p123, %p124
      %p127 = scmp.ne.s32.totalorder %s110, %s126
      %p128 = scmp.eq.s32.totalorder %s18, 0
      %p129 = por %p127, %p128
      %s130 = ssub.s32 %s12, %s19
      %p131 = scmp.eq.s32.totalorder %s130, 0
      %s133 = sadd.s32 %s132, 1
      %s134 = scalar_select %p131, %s132, %s133
      %p137 = pneg %p131
      %p138 = scmp.eq.s32.totalorder %s12, 1
      %p139 = por %p137, %p138
      %p140 = scmp.ne.s32.totalorder %s132, %s135
      %p141 = scmp.eq.s32.totalorder %s12, 0
      %p142 = por %p140, %p141
      %p143 = scmp.ne.s32.totalorder %s132, %s135
      %p144 = scmp.eq.s32.totalorder %s17, 1
      %p145 = por %p143, %p144
      %p146 = scmp.ne.s32.totalorder %s135, %s136
      %p147 = scmp.eq.s32.totalorder %s17, 0
      %p148 = por %p146, %p147
      %p149 = scmp.ne.s32.totalorder %s135, %s136
      %p150 = scmp.eq.s32.totalorder %s18, 1
      %p151 = por %p149, %p150
      %p153 = scmp.ne.s32.totalorder %s136, %s152
      %p154 = scmp.eq.s32.totalorder %s18, 0
      %p155 = por %p153, %p154
      %s156 = ssub.s32 %s12, %s19
      %p157 = scmp.eq.s32.totalorder %s156, 0
      %s159 = sadd.s32 %s158, 1
      %s160 = scalar_select %p157, %s158, %s159
      %p163 = pneg %p157
      %p164 = scmp.eq.s32.totalorder %s12, 1
      %p165 = por %p163, %p164
      %p166 = scmp.ne.s32.totalorder %s158, %s161
      %p167 = scmp.eq.s32.totalorder %s12, 0
      %p168 = por %p166, %p167
      %p169 = scmp.ne.s32.totalorder %s158, %s161
      %p170 = scmp.eq.s32.totalorder %s17, 1
      %p171 = por %p169, %p170
      %p172 = scmp.ne.s32.totalorder %s161, %s162
      %p173 = scmp.eq.s32.totalorder %s17, 0
      %p174 = por %p172, %p173
      %p175 = scmp.ne.s32.totalorder %s161, %s162
      %p176 = scmp.eq.s32.totalorder %s18, 1
      %p177 = por %p175, %p176
      %p179 = scmp.ne.s32.totalorder %s162, %s178
      %p180 = scmp.eq.s32.totalorder %s18, 0
      %p181 = por %p179, %p180
      %p182 = scmp.le.s32.totalorder 1, %s12
      %p183 = scmp.lt.s32.totalorder %s12, 3
      %p184 = pnand %p182, %p183
      %p185 = pneg %p184
      // Predicated region
      $region9: #{stfpm_forward.5} parent=5 // pred_check
        _
      $region10: #{stfpm_forward.5} parent=5 // pred_check_branch
        %187 = sbr.rel (%p184) target = $region12
      $region11: #{stfpm_forward.5} parent=5 // pred_region
        %s188 = ssub.s32 %s12, 1
        // Predicated region
        $region13: #{stfpm_forward.5} parent=11 // pred_check
          %p189 = pneg %p33
        $region14: #{stfpm_forward.5} parent=11 // pred_check_branch
          %191 = sbr.rel (%p189) target = $region16
        $region15: #{stfpm_forward.5} parent=11 // pred_region
          _
        $region16: #{stfpm_forward.5} parent=11 // pred_fallthru
          _
        // Predicated region
        $region17: #{stfpm_forward.5} parent=11 // pred_check
          %p192 = pneg %p54
        $region18: #{stfpm_forward.5} parent=11 // pred_check_branch
          %194 = sbr.rel (%p192) target = $region20
        $region19: #{stfpm_forward.5} parent=11 // pred_region
          _
        $region20: #{stfpm_forward.5} parent=11 // pred_fallthru
          _
        // Predicated region
        $region21: #{stfpm_forward.5} parent=11 // pred_check
          %p195 = pneg %p75
        $region22: #{stfpm_forward.5} parent=11 // pred_check_branch
          %197 = sbr.rel (%p195) target = $region24
        $region23: #{stfpm_forward.5} parent=11 // pred_region
          _
        $region24: #{stfpm_forward.5} parent=11 // pred_fallthru
          _
        // Predicated region
        $region25: #{stfpm_forward.5} parent=11 // pred_check
          %p198 = pneg %p96
        $region26: #{stfpm_forward.5} parent=11 // pred_check_branch
          %200 = sbr.rel (%p198) target = $region28
        $region27: #{stfpm_forward.5} parent=11 // pred_region
          _
        $region28: #{stfpm_forward.5} parent=11 // pred_fallthru
          _
      $region12: #{stfpm_forward.5} parent=5 // pred_fallthru
        _
      %p201 = scmp.lt.s32.totalorder %s12, 2
      // Predicated region
      $region29: #{stfpm_forward.5} parent=5 // pred_check
        %p202 = pneg %p201
      $region30: #{stfpm_forward.5} parent=5 // pred_check_branch
        %204 = sbr.rel (%p202) target = $region32
      $region31: #{stfpm_forward.5} parent=5 // pred_region
        // Predicated region
        $region33: #{stfpm_forward.5} parent=31 // pred_check
          %p205 = pneg %p116
        $region34: #{stfpm_forward.5} parent=31 // pred_check_branch
          %207 = sbr.rel (%p205) target = $region36
        $region35: #{stfpm_forward.5} parent=31 // pred_region
          %s208 = sand.u32 %s106, 1
          %s209 = sand.u32 %s106, 1
          %s210 = smul.addr %s209, 4096
          %s211 = scalar_lea.vmem [#allocation2], %s210
          %s212 = smul.u32 8, %s12
          %s213 = smul.addr %s212, 8
          %s214 = scalar_lea.vmem %s4, %s213
          // Predicated region
          $region37: #{stfpm_forward.5} parent=35 // pred_check
            _
          $region38: #{stfpm_forward.5} parent=35 // pred_check_branch
            %216 = sbr.rel (0) target = $region40
          $region39: #{stfpm_forward.5} parent=35 // pred_region
            // Predicated region
            $region41: #{stfpm_forward.5} parent=39 // pred_check
              _
            $region42: #{stfpm_forward.5} parent=39 // pred_check_branch
              %218 = sbr.rel (0) target = $region44
            $region43: #{stfpm_forward.5} parent=39 // pred_region
              loop: start=0, step=1, limit=1
              $region45: #{stfpm_forward.5} parent=43 // loop_pre_header
                _
              $region46: #{stfpm_forward.5} parent=43 // loop_header
                %s220 = sphi 0, %s224
                %p221 = scmp.ge.s32.totalorder %s220, 1
                %s225 = sphi %s214, %s214
                %s226 = sphi %s211, %s211
              $region47: #{stfpm_forward.5} parent=43 // loop_header_branch
                %223 = sbr.rel (%p221) target = $region51
              $region48: #{stfpm_forward.5} parent=43 // loop_body
                %v227 = vld [vmem:[%s225] sm:$0xff]
                %228 = vst [vmem:[%s226] sm:$0xff] %v227
                %v229 = vld [vmem:[%s225 + $0x8] sm:$0xff]
                %230 = vst [vmem:[%s226 + $0x8] sm:$0xff] %v229
                %v231 = vld [vmem:[%s225 + $0x10] sm:$0xff]
                %232 = vst [vmem:[%s226 + $0x10] sm:$0xff] %v231
                %v233 = vld [vmem:[%s225 + $0x18] sm:$0xff]
                %234 = vst [vmem:[%s226 + $0x18] sm:$0xff] %v233
                %v235 = vld [vmem:[%s225 + $0x20] sm:$0xff]
                %236 = vst [vmem:[%s226 + $0x20] sm:$0xff] %v235
                %v237 = vld [vmem:[%s225 + $0x28] sm:$0xff]
                %238 = vst [vmem:[%s226 + $0x28] sm:$0xff] %v237
                %v239 = vld [vmem:[%s225 + $0x30] sm:$0xff]
                %240 = vst [vmem:[%s226 + $0x30] sm:$0xff] %v239
                %v241 = vld [vmem:[%s225 + $0x38] sm:$0xff]
                %242 = vst [vmem:[%s226 + $0x38] sm:$0xff] %v241
                %v243 = vld [vmem:[%s225 + $0x80] sm:$0xff]
                %244 = vst [vmem:[%s226 + $0x40] sm:$0xff] %v243
                %v245 = vld [vmem:[%s225 + $0x88] sm:$0xff]
                %246 = vst [vmem:[%s226 + $0x48] sm:$0xff] %v245
                %v247 = vld [vmem:[%s225 + $0x90] sm:$0xff]
                %248 = vst [vmem:[%s226 + $0x50] sm:$0xff] %v247
                %v249 = vld [vmem:[%s225 + $0x98] sm:$0xff]
                %250 = vst [vmem:[%s226 + $0x58] sm:$0xff] %v249
                %v251 = vld [vmem:[%s225 + $0xa0] sm:$0xff]
                %252 = vst [vmem:[%s226 + $0x60] sm:$0xff] %v251
                %v253 = vld [vmem:[%s225 + $0xa8] sm:$0xff]
                %254 = vst [vmem:[%s226 + $0x68] sm:$0xff] %v253
                %v255 = vld [vmem:[%s225 + $0xb0] sm:$0xff]
                %256 = vst [vmem:[%s226 + $0x70] sm:$0xff] %v255
                %v257 = vld [vmem:[%s225 + $0xb8] sm:$0xff]
                %258 = vst [vmem:[%s226 + $0x78] sm:$0xff] %v257
                %v259 = vld [vmem:[%s225 + $0x100] sm:$0xff]
                %260 = vst [vmem:[%s226 + $0x80] sm:$0xff] %v259
                %v261 = vld [vmem:[%s225 + $0x108] sm:$0xff]
                %262 = vst [vmem:[%s226 + $0x88] sm:$0xff] %v261
                %v263 = vld [vmem:[%s225 + $0x110] sm:$0xff]
                %264 = vst [vmem:[%s226 + $0x90] sm:$0xff] %v263
                %v265 = vld [vmem:[%s225 + $0x118] sm:$0xff]
                %266 = vst [vmem:[%s226 + $0x98] sm:$0xff] %v265
                %v267 = vld [vmem:[%s225 + $0x120] sm:$0xff]
                %268 = vst [vmem:[%s226 + $0xa0] sm:$0xff] %v267
                %v269 = vld [vmem:[%s225 + $0x128] sm:$0xff]
                %270 = vst [vmem:[%s226 + $0xa8] sm:$0xff] %v269
                %v271 = vld [vmem:[%s225 + $0x130] sm:$0xff]
                %272 = vst [vmem:[%s226 + $0xb0] sm:$0xff] %v271
                %v273 = vld [vmem:[%s225 + $0x138] sm:$0xff]
                %274 = vst [vmem:[%s226 + $0xb8] sm:$0xff] %v273
                %v275 = vld [vmem:[%s225 + $0x180] sm:$0xff]
                %276 = vst [vmem:[%s226 + $0xc0] sm:$0xff] %v275
                %v277 = vld [vmem:[%s225 + $0x188] sm:$0xff]
                %278 = vst [vmem:[%s226 + $0xc8] sm:$0xff] %v277
                %v279 = vld [vmem:[%s225 + $0x190] sm:$0xff]
                %280 = vst [vmem:[%s226 + $0xd0] sm:$0xff] %v279
                %v281 = vld [vmem:[%s225 + $0x198] sm:$0xff]
                %282 = vst [vmem:[%s226 + $0xd8] sm:$0xff] %v281
                %v283 = vld [vmem:[%s225 + $0x1a0] sm:$0xff]
                %284 = vst [vmem:[%s226 + $0xe0] sm:$0xff] %v283
                %v285 = vld [vmem:[%s225 + $0x1a8] sm:$0xff]
                %286 = vst [vmem:[%s226 + $0xe8] sm:$0xff] %v285
                %v287 = vld [vmem:[%s225 + $0x1b0] sm:$0xff]
                %288 = vst [vmem:[%s226 + $0xf0] sm:$0xff] %v287
                %v289 = vld [vmem:[%s225 + $0x1b8] sm:$0xff]
                %290 = vst [vmem:[%s226 + $0xf8] sm:$0xff] %v289
                %v291 = vld [vmem:[%s225 + $0x200] sm:$0xff]
                %292 = vst [vmem:[%s226 + $0x100] sm:$0xff] %v291
                %v293 = vld [vmem:[%s225 + $0x208] sm:$0xff]
                %294 = vst [vmem:[%s226 + $0x108] sm:$0xff] %v293
                %v295 = vld [vmem:[%s225 + $0x210] sm:$0xff]
                %296 = vst [vmem:[%s226 + $0x110] sm:$0xff] %v295
                %v297 = vld [vmem:[%s225 + $0x218] sm:$0xff]
                %298 = vst [vmem:[%s226 + $0x118] sm:$0xff] %v297
                %v299 = vld [vmem:[%s225 + $0x220] sm:$0xff]
                %300 = vst [vmem:[%s226 + $0x120] sm:$0xff] %v299
                %v301 = vld [vmem:[%s225 + $0x228] sm:$0xff]
                %302 = vst [vmem:[%s226 + $0x128] sm:$0xff] %v301
                %v303 = vld [vmem:[%s225 + $0x230] sm:$0xff]
                %304 = vst [vmem:[%s226 + $0x130] sm:$0xff] %v303
                %v305 = vld [vmem:[%s225 + $0x238] sm:$0xff]
                %306 = vst [vmem:[%s226 + $0x138] sm:$0xff] %v305
                %v307 = vld [vmem:[%s225 + $0x280] sm:$0xff]
                %308 = vst [vmem:[%s226 + $0x140] sm:$0xff] %v307
                %v309 = vld [vmem:[%s225 + $0x288] sm:$0xff]
                %310 = vst [vmem:[%s226 + $0x148] sm:$0xff] %v309
                %v311 = vld [vmem:[%s225 + $0x290] sm:$0xff]
                %312 = vst [vmem:[%s226 + $0x150] sm:$0xff] %v311
                %v313 = vld [vmem:[%s225 + $0x298] sm:$0xff]
                %314 = vst [vmem:[%s226 + $0x158] sm:$0xff] %v313
                %v315 = vld [vmem:[%s225 + $0x2a0] sm:$0xff]
                %316 = vst [vmem:[%s226 + $0x160] sm:$0xff] %v315
                %v317 = vld [vmem:[%s225 + $0x2a8] sm:$0xff]
                %318 = vst [vmem:[%s226 + $0x168] sm:$0xff] %v317
                %v319 = vld [vmem:[%s225 + $0x2b0] sm:$0xff]
                %320 = vst [vmem:[%s226 + $0x170] sm:$0xff] %v319
                %v321 = vld [vmem:[%s225 + $0x2b8] sm:$0xff]
                %322 = vst [vmem:[%s226 + $0x178] sm:$0xff] %v321
                %v323 = vld [vmem:[%s225 + $0x300] sm:$0xff]
                %324 = vst [vmem:[%s226 + $0x180] sm:$0xff] %v323
                %v325 = vld [vmem:[%s225 + $0x308] sm:$0xff]
                %326 = vst [vmem:[%s226 + $0x188] sm:$0xff] %v325
                %v327 = vld [vmem:[%s225 + $0x310] sm:$0xff]
                %328 = vst [vmem:[%s226 + $0x190] sm:$0xff] %v327
                %v329 = vld [vmem:[%s225 + $0x318] sm:$0xff]
                %330 = vst [vmem:[%s226 + $0x198] sm:$0xff] %v329
                %v331 = vld [vmem:[%s225 + $0x320] sm:$0xff]
                %332 = vst [vmem:[%s226 + $0x1a0] sm:$0xff] %v331
                %v333 = vld [vmem:[%s225 + $0x328] sm:$0xff]
                %334 = vst [vmem:[%s226 + $0x1a8] sm:$0xff] %v333
                %v335 = vld [vmem:[%s225 + $0x330] sm:$0xff]
                %336 = vst [vmem:[%s226 + $0x1b0] sm:$0xff] %v335
                %v337 = vld [vmem:[%s225 + $0x338] sm:$0xff]
                %338 = vst [vmem:[%s226 + $0x1b8] sm:$0xff] %v337
                %v339 = vld [vmem:[%s225 + $0x380] sm:$0xff]
                %340 = vst [vmem:[%s226 + $0x1c0] sm:$0xff] %v339
                %v341 = vld [vmem:[%s225 + $0x388] sm:$0xff]
                %342 = vst [vmem:[%s226 + $0x1c8] sm:$0xff] %v341
                %v343 = vld [vmem:[%s225 + $0x390] sm:$0xff]
                %344 = vst [vmem:[%s226 + $0x1d0] sm:$0xff] %v343
                %v345 = vld [vmem:[%s225 + $0x398] sm:$0xff]
                %346 = vst [vmem:[%s226 + $0x1d8] sm:$0xff] %v345
                %v347 = vld [vmem:[%s225 + $0x3a0] sm:$0xff]
                %348 = vst [vmem:[%s226 + $0x1e0] sm:$0xff] %v347
                %v349 = vld [vmem:[%s225 + $0x3a8] sm:$0xff]
                %350 = vst [vmem:[%s226 + $0x1e8] sm:$0xff] %v349
                %v351 = vld [vmem:[%s225 + $0x3b0] sm:$0xff]
                %352 = vst [vmem:[%s226 + $0x1f0] sm:$0xff] %v351
                %v353 = vld [vmem:[%s225 + $0x3b8] sm:$0xff]
                %354 = vst [vmem:[%s226 + $0x1f8] sm:$0xff] %v353
                %v355 = vld [vmem:[%s225 + $0x400] sm:$0xff]
                %356 = vst [vmem:[%s226 + $0x200] sm:$0xff] %v355
                %v357 = vld [vmem:[%s225 + $0x408] sm:$0xff]
                %358 = vst [vmem:[%s226 + $0x208] sm:$0xff] %v357
                %v359 = vld [vmem:[%s225 + $0x410] sm:$0xff]
                %360 = vst [vmem:[%s226 + $0x210] sm:$0xff] %v359
                %v361 = vld [vmem:[%s225 + $0x418] sm:$0xff]
                %362 = vst [vmem:[%s226 + $0x218] sm:$0xff] %v361
                %v363 = vld [vmem:[%s225 + $0x420] sm:$0xff]
                %364 = vst [vmem:[%s226 + $0x220] sm:$0xff] %v363
                %v365 = vld [vmem:[%s225 + $0x428] sm:$0xff]
                %366 = vst [vmem:[%s226 + $0x228] sm:$0xff] %v365
                %v367 = vld [vmem:[%s225 + $0x430] sm:$0xff]
                %368 = vst [vmem:[%s226 + $0x230] sm:$0xff] %v367
                %v369 = vld [vmem:[%s225 + $0x438] sm:$0xff]
                %370 = vst [vmem:[%s226 + $0x238] sm:$0xff] %v369
                %v371 = vld [vmem:[%s225 + $0x480] sm:$0xff]
                %372 = vst [vmem:[%s226 + $0x240] sm:$0xff] %v371
                %v373 = vld [vmem:[%s225 + $0x488] sm:$0xff]
                %374 = vst [vmem:[%s226 + $0x248] sm:$0xff] %v373
                %v375 = vld [vmem:[%s225 + $0x490] sm:$0xff]
                %376 = vst [vmem:[%s226 + $0x250] sm:$0xff] %v375
                %v377 = vld [vmem:[%s225 + $0x498] sm:$0xff]
                %378 = vst [vmem:[%s226 + $0x258] sm:$0xff] %v377
                %v379 = vld [vmem:[%s225 + $0x4a0] sm:$0xff]
                %380 = vst [vmem:[%s226 + $0x260] sm:$0xff] %v379
                %v381 = vld [vmem:[%s225 + $0x4a8] sm:$0xff]
                %382 = vst [vmem:[%s226 + $0x268] sm:$0xff] %v381
                %v383 = vld [vmem:[%s225 + $0x4b0] sm:$0xff]
                %384 = vst [vmem:[%s226 + $0x270] sm:$0xff] %v383
                %v385 = vld [vmem:[%s225 + $0x4b8] sm:$0xff]
                %386 = vst [vmem:[%s226 + $0x278] sm:$0xff] %v385
                %v387 = vld [vmem:[%s225 + $0x500] sm:$0xff]
                %388 = vst [vmem:[%s226 + $0x280] sm:$0xff] %v387
                %v389 = vld [vmem:[%s225 + $0x508] sm:$0xff]
                %390 = vst [vmem:[%s226 + $0x288] sm:$0xff] %v389
                %v391 = vld [vmem:[%s225 + $0x510] sm:$0xff]
                %392 = vst [vmem:[%s226 + $0x290] sm:$0xff] %v391
                %v393 = vld [vmem:[%s225 + $0x518] sm:$0xff]
                %394 = vst [vmem:[%s226 + $0x298] sm:$0xff] %v393
                %v395 = vld [vmem:[%s225 + $0x520] sm:$0xff]
                %396 = vst [vmem:[%s226 + $0x2a0] sm:$0xff] %v395
                %v397 = vld [vmem:[%s225 + $0x528] sm:$0xff]
                %398 = vst [vmem:[%s226 + $0x2a8] sm:$0xff] %v397
                %v399 = vld [vmem:[%s225 + $0x530] sm:$0xff]
                %400 = vst [vmem:[%s226 + $0x2b0] sm:$0xff] %v399
                %v401 = vld [vmem:[%s225 + $0x538] sm:$0xff]
                %402 = vst [vmem:[%s226 + $0x2b8] sm:$0xff] %v401
                %v403 = vld [vmem:[%s225 + $0x580] sm:$0xff]
                %404 = vst [vmem:[%s226 + $0x2c0] sm:$0xff] %v403
                %v405 = vld [vmem:[%s225 + $0x588] sm:$0xff]
                %406 = vst [vmem:[%s226 + $0x2c8] sm:$0xff] %v405
                %v407 = vld [vmem:[%s225 + $0x590] sm:$0xff]
                %408 = vst [vmem:[%s226 + $0x2d0] sm:$0xff] %v407
                %v409 = vld [vmem:[%s225 + $0x598] sm:$0xff]
                %410 = vst [vmem:[%s226 + $0x2d8] sm:$0xff] %v409
                %v411 = vld [vmem:[%s225 + $0x5a0] sm:$0xff]
                %412 = vst [vmem:[%s226 + $0x2e0] sm:$0xff] %v411
                %v413 = vld [vmem:[%s225 + $0x5a8] sm:$0xff]
                %414 = vst [vmem:[%s226 + $0x2e8] sm:$0xff] %v413
                %v415 = vld [vmem:[%s225 + $0x5b0] sm:$0xff]
                %416 = vst [vmem:[%s226 + $0x2f0] sm:$0xff] %v415
                %v417 = vld [vmem:[%s225 + $0x5b8] sm:$0xff]
                %418 = vst [vmem:[%s226 + $0x2f8] sm:$0xff] %v417
                %v419 = vld [vmem:[%s225 + $0x600] sm:$0xff]
                %420 = vst [vmem:[%s226 + $0x300] sm:$0xff] %v419
                %v421 = vld [vmem:[%s225 + $0x608] sm:$0xff]
                %422 = vst [vmem:[%s226 + $0x308] sm:$0xff] %v421
                %v423 = vld [vmem:[%s225 + $0x610] sm:$0xff]
                %424 = vst [vmem:[%s226 + $0x310] sm:$0xff] %v423
                %v425 = vld [vmem:[%s225 + $0x618] sm:$0xff]
                %426 = vst [vmem:[%s226 + $0x318] sm:$0xff] %v425
                %v427 = vld [vmem:[%s225 + $0x620] sm:$0xff]
                %428 = vst [vmem:[%s226 + $0x320] sm:$0xff] %v427
                %v429 = vld [vmem:[%s225 + $0x628] sm:$0xff]
                %430 = vst [vmem:[%s226 + $0x328] sm:$0xff] %v429
                %v431 = vld [vmem:[%s225 + $0x630] sm:$0xff]
                %432 = vst [vmem:[%s226 + $0x330] sm:$0xff] %v431
                %v433 = vld [vmem:[%s225 + $0x638] sm:$0xff]
                %434 = vst [vmem:[%s226 + $0x338] sm:$0xff] %v433
                %v435 = vld [vmem:[%s225 + $0x680] sm:$0xff]
                %436 = vst [vmem:[%s226 + $0x340] sm:$0xff] %v435
                %v437 = vld [vmem:[%s225 + $0x688] sm:$0xff]
                %438 = vst [vmem:[%s226 + $0x348] sm:$0xff] %v437
                %v439 = vld [vmem:[%s225 + $0x690] sm:$0xff]
                %440 = vst [vmem:[%s226 + $0x350] sm:$0xff] %v439
                %v441 = vld [vmem:[%s225 + $0x698] sm:$0xff]
                %442 = vst [vmem:[%s226 + $0x358] sm:$0xff] %v441
                %v443 = vld [vmem:[%s225 + $0x6a0] sm:$0xff]
                %444 = vst [vmem:[%s226 + $0x360] sm:$0xff] %v443
                %v445 = vld [vmem:[%s225 + $0x6a8] sm:$0xff]
                %446 = vst [vmem:[%s226 + $0x368] sm:$0xff] %v445
                %v447 = vld [vmem:[%s225 + $0x6b0] sm:$0xff]
                %448 = vst [vmem:[%s226 + $0x370] sm:$0xff] %v447
                %v449 = vld [vmem:[%s225 + $0x6b8] sm:$0xff]
                %450 = vst [vmem:[%s226 + $0x378] sm:$0xff] %v449
                %v451 = vld [vmem:[%s225 + $0x700] sm:$0xff]
                %452 = vst [vmem:[%s226 + $0x380] sm:$0xff] %v451
                %v453 = vld [vmem:[%s225 + $0x708] sm:$0xff]
                %454 = vst [vmem:[%s226 + $0x388] sm:$0xff] %v453
                %v455 = vld [vmem:[%s225 + $0x710] sm:$0xff]
                %456 = vst [vmem:[%s226 + $0x390] sm:$0xff] %v455
                %v457 = vld [vmem:[%s225 + $0x718] sm:$0xff]
                %458 = vst [vmem:[%s226 + $0x398] sm:$0xff] %v457
                %v459 = vld [vmem:[%s225 + $0x720] sm:$0xff]
                %460 = vst [vmem:[%s226 + $0x3a0] sm:$0xff] %v459
                %v461 = vld [vmem:[%s225 + $0x728] sm:$0xff]
                %462 = vst [vmem:[%s226 + $0x3a8] sm:$0xff] %v461
                %v463 = vld [vmem:[%s225 + $0x730] sm:$0xff]
                %464 = vst [vmem:[%s226 + $0x3b0] sm:$0xff] %v463
                %v465 = vld [vmem:[%s225 + $0x738] sm:$0xff]
                %466 = vst [vmem:[%s226 + $0x3b8] sm:$0xff] %v465
                %v467 = vld [vmem:[%s225 + $0x780] sm:$0xff]
                %468 = vst [vmem:[%s226 + $0x3c0] sm:$0xff] %v467
                %v469 = vld [vmem:[%s225 + $0x788] sm:$0xff]
                %470 = vst [vmem:[%s226 + $0x3c8] sm:$0xff] %v469
                %v471 = vld [vmem:[%s225 + $0x790] sm:$0xff]
                %472 = vst [vmem:[%s226 + $0x3d0] sm:$0xff] %v471
                %v473 = vld [vmem:[%s225 + $0x798] sm:$0xff]
                %474 = vst [vmem:[%s226 + $0x3d8] sm:$0xff] %v473
                %v475 = vld [vmem:[%s225 + $0x7a0] sm:$0xff]
                %476 = vst [vmem:[%s226 + $0x3e0] sm:$0xff] %v475
                %v477 = vld [vmem:[%s225 + $0x7a8] sm:$0xff]
                %478 = vst [vmem:[%s226 + $0x3e8] sm:$0xff] %v477
                %v479 = vld [vmem:[%s225 + $0x7b0] sm:$0xff]
                %480 = vst [vmem:[%s226 + $0x3f0] sm:$0xff] %v479
                %v481 = vld [vmem:[%s225 + $0x7b8] sm:$0xff]
                %482 = vst [vmem:[%s226 + $0x3f8] sm:$0xff] %v481
                %v483 = vld [vmem:[%s225 + $0x800] sm:$0xff]
                %484 = vst [vmem:[%s226 + $0x400] sm:$0xff] %v483
                %v485 = vld [vmem:[%s225 + $0x808] sm:$0xff]
                %486 = vst [vmem:[%s226 + $0x408] sm:$0xff] %v485
                %v487 = vld [vmem:[%s225 + $0x810] sm:$0xff]
                %488 = vst [vmem:[%s226 + $0x410] sm:$0xff] %v487
                %v489 = vld [vmem:[%s225 + $0x818] sm:$0xff]
                %490 = vst [vmem:[%s226 + $0x418] sm:$0xff] %v489
                %v491 = vld [vmem:[%s225 + $0x820] sm:$0xff]
                %492 = vst [vmem:[%s226 + $0x420] sm:$0xff] %v491
                %v493 = vld [vmem:[%s225 + $0x828] sm:$0xff]
                %494 = vst [vmem:[%s226 + $0x428] sm:$0xff] %v493
                %v495 = vld [vmem:[%s225 + $0x830] sm:$0xff]
                %496 = vst [vmem:[%s226 + $0x430] sm:$0xff] %v495
                %v497 = vld [vmem:[%s225 + $0x838] sm:$0xff]
                %498 = vst [vmem:[%s226 + $0x438] sm:$0xff] %v497
                %v499 = vld [vmem:[%s225 + $0x880] sm:$0xff]
                %500 = vst [vmem:[%s226 + $0x440] sm:$0xff] %v499
                %v501 = vld [vmem:[%s225 + $0x888] sm:$0xff]
                %502 = vst [vmem:[%s226 + $0x448] sm:$0xff] %v501
                %v503 = vld [vmem:[%s225 + $0x890] sm:$0xff]
                %504 = vst [vmem:[%s226 + $0x450] sm:$0xff] %v503
                %v505 = vld [vmem:[%s225 + $0x898] sm:$0xff]
                %506 = vst [vmem:[%s226 + $0x458] sm:$0xff] %v505
                %v507 = vld [vmem:[%s225 + $0x8a0] sm:$0xff]
                %508 = vst [vmem:[%s226 + $0x460] sm:$0xff] %v507
                %v509 = vld [vmem:[%s225 + $0x8a8] sm:$0xff]
                %510 = vst [vmem:[%s226 + $0x468] sm:$0xff] %v509
                %v511 = vld [vmem:[%s225 + $0x8b0] sm:$0xff]
                %512 = vst [vmem:[%s226 + $0x470] sm:$0xff] %v511
                %v513 = vld [vmem:[%s225 + $0x8b8] sm:$0xff]
                %514 = vst [vmem:[%s226 + $0x478] sm:$0xff] %v513
                %v515 = vld [vmem:[%s225 + $0x900] sm:$0xff]
                %516 = vst [vmem:[%s226 + $0x480] sm:$0xff] %v515
                %v517 = vld [vmem:[%s225 + $0x908] sm:$0xff]
                %518 = vst [vmem:[%s226 + $0x488] sm:$0xff] %v517
                %v519 = vld [vmem:[%s225 + $0x910] sm:$0xff]
                %520 = vst [vmem:[%s226 + $0x490] sm:$0xff] %v519
                %v521 = vld [vmem:[%s225 + $0x918] sm:$0xff]
                %522 = vst [vmem:[%s226 + $0x498] sm:$0xff] %v521
                %v523 = vld [vmem:[%s225 + $0x920] sm:$0xff]
                %524 = vst [vmem:[%s226 + $0x4a0] sm:$0xff] %v523
                %v525 = vld [vmem:[%s225 + $0x928] sm:$0xff]
                %526 = vst [vmem:[%s226 + $0x4a8] sm:$0xff] %v525
                %v527 = vld [vmem:[%s225 + $0x930] sm:$0xff]
                %528 = vst [vmem:[%s226 + $0x4b0] sm:$0xff] %v527
                %v529 = vld [vmem:[%s225 + $0x938] sm:$0xff]
                %530 = vst [vmem:[%s226 + $0x4b8] sm:$0xff] %v529
                %v531 = vld [vmem:[%s225 + $0x980] sm:$0xff]
                %532 = vst [vmem:[%s226 + $0x4c0] sm:$0xff] %v531
                %v533 = vld [vmem:[%s225 + $0x988] sm:$0xff]
                %534 = vst [vmem:[%s226 + $0x4c8] sm:$0xff] %v533
                %v535 = vld [vmem:[%s225 + $0x990] sm:$0xff]
                %536 = vst [vmem:[%s226 + $0x4d0] sm:$0xff] %v535
                %v537 = vld [vmem:[%s225 + $0x998] sm:$0xff]
                %538 = vst [vmem:[%s226 + $0x4d8] sm:$0xff] %v537
                %v539 = vld [vmem:[%s225 + $0x9a0] sm:$0xff]
                %540 = vst [vmem:[%s226 + $0x4e0] sm:$0xff] %v539
                %v541 = vld [vmem:[%s225 + $0x9a8] sm:$0xff]
                %542 = vst [vmem:[%s226 + $0x4e8] sm:$0xff] %v541
                %v543 = vld [vmem:[%s225 + $0x9b0] sm:$0xff]
                %544 = vst [vmem:[%s226 + $0x4f0] sm:$0xff] %v543
                %v545 = vld [vmem:[%s225 + $0x9b8] sm:$0xff]
                %546 = vst [vmem:[%s226 + $0x4f8] sm:$0xff] %v545
                %v547 = vld [vmem:[%s225 + $0xa00] sm:$0xff]
                %548 = vst [vmem:[%s226 + $0x500] sm:$0xff] %v547
                %v549 = vld [vmem:[%s225 + $0xa08] sm:$0xff]
                %550 = vst [vmem:[%s226 + $0x508] sm:$0xff] %v549
                %v551 = vld [vmem:[%s225 + $0xa10] sm:$0xff]
                %552 = vst [vmem:[%s226 + $0x510] sm:$0xff] %v551
                %v553 = vld [vmem:[%s225 + $0xa18] sm:$0xff]
                %554 = vst [vmem:[%s226 + $0x518] sm:$0xff] %v553
                %v555 = vld [vmem:[%s225 + $0xa20] sm:$0xff]
                %556 = vst [vmem:[%s226 + $0x520] sm:$0xff] %v555
                %v557 = vld [vmem:[%s225 + $0xa28] sm:$0xff]
                %558 = vst [vmem:[%s226 + $0x528] sm:$0xff] %v557
                %v559 = vld [vmem:[%s225 + $0xa30] sm:$0xff]
                %560 = vst [vmem:[%s226 + $0x530] sm:$0xff] %v559
                %v561 = vld [vmem:[%s225 + $0xa38] sm:$0xff]
                %562 = vst [vmem:[%s226 + $0x538] sm:$0xff] %v561
                %v563 = vld [vmem:[%s225 + $0xa80] sm:$0xff]
                %564 = vst [vmem:[%s226 + $0x540] sm:$0xff] %v563
                %v565 = vld [vmem:[%s225 + $0xa88] sm:$0xff]
                %566 = vst [vmem:[%s226 + $0x548] sm:$0xff] %v565
                %v567 = vld [vmem:[%s225 + $0xa90] sm:$0xff]
                %568 = vst [vmem:[%s226 + $0x550] sm:$0xff] %v567
                %v569 = vld [vmem:[%s225 + $0xa98] sm:$0xff]
                %570 = vst [vmem:[%s226 + $0x558] sm:$0xff] %v569
                %v571 = vld [vmem:[%s225 + $0xaa0] sm:$0xff]
                %572 = vst [vmem:[%s226 + $0x560] sm:$0xff] %v571
                %v573 = vld [vmem:[%s225 + $0xaa8] sm:$0xff]
                %574 = vst [vmem:[%s226 + $0x568] sm:$0xff] %v573
                %v575 = vld [vmem:[%s225 + $0xab0] sm:$0xff]
                %576 = vst [vmem:[%s226 + $0x570] sm:$0xff] %v575
                %v577 = vld [vmem:[%s225 + $0xab8] sm:$0xff]
                %578 = vst [vmem:[%s226 + $0x578] sm:$0xff] %v577
                %v579 = vld [vmem:[%s225 + $0xb00] sm:$0xff]
                %580 = vst [vmem:[%s226 + $0x580] sm:$0xff] %v579
                %v581 = vld [vmem:[%s225 + $0xb08] sm:$0xff]
                %582 = vst [vmem:[%s226 + $0x588] sm:$0xff] %v581
                %v583 = vld [vmem:[%s225 + $0xb10] sm:$0xff]
                %584 = vst [vmem:[%s226 + $0x590] sm:$0xff] %v583
                %v585 = vld [vmem:[%s225 + $0xb18] sm:$0xff]
                %586 = vst [vmem:[%s226 + $0x598] sm:$0xff] %v585
                %v587 = vld [vmem:[%s225 + $0xb20] sm:$0xff]
                %588 = vst [vmem:[%s226 + $0x5a0] sm:$0xff] %v587
                %v589 = vld [vmem:[%s225 + $0xb28] sm:$0xff]
                %590 = vst [vmem:[%s226 + $0x5a8] sm:$0xff] %v589
                %v591 = vld [vmem:[%s225 + $0xb30] sm:$0xff]
                %592 = vst [vmem:[%s226 + $0x5b0] sm:$0xff] %v591
                %v593 = vld [vmem:[%s225 + $0xb38] sm:$0xff]
                %594 = vst [vmem:[%s226 + $0x5b8] sm:$0xff] %v593
                %v595 = vld [vmem:[%s225 + $0xb80] sm:$0xff]
                %596 = vst [vmem:[%s226 + $0x5c0] sm:$0xff] %v595
                %v597 = vld [vmem:[%s225 + $0xb88] sm:$0xff]
                %598 = vst [vmem:[%s226 + $0x5c8] sm:$0xff] %v597
                %v599 = vld [vmem:[%s225 + $0xb90] sm:$0xff]
                %600 = vst [vmem:[%s226 + $0x5d0] sm:$0xff] %v599
                %v601 = vld [vmem:[%s225 + $0xb98] sm:$0xff]
                %602 = vst [vmem:[%s226 + $0x5d8] sm:$0xff] %v601
                %v603 = vld [vmem:[%s225 + $0xba0] sm:$0xff]
                %604 = vst [vmem:[%s226 + $0x5e0] sm:$0xff] %v603
                %v605 = vld [vmem:[%s225 + $0xba8] sm:$0xff]
                %606 = vst [vmem:[%s226 + $0x5e8] sm:$0xff] %v605
                %v607 = vld [vmem:[%s225 + $0xbb0] sm:$0xff]
                %608 = vst [vmem:[%s226 + $0x5f0] sm:$0xff] %v607
                %v609 = vld [vmem:[%s225 + $0xbb8] sm:$0xff]
                %610 = vst [vmem:[%s226 + $0x5f8] sm:$0xff] %v609
                %v611 = vld [vmem:[%s225 + $0xc00] sm:$0xff]
                %612 = vst [vmem:[%s226 + $0x600] sm:$0xff] %v611
                %v613 = vld [vmem:[%s225 + $0xc08] sm:$0xff]
                %614 = vst [vmem:[%s226 + $0x608] sm:$0xff] %v613
                %v615 = vld [vmem:[%s225 + $0xc10] sm:$0xff]
                %616 = vst [vmem:[%s226 + $0x610] sm:$0xff] %v615
                %v617 = vld [vmem:[%s225 + $0xc18] sm:$0xff]
                %618 = vst [vmem:[%s226 + $0x618] sm:$0xff] %v617
                %v619 = vld [vmem:[%s225 + $0xc20] sm:$0xff]
                %620 = vst [vmem:[%s226 + $0x620] sm:$0xff] %v619
                %v621 = vld [vmem:[%s225 + $0xc28] sm:$0xff]
                %622 = vst [vmem:[%s226 + $0x628] sm:$0xff] %v621
                %v623 = vld [vmem:[%s225 + $0xc30] sm:$0xff]
                %624 = vst [vmem:[%s226 + $0x630] sm:$0xff] %v623
                %v625 = vld [vmem:[%s225 + $0xc38] sm:$0xff]
                %626 = vst [vmem:[%s226 + $0x638] sm:$0xff] %v625
                %v627 = vld [vmem:[%s225 + $0xc80] sm:$0xff]
                %628 = vst [vmem:[%s226 + $0x640] sm:$0xff] %v627
                %v629 = vld [vmem:[%s225 + $0xc88] sm:$0xff]
                %630 = vst [vmem:[%s226 + $0x648] sm:$0xff] %v629
                %v631 = vld [vmem:[%s225 + $0xc90] sm:$0xff]
                %632 = vst [vmem:[%s226 + $0x650] sm:$0xff] %v631
                %v633 = vld [vmem:[%s225 + $0xc98] sm:$0xff]
                %634 = vst [vmem:[%s226 + $0x658] sm:$0xff] %v633
                %v635 = vld [vmem:[%s225 + $0xca0] sm:$0xff]
                %636 = vst [vmem:[%s226 + $0x660] sm:$0xff] %v635
                %v637 = vld [vmem:[%s225 + $0xca8] sm:$0xff]
                %638 = vst [vmem:[%s226 + $0x668] sm:$0xff] %v637
                %v639 = vld [vmem:[%s225 + $0xcb0] sm:$0xff]
                %640 = vst [vmem:[%s226 + $0x670] sm:$0xff] %v639
                %v641 = vld [vmem:[%s225 + $0xcb8] sm:$0xff]
                %642 = vst [vmem:[%s226 + $0x678] sm:$0xff] %v641
                %v643 = vld [vmem:[%s225 + $0xd00] sm:$0xff]
                %644 = vst [vmem:[%s226 + $0x680] sm:$0xff] %v643
                %v645 = vld [vmem:[%s225 + $0xd08] sm:$0xff]
                %646 = vst [vmem:[%s226 + $0x688] sm:$0xff] %v645
                %v647 = vld [vmem:[%s225 + $0xd10] sm:$0xff]
                %648 = vst [vmem:[%s226 + $0x690] sm:$0xff] %v647
                %v649 = vld [vmem:[%s225 + $0xd18] sm:$0xff]
                %650 = vst [vmem:[%s226 + $0x698] sm:$0xff] %v649
                %v651 = vld [vmem:[%s225 + $0xd20] sm:$0xff]
                %652 = vst [vmem:[%s226 + $0x6a0] sm:$0xff] %v651
                %v653 = vld [vmem:[%s225 + $0xd28] sm:$0xff]
                %654 = vst [vmem:[%s226 + $0x6a8] sm:$0xff] %v653
                %v655 = vld [vmem:[%s225 + $0xd30] sm:$0xff]
                %656 = vst [vmem:[%s226 + $0x6b0] sm:$0xff] %v655
                %v657 = vld [vmem:[%s225 + $0xd38] sm:$0xff]
                %658 = vst [vmem:[%s226 + $0x6b8] sm:$0xff] %v657
                %v659 = vld [vmem:[%s225 + $0xd80] sm:$0xff]
                %660 = vst [vmem:[%s226 + $0x6c0] sm:$0xff] %v659
                %v661 = vld [vmem:[%s225 + $0xd88] sm:$0xff]
                %662 = vst [vmem:[%s226 + $0x6c8] sm:$0xff] %v661
                %v663 = vld [vmem:[%s225 + $0xd90] sm:$0xff]
                %664 = vst [vmem:[%s226 + $0x6d0] sm:$0xff] %v663
                %v665 = vld [vmem:[%s225 + $0xd98] sm:$0xff]
                %666 = vst [vmem:[%s226 + $0x6d8] sm:$0xff] %v665
                %v667 = vld [vmem:[%s225 + $0xda0] sm:$0xff]
                %668 = vst [vmem:[%s226 + $0x6e0] sm:$0xff] %v667
                %v669 = vld [vmem:[%s225 + $0xda8] sm:$0xff]
                %670 = vst [vmem:[%s226 + $0x6e8] sm:$0xff] %v669
                %v671 = vld [vmem:[%s225 + $0xdb0] sm:$0xff]
                %672 = vst [vmem:[%s226 + $0x6f0] sm:$0xff] %v671
                %v673 = vld [vmem:[%s225 + $0xdb8] sm:$0xff]
                %674 = vst [vmem:[%s226 + $0x6f8] sm:$0xff] %v673
                %v675 = vld [vmem:[%s225 + $0xe00] sm:$0xff]
                %676 = vst [vmem:[%s226 + $0x700] sm:$0xff] %v675
                %v677 = vld [vmem:[%s225 + $0xe08] sm:$0xff]
                %678 = vst [vmem:[%s226 + $0x708] sm:$0xff] %v677
                %v679 = vld [vmem:[%s225 + $0xe10] sm:$0xff]
                %680 = vst [vmem:[%s226 + $0x710] sm:$0xff] %v679
                %v681 = vld [vmem:[%s225 + $0xe18] sm:$0xff]
                %682 = vst [vmem:[%s226 + $0x718] sm:$0xff] %v681
                %v683 = vld [vmem:[%s225 + $0xe20] sm:$0xff]
                %684 = vst [vmem:[%s226 + $0x720] sm:$0xff] %v683
                %v685 = vld [vmem:[%s225 + $0xe28] sm:$0xff]
                %686 = vst [vmem:[%s226 + $0x728] sm:$0xff] %v685
                %v687 = vld [vmem:[%s225 + $0xe30] sm:$0xff]
                %688 = vst [vmem:[%s226 + $0x730] sm:$0xff] %v687
                %v689 = vld [vmem:[%s225 + $0xe38] sm:$0xff]
                %690 = vst [vmem:[%s226 + $0x738] sm:$0xff] %v689
                %v691 = vld [vmem:[%s225 + $0xe80] sm:$0xff]
                %692 = vst [vmem:[%s226 + $0x740] sm:$0xff] %v691
                %v693 = vld [vmem:[%s225 + $0xe88] sm:$0xff]
                %694 = vst [vmem:[%s226 + $0x748] sm:$0xff] %v693
                %v695 = vld [vmem:[%s225 + $0xe90] sm:$0xff]
                %696 = vst [vmem:[%s226 + $0x750] sm:$0xff] %v695
                %v697 = vld [vmem:[%s225 + $0xe98] sm:$0xff]
                %698 = vst [vmem:[%s226 + $0x758] sm:$0xff] %v697
                %v699 = vld [vmem:[%s225 + $0xea0] sm:$0xff]
                %700 = vst [vmem:[%s226 + $0x760] sm:$0xff] %v699
                %v701 = vld [vmem:[%s225 + $0xea8] sm:$0xff]
                %702 = vst [vmem:[%s226 + $0x768] sm:$0xff] %v701
                %v703 = vld [vmem:[%s225 + $0xeb0] sm:$0xff]
                %704 = vst [vmem:[%s226 + $0x770] sm:$0xff] %v703
                %v705 = vld [vmem:[%s225 + $0xeb8] sm:$0xff]
                %706 = vst [vmem:[%s226 + $0x778] sm:$0xff] %v705
                %v707 = vld [vmem:[%s225 + $0xf00] sm:$0xff]
                %708 = vst [vmem:[%s226 + $0x780] sm:$0xff] %v707
                %v709 = vld [vmem:[%s225 + $0xf08] sm:$0xff]
                %710 = vst [vmem:[%s226 + $0x788] sm:$0xff] %v709
                %v711 = vld [vmem:[%s225 + $0xf10] sm:$0xff]
                %712 = vst [vmem:[%s226 + $0x790] sm:$0xff] %v711
                %v713 = vld [vmem:[%s225 + $0xf18] sm:$0xff]
                %714 = vst [vmem:[%s226 + $0x798] sm:$0xff] %v713
                %v715 = vld [vmem:[%s225 + $0xf20] sm:$0xff]
                %716 = vst [vmem:[%s226 + $0x7a0] sm:$0xff] %v715
                %v717 = vld [vmem:[%s225 + $0xf28] sm:$0xff]
                %718 = vst [vmem:[%s226 + $0x7a8] sm:$0xff] %v717
                %v719 = vld [vmem:[%s225 + $0xf30] sm:$0xff]
                %720 = vst [vmem:[%s226 + $0x7b0] sm:$0xff] %v719
                %v721 = vld [vmem:[%s225 + $0xf38] sm:$0xff]
                %722 = vst [vmem:[%s226 + $0x7b8] sm:$0xff] %v721
                %v723 = vld [vmem:[%s225 + $0xf80] sm:$0xff]
                %724 = vst [vmem:[%s226 + $0x7c0] sm:$0xff] %v723
                %v725 = vld [vmem:[%s225 + $0xf88] sm:$0xff]
                %726 = vst [vmem:[%s226 + $0x7c8] sm:$0xff] %v725
                %v727 = vld [vmem:[%s225 + $0xf90] sm:$0xff]
                %728 = vst [vmem:[%s226 + $0x7d0] sm:$0xff] %v727
                %v729 = vld [vmem:[%s225 + $0xf98] sm:$0xff]
                %730 = vst [vmem:[%s226 + $0x7d8] sm:$0xff] %v729
                %v731 = vld [vmem:[%s225 + $0xfa0] sm:$0xff]
                %732 = vst [vmem:[%s226 + $0x7e0] sm:$0xff] %v731
                %v733 = vld [vmem:[%s225 + $0xfa8] sm:$0xff]
                %734 = vst [vmem:[%s226 + $0x7e8] sm:$0xff] %v733
                %v735 = vld [vmem:[%s225 + $0xfb0] sm:$0xff]
                %736 = vst [vmem:[%s226 + $0x7f0] sm:$0xff] %v735
                %v737 = vld [vmem:[%s225 + $0xfb8] sm:$0xff]
                %738 = vst [vmem:[%s226 + $0x7f8] sm:$0xff] %v737
                %v739 = vld [vmem:[%s225 + $0x1000] sm:$0xff]
                %740 = vst [vmem:[%s226 + $0x800] sm:$0xff] %v739
                %v741 = vld [vmem:[%s225 + $0x1008] sm:$0xff]
                %742 = vst [vmem:[%s226 + $0x808] sm:$0xff] %v741
                %v743 = vld [vmem:[%s225 + $0x1010] sm:$0xff]
                %744 = vst [vmem:[%s226 + $0x810] sm:$0xff] %v743
                %v745 = vld [vmem:[%s225 + $0x1018] sm:$0xff]
                %746 = vst [vmem:[%s226 + $0x818] sm:$0xff] %v745
                %v747 = vld [vmem:[%s225 + $0x1020] sm:$0xff]
                %748 = vst [vmem:[%s226 + $0x820] sm:$0xff] %v747
                %v749 = vld [vmem:[%s225 + $0x1028] sm:$0xff]
                %750 = vst [vmem:[%s226 + $0x828] sm:$0xff] %v749
                %v751 = vld [vmem:[%s225 + $0x1030] sm:$0xff]
                %752 = vst [vmem:[%s226 + $0x830] sm:$0xff] %v751
                %v753 = vld [vmem:[%s225 + $0x1038] sm:$0xff]
                %754 = vst [vmem:[%s226 + $0x838] sm:$0xff] %v753
                %v755 = vld [vmem:[%s225 + $0x1080] sm:$0xff]
                %756 = vst [vmem:[%s226 + $0x840] sm:$0xff] %v755
                %v757 = vld [vmem:[%s225 + $0x1088] sm:$0xff]
                %758 = vst [vmem:[%s226 + $0x848] sm:$0xff] %v757
                %v759 = vld [vmem:[%s225 + $0x1090] sm:$0xff]
                %760 = vst [vmem:[%s226 + $0x850] sm:$0xff] %v759
                %v761 = vld [vmem:[%s225 + $0x1098] sm:$0xff]
                %762 = vst [vmem:[%s226 + $0x858] sm:$0xff] %v761
                %v763 = vld [vmem:[%s225 + $0x10a0] sm:$0xff]
                %764 = vst [vmem:[%s226 + $0x860] sm:$0xff] %v763
                %v765 = vld [vmem:[%s225 + $0x10a8] sm:$0xff]
                %766 = vst [vmem:[%s226 + $0x868] sm:$0xff] %v765
                %v767 = vld [vmem:[%s225 + $0x10b0] sm:$0xff]
                %768 = vst [vmem:[%s226 + $0x870] sm:$0xff] %v767
                %v769 = vld [vmem:[%s225 + $0x10b8] sm:$0xff]
                %770 = vst [vmem:[%s226 + $0x878] sm:$0xff] %v769
                %v771 = vld [vmem:[%s225 + $0x1100] sm:$0xff]
                %772 = vst [vmem:[%s226 + $0x880] sm:$0xff] %v771
                %v773 = vld [vmem:[%s225 + $0x1108] sm:$0xff]
                %774 = vst [vmem:[%s226 + $0x888] sm:$0xff] %v773
                %v775 = vld [vmem:[%s225 + $0x1110] sm:$0xff]
                %776 = vst [vmem:[%s226 + $0x890] sm:$0xff] %v775
                %v777 = vld [vmem:[%s225 + $0x1118] sm:$0xff]
                %778 = vst [vmem:[%s226 + $0x898] sm:$0xff] %v777
                %v779 = vld [vmem:[%s225 + $0x1120] sm:$0xff]
                %780 = vst [vmem:[%s226 + $0x8a0] sm:$0xff] %v779
                %v781 = vld [vmem:[%s225 + $0x1128] sm:$0xff]
                %782 = vst [vmem:[%s226 + $0x8a8] sm:$0xff] %v781
                %v783 = vld [vmem:[%s225 + $0x1130] sm:$0xff]
                %784 = vst [vmem:[%s226 + $0x8b0] sm:$0xff] %v783
                %v785 = vld [vmem:[%s225 + $0x1138] sm:$0xff]
                %786 = vst [vmem:[%s226 + $0x8b8] sm:$0xff] %v785
                %v787 = vld [vmem:[%s225 + $0x1180] sm:$0xff]
                %788 = vst [vmem:[%s226 + $0x8c0] sm:$0xff] %v787
                %v789 = vld [vmem:[%s225 + $0x1188] sm:$0xff]
                %790 = vst [vmem:[%s226 + $0x8c8] sm:$0xff] %v789
                %v791 = vld [vmem:[%s225 + $0x1190] sm:$0xff]
                %792 = vst [vmem:[%s226 + $0x8d0] sm:$0xff] %v791
                %v793 = vld [vmem:[%s225 + $0x1198] sm:$0xff]
                %794 = vst [vmem:[%s226 + $0x8d8] sm:$0xff] %v793
                %v795 = vld [vmem:[%s225 + $0x11a0] sm:$0xff]
                %796 = vst [vmem:[%s226 + $0x8e0] sm:$0xff] %v795
                %v797 = vld [vmem:[%s225 + $0x11a8] sm:$0xff]
                %798 = vst [vmem:[%s226 + $0x8e8] sm:$0xff] %v797
                %v799 = vld [vmem:[%s225 + $0x11b0] sm:$0xff]
                %800 = vst [vmem:[%s226 + $0x8f0] sm:$0xff] %v799
                %v801 = vld [vmem:[%s225 + $0x11b8] sm:$0xff]
                %802 = vst [vmem:[%s226 + $0x8f8] sm:$0xff] %v801
                %v803 = vld [vmem:[%s225 + $0x1200] sm:$0xff]
                %804 = vst [vmem:[%s226 + $0x900] sm:$0xff] %v803
                %v805 = vld [vmem:[%s225 + $0x1208] sm:$0xff]
                %806 = vst [vmem:[%s226 + $0x908] sm:$0xff] %v805
                %v807 = vld [vmem:[%s225 + $0x1210] sm:$0xff]
                %808 = vst [vmem:[%s226 + $0x910] sm:$0xff] %v807
                %v809 = vld [vmem:[%s225 + $0x1218] sm:$0xff]
                %810 = vst [vmem:[%s226 + $0x918] sm:$0xff] %v809
                %v811 = vld [vmem:[%s225 + $0x1220] sm:$0xff]
                %812 = vst [vmem:[%s226 + $0x920] sm:$0xff] %v811
                %v813 = vld [vmem:[%s225 + $0x1228] sm:$0xff]
                %814 = vst [vmem:[%s226 + $0x928] sm:$0xff] %v813
                %v815 = vld [vmem:[%s225 + $0x1230] sm:$0xff]
                %816 = vst [vmem:[%s226 + $0x930] sm:$0xff] %v815
                %v817 = vld [vmem:[%s225 + $0x1238] sm:$0xff]
                %818 = vst [vmem:[%s226 + $0x938] sm:$0xff] %v817
                %v819 = vld [vmem:[%s225 + $0x1280] sm:$0xff]
                %820 = vst [vmem:[%s226 + $0x940] sm:$0xff] %v819
                %v821 = vld [vmem:[%s225 + $0x1288] sm:$0xff]
                %822 = vst [vmem:[%s226 + $0x948] sm:$0xff] %v821
                %v823 = vld [vmem:[%s225 + $0x1290] sm:$0xff]
                %824 = vst [vmem:[%s226 + $0x950] sm:$0xff] %v823
                %v825 = vld [vmem:[%s225 + $0x1298] sm:$0xff]
                %826 = vst [vmem:[%s226 + $0x958] sm:$0xff] %v825
                %v827 = vld [vmem:[%s225 + $0x12a0] sm:$0xff]
                %828 = vst [vmem:[%s226 + $0x960] sm:$0xff] %v827
                %v829 = vld [vmem:[%s225 + $0x12a8] sm:$0xff]
                %830 = vst [vmem:[%s226 + $0x968] sm:$0xff] %v829
                %v831 = vld [vmem:[%s225 + $0x12b0] sm:$0xff]
                %832 = vst [vmem:[%s226 + $0x970] sm:$0xff] %v831
                %v833 = vld [vmem:[%s225 + $0x12b8] sm:$0xff]
                %834 = vst [vmem:[%s226 + $0x978] sm:$0xff] %v833
                %v835 = vld [vmem:[%s225 + $0x1300] sm:$0xff]
                %836 = vst [vmem:[%s226 + $0x980] sm:$0xff] %v835
                %v837 = vld [vmem:[%s225 + $0x1308] sm:$0xff]
                %838 = vst [vmem:[%s226 + $0x988] sm:$0xff] %v837
                %v839 = vld [vmem:[%s225 + $0x1310] sm:$0xff]
                %840 = vst [vmem:[%s226 + $0x990] sm:$0xff] %v839
                %v841 = vld [vmem:[%s225 + $0x1318] sm:$0xff]
                %842 = vst [vmem:[%s226 + $0x998] sm:$0xff] %v841
                %v843 = vld [vmem:[%s225 + $0x1320] sm:$0xff]
                %844 = vst [vmem:[%s226 + $0x9a0] sm:$0xff] %v843
                %v845 = vld [vmem:[%s225 + $0x1328] sm:$0xff]
                %846 = vst [vmem:[%s226 + $0x9a8] sm:$0xff] %v845
                %v847 = vld [vmem:[%s225 + $0x1330] sm:$0xff]
                %848 = vst [vmem:[%s226 + $0x9b0] sm:$0xff] %v847
                %v849 = vld [vmem:[%s225 + $0x1338] sm:$0xff]
                %850 = vst [vmem:[%s226 + $0x9b8] sm:$0xff] %v849
                %v851 = vld [vmem:[%s225 + $0x1380] sm:$0xff]
                %852 = vst [vmem:[%s226 + $0x9c0] sm:$0xff] %v851
                %v853 = vld [vmem:[%s225 + $0x1388] sm:$0xff]
                %854 = vst [vmem:[%s226 + $0x9c8] sm:$0xff] %v853
                %v855 = vld [vmem:[%s225 + $0x1390] sm:$0xff]
                %856 = vst [vmem:[%s226 + $0x9d0] sm:$0xff] %v855
                %v857 = vld [vmem:[%s225 + $0x1398] sm:$0xff]
                %858 = vst [vmem:[%s226 + $0x9d8] sm:$0xff] %v857
                %v859 = vld [vmem:[%s225 + $0x13a0] sm:$0xff]
                %860 = vst [vmem:[%s226 + $0x9e0] sm:$0xff] %v859
                %v861 = vld [vmem:[%s225 + $0x13a8] sm:$0xff]
                %862 = vst [vmem:[%s226 + $0x9e8] sm:$0xff] %v861
                %v863 = vld [vmem:[%s225 + $0x13b0] sm:$0xff]
                %864 = vst [vmem:[%s226 + $0x9f0] sm:$0xff] %v863
                %v865 = vld [vmem:[%s225 + $0x13b8] sm:$0xff]
                %866 = vst [vmem:[%s226 + $0x9f8] sm:$0xff] %v865
                %v867 = vld [vmem:[%s225 + $0x1400] sm:$0xff]
                %868 = vst [vmem:[%s226 + $0xa00] sm:$0xff] %v867
                %v869 = vld [vmem:[%s225 + $0x1408] sm:$0xff]
                %870 = vst [vmem:[%s226 + $0xa08] sm:$0xff] %v869
                %v871 = vld [vmem:[%s225 + $0x1410] sm:$0xff]
                %872 = vst [vmem:[%s226 + $0xa10] sm:$0xff] %v871
                %v873 = vld [vmem:[%s225 + $0x1418] sm:$0xff]
                %874 = vst [vmem:[%s226 + $0xa18] sm:$0xff] %v873
                %v875 = vld [vmem:[%s225 + $0x1420] sm:$0xff]
                %876 = vst [vmem:[%s226 + $0xa20] sm:$0xff] %v875
                %v877 = vld [vmem:[%s225 + $0x1428] sm:$0xff]
                %878 = vst [vmem:[%s226 + $0xa28] sm:$0xff] %v877
                %v879 = vld [vmem:[%s225 + $0x1430] sm:$0xff]
                %880 = vst [vmem:[%s226 + $0xa30] sm:$0xff] %v879
                %v881 = vld [vmem:[%s225 + $0x1438] sm:$0xff]
                %882 = vst [vmem:[%s226 + $0xa38] sm:$0xff] %v881
                %v883 = vld [vmem:[%s225 + $0x1480] sm:$0xff]
                %884 = vst [vmem:[%s226 + $0xa40] sm:$0xff] %v883
                %v885 = vld [vmem:[%s225 + $0x1488] sm:$0xff]
                %886 = vst [vmem:[%s226 + $0xa48] sm:$0xff] %v885
                %v887 = vld [vmem:[%s225 + $0x1490] sm:$0xff]
                %888 = vst [vmem:[%s226 + $0xa50] sm:$0xff] %v887
                %v889 = vld [vmem:[%s225 + $0x1498] sm:$0xff]
                %890 = vst [vmem:[%s226 + $0xa58] sm:$0xff] %v889
                %v891 = vld [vmem:[%s225 + $0x14a0] sm:$0xff]
                %892 = vst [vmem:[%s226 + $0xa60] sm:$0xff] %v891
                %v893 = vld [vmem:[%s225 + $0x14a8] sm:$0xff]
                %894 = vst [vmem:[%s226 + $0xa68] sm:$0xff] %v893
                %v895 = vld [vmem:[%s225 + $0x14b0] sm:$0xff]
                %896 = vst [vmem:[%s226 + $0xa70] sm:$0xff] %v895
                %v897 = vld [vmem:[%s225 + $0x14b8] sm:$0xff]
                %898 = vst [vmem:[%s226 + $0xa78] sm:$0xff] %v897
                %v899 = vld [vmem:[%s225 + $0x1500] sm:$0xff]
                %900 = vst [vmem:[%s226 + $0xa80] sm:$0xff] %v899
                %v901 = vld [vmem:[%s225 + $0x1508] sm:$0xff]
                %902 = vst [vmem:[%s226 + $0xa88] sm:$0xff] %v901
                %v903 = vld [vmem:[%s225 + $0x1510] sm:$0xff]
                %904 = vst [vmem:[%s226 + $0xa90] sm:$0xff] %v903
                %v905 = vld [vmem:[%s225 + $0x1518] sm:$0xff]
                %906 = vst [vmem:[%s226 + $0xa98] sm:$0xff] %v905
                %v907 = vld [vmem:[%s225 + $0x1520] sm:$0xff]
                %908 = vst [vmem:[%s226 + $0xaa0] sm:$0xff] %v907
                %v909 = vld [vmem:[%s225 + $0x1528] sm:$0xff]
                %910 = vst [vmem:[%s226 + $0xaa8] sm:$0xff] %v909
                %v911 = vld [vmem:[%s225 + $0x1530] sm:$0xff]
                %912 = vst [vmem:[%s226 + $0xab0] sm:$0xff] %v911
                %v913 = vld [vmem:[%s225 + $0x1538] sm:$0xff]
                %914 = vst [vmem:[%s226 + $0xab8] sm:$0xff] %v913
                %v915 = vld [vmem:[%s225 + $0x1580] sm:$0xff]
                %916 = vst [vmem:[%s226 + $0xac0] sm:$0xff] %v915
                %v917 = vld [vmem:[%s225 + $0x1588] sm:$0xff]
                %918 = vst [vmem:[%s226 + $0xac8] sm:$0xff] %v917
                %v919 = vld [vmem:[%s225 + $0x1590] sm:$0xff]
                %920 = vst [vmem:[%s226 + $0xad0] sm:$0xff] %v919
                %v921 = vld [vmem:[%s225 + $0x1598] sm:$0xff]
                %922 = vst [vmem:[%s226 + $0xad8] sm:$0xff] %v921
                %v923 = vld [vmem:[%s225 + $0x15a0] sm:$0xff]
                %924 = vst [vmem:[%s226 + $0xae0] sm:$0xff] %v923
                %v925 = vld [vmem:[%s225 + $0x15a8] sm:$0xff]
                %926 = vst [vmem:[%s226 + $0xae8] sm:$0xff] %v925
                %v927 = vld [vmem:[%s225 + $0x15b0] sm:$0xff]
                %928 = vst [vmem:[%s226 + $0xaf0] sm:$0xff] %v927
                %v929 = vld [vmem:[%s225 + $0x15b8] sm:$0xff]
                %930 = vst [vmem:[%s226 + $0xaf8] sm:$0xff] %v929
                %v931 = vld [vmem:[%s225 + $0x1600] sm:$0xff]
                %932 = vst [vmem:[%s226 + $0xb00] sm:$0xff] %v931
                %v933 = vld [vmem:[%s225 + $0x1608] sm:$0xff]
                %934 = vst [vmem:[%s226 + $0xb08] sm:$0xff] %v933
                %v935 = vld [vmem:[%s225 + $0x1610] sm:$0xff]
                %936 = vst [vmem:[%s226 + $0xb10] sm:$0xff] %v935
                %v937 = vld [vmem:[%s225 + $0x1618] sm:$0xff]
                %938 = vst [vmem:[%s226 + $0xb18] sm:$0xff] %v937
                %v939 = vld [vmem:[%s225 + $0x1620] sm:$0xff]
                %940 = vst [vmem:[%s226 + $0xb20] sm:$0xff] %v939
                %v941 = vld [vmem:[%s225 + $0x1628] sm:$0xff]
                %942 = vst [vmem:[%s226 + $0xb28] sm:$0xff] %v941
                %v943 = vld [vmem:[%s225 + $0x1630] sm:$0xff]
                %944 = vst [vmem:[%s226 + $0xb30] sm:$0xff] %v943
                %v945 = vld [vmem:[%s225 + $0x1638] sm:$0xff]
                %946 = vst [vmem:[%s226 + $0xb38] sm:$0xff] %v945
                %v947 = vld [vmem:[%s225 + $0x1680] sm:$0xff]
                %948 = vst [vmem:[%s226 + $0xb40] sm:$0xff] %v947
                %v949 = vld [vmem:[%s225 + $0x1688] sm:$0xff]
                %950 = vst [vmem:[%s226 + $0xb48] sm:$0xff] %v949
                %v951 = vld [vmem:[%s225 + $0x1690] sm:$0xff]
                %952 = vst [vmem:[%s226 + $0xb50] sm:$0xff] %v951
                %v953 = vld [vmem:[%s225 + $0x1698] sm:$0xff]
                %954 = vst [vmem:[%s226 + $0xb58] sm:$0xff] %v953
                %v955 = vld [vmem:[%s225 + $0x16a0] sm:$0xff]
                %956 = vst [vmem:[%s226 + $0xb60] sm:$0xff] %v955
                %v957 = vld [vmem:[%s225 + $0x16a8] sm:$0xff]
                %958 = vst [vmem:[%s226 + $0xb68] sm:$0xff] %v957
                %v959 = vld [vmem:[%s225 + $0x16b0] sm:$0xff]
                %960 = vst [vmem:[%s226 + $0xb70] sm:$0xff] %v959
                %v961 = vld [vmem:[%s225 + $0x16b8] sm:$0xff]
                %962 = vst [vmem:[%s226 + $0xb78] sm:$0xff] %v961
                %v963 = vld [vmem:[%s225 + $0x1700] sm:$0xff]
                %964 = vst [vmem:[%s226 + $0xb80] sm:$0xff] %v963
                %v965 = vld [vmem:[%s225 + $0x1708] sm:$0xff]
                %966 = vst [vmem:[%s226 + $0xb88] sm:$0xff] %v965
                %v967 = vld [vmem:[%s225 + $0x1710] sm:$0xff]
                %968 = vst [vmem:[%s226 + $0xb90] sm:$0xff] %v967
                %v969 = vld [vmem:[%s225 + $0x1718] sm:$0xff]
                %970 = vst [vmem:[%s226 + $0xb98] sm:$0xff] %v969
                %v971 = vld [vmem:[%s225 + $0x1720] sm:$0xff]
                %972 = vst [vmem:[%s226 + $0xba0] sm:$0xff] %v971
                %v973 = vld [vmem:[%s225 + $0x1728] sm:$0xff]
                %974 = vst [vmem:[%s226 + $0xba8] sm:$0xff] %v973
                %v975 = vld [vmem:[%s225 + $0x1730] sm:$0xff]
                %976 = vst [vmem:[%s226 + $0xbb0] sm:$0xff] %v975
                %v977 = vld [vmem:[%s225 + $0x1738] sm:$0xff]
                %978 = vst [vmem:[%s226 + $0xbb8] sm:$0xff] %v977
                %v979 = vld [vmem:[%s225 + $0x1780] sm:$0xff]
                %980 = vst [vmem:[%s226 + $0xbc0] sm:$0xff] %v979
                %v981 = vld [vmem:[%s225 + $0x1788] sm:$0xff]
                %982 = vst [vmem:[%s226 + $0xbc8] sm:$0xff] %v981
                %v983 = vld [vmem:[%s225 + $0x1790] sm:$0xff]
                %984 = vst [vmem:[%s226 + $0xbd0] sm:$0xff] %v983
                %v985 = vld [vmem:[%s225 + $0x1798] sm:$0xff]
                %986 = vst [vmem:[%s226 + $0xbd8] sm:$0xff] %v985
                %v987 = vld [vmem:[%s225 + $0x17a0] sm:$0xff]
                %988 = vst [vmem:[%s226 + $0xbe0] sm:$0xff] %v987
                %v989 = vld [vmem:[%s225 + $0x17a8] sm:$0xff]
                %990 = vst [vmem:[%s226 + $0xbe8] sm:$0xff] %v989
                %v991 = vld [vmem:[%s225 + $0x17b0] sm:$0xff]
                %992 = vst [vmem:[%s226 + $0xbf0] sm:$0xff] %v991
                %v993 = vld [vmem:[%s225 + $0x17b8] sm:$0xff]
                %994 = vst [vmem:[%s226 + $0xbf8] sm:$0xff] %v993
                %v995 = vld [vmem:[%s225 + $0x1800] sm:$0xff]
                %996 = vst [vmem:[%s226 + $0xc00] sm:$0xff] %v995
                %v997 = vld [vmem:[%s225 + $0x1808] sm:$0xff]
                %998 = vst [vmem:[%s226 + $0xc08] sm:$0xff] %v997
                %v999 = vld [vmem:[%s225 + $0x1810] sm:$0xff]
                %1000 = vst [vmem:[%s226 + $0xc10] sm:$0xff] %v999
                %v1001 = vld [vmem:[%s225 + $0x1818] sm:$0xff]
                %1002 = vst [vmem:[%s226 + $0xc18] sm:$0xff] %v1001
                %v1003 = vld [vmem:[%s225 + $0x1820] sm:$0xff]
                %1004 = vst [vmem:[%s226 + $0xc20] sm:$0xff] %v1003
                %v1005 = vld [vmem:[%s225 + $0x1828] sm:$0xff]
                %1006 = vst [vmem:[%s226 + $0xc28] sm:$0xff] %v1005
                %v1007 = vld [vmem:[%s225 + $0x1830] sm:$0xff]
                %1008 = vst [vmem:[%s226 + $0xc30] sm:$0xff] %v1007
                %v1009 = vld [vmem:[%s225 + $0x1838] sm:$0xff]
                %1010 = vst [vmem:[%s226 + $0xc38] sm:$0xff] %v1009
                %v1011 = vld [vmem:[%s225 + $0x1880] sm:$0xff]
                %1012 = vst [vmem:[%s226 + $0xc40] sm:$0xff] %v1011
                %v1013 = vld [vmem:[%s225 + $0x1888] sm:$0xff]
                %1014 = vst [vmem:[%s226 + $0xc48] sm:$0xff] %v1013
                %v1015 = vld [vmem:[%s225 + $0x1890] sm:$0xff]
                %1016 = vst [vmem:[%s226 + $0xc50] sm:$0xff] %v1015
                %v1017 = vld [vmem:[%s225 + $0x1898] sm:$0xff]
                %1018 = vst [vmem:[%s226 + $0xc58] sm:$0xff] %v1017
                %v1019 = vld [vmem:[%s225 + $0x18a0] sm:$0xff]
                %1020 = vst [vmem:[%s226 + $0xc60] sm:$0xff] %v1019
                %v1021 = vld [vmem:[%s225 + $0x18a8] sm:$0xff]
                %1022 = vst [vmem:[%s226 + $0xc68] sm:$0xff] %v1021
                %v1023 = vld [vmem:[%s225 + $0x18b0] sm:$0xff]
                %1024 = vst [vmem:[%s226 + $0xc70] sm:$0xff] %v1023
                %v1025 = vld [vmem:[%s225 + $0x18b8] sm:$0xff]
                %1026 = vst [vmem:[%s226 + $0xc78] sm:$0xff] %v1025
                %v1027 = vld [vmem:[%s225 + $0x1900] sm:$0xff]
                %1028 = vst [vmem:[%s226 + $0xc80] sm:$0xff] %v1027
                %v1029 = vld [vmem:[%s225 + $0x1908] sm:$0xff]
                %1030 = vst [vmem:[%s226 + $0xc88] sm:$0xff] %v1029
                %v1031 = vld [vmem:[%s225 + $0x1910] sm:$0xff]
                %1032 = vst [vmem:[%s226 + $0xc90] sm:$0xff] %v1031
                %v1033 = vld [vmem:[%s225 + $0x1918] sm:$0xff]
                %1034 = vst [vmem:[%s226 + $0xc98] sm:$0xff] %v1033
                %v1035 = vld [vmem:[%s225 + $0x1920] sm:$0xff]
                %1036 = vst [vmem:[%s226 + $0xca0] sm:$0xff] %v1035
                %v1037 = vld [vmem:[%s225 + $0x1928] sm:$0xff]
                %1038 = vst [vmem:[%s226 + $0xca8] sm:$0xff] %v1037
                %v1039 = vld [vmem:[%s225 + $0x1930] sm:$0xff]
                %1040 = vst [vmem:[%s226 + $0xcb0] sm:$0xff] %v1039
                %v1041 = vld [vmem:[%s225 + $0x1938] sm:$0xff]
                %1042 = vst [vmem:[%s226 + $0xcb8] sm:$0xff] %v1041
                %v1043 = vld [vmem:[%s225 + $0x1980] sm:$0xff]
                %1044 = vst [vmem:[%s226 + $0xcc0] sm:$0xff] %v1043
                %v1045 = vld [vmem:[%s225 + $0x1988] sm:$0xff]
                %1046 = vst [vmem:[%s226 + $0xcc8] sm:$0xff] %v1045
                %v1047 = vld [vmem:[%s225 + $0x1990] sm:$0xff]
                %1048 = vst [vmem:[%s226 + $0xcd0] sm:$0xff] %v1047
                %v1049 = vld [vmem:[%s225 + $0x1998] sm:$0xff]
                %1050 = vst [vmem:[%s226 + $0xcd8] sm:$0xff] %v1049
                %v1051 = vld [vmem:[%s225 + $0x19a0] sm:$0xff]
                %1052 = vst [vmem:[%s226 + $0xce0] sm:$0xff] %v1051
                %v1053 = vld [vmem:[%s225 + $0x19a8] sm:$0xff]
                %1054 = vst [vmem:[%s226 + $0xce8] sm:$0xff] %v1053
                %v1055 = vld [vmem:[%s225 + $0x19b0] sm:$0xff]
                %1056 = vst [vmem:[%s226 + $0xcf0] sm:$0xff] %v1055
                %v1057 = vld [vmem:[%s225 + $0x19b8] sm:$0xff]
                %1058 = vst [vmem:[%s226 + $0xcf8] sm:$0xff] %v1057
                %v1059 = vld [vmem:[%s225 + $0x1a00] sm:$0xff]
                %1060 = vst [vmem:[%s226 + $0xd00] sm:$0xff] %v1059
                %v1061 = vld [vmem:[%s225 + $0x1a08] sm:$0xff]
                %1062 = vst [vmem:[%s226 + $0xd08] sm:$0xff] %v1061
                %v1063 = vld [vmem:[%s225 + $0x1a10] sm:$0xff]
                %1064 = vst [vmem:[%s226 + $0xd10] sm:$0xff] %v1063
                %v1065 = vld [vmem:[%s225 + $0x1a18] sm:$0xff]
                %1066 = vst [vmem:[%s226 + $0xd18] sm:$0xff] %v1065
                %v1067 = vld [vmem:[%s225 + $0x1a20] sm:$0xff]
                %1068 = vst [vmem:[%s226 + $0xd20] sm:$0xff] %v1067
                %v1069 = vld [vmem:[%s225 + $0x1a28] sm:$0xff]
                %1070 = vst [vmem:[%s226 + $0xd28] sm:$0xff] %v1069
                %v1071 = vld [vmem:[%s225 + $0x1a30] sm:$0xff]
                %1072 = vst [vmem:[%s226 + $0xd30] sm:$0xff] %v1071
                %v1073 = vld [vmem:[%s225 + $0x1a38] sm:$0xff]
                %1074 = vst [vmem:[%s226 + $0xd38] sm:$0xff] %v1073
                %v1075 = vld [vmem:[%s225 + $0x1a80] sm:$0xff]
                %1076 = vst [vmem:[%s226 + $0xd40] sm:$0xff] %v1075
                %v1077 = vld [vmem:[%s225 + $0x1a88] sm:$0xff]
                %1078 = vst [vmem:[%s226 + $0xd48] sm:$0xff] %v1077
                %v1079 = vld [vmem:[%s225 + $0x1a90] sm:$0xff]
                %1080 = vst [vmem:[%s226 + $0xd50] sm:$0xff] %v1079
                %v1081 = vld [vmem:[%s225 + $0x1a98] sm:$0xff]
                %1082 = vst [vmem:[%s226 + $0xd58] sm:$0xff] %v1081
                %v1083 = vld [vmem:[%s225 + $0x1aa0] sm:$0xff]
                %1084 = vst [vmem:[%s226 + $0xd60] sm:$0xff] %v1083
                %v1085 = vld [vmem:[%s225 + $0x1aa8] sm:$0xff]
                %1086 = vst [vmem:[%s226 + $0xd68] sm:$0xff] %v1085
                %v1087 = vld [vmem:[%s225 + $0x1ab0] sm:$0xff]
                %1088 = vst [vmem:[%s226 + $0xd70] sm:$0xff] %v1087
                %v1089 = vld [vmem:[%s225 + $0x1ab8] sm:$0xff]
                %1090 = vst [vmem:[%s226 + $0xd78] sm:$0xff] %v1089
                %v1091 = vld [vmem:[%s225 + $0x1b00] sm:$0xff]
                %1092 = vst [vmem:[%s226 + $0xd80] sm:$0xff] %v1091
                %v1093 = vld [vmem:[%s225 + $0x1b08] sm:$0xff]
                %1094 = vst [vmem:[%s226 + $0xd88] sm:$0xff] %v1093
                %v1095 = vld [vmem:[%s225 + $0x1b10] sm:$0xff]
                %1096 = vst [vmem:[%s226 + $0xd90] sm:$0xff] %v1095
                %v1097 = vld [vmem:[%s225 + $0x1b18] sm:$0xff]
                %1098 = vst [vmem:[%s226 + $0xd98] sm:$0xff] %v1097
                %v1099 = vld [vmem:[%s225 + $0x1b20] sm:$0xff]
                %1100 = vst [vmem:[%s226 + $0xda0] sm:$0xff] %v1099
                %v1101 = vld [vmem:[%s225 + $0x1b28] sm:$0xff]
                %1102 = vst [vmem:[%s226 + $0xda8] sm:$0xff] %v1101
                %v1103 = vld [vmem:[%s225 + $0x1b30] sm:$0xff]
                %1104 = vst [vmem:[%s226 + $0xdb0] sm:$0xff] %v1103
                %v1105 = vld [vmem:[%s225 + $0x1b38] sm:$0xff]
                %1106 = vst [vmem:[%s226 + $0xdb8] sm:$0xff] %v1105
                %v1107 = vld [vmem:[%s225 + $0x1b80] sm:$0xff]
                %1108 = vst [vmem:[%s226 + $0xdc0] sm:$0xff] %v1107
                %v1109 = vld [vmem:[%s225 + $0x1b88] sm:$0xff]
                %1110 = vst [vmem:[%s226 + $0xdc8] sm:$0xff] %v1109
                %v1111 = vld [vmem:[%s225 + $0x1b90] sm:$0xff]
                %1112 = vst [vmem:[%s226 + $0xdd0] sm:$0xff] %v1111
                %v1113 = vld [vmem:[%s225 + $0x1b98] sm:$0xff]
                %1114 = vst [vmem:[%s226 + $0xdd8] sm:$0xff] %v1113
                %v1115 = vld [vmem:[%s225 + $0x1ba0] sm:$0xff]
                %1116 = vst [vmem:[%s226 + $0xde0] sm:$0xff] %v1115
                %v1117 = vld [vmem:[%s225 + $0x1ba8] sm:$0xff]
                %1118 = vst [vmem:[%s226 + $0xde8] sm:$0xff] %v1117
                %v1119 = vld [vmem:[%s225 + $0x1bb0] sm:$0xff]
                %1120 = vst [vmem:[%s226 + $0xdf0] sm:$0xff] %v1119
                %v1121 = vld [vmem:[%s225 + $0x1bb8] sm:$0xff]
                %1122 = vst [vmem:[%s226 + $0xdf8] sm:$0xff] %v1121
                %v1123 = vld [vmem:[%s225 + $0x1c00] sm:$0xff]
                %1124 = vst [vmem:[%s226 + $0xe00] sm:$0xff] %v1123
                %v1125 = vld [vmem:[%s225 + $0x1c08] sm:$0xff]
                %1126 = vst [vmem:[%s226 + $0xe08] sm:$0xff] %v1125
                %v1127 = vld [vmem:[%s225 + $0x1c10] sm:$0xff]
                %1128 = vst [vmem:[%s226 + $0xe10] sm:$0xff] %v1127
                %v1129 = vld [vmem:[%s225 + $0x1c18] sm:$0xff]
                %1130 = vst [vmem:[%s226 + $0xe18] sm:$0xff] %v1129
                %v1131 = vld [vmem:[%s225 + $0x1c20] sm:$0xff]
                %1132 = vst [vmem:[%s226 + $0xe20] sm:$0xff] %v1131
                %v1133 = vld [vmem:[%s225 + $0x1c28] sm:$0xff]
                %1134 = vst [vmem:[%s226 + $0xe28] sm:$0xff] %v1133
                %v1135 = vld [vmem:[%s225 + $0x1c30] sm:$0xff]
                %1136 = vst [vmem:[%s226 + $0xe30] sm:$0xff] %v1135
                %v1137 = vld [vmem:[%s225 + $0x1c38] sm:$0xff]
                %1138 = vst [vmem:[%s226 + $0xe38] sm:$0xff] %v1137
                %v1139 = vld [vmem:[%s225 + $0x1c80] sm:$0xff]
                %1140 = vst [vmem:[%s226 + $0xe40] sm:$0xff] %v1139
                %v1141 = vld [vmem:[%s225 + $0x1c88] sm:$0xff]
                %1142 = vst [vmem:[%s226 + $0xe48] sm:$0xff] %v1141
                %v1143 = vld [vmem:[%s225 + $0x1c90] sm:$0xff]
                %1144 = vst [vmem:[%s226 + $0xe50] sm:$0xff] %v1143
                %v1145 = vld [vmem:[%s225 + $0x1c98] sm:$0xff]
                %1146 = vst [vmem:[%s226 + $0xe58] sm:$0xff] %v1145
                %v1147 = vld [vmem:[%s225 + $0x1ca0] sm:$0xff]
                %1148 = vst [vmem:[%s226 + $0xe60] sm:$0xff] %v1147
                %v1149 = vld [vmem:[%s225 + $0x1ca8] sm:$0xff]
                %1150 = vst [vmem:[%s226 + $0xe68] sm:$0xff] %v1149
                %v1151 = vld [vmem:[%s225 + $0x1cb0] sm:$0xff]
                %1152 = vst [vmem:[%s226 + $0xe70] sm:$0xff] %v1151
                %v1153 = vld [vmem:[%s225 + $0x1cb8] sm:$0xff]
                %1154 = vst [vmem:[%s226 + $0xe78] sm:$0xff] %v1153
                %v1155 = vld [vmem:[%s225 + $0x1d00] sm:$0xff]
                %1156 = vst [vmem:[%s226 + $0xe80] sm:$0xff] %v1155
                %v1157 = vld [vmem:[%s225 + $0x1d08] sm:$0xff]
                %1158 = vst [vmem:[%s226 + $0xe88] sm:$0xff] %v1157
                %v1159 = vld [vmem:[%s225 + $0x1d10] sm:$0xff]
                %1160 = vst [vmem:[%s226 + $0xe90] sm:$0xff] %v1159
                %v1161 = vld [vmem:[%s225 + $0x1d18] sm:$0xff]
                %1162 = vst [vmem:[%s226 + $0xe98] sm:$0xff] %v1161
                %v1163 = vld [vmem:[%s225 + $0x1d20] sm:$0xff]
                %1164 = vst [vmem:[%s226 + $0xea0] sm:$0xff] %v1163
                %v1165 = vld [vmem:[%s225 + $0x1d28] sm:$0xff]
                %1166 = vst [vmem:[%s226 + $0xea8] sm:$0xff] %v1165
                %v1167 = vld [vmem:[%s225 + $0x1d30] sm:$0xff]
                %1168 = vst [vmem:[%s226 + $0xeb0] sm:$0xff] %v1167
                %v1169 = vld [vmem:[%s225 + $0x1d38] sm:$0xff]
                %1170 = vst [vmem:[%s226 + $0xeb8] sm:$0xff] %v1169
                %v1171 = vld [vmem:[%s225 + $0x1d80] sm:$0xff]
                %1172 = vst [vmem:[%s226 + $0xec0] sm:$0xff] %v1171
                %v1173 = vld [vmem:[%s225 + $0x1d88] sm:$0xff]
                %1174 = vst [vmem:[%s226 + $0xec8] sm:$0xff] %v1173
                %v1175 = vld [vmem:[%s225 + $0x1d90] sm:$0xff]
                %1176 = vst [vmem:[%s226 + $0xed0] sm:$0xff] %v1175
                %v1177 = vld [vmem:[%s225 + $0x1d98] sm:$0xff]
                %1178 = vst [vmem:[%s226 + $0xed8] sm:$0xff] %v1177
                %v1179 = vld [vmem:[%s225 + $0x1da0] sm:$0xff]
                %1180 = vst [vmem:[%s226 + $0xee0] sm:$0xff] %v1179
                %v1181 = vld [vmem:[%s225 + $0x1da8] sm:$0xff]
                %1182 = vst [vmem:[%s226 + $0xee8] sm:$0xff] %v1181
                %v1183 = vld [vmem:[%s225 + $0x1db0] sm:$0xff]
                %1184 = vst [vmem:[%s226 + $0xef0] sm:$0xff] %v1183
                %v1185 = vld [vmem:[%s225 + $0x1db8] sm:$0xff]
                %1186 = vst [vmem:[%s226 + $0xef8] sm:$0xff] %v1185
                %v1187 = vld [vmem:[%s225 + $0x1e00] sm:$0xff]
                %1188 = vst [vmem:[%s226 + $0xf00] sm:$0xff] %v1187
                %v1189 = vld [vmem:[%s225 + $0x1e08] sm:$0xff]
                %1190 = vst [vmem:[%s226 + $0xf08] sm:$0xff] %v1189
                %v1191 = vld [vmem:[%s225 + $0x1e10] sm:$0xff]
                %1192 = vst [vmem:[%s226 + $0xf10] sm:$0xff] %v1191
                %v1193 = vld [vmem:[%s225 + $0x1e18] sm:$0xff]
                %1194 = vst [vmem:[%s226 + $0xf18] sm:$0xff] %v1193
                %v1195 = vld [vmem:[%s225 + $0x1e20] sm:$0xff]
                %1196 = vst [vmem:[%s226 + $0xf20] sm:$0xff] %v1195
                %v1197 = vld [vmem:[%s225 + $0x1e28] sm:$0xff]
                %1198 = vst [vmem:[%s226 + $0xf28] sm:$0xff] %v1197
                %v1199 = vld [vmem:[%s225 + $0x1e30] sm:$0xff]
                %1200 = vst [vmem:[%s226 + $0xf30] sm:$0xff] %v1199
                %v1201 = vld [vmem:[%s225 + $0x1e38] sm:$0xff]
                %1202 = vst [vmem:[%s226 + $0xf38] sm:$0xff] %v1201
                %v1203 = vld [vmem:[%s225 + $0x1e80] sm:$0xff]
                %1204 = vst [vmem:[%s226 + $0xf40] sm:$0xff] %v1203
                %v1205 = vld [vmem:[%s225 + $0x1e88] sm:$0xff]
                %1206 = vst [vmem:[%s226 + $0xf48] sm:$0xff] %v1205
                %v1207 = vld [vmem:[%s225 + $0x1e90] sm:$0xff]
                %1208 = vst [vmem:[%s226 + $0xf50] sm:$0xff] %v1207
                %v1209 = vld [vmem:[%s225 + $0x1e98] sm:$0xff]
                %1210 = vst [vmem:[%s226 + $0xf58] sm:$0xff] %v1209
                %v1211 = vld [vmem:[%s225 + $0x1ea0] sm:$0xff]
                %1212 = vst [vmem:[%s226 + $0xf60] sm:$0xff] %v1211
                %v1213 = vld [vmem:[%s225 + $0x1ea8] sm:$0xff]
                %1214 = vst [vmem:[%s226 + $0xf68] sm:$0xff] %v1213
                %v1215 = vld [vmem:[%s225 + $0x1eb0] sm:$0xff]
                %1216 = vst [vmem:[%s226 + $0xf70] sm:$0xff] %v1215
                %v1217 = vld [vmem:[%s225 + $0x1eb8] sm:$0xff]
                %1218 = vst [vmem:[%s226 + $0xf78] sm:$0xff] %v1217
                %v1219 = vld [vmem:[%s225 + $0x1f00] sm:$0xff]
                %1220 = vst [vmem:[%s226 + $0xf80] sm:$0xff] %v1219
                %v1221 = vld [vmem:[%s225 + $0x1f08] sm:$0xff]
                %1222 = vst [vmem:[%s226 + $0xf88] sm:$0xff] %v1221
                %v1223 = vld [vmem:[%s225 + $0x1f10] sm:$0xff]
                %1224 = vst [vmem:[%s226 + $0xf90] sm:$0xff] %v1223
                %v1225 = vld [vmem:[%s225 + $0x1f18] sm:$0xff]
                %1226 = vst [vmem:[%s226 + $0xf98] sm:$0xff] %v1225
                %v1227 = vld [vmem:[%s225 + $0x1f20] sm:$0xff]
                %1228 = vst [vmem:[%s226 + $0xfa0] sm:$0xff] %v1227
                %v1229 = vld [vmem:[%s225 + $0x1f28] sm:$0xff]
                %1230 = vst [vmem:[%s226 + $0xfa8] sm:$0xff] %v1229
                %v1231 = vld [vmem:[%s225 + $0x1f30] sm:$0xff]
                %1232 = vst [vmem:[%s226 + $0xfb0] sm:$0xff] %v1231
                %v1233 = vld [vmem:[%s225 + $0x1f38] sm:$0xff]
                %1234 = vst [vmem:[%s226 + $0xfb8] sm:$0xff] %v1233
                %v1235 = vld [vmem:[%s225 + $0x1f80] sm:$0xff]
                %1236 = vst [vmem:[%s226 + $0xfc0] sm:$0xff] %v1235
                %v1237 = vld [vmem:[%s225 + $0x1f88] sm:$0xff]
                %1238 = vst [vmem:[%s226 + $0xfc8] sm:$0xff] %v1237
                %v1239 = vld [vmem:[%s225 + $0x1f90] sm:$0xff]
                %1240 = vst [vmem:[%s226 + $0xfd0] sm:$0xff] %v1239
                %v1241 = vld [vmem:[%s225 + $0x1f98] sm:$0xff]
                %1242 = vst [vmem:[%s226 + $0xfd8] sm:$0xff] %v1241
                %v1243 = vld [vmem:[%s225 + $0x1fa0] sm:$0xff]
                %1244 = vst [vmem:[%s226 + $0xfe0] sm:$0xff] %v1243
                %v1245 = vld [vmem:[%s225 + $0x1fa8] sm:$0xff]
                %1246 = vst [vmem:[%s226 + $0xfe8] sm:$0xff] %v1245
                %v1247 = vld [vmem:[%s225 + $0x1fb0] sm:$0xff]
                %1248 = vst [vmem:[%s226 + $0xff0] sm:$0xff] %v1247
                %v1249 = vld [vmem:[%s225 + $0x1fb8] sm:$0xff]
                %1250 = vst [vmem:[%s226 + $0xff8] sm:$0xff] %v1249
              $region49: #{stfpm_forward.5} parent=43 // loop_footer
                %s224 = sadd.s32 1, %s220
              $region50: #{stfpm_forward.5} parent=43 // loop_footer_branch
                %219 = sbr.rel target = $region46
              $region51: #{stfpm_forward.5} parent=43 // loop_exit
                _
            $region44: #{stfpm_forward.5} parent=39 // pred_fallthru
              _
            // Predicated region
            $region52: #{stfpm_forward.5} parent=39 // pred_check
              _
            $region53: #{stfpm_forward.5} parent=39 // pred_check_branch
              %1252 = sbr.rel target = $region55
            $region54: #{stfpm_forward.5} parent=39 // pred_region
              _
            $region55: #{stfpm_forward.5} parent=39 // pred_fallthru
              _
          $region40: #{stfpm_forward.5} parent=35 // pred_fallthru
            _
          %1253 = vnop
        $region36: #{stfpm_forward.5} parent=31 // pred_fallthru
          _
        // Predicated region
        $region56: #{stfpm_forward.5} parent=31 // pred_check
          %p1254 = pneg %p142
        $region57: #{stfpm_forward.5} parent=31 // pred_check_branch
          %1256 = sbr.rel (%p1254) target = $region59
        $region58: #{stfpm_forward.5} parent=31 // pred_region
          %s1257 = sand.u32 %s132, 1
          %s1258 = sand.u32 %s132, 1
          %s1259 = smul.addr %s1258, 1024
          %s1260 = scalar_lea.vmem [#allocation3], %s1259
          %s1261 = smul.u32 8, %s12
          %s1262 = smul.addr %s1261, 8
          %s1263 = scalar_lea.vmem %s5, %s1262
          // Predicated region
          $region60: #{stfpm_forward.5} parent=58 // pred_check
            _
          $region61: #{stfpm_forward.5} parent=58 // pred_check_branch
            %1265 = sbr.rel (0) target = $region63
          $region62: #{stfpm_forward.5} parent=58 // pred_region
            // Predicated region
            $region64: #{stfpm_forward.5} parent=62 // pred_check
              _
            $region65: #{stfpm_forward.5} parent=62 // pred_check_branch
              %1267 = sbr.rel (0) target = $region67
            $region66: #{stfpm_forward.5} parent=62 // pred_region
              loop: start=0, step=1, limit=1
              $region68: #{stfpm_forward.5} parent=66 // loop_pre_header
                _
              $region69: #{stfpm_forward.5} parent=66 // loop_header
                %s1269 = sphi 0, %s1273
                %p1270 = scmp.ge.s32.totalorder %s1269, 1
                %s1274 = sphi %s1263, %s1263
                %s1275 = sphi %s1260, %s1260
              $region70: #{stfpm_forward.5} parent=66 // loop_header_branch
                %1272 = sbr.rel (%p1270) target = $region74
              $region71: #{stfpm_forward.5} parent=66 // loop_body
                %v1276 = vld [vmem:[%s1274] sm:$0xff]
                %1277 = vst [vmem:[%s1275] sm:$0xff] %v1276
                %v1278 = vld [vmem:[%s1274 + $0x8] sm:$0xff]
                %1279 = vst [vmem:[%s1275 + $0x8] sm:$0xff] %v1278
                %v1280 = vld [vmem:[%s1274 + $0x10] sm:$0xff]
                %1281 = vst [vmem:[%s1275 + $0x10] sm:$0xff] %v1280
                %v1282 = vld [vmem:[%s1274 + $0x18] sm:$0xff]
                %1283 = vst [vmem:[%s1275 + $0x18] sm:$0xff] %v1282
                %v1284 = vld [vmem:[%s1274 + $0x20] sm:$0xff]
                %1285 = vst [vmem:[%s1275 + $0x20] sm:$0xff] %v1284
                %v1286 = vld [vmem:[%s1274 + $0x28] sm:$0xff]
                %1287 = vst [vmem:[%s1275 + $0x28] sm:$0xff] %v1286
                %v1288 = vld [vmem:[%s1274 + $0x30] sm:$0xff]
                %1289 = vst [vmem:[%s1275 + $0x30] sm:$0xff] %v1288
                %v1290 = vld [vmem:[%s1274 + $0x38] sm:$0xff]
                %1291 = vst [vmem:[%s1275 + $0x38] sm:$0xff] %v1290
                %v1292 = vld [vmem:[%s1274 + $0x80] sm:$0xff]
                %1293 = vst [vmem:[%s1275 + $0x40] sm:$0xff] %v1292
                %v1294 = vld [vmem:[%s1274 + $0x88] sm:$0xff]
                %1295 = vst [vmem:[%s1275 + $0x48] sm:$0xff] %v1294
                %v1296 = vld [vmem:[%s1274 + $0x90] sm:$0xff]
                %1297 = vst [vmem:[%s1275 + $0x50] sm:$0xff] %v1296
                %v1298 = vld [vmem:[%s1274 + $0x98] sm:$0xff]
                %1299 = vst [vmem:[%s1275 + $0x58] sm:$0xff] %v1298
                %v1300 = vld [vmem:[%s1274 + $0xa0] sm:$0xff]
                %1301 = vst [vmem:[%s1275 + $0x60] sm:$0xff] %v1300
                %v1302 = vld [vmem:[%s1274 + $0xa8] sm:$0xff]
                %1303 = vst [vmem:[%s1275 + $0x68] sm:$0xff] %v1302
                %v1304 = vld [vmem:[%s1274 + $0xb0] sm:$0xff]
                %1305 = vst [vmem:[%s1275 + $0x70] sm:$0xff] %v1304
                %v1306 = vld [vmem:[%s1274 + $0xb8] sm:$0xff]
                %1307 = vst [vmem:[%s1275 + $0x78] sm:$0xff] %v1306
                %v1308 = vld [vmem:[%s1274 + $0x100] sm:$0xff]
                %1309 = vst [vmem:[%s1275 + $0x80] sm:$0xff] %v1308
                %v1310 = vld [vmem:[%s1274 + $0x108] sm:$0xff]
                %1311 = vst [vmem:[%s1275 + $0x88] sm:$0xff] %v1310
                %v1312 = vld [vmem:[%s1274 + $0x110] sm:$0xff]
                %1313 = vst [vmem:[%s1275 + $0x90] sm:$0xff] %v1312
                %v1314 = vld [vmem:[%s1274 + $0x118] sm:$0xff]
                %1315 = vst [vmem:[%s1275 + $0x98] sm:$0xff] %v1314
                %v1316 = vld [vmem:[%s1274 + $0x120] sm:$0xff]
                %1317 = vst [vmem:[%s1275 + $0xa0] sm:$0xff] %v1316
                %v1318 = vld [vmem:[%s1274 + $0x128] sm:$0xff]
                %1319 = vst [vmem:[%s1275 + $0xa8] sm:$0xff] %v1318
                %v1320 = vld [vmem:[%s1274 + $0x130] sm:$0xff]
                %1321 = vst [vmem:[%s1275 + $0xb0] sm:$0xff] %v1320
                %v1322 = vld [vmem:[%s1274 + $0x138] sm:$0xff]
                %1323 = vst [vmem:[%s1275 + $0xb8] sm:$0xff] %v1322
                %v1324 = vld [vmem:[%s1274 + $0x180] sm:$0xff]
                %1325 = vst [vmem:[%s1275 + $0xc0] sm:$0xff] %v1324
                %v1326 = vld [vmem:[%s1274 + $0x188] sm:$0xff]
                %1327 = vst [vmem:[%s1275 + $0xc8] sm:$0xff] %v1326
                %v1328 = vld [vmem:[%s1274 + $0x190] sm:$0xff]
                %1329 = vst [vmem:[%s1275 + $0xd0] sm:$0xff] %v1328
                %v1330 = vld [vmem:[%s1274 + $0x198] sm:$0xff]
                %1331 = vst [vmem:[%s1275 + $0xd8] sm:$0xff] %v1330
                %v1332 = vld [vmem:[%s1274 + $0x1a0] sm:$0xff]
                %1333 = vst [vmem:[%s1275 + $0xe0] sm:$0xff] %v1332
                %v1334 = vld [vmem:[%s1274 + $0x1a8] sm:$0xff]
                %1335 = vst [vmem:[%s1275 + $0xe8] sm:$0xff] %v1334
                %v1336 = vld [vmem:[%s1274 + $0x1b0] sm:$0xff]
                %1337 = vst [vmem:[%s1275 + $0xf0] sm:$0xff] %v1336
                %v1338 = vld [vmem:[%s1274 + $0x1b8] sm:$0xff]
                %1339 = vst [vmem:[%s1275 + $0xf8] sm:$0xff] %v1338
                %v1340 = vld [vmem:[%s1274 + $0x200] sm:$0xff]
                %1341 = vst [vmem:[%s1275 + $0x100] sm:$0xff] %v1340
                %v1342 = vld [vmem:[%s1274 + $0x208] sm:$0xff]
                %1343 = vst [vmem:[%s1275 + $0x108] sm:$0xff] %v1342
                %v1344 = vld [vmem:[%s1274 + $0x210] sm:$0xff]
                %1345 = vst [vmem:[%s1275 + $0x110] sm:$0xff] %v1344
                %v1346 = vld [vmem:[%s1274 + $0x218] sm:$0xff]
                %1347 = vst [vmem:[%s1275 + $0x118] sm:$0xff] %v1346
                %v1348 = vld [vmem:[%s1274 + $0x220] sm:$0xff]
                %1349 = vst [vmem:[%s1275 + $0x120] sm:$0xff] %v1348
                %v1350 = vld [vmem:[%s1274 + $0x228] sm:$0xff]
                %1351 = vst [vmem:[%s1275 + $0x128] sm:$0xff] %v1350
                %v1352 = vld [vmem:[%s1274 + $0x230] sm:$0xff]
                %1353 = vst [vmem:[%s1275 + $0x130] sm:$0xff] %v1352
                %v1354 = vld [vmem:[%s1274 + $0x238] sm:$0xff]
                %1355 = vst [vmem:[%s1275 + $0x138] sm:$0xff] %v1354
                %v1356 = vld [vmem:[%s1274 + $0x280] sm:$0xff]
                %1357 = vst [vmem:[%s1275 + $0x140] sm:$0xff] %v1356
                %v1358 = vld [vmem:[%s1274 + $0x288] sm:$0xff]
                %1359 = vst [vmem:[%s1275 + $0x148] sm:$0xff] %v1358
                %v1360 = vld [vmem:[%s1274 + $0x290] sm:$0xff]
                %1361 = vst [vmem:[%s1275 + $0x150] sm:$0xff] %v1360
                %v1362 = vld [vmem:[%s1274 + $0x298] sm:$0xff]
                %1363 = vst [vmem:[%s1275 + $0x158] sm:$0xff] %v1362
                %v1364 = vld [vmem:[%s1274 + $0x2a0] sm:$0xff]
                %1365 = vst [vmem:[%s1275 + $0x160] sm:$0xff] %v1364
                %v1366 = vld [vmem:[%s1274 + $0x2a8] sm:$0xff]
                %1367 = vst [vmem:[%s1275 + $0x168] sm:$0xff] %v1366
                %v1368 = vld [vmem:[%s1274 + $0x2b0] sm:$0xff]
                %1369 = vst [vmem:[%s1275 + $0x170] sm:$0xff] %v1368
                %v1370 = vld [vmem:[%s1274 + $0x2b8] sm:$0xff]
                %1371 = vst [vmem:[%s1275 + $0x178] sm:$0xff] %v1370
                %v1372 = vld [vmem:[%s1274 + $0x300] sm:$0xff]
                %1373 = vst [vmem:[%s1275 + $0x180] sm:$0xff] %v1372
                %v1374 = vld [vmem:[%s1274 + $0x308] sm:$0xff]
                %1375 = vst [vmem:[%s1275 + $0x188] sm:$0xff] %v1374
                %v1376 = vld [vmem:[%s1274 + $0x310] sm:$0xff]
                %1377 = vst [vmem:[%s1275 + $0x190] sm:$0xff] %v1376
                %v1378 = vld [vmem:[%s1274 + $0x318] sm:$0xff]
                %1379 = vst [vmem:[%s1275 + $0x198] sm:$0xff] %v1378
                %v1380 = vld [vmem:[%s1274 + $0x320] sm:$0xff]
                %1381 = vst [vmem:[%s1275 + $0x1a0] sm:$0xff] %v1380
                %v1382 = vld [vmem:[%s1274 + $0x328] sm:$0xff]
                %1383 = vst [vmem:[%s1275 + $0x1a8] sm:$0xff] %v1382
                %v1384 = vld [vmem:[%s1274 + $0x330] sm:$0xff]
                %1385 = vst [vmem:[%s1275 + $0x1b0] sm:$0xff] %v1384
                %v1386 = vld [vmem:[%s1274 + $0x338] sm:$0xff]
                %1387 = vst [vmem:[%s1275 + $0x1b8] sm:$0xff] %v1386
                %v1388 = vld [vmem:[%s1274 + $0x380] sm:$0xff]
                %1389 = vst [vmem:[%s1275 + $0x1c0] sm:$0xff] %v1388
                %v1390 = vld [vmem:[%s1274 + $0x388] sm:$0xff]
                %1391 = vst [vmem:[%s1275 + $0x1c8] sm:$0xff] %v1390
                %v1392 = vld [vmem:[%s1274 + $0x390] sm:$0xff]
                %1393 = vst [vmem:[%s1275 + $0x1d0] sm:$0xff] %v1392
                %v1394 = vld [vmem:[%s1274 + $0x398] sm:$0xff]
                %1395 = vst [vmem:[%s1275 + $0x1d8] sm:$0xff] %v1394
                %v1396 = vld [vmem:[%s1274 + $0x3a0] sm:$0xff]
                %1397 = vst [vmem:[%s1275 + $0x1e0] sm:$0xff] %v1396
                %v1398 = vld [vmem:[%s1274 + $0x3a8] sm:$0xff]
                %1399 = vst [vmem:[%s1275 + $0x1e8] sm:$0xff] %v1398
                %v1400 = vld [vmem:[%s1274 + $0x3b0] sm:$0xff]
                %1401 = vst [vmem:[%s1275 + $0x1f0] sm:$0xff] %v1400
                %v1402 = vld [vmem:[%s1274 + $0x3b8] sm:$0xff]
                %1403 = vst [vmem:[%s1275 + $0x1f8] sm:$0xff] %v1402
                %v1404 = vld [vmem:[%s1274 + $0x400] sm:$0xff]
                %1405 = vst [vmem:[%s1275 + $0x200] sm:$0xff] %v1404
                %v1406 = vld [vmem:[%s1274 + $0x408] sm:$0xff]
                %1407 = vst [vmem:[%s1275 + $0x208] sm:$0xff] %v1406
                %v1408 = vld [vmem:[%s1274 + $0x410] sm:$0xff]
                %1409 = vst [vmem:[%s1275 + $0x210] sm:$0xff] %v1408
                %v1410 = vld [vmem:[%s1274 + $0x418] sm:$0xff]
                %1411 = vst [vmem:[%s1275 + $0x218] sm:$0xff] %v1410
                %v1412 = vld [vmem:[%s1274 + $0x420] sm:$0xff]
                %1413 = vst [vmem:[%s1275 + $0x220] sm:$0xff] %v1412
                %v1414 = vld [vmem:[%s1274 + $0x428] sm:$0xff]
                %1415 = vst [vmem:[%s1275 + $0x228] sm:$0xff] %v1414
                %v1416 = vld [vmem:[%s1274 + $0x430] sm:$0xff]
                %1417 = vst [vmem:[%s1275 + $0x230] sm:$0xff] %v1416
                %v1418 = vld [vmem:[%s1274 + $0x438] sm:$0xff]
                %1419 = vst [vmem:[%s1275 + $0x238] sm:$0xff] %v1418
                %v1420 = vld [vmem:[%s1274 + $0x480] sm:$0xff]
                %1421 = vst [vmem:[%s1275 + $0x240] sm:$0xff] %v1420
                %v1422 = vld [vmem:[%s1274 + $0x488] sm:$0xff]
                %1423 = vst [vmem:[%s1275 + $0x248] sm:$0xff] %v1422
                %v1424 = vld [vmem:[%s1274 + $0x490] sm:$0xff]
                %1425 = vst [vmem:[%s1275 + $0x250] sm:$0xff] %v1424
                %v1426 = vld [vmem:[%s1274 + $0x498] sm:$0xff]
                %1427 = vst [vmem:[%s1275 + $0x258] sm:$0xff] %v1426
                %v1428 = vld [vmem:[%s1274 + $0x4a0] sm:$0xff]
                %1429 = vst [vmem:[%s1275 + $0x260] sm:$0xff] %v1428
                %v1430 = vld [vmem:[%s1274 + $0x4a8] sm:$0xff]
                %1431 = vst [vmem:[%s1275 + $0x268] sm:$0xff] %v1430
                %v1432 = vld [vmem:[%s1274 + $0x4b0] sm:$0xff]
                %1433 = vst [vmem:[%s1275 + $0x270] sm:$0xff] %v1432
                %v1434 = vld [vmem:[%s1274 + $0x4b8] sm:$0xff]
                %1435 = vst [vmem:[%s1275 + $0x278] sm:$0xff] %v1434
                %v1436 = vld [vmem:[%s1274 + $0x500] sm:$0xff]
                %1437 = vst [vmem:[%s1275 + $0x280] sm:$0xff] %v1436
                %v1438 = vld [vmem:[%s1274 + $0x508] sm:$0xff]
                %1439 = vst [vmem:[%s1275 + $0x288] sm:$0xff] %v1438
                %v1440 = vld [vmem:[%s1274 + $0x510] sm:$0xff]
                %1441 = vst [vmem:[%s1275 + $0x290] sm:$0xff] %v1440
                %v1442 = vld [vmem:[%s1274 + $0x518] sm:$0xff]
                %1443 = vst [vmem:[%s1275 + $0x298] sm:$0xff] %v1442
                %v1444 = vld [vmem:[%s1274 + $0x520] sm:$0xff]
                %1445 = vst [vmem:[%s1275 + $0x2a0] sm:$0xff] %v1444
                %v1446 = vld [vmem:[%s1274 + $0x528] sm:$0xff]
                %1447 = vst [vmem:[%s1275 + $0x2a8] sm:$0xff] %v1446
                %v1448 = vld [vmem:[%s1274 + $0x530] sm:$0xff]
                %1449 = vst [vmem:[%s1275 + $0x2b0] sm:$0xff] %v1448
                %v1450 = vld [vmem:[%s1274 + $0x538] sm:$0xff]
                %1451 = vst [vmem:[%s1275 + $0x2b8] sm:$0xff] %v1450
                %v1452 = vld [vmem:[%s1274 + $0x580] sm:$0xff]
                %1453 = vst [vmem:[%s1275 + $0x2c0] sm:$0xff] %v1452
                %v1454 = vld [vmem:[%s1274 + $0x588] sm:$0xff]
                %1455 = vst [vmem:[%s1275 + $0x2c8] sm:$0xff] %v1454
                %v1456 = vld [vmem:[%s1274 + $0x590] sm:$0xff]
                %1457 = vst [vmem:[%s1275 + $0x2d0] sm:$0xff] %v1456
                %v1458 = vld [vmem:[%s1274 + $0x598] sm:$0xff]
                %1459 = vst [vmem:[%s1275 + $0x2d8] sm:$0xff] %v1458
                %v1460 = vld [vmem:[%s1274 + $0x5a0] sm:$0xff]
                %1461 = vst [vmem:[%s1275 + $0x2e0] sm:$0xff] %v1460
                %v1462 = vld [vmem:[%s1274 + $0x5a8] sm:$0xff]
                %1463 = vst [vmem:[%s1275 + $0x2e8] sm:$0xff] %v1462
                %v1464 = vld [vmem:[%s1274 + $0x5b0] sm:$0xff]
                %1465 = vst [vmem:[%s1275 + $0x2f0] sm:$0xff] %v1464
                %v1466 = vld [vmem:[%s1274 + $0x5b8] sm:$0xff]
                %1467 = vst [vmem:[%s1275 + $0x2f8] sm:$0xff] %v1466
                %v1468 = vld [vmem:[%s1274 + $0x600] sm:$0xff]
                %1469 = vst [vmem:[%s1275 + $0x300] sm:$0xff] %v1468
                %v1470 = vld [vmem:[%s1274 + $0x608] sm:$0xff]
                %1471 = vst [vmem:[%s1275 + $0x308] sm:$0xff] %v1470
                %v1472 = vld [vmem:[%s1274 + $0x610] sm:$0xff]
                %1473 = vst [vmem:[%s1275 + $0x310] sm:$0xff] %v1472
                %v1474 = vld [vmem:[%s1274 + $0x618] sm:$0xff]
                %1475 = vst [vmem:[%s1275 + $0x318] sm:$0xff] %v1474
                %v1476 = vld [vmem:[%s1274 + $0x620] sm:$0xff]
                %1477 = vst [vmem:[%s1275 + $0x320] sm:$0xff] %v1476
                %v1478 = vld [vmem:[%s1274 + $0x628] sm:$0xff]
                %1479 = vst [vmem:[%s1275 + $0x328] sm:$0xff] %v1478
                %v1480 = vld [vmem:[%s1274 + $0x630] sm:$0xff]
                %1481 = vst [vmem:[%s1275 + $0x330] sm:$0xff] %v1480
                %v1482 = vld [vmem:[%s1274 + $0x638] sm:$0xff]
                %1483 = vst [vmem:[%s1275 + $0x338] sm:$0xff] %v1482
                %v1484 = vld [vmem:[%s1274 + $0x680] sm:$0xff]
                %1485 = vst [vmem:[%s1275 + $0x340] sm:$0xff] %v1484
                %v1486 = vld [vmem:[%s1274 + $0x688] sm:$0xff]
                %1487 = vst [vmem:[%s1275 + $0x348] sm:$0xff] %v1486
                %v1488 = vld [vmem:[%s1274 + $0x690] sm:$0xff]
                %1489 = vst [vmem:[%s1275 + $0x350] sm:$0xff] %v1488
                %v1490 = vld [vmem:[%s1274 + $0x698] sm:$0xff]
                %1491 = vst [vmem:[%s1275 + $0x358] sm:$0xff] %v1490
                %v1492 = vld [vmem:[%s1274 + $0x6a0] sm:$0xff]
                %1493 = vst [vmem:[%s1275 + $0x360] sm:$0xff] %v1492
                %v1494 = vld [vmem:[%s1274 + $0x6a8] sm:$0xff]
                %1495 = vst [vmem:[%s1275 + $0x368] sm:$0xff] %v1494
                %v1496 = vld [vmem:[%s1274 + $0x6b0] sm:$0xff]
                %1497 = vst [vmem:[%s1275 + $0x370] sm:$0xff] %v1496
                %v1498 = vld [vmem:[%s1274 + $0x6b8] sm:$0xff]
                %1499 = vst [vmem:[%s1275 + $0x378] sm:$0xff] %v1498
                %v1500 = vld [vmem:[%s1274 + $0x700] sm:$0xff]
                %1501 = vst [vmem:[%s1275 + $0x380] sm:$0xff] %v1500
                %v1502 = vld [vmem:[%s1274 + $0x708] sm:$0xff]
                %1503 = vst [vmem:[%s1275 + $0x388] sm:$0xff] %v1502
                %v1504 = vld [vmem:[%s1274 + $0x710] sm:$0xff]
                %1505 = vst [vmem:[%s1275 + $0x390] sm:$0xff] %v1504
                %v1506 = vld [vmem:[%s1274 + $0x718] sm:$0xff]
                %1507 = vst [vmem:[%s1275 + $0x398] sm:$0xff] %v1506
                %v1508 = vld [vmem:[%s1274 + $0x720] sm:$0xff]
                %1509 = vst [vmem:[%s1275 + $0x3a0] sm:$0xff] %v1508
                %v1510 = vld [vmem:[%s1274 + $0x728] sm:$0xff]
                %1511 = vst [vmem:[%s1275 + $0x3a8] sm:$0xff] %v1510
                %v1512 = vld [vmem:[%s1274 + $0x730] sm:$0xff]
                %1513 = vst [vmem:[%s1275 + $0x3b0] sm:$0xff] %v1512
                %v1514 = vld [vmem:[%s1274 + $0x738] sm:$0xff]
                %1515 = vst [vmem:[%s1275 + $0x3b8] sm:$0xff] %v1514
                %v1516 = vld [vmem:[%s1274 + $0x780] sm:$0xff]
                %1517 = vst [vmem:[%s1275 + $0x3c0] sm:$0xff] %v1516
                %v1518 = vld [vmem:[%s1274 + $0x788] sm:$0xff]
                %1519 = vst [vmem:[%s1275 + $0x3c8] sm:$0xff] %v1518
                %v1520 = vld [vmem:[%s1274 + $0x790] sm:$0xff]
                %1521 = vst [vmem:[%s1275 + $0x3d0] sm:$0xff] %v1520
                %v1522 = vld [vmem:[%s1274 + $0x798] sm:$0xff]
                %1523 = vst [vmem:[%s1275 + $0x3d8] sm:$0xff] %v1522
                %v1524 = vld [vmem:[%s1274 + $0x7a0] sm:$0xff]
                %1525 = vst [vmem:[%s1275 + $0x3e0] sm:$0xff] %v1524
                %v1526 = vld [vmem:[%s1274 + $0x7a8] sm:$0xff]
                %1527 = vst [vmem:[%s1275 + $0x3e8] sm:$0xff] %v1526
                %v1528 = vld [vmem:[%s1274 + $0x7b0] sm:$0xff]
                %1529 = vst [vmem:[%s1275 + $0x3f0] sm:$0xff] %v1528
                %v1530 = vld [vmem:[%s1274 + $0x7b8] sm:$0xff]
                %1531 = vst [vmem:[%s1275 + $0x3f8] sm:$0xff] %v1530
              $region72: #{stfpm_forward.5} parent=66 // loop_footer
                %s1273 = sadd.s32 1, %s1269
              $region73: #{stfpm_forward.5} parent=66 // loop_footer_branch
                %1268 = sbr.rel target = $region69
              $region74: #{stfpm_forward.5} parent=66 // loop_exit
                _
            $region67: #{stfpm_forward.5} parent=62 // pred_fallthru
              _
            // Predicated region
            $region75: #{stfpm_forward.5} parent=62 // pred_check
              _
            $region76: #{stfpm_forward.5} parent=62 // pred_check_branch
              %1533 = sbr.rel target = $region78
            $region77: #{stfpm_forward.5} parent=62 // pred_region
              _
            $region78: #{stfpm_forward.5} parent=62 // pred_fallthru
              _
          $region63: #{stfpm_forward.5} parent=58 // pred_fallthru
            _
          %1534 = vnop
        $region59: #{stfpm_forward.5} parent=31 // pred_fallthru
          _
      $region32: #{stfpm_forward.5} parent=5 // pred_fallthru
        _
      %p1535 = scmp.le.s32.totalorder 1, %s12
      %p1536 = scmp.lt.s32.totalorder %s12, 3
      %p1537 = pnand %p1535, %p1536
      %p1538 = pneg %p1537
      // Predicated region
      $region79: #{stfpm_forward.5} parent=5 // pred_check
        _
      $region80: #{stfpm_forward.5} parent=5 // pred_check_branch
        %1540 = sbr.rel (%p1537) target = $region82
      $region81: #{stfpm_forward.5} parent=5 // pred_region
        %s1541 = ssub.s32 %s12, 1
        %s1542 = sand.u32 %s109, 1
        %s1543 = sand.u32 %s109, 1
        %s1544 = smul.addr %s1543, 4096
        %s1545 = scalar_lea.vmem [#allocation2], %s1544
        // Predicated region
        $region83: #{stfpm_forward.5} parent=81 // pred_check
          %p1546 = pneg %p122
        $region84: #{stfpm_forward.5} parent=81 // pred_check_branch
          %1548 = sbr.rel (%p1546) target = $region86
        $region85: #{stfpm_forward.5} parent=81 // pred_region
          _
        $region86: #{stfpm_forward.5} parent=81 // pred_fallthru
          _
        %s1549 = sand.u32 %s135, 1
        %s1550 = sand.u32 %s135, 1
        %s1551 = smul.addr %s1550, 1024
        %s1552 = scalar_lea.vmem [#allocation3], %s1551
        // Predicated region
        $region87: #{stfpm_forward.5} parent=81 // pred_check
          %p1553 = pneg %p148
        $region88: #{stfpm_forward.5} parent=81 // pred_check_branch
          %1555 = sbr.rel (%p1553) target = $region90
        $region89: #{stfpm_forward.5} parent=81 // pred_region
          _
        $region90: #{stfpm_forward.5} parent=81 // pred_fallthru
          _
        %p1556 = pneg %p33
        %p1557 = pneg %p30
        %p1558 = pneg %p54
        %p1559 = pneg %p51
        %p1560 = pneg %p75
        %p1561 = pneg %p72
        %p1562 = pneg %p96
        %p1563 = pneg %p93
        %s1564 = sand.u32 %s109, 1
        %s1565 = sand.u32 %s109, 1
        %s1566 = smul.addr %s1565, 4096
        %s1567 = scalar_lea.vmem [#allocation2], %s1566
        %p1568 = pneg %p122
        %p1569 = pneg %p119
        %s1570 = sand.u32 %s135, 1
        %s1571 = sand.u32 %s135, 1
        %s1572 = smul.addr %s1571, 1024
        %s1573 = scalar_lea.vmem [#allocation3], %s1572
        %p1574 = pneg %p148
        %p1575 = pneg %p145
        %p1576 = pneg %p174
        %p1577 = pneg %p171
        %s1578 = smul.u32 8, %s17
        %p1579 = scmp.lt.s32.totalorder %s1578, 15
        %s1580 = scalar_select %p1579, %s1578, 15
        %s1581 = scalar_lea.vmem %s6, %s1580
        %s1582 = smul.u32 8, %s17
        %s1583 = smul.u32 8, %s17
        %s1584 = smul.u32 8, %s17
        %p1585 = scmp.lt.s32.totalorder %s1584, 15
        %s1586 = scalar_select %p1585, %s1584, 15
        %s1587 = scalar_lea.vmem %s6, %s1586
        %s1588 = smul.u32 8, %s17
        %v1589 = vld [vmem:[%s0] sm:$0xff]
        %v1590 = vld [vmem:[%s0 + $0x8] sm:$0xff]
        %v1591 = vld [vmem:[%s0 + $0x10] sm:$0xff]
        %v1592 = vld [vmem:[%s0 + $0x18] sm:$0xff]
        %v1593 = vld [vmem:[%s2] sm:$0xff]
        %v1594 = vld [vmem:[%s2 + $0x8] sm:$0xff]
        %v1595 = vld [vmem:[%s2 + $0x10] sm:$0xff]
        %v1596 = vld [vmem:[%s2 + $0x18] sm:$0xff]
        %v1597 = vld [vmem:[%s2 + $0x20] sm:$0xff]
        %v1598 = vld [vmem:[%s2 + $0x28] sm:$0xff]
        %v1599 = vld [vmem:[%s2 + $0x30] sm:$0xff]
        %v1600 = vld [vmem:[%s2 + $0x38] sm:$0xff]
        %v1601 = vld [vmem:[%s2 + $0x40] sm:$0xff]
        %v1602 = vld [vmem:[%s2 + $0x48] sm:$0xff]
        %v1603 = vld [vmem:[%s2 + $0x50] sm:$0xff]
        %v1604 = vld [vmem:[%s2 + $0x58] sm:$0xff]
        %v1605 = vld [vmem:[%s2 + $0x60] sm:$0xff]
        %v1606 = vld [vmem:[%s2 + $0x68] sm:$0xff]
        %v1607 = vld [vmem:[%s2 + $0x70] sm:$0xff]
        %v1608 = vld [vmem:[%s2 + $0x78] sm:$0xff]
        %v1609 = vld [vmem:[%s2 + $0x80] sm:$0xff]
        %v1610 = vld [vmem:[%s2 + $0x88] sm:$0xff]
        %v1611 = vld [vmem:[%s2 + $0x90] sm:$0xff]
        %v1612 = vld [vmem:[%s2 + $0x98] sm:$0xff]
        %v1613 = vld [vmem:[%s2 + $0xa0] sm:$0xff]
        %v1614 = vld [vmem:[%s2 + $0xa8] sm:$0xff]
        %v1615 = vld [vmem:[%s2 + $0xb0] sm:$0xff]
        %v1616 = vld [vmem:[%s2 + $0xb8] sm:$0xff]
        %v1617 = vld [vmem:[%s2 + $0xc0] sm:$0xff]
        %v1618 = vld [vmem:[%s2 + $0xc8] sm:$0xff]
        %v1619 = vld [vmem:[%s2 + $0xd0] sm:$0xff]
        %v1620 = vld [vmem:[%s2 + $0xd8] sm:$0xff]
        %v1621 = vld [vmem:[%s2 + $0xe0] sm:$0xff]
        %v1622 = vld [vmem:[%s2 + $0xe8] sm:$0xff]
        %v1623 = vld [vmem:[%s2 + $0xf0] sm:$0xff]
        %v1624 = vld [vmem:[%s2 + $0xf8] sm:$0xff]
        %v1625 = vld [vmem:[%s2 + $0x100] sm:$0xff]
        %v1626 = vld [vmem:[%s2 + $0x108] sm:$0xff]
        %v1627 = vld [vmem:[%s2 + $0x110] sm:$0xff]
        %v1628 = vld [vmem:[%s2 + $0x118] sm:$0xff]
        %v1629 = vld [vmem:[%s2 + $0x120] sm:$0xff]
        %v1630 = vld [vmem:[%s2 + $0x128] sm:$0xff]
        %v1631 = vld [vmem:[%s2 + $0x130] sm:$0xff]
        %v1632 = vld [vmem:[%s2 + $0x138] sm:$0xff]
        %v1633 = vld [vmem:[%s2 + $0x140] sm:$0xff]
        %v1634 = vld [vmem:[%s2 + $0x148] sm:$0xff]
        %v1635 = vld [vmem:[%s2 + $0x150] sm:$0xff]
        %v1636 = vld [vmem:[%s2 + $0x158] sm:$0xff]
        %v1637 = vld [vmem:[%s2 + $0x160] sm:$0xff]
        %v1638 = vld [vmem:[%s2 + $0x168] sm:$0xff]
        %v1639 = vld [vmem:[%s2 + $0x170] sm:$0xff]
        %v1640 = vld [vmem:[%s2 + $0x178] sm:$0xff]
        %v1641 = vld [vmem:[%s2 + $0x180] sm:$0xff]
        %v1642 = vld [vmem:[%s2 + $0x188] sm:$0xff]
        %v1643 = vld [vmem:[%s2 + $0x190] sm:$0xff]
        %v1644 = vld [vmem:[%s2 + $0x198] sm:$0xff]
        %v1645 = vld [vmem:[%s2 + $0x1a0] sm:$0xff]
        %v1646 = vld [vmem:[%s2 + $0x1a8] sm:$0xff]
        %v1647 = vld [vmem:[%s2 + $0x1b0] sm:$0xff]
        %v1648 = vld [vmem:[%s2 + $0x1b8] sm:$0xff]
        %v1649 = vld [vmem:[%s2 + $0x1c0] sm:$0xff]
        %v1650 = vld [vmem:[%s2 + $0x1c8] sm:$0xff]
        %v1651 = vld [vmem:[%s2 + $0x1d0] sm:$0xff]
        %v1652 = vld [vmem:[%s2 + $0x1d8] sm:$0xff]
        %v1653 = vld [vmem:[%s2 + $0x1e0] sm:$0xff]
        %v1654 = vld [vmem:[%s2 + $0x1e8] sm:$0xff]
        %v1655 = vld [vmem:[%s2 + $0x1f0] sm:$0xff]
        %v1656 = vld [vmem:[%s2 + $0x1f8] sm:$0xff]
        %v1657 = vld [vmem:[%s2 + $0x200] sm:$0xff]
        %v1658 = vld [vmem:[%s2 + $0x208] sm:$0xff]
        %v1659 = vld [vmem:[%s2 + $0x210] sm:$0xff]
        %v1660 = vld [vmem:[%s2 + $0x218] sm:$0xff]
        %v1661 = vld [vmem:[%s2 + $0x220] sm:$0xff]
        %v1662 = vld [vmem:[%s2 + $0x228] sm:$0xff]
        %v1663 = vld [vmem:[%s2 + $0x230] sm:$0xff]
        %v1664 = vld [vmem:[%s2 + $0x238] sm:$0xff]
        %v1665 = vld [vmem:[%s2 + $0x240] sm:$0xff]
        %v1666 = vld [vmem:[%s2 + $0x248] sm:$0xff]
        %v1667 = vld [vmem:[%s2 + $0x250] sm:$0xff]
        %v1668 = vld [vmem:[%s2 + $0x258] sm:$0xff]
        %v1669 = vld [vmem:[%s2 + $0x260] sm:$0xff]
        %v1670 = vld [vmem:[%s2 + $0x268] sm:$0xff]
        %v1671 = vld [vmem:[%s2 + $0x270] sm:$0xff]
        %v1672 = vld [vmem:[%s2 + $0x278] sm:$0xff]
        %v1673 = vld [vmem:[%s2 + $0x280] sm:$0xff]
        %v1674 = vld [vmem:[%s2 + $0x288] sm:$0xff]
        %v1675 = vld [vmem:[%s2 + $0x290] sm:$0xff]
        %v1676 = vld [vmem:[%s2 + $0x298] sm:$0xff]
        %v1677 = vld [vmem:[%s2 + $0x2a0] sm:$0xff]
        %v1678 = vld [vmem:[%s2 + $0x2a8] sm:$0xff]
        %v1679 = vld [vmem:[%s2 + $0x2b0] sm:$0xff]
        %v1680 = vld [vmem:[%s2 + $0x2b8] sm:$0xff]
        %v1681 = vld [vmem:[%s2 + $0x2c0] sm:$0xff]
        %v1682 = vld [vmem:[%s2 + $0x2c8] sm:$0xff]
        %v1683 = vld [vmem:[%s2 + $0x2d0] sm:$0xff]
        %v1684 = vld [vmem:[%s2 + $0x2d8] sm:$0xff]
        %v1685 = vld [vmem:[%s2 + $0x2e0] sm:$0xff]
        %v1686 = vld [vmem:[%s2 + $0x2e8] sm:$0xff]
        %v1687 = vld [vmem:[%s2 + $0x2f0] sm:$0xff]
        %v1688 = vld [vmem:[%s2 + $0x2f8] sm:$0xff]
        %v1689 = vld [vmem:[%s2 + $0x300] sm:$0xff]
        %v1690 = vld [vmem:[%s2 + $0x308] sm:$0xff]
        %v1691 = vld [vmem:[%s2 + $0x310] sm:$0xff]
        %v1692 = vld [vmem:[%s2 + $0x318] sm:$0xff]
        %v1693 = vld [vmem:[%s2 + $0x320] sm:$0xff]
        %v1694 = vld [vmem:[%s2 + $0x328] sm:$0xff]
        %v1695 = vld [vmem:[%s2 + $0x330] sm:$0xff]
        %v1696 = vld [vmem:[%s2 + $0x338] sm:$0xff]
        %v1697 = vld [vmem:[%s2 + $0x340] sm:$0xff]
        %v1698 = vld [vmem:[%s2 + $0x348] sm:$0xff]
        %v1699 = vld [vmem:[%s2 + $0x350] sm:$0xff]
        %v1700 = vld [vmem:[%s2 + $0x358] sm:$0xff]
        %v1701 = vld [vmem:[%s2 + $0x360] sm:$0xff]
        %v1702 = vld [vmem:[%s2 + $0x368] sm:$0xff]
        %v1703 = vld [vmem:[%s2 + $0x370] sm:$0xff]
        %v1704 = vld [vmem:[%s2 + $0x378] sm:$0xff]
        %v1705 = vld [vmem:[%s2 + $0x380] sm:$0xff]
        %v1706 = vld [vmem:[%s2 + $0x388] sm:$0xff]
        %v1707 = vld [vmem:[%s2 + $0x390] sm:$0xff]
        %v1708 = vld [vmem:[%s2 + $0x398] sm:$0xff]
        %v1709 = vld [vmem:[%s2 + $0x3a0] sm:$0xff]
        %v1710 = vld [vmem:[%s2 + $0x3a8] sm:$0xff]
        %v1711 = vld [vmem:[%s2 + $0x3b0] sm:$0xff]
        %v1712 = vld [vmem:[%s2 + $0x3b8] sm:$0xff]
        %v1713 = vld [vmem:[%s2 + $0x3c0] sm:$0xff]
        %v1714 = vld [vmem:[%s2 + $0x3c8] sm:$0xff]
        %v1715 = vld [vmem:[%s2 + $0x3d0] sm:$0xff]
        %v1716 = vld [vmem:[%s2 + $0x3d8] sm:$0xff]
        %v1717 = vld [vmem:[%s2 + $0x3e0] sm:$0xff]
        %v1718 = vld [vmem:[%s2 + $0x3e8] sm:$0xff]
        %v1719 = vld [vmem:[%s2 + $0x3f0] sm:$0xff]
        %v1720 = vld [vmem:[%s2 + $0x3f8] sm:$0xff]
        %v1721 = vld [vmem:[%s2 + $0x400] sm:$0xff]
        %v1722 = vld [vmem:[%s2 + $0x408] sm:$0xff]
        %v1723 = vld [vmem:[%s2 + $0x410] sm:$0xff]
        %v1724 = vld [vmem:[%s2 + $0x418] sm:$0xff]
        %v1725 = vld [vmem:[%s2 + $0x420] sm:$0xff]
        %v1726 = vld [vmem:[%s2 + $0x428] sm:$0xff]
        %v1727 = vld [vmem:[%s2 + $0x430] sm:$0xff]
        %v1728 = vld [vmem:[%s2 + $0x438] sm:$0xff]
        %v1729 = vld [vmem:[%s2 + $0x440] sm:$0xff]
        %v1730 = vld [vmem:[%s2 + $0x448] sm:$0xff]
        %v1731 = vld [vmem:[%s2 + $0x450] sm:$0xff]
        %v1732 = vld [vmem:[%s2 + $0x458] sm:$0xff]
        %v1733 = vld [vmem:[%s2 + $0x460] sm:$0xff]
        %v1734 = vld [vmem:[%s2 + $0x468] sm:$0xff]
        %v1735 = vld [vmem:[%s2 + $0x470] sm:$0xff]
        %v1736 = vld [vmem:[%s2 + $0x478] sm:$0xff]
        %v1737 = vld [vmem:[%s2 + $0x480] sm:$0xff]
        %v1738 = vld [vmem:[%s2 + $0x488] sm:$0xff]
        %v1739 = vld [vmem:[%s2 + $0x490] sm:$0xff]
        %v1740 = vld [vmem:[%s2 + $0x498] sm:$0xff]
        %v1741 = vld [vmem:[%s2 + $0x4a0] sm:$0xff]
        %v1742 = vld [vmem:[%s2 + $0x4a8] sm:$0xff]
        %v1743 = vld [vmem:[%s2 + $0x4b0] sm:$0xff]
        %v1744 = vld [vmem:[%s2 + $0x4b8] sm:$0xff]
        %v1745 = vld [vmem:[%s2 + $0x4c0] sm:$0xff]
        %v1746 = vld [vmem:[%s2 + $0x4c8] sm:$0xff]
        %v1747 = vld [vmem:[%s2 + $0x4d0] sm:$0xff]
        %v1748 = vld [vmem:[%s2 + $0x4d8] sm:$0xff]
        %v1749 = vld [vmem:[%s2 + $0x4e0] sm:$0xff]
        %v1750 = vld [vmem:[%s2 + $0x4e8] sm:$0xff]
        %v1751 = vld [vmem:[%s2 + $0x4f0] sm:$0xff]
        %v1752 = vld [vmem:[%s2 + $0x4f8] sm:$0xff]
        %v1753 = vld [vmem:[%s2 + $0x500] sm:$0xff]
        %v1754 = vld [vmem:[%s2 + $0x508] sm:$0xff]
        %v1755 = vld [vmem:[%s2 + $0x510] sm:$0xff]
        %v1756 = vld [vmem:[%s2 + $0x518] sm:$0xff]
        %v1757 = vld [vmem:[%s2 + $0x520] sm:$0xff]
        %v1758 = vld [vmem:[%s2 + $0x528] sm:$0xff]
        %v1759 = vld [vmem:[%s2 + $0x530] sm:$0xff]
        %v1760 = vld [vmem:[%s2 + $0x538] sm:$0xff]
        %v1761 = vld [vmem:[%s2 + $0x540] sm:$0xff]
        %v1762 = vld [vmem:[%s2 + $0x548] sm:$0xff]
        %v1763 = vld [vmem:[%s2 + $0x550] sm:$0xff]
        %v1764 = vld [vmem:[%s2 + $0x558] sm:$0xff]
        %v1765 = vld [vmem:[%s2 + $0x560] sm:$0xff]
        %v1766 = vld [vmem:[%s2 + $0x568] sm:$0xff]
        %v1767 = vld [vmem:[%s2 + $0x570] sm:$0xff]
        %v1768 = vld [vmem:[%s2 + $0x578] sm:$0xff]
        %v1769 = vld [vmem:[%s2 + $0x580] sm:$0xff]
        %v1770 = vld [vmem:[%s2 + $0x588] sm:$0xff]
        %v1771 = vld [vmem:[%s2 + $0x590] sm:$0xff]
        %v1772 = vld [vmem:[%s2 + $0x598] sm:$0xff]
        %v1773 = vld [vmem:[%s2 + $0x5a0] sm:$0xff]
        %v1774 = vld [vmem:[%s2 + $0x5a8] sm:$0xff]
        %v1775 = vld [vmem:[%s2 + $0x5b0] sm:$0xff]
        %v1776 = vld [vmem:[%s2 + $0x5b8] sm:$0xff]
        %v1777 = vld [vmem:[%s2 + $0x5c0] sm:$0xff]
        %v1778 = vld [vmem:[%s2 + $0x5c8] sm:$0xff]
        %v1779 = vld [vmem:[%s2 + $0x5d0] sm:$0xff]
        %v1780 = vld [vmem:[%s2 + $0x5d8] sm:$0xff]
        %v1781 = vld [vmem:[%s2 + $0x5e0] sm:$0xff]
        %v1782 = vld [vmem:[%s2 + $0x5e8] sm:$0xff]
        %v1783 = vld [vmem:[%s2 + $0x5f0] sm:$0xff]
        %v1784 = vld [vmem:[%s2 + $0x5f8] sm:$0xff]
        %v1785 = vld [vmem:[%s2 + $0x600] sm:$0xff]
        %v1786 = vld [vmem:[%s2 + $0x608] sm:$0xff]
        %v1787 = vld [vmem:[%s2 + $0x610] sm:$0xff]
        %v1788 = vld [vmem:[%s2 + $0x618] sm:$0xff]
        %v1789 = vld [vmem:[%s2 + $0x620] sm:$0xff]
        %v1790 = vld [vmem:[%s2 + $0x628] sm:$0xff]
        %v1791 = vld [vmem:[%s2 + $0x630] sm:$0xff]
        %v1792 = vld [vmem:[%s2 + $0x638] sm:$0xff]
        %v1793 = vld [vmem:[%s2 + $0x640] sm:$0xff]
        %v1794 = vld [vmem:[%s2 + $0x648] sm:$0xff]
        %v1795 = vld [vmem:[%s2 + $0x650] sm:$0xff]
        %v1796 = vld [vmem:[%s2 + $0x658] sm:$0xff]
        %v1797 = vld [vmem:[%s2 + $0x660] sm:$0xff]
        %v1798 = vld [vmem:[%s2 + $0x668] sm:$0xff]
        %v1799 = vld [vmem:[%s2 + $0x670] sm:$0xff]
        %v1800 = vld [vmem:[%s2 + $0x678] sm:$0xff]
        %v1801 = vld [vmem:[%s2 + $0x680] sm:$0xff]
        %v1802 = vld [vmem:[%s2 + $0x688] sm:$0xff]
        %v1803 = vld [vmem:[%s2 + $0x690] sm:$0xff]
        %v1804 = vld [vmem:[%s2 + $0x698] sm:$0xff]
        %v1805 = vld [vmem:[%s2 + $0x6a0] sm:$0xff]
        %v1806 = vld [vmem:[%s2 + $0x6a8] sm:$0xff]
        %v1807 = vld [vmem:[%s2 + $0x6b0] sm:$0xff]
        %v1808 = vld [vmem:[%s2 + $0x6b8] sm:$0xff]
        %v1809 = vld [vmem:[%s2 + $0x6c0] sm:$0xff]
        %v1810 = vld [vmem:[%s2 + $0x6c8] sm:$0xff]
        %v1811 = vld [vmem:[%s2 + $0x6d0] sm:$0xff]
        %v1812 = vld [vmem:[%s2 + $0x6d8] sm:$0xff]
        %v1813 = vld [vmem:[%s2 + $0x6e0] sm:$0xff]
        %v1814 = vld [vmem:[%s2 + $0x6e8] sm:$0xff]
        %v1815 = vld [vmem:[%s2 + $0x6f0] sm:$0xff]
        %v1816 = vld [vmem:[%s2 + $0x6f8] sm:$0xff]
        %v1817 = vld [vmem:[%s2 + $0x700] sm:$0xff]
        %v1818 = vld [vmem:[%s2 + $0x708] sm:$0xff]
        %v1819 = vld [vmem:[%s2 + $0x710] sm:$0xff]
        %v1820 = vld [vmem:[%s2 + $0x718] sm:$0xff]
        %v1821 = vld [vmem:[%s2 + $0x720] sm:$0xff]
        %v1822 = vld [vmem:[%s2 + $0x728] sm:$0xff]
        %v1823 = vld [vmem:[%s2 + $0x730] sm:$0xff]
        %v1824 = vld [vmem:[%s2 + $0x738] sm:$0xff]
        %v1825 = vld [vmem:[%s2 + $0x740] sm:$0xff]
        %v1826 = vld [vmem:[%s2 + $0x748] sm:$0xff]
        %v1827 = vld [vmem:[%s2 + $0x750] sm:$0xff]
        %v1828 = vld [vmem:[%s2 + $0x758] sm:$0xff]
        %v1829 = vld [vmem:[%s2 + $0x760] sm:$0xff]
        %v1830 = vld [vmem:[%s2 + $0x768] sm:$0xff]
        %v1831 = vld [vmem:[%s2 + $0x770] sm:$0xff]
        %v1832 = vld [vmem:[%s2 + $0x778] sm:$0xff]
        %v1833 = vld [vmem:[%s2 + $0x780] sm:$0xff]
        %v1834 = vld [vmem:[%s2 + $0x788] sm:$0xff]
        %v1835 = vld [vmem:[%s2 + $0x790] sm:$0xff]
        %v1836 = vld [vmem:[%s2 + $0x798] sm:$0xff]
        %v1837 = vld [vmem:[%s2 + $0x7a0] sm:$0xff]
        %v1838 = vld [vmem:[%s2 + $0x7a8] sm:$0xff]
        %v1839 = vld [vmem:[%s2 + $0x7b0] sm:$0xff]
        %v1840 = vld [vmem:[%s2 + $0x7b8] sm:$0xff]
        %v1841 = vld [vmem:[%s2 + $0x7c0] sm:$0xff]
        %v1842 = vld [vmem:[%s2 + $0x7c8] sm:$0xff]
        %v1843 = vld [vmem:[%s2 + $0x7d0] sm:$0xff]
        %v1844 = vld [vmem:[%s2 + $0x7d8] sm:$0xff]
        %v1845 = vld [vmem:[%s2 + $0x7e0] sm:$0xff]
        %v1846 = vld [vmem:[%s2 + $0x7e8] sm:$0xff]
        %v1847 = vld [vmem:[%s2 + $0x7f0] sm:$0xff]
        %v1848 = vld [vmem:[%s2 + $0x7f8] sm:$0xff]
        %v1849 = vld [vmem:[%s1545] sm:$0xff]
        %v1850 = vld [vmem:[%s1545 + $0x8] sm:$0xff]
        %v1851 = vld [vmem:[%s1545 + $0x10] sm:$0xff]
        %v1852 = vld [vmem:[%s1545 + $0x18] sm:$0xff]
        %v1853 = vld [vmem:[%s1545 + $0x20] sm:$0xff]
        %v1854 = vld [vmem:[%s1545 + $0x28] sm:$0xff]
        %v1855 = vld [vmem:[%s1545 + $0x30] sm:$0xff]
        %v1856 = vld [vmem:[%s1545 + $0x38] sm:$0xff]
        %v1857 = vld [vmem:[%s1545 + $0x40] sm:$0xff]
        %v1858 = vld [vmem:[%s1545 + $0x48] sm:$0xff]
        %v1859 = vld [vmem:[%s1545 + $0x50] sm:$0xff]
        %v1860 = vld [vmem:[%s1545 + $0x58] sm:$0xff]
        %v1861 = vld [vmem:[%s1545 + $0x60] sm:$0xff]
        %v1862 = vld [vmem:[%s1545 + $0x68] sm:$0xff]
        %v1863 = vld [vmem:[%s1545 + $0x70] sm:$0xff]
        %v1864 = vld [vmem:[%s1545 + $0x78] sm:$0xff]
        %v1865 = vld [vmem:[%s1545 + $0x80] sm:$0xff]
        %v1866 = vld [vmem:[%s1545 + $0x88] sm:$0xff]
        %v1867 = vld [vmem:[%s1545 + $0x90] sm:$0xff]
        %v1868 = vld [vmem:[%s1545 + $0x98] sm:$0xff]
        %v1869 = vld [vmem:[%s1545 + $0xa0] sm:$0xff]
        %v1870 = vld [vmem:[%s1545 + $0xa8] sm:$0xff]
        %v1871 = vld [vmem:[%s1545 + $0xb0] sm:$0xff]
        %v1872 = vld [vmem:[%s1545 + $0xb8] sm:$0xff]
        %v1873 = vld [vmem:[%s1545 + $0xc0] sm:$0xff]
        %v1874 = vld [vmem:[%s1545 + $0xc8] sm:$0xff]
        %v1875 = vld [vmem:[%s1545 + $0xd0] sm:$0xff]
        %v1876 = vld [vmem:[%s1545 + $0xd8] sm:$0xff]
        %v1877 = vld [vmem:[%s1545 + $0xe0] sm:$0xff]
        %v1878 = vld [vmem:[%s1545 + $0xe8] sm:$0xff]
        %v1879 = vld [vmem:[%s1545 + $0xf0] sm:$0xff]
        %v1880 = vld [vmem:[%s1545 + $0xf8] sm:$0xff]
        %v1881 = vld [vmem:[%s1545 + $0x100] sm:$0xff]
        %v1882 = vld [vmem:[%s1545 + $0x108] sm:$0xff]
        %v1883 = vld [vmem:[%s1545 + $0x110] sm:$0xff]
        %v1884 = vld [vmem:[%s1545 + $0x118] sm:$0xff]
        %v1885 = vld [vmem:[%s1545 + $0x120] sm:$0xff]
        %v1886 = vld [vmem:[%s1545 + $0x128] sm:$0xff]
        %v1887 = vld [vmem:[%s1545 + $0x130] sm:$0xff]
        %v1888 = vld [vmem:[%s1545 + $0x138] sm:$0xff]
        %v1889 = vld [vmem:[%s1545 + $0x140] sm:$0xff]
        %v1890 = vld [vmem:[%s1545 + $0x148] sm:$0xff]
        %v1891 = vld [vmem:[%s1545 + $0x150] sm:$0xff]
        %v1892 = vld [vmem:[%s1545 + $0x158] sm:$0xff]
        %v1893 = vld [vmem:[%s1545 + $0x160] sm:$0xff]
        %v1894 = vld [vmem:[%s1545 + $0x168] sm:$0xff]
        %v1895 = vld [vmem:[%s1545 + $0x170] sm:$0xff]
        %v1896 = vld [vmem:[%s1545 + $0x178] sm:$0xff]
        %v1897 = vld [vmem:[%s1545 + $0x180] sm:$0xff]
        %v1898 = vld [vmem:[%s1545 + $0x188] sm:$0xff]
        %v1899 = vld [vmem:[%s1545 + $0x190] sm:$0xff]
        %v1900 = vld [vmem:[%s1545 + $0x198] sm:$0xff]
        %v1901 = vld [vmem:[%s1545 + $0x1a0] sm:$0xff]
        %v1902 = vld [vmem:[%s1545 + $0x1a8] sm:$0xff]
        %v1903 = vld [vmem:[%s1545 + $0x1b0] sm:$0xff]
        %v1904 = vld [vmem:[%s1545 + $0x1b8] sm:$0xff]
        %v1905 = vld [vmem:[%s1545 + $0x1c0] sm:$0xff]
        %v1906 = vld [vmem:[%s1545 + $0x1c8] sm:$0xff]
        %v1907 = vld [vmem:[%s1545 + $0x1d0] sm:$0xff]
        %v1908 = vld [vmem:[%s1545 + $0x1d8] sm:$0xff]
        %v1909 = vld [vmem:[%s1545 + $0x1e0] sm:$0xff]
        %v1910 = vld [vmem:[%s1545 + $0x1e8] sm:$0xff]
        %v1911 = vld [vmem:[%s1545 + $0x1f0] sm:$0xff]
        %v1912 = vld [vmem:[%s1545 + $0x1f8] sm:$0xff]
        %v1913 = vld [vmem:[%s1545 + $0x200] sm:$0xff]
        %v1914 = vld [vmem:[%s1545 + $0x208] sm:$0xff]
        %v1915 = vld [vmem:[%s1545 + $0x210] sm:$0xff]
        %v1916 = vld [vmem:[%s1545 + $0x218] sm:$0xff]
        %v1917 = vld [vmem:[%s1545 + $0x220] sm:$0xff]
        %v1918 = vld [vmem:[%s1545 + $0x228] sm:$0xff]
        %v1919 = vld [vmem:[%s1545 + $0x230] sm:$0xff]
        %v1920 = vld [vmem:[%s1545 + $0x238] sm:$0xff]
        %v1921 = vld [vmem:[%s1545 + $0x240] sm:$0xff]
        %v1922 = vld [vmem:[%s1545 + $0x248] sm:$0xff]
        %v1923 = vld [vmem:[%s1545 + $0x250] sm:$0xff]
        %v1924 = vld [vmem:[%s1545 + $0x258] sm:$0xff]
        %v1925 = vld [vmem:[%s1545 + $0x260] sm:$0xff]
        %v1926 = vld [vmem:[%s1545 + $0x268] sm:$0xff]
        %v1927 = vld [vmem:[%s1545 + $0x270] sm:$0xff]
        %v1928 = vld [vmem:[%s1545 + $0x278] sm:$0xff]
        %v1929 = vld [vmem:[%s1545 + $0x280] sm:$0xff]
        %v1930 = vld [vmem:[%s1545 + $0x288] sm:$0xff]
        %v1931 = vld [vmem:[%s1545 + $0x290] sm:$0xff]
        %v1932 = vld [vmem:[%s1545 + $0x298] sm:$0xff]
        %v1933 = vld [vmem:[%s1545 + $0x2a0] sm:$0xff]
        %v1934 = vld [vmem:[%s1545 + $0x2a8] sm:$0xff]
        %v1935 = vld [vmem:[%s1545 + $0x2b0] sm:$0xff]
        %v1936 = vld [vmem:[%s1545 + $0x2b8] sm:$0xff]
        %v1937 = vld [vmem:[%s1545 + $0x2c0] sm:$0xff]
        %v1938 = vld [vmem:[%s1545 + $0x2c8] sm:$0xff]
        %v1939 = vld [vmem:[%s1545 + $0x2d0] sm:$0xff]
        %v1940 = vld [vmem:[%s1545 + $0x2d8] sm:$0xff]
        %v1941 = vld [vmem:[%s1545 + $0x2e0] sm:$0xff]
        %v1942 = vld [vmem:[%s1545 + $0x2e8] sm:$0xff]
        %v1943 = vld [vmem:[%s1545 + $0x2f0] sm:$0xff]
        %v1944 = vld [vmem:[%s1545 + $0x2f8] sm:$0xff]
        %v1945 = vld [vmem:[%s1545 + $0x300] sm:$0xff]
        %v1946 = vld [vmem:[%s1545 + $0x308] sm:$0xff]
        %v1947 = vld [vmem:[%s1545 + $0x310] sm:$0xff]
        %v1948 = vld [vmem:[%s1545 + $0x318] sm:$0xff]
        %v1949 = vld [vmem:[%s1545 + $0x320] sm:$0xff]
        %v1950 = vld [vmem:[%s1545 + $0x328] sm:$0xff]
        %v1951 = vld [vmem:[%s1545 + $0x330] sm:$0xff]
        %v1952 = vld [vmem:[%s1545 + $0x338] sm:$0xff]
        %v1953 = vld [vmem:[%s1545 + $0x340] sm:$0xff]
        %v1954 = vld [vmem:[%s1545 + $0x348] sm:$0xff]
        %v1955 = vld [vmem:[%s1545 + $0x350] sm:$0xff]
        %v1956 = vld [vmem:[%s1545 + $0x358] sm:$0xff]
        %v1957 = vld [vmem:[%s1545 + $0x360] sm:$0xff]
        %v1958 = vld [vmem:[%s1545 + $0x368] sm:$0xff]
        %v1959 = vld [vmem:[%s1545 + $0x370] sm:$0xff]
        %v1960 = vld [vmem:[%s1545 + $0x378] sm:$0xff]
        %v1961 = vld [vmem:[%s1545 + $0x380] sm:$0xff]
        %v1962 = vld [vmem:[%s1545 + $0x388] sm:$0xff]
        %v1963 = vld [vmem:[%s1545 + $0x390] sm:$0xff]
        %v1964 = vld [vmem:[%s1545 + $0x398] sm:$0xff]
        %v1965 = vld [vmem:[%s1545 + $0x3a0] sm:$0xff]
        %v1966 = vld [vmem:[%s1545 + $0x3a8] sm:$0xff]
        %v1967 = vld [vmem:[%s1545 + $0x3b0] sm:$0xff]
        %v1968 = vld [vmem:[%s1545 + $0x3b8] sm:$0xff]
        %v1969 = vld [vmem:[%s1545 + $0x3c0] sm:$0xff]
        %v1970 = vld [vmem:[%s1545 + $0x3c8] sm:$0xff]
        %v1971 = vld [vmem:[%s1545 + $0x3d0] sm:$0xff]
        %v1972 = vld [vmem:[%s1545 + $0x3d8] sm:$0xff]
        %v1973 = vld [vmem:[%s1545 + $0x3e0] sm:$0xff]
        %v1974 = vld [vmem:[%s1545 + $0x3e8] sm:$0xff]
        %v1975 = vld [vmem:[%s1545 + $0x3f0] sm:$0xff]
        %v1976 = vld [vmem:[%s1545 + $0x3f8] sm:$0xff]
        %v1977 = vld [vmem:[%s1545 + $0x400] sm:$0xff]
        %v1978 = vld [vmem:[%s1545 + $0x408] sm:$0xff]
        %v1979 = vld [vmem:[%s1545 + $0x410] sm:$0xff]
        %v1980 = vld [vmem:[%s1545 + $0x418] sm:$0xff]
        %v1981 = vld [vmem:[%s1545 + $0x420] sm:$0xff]
        %v1982 = vld [vmem:[%s1545 + $0x428] sm:$0xff]
        %v1983 = vld [vmem:[%s1545 + $0x430] sm:$0xff]
        %v1984 = vld [vmem:[%s1545 + $0x438] sm:$0xff]
        %v1985 = vld [vmem:[%s1545 + $0x440] sm:$0xff]
        %v1986 = vld [vmem:[%s1545 + $0x448] sm:$0xff]
        %v1987 = vld [vmem:[%s1545 + $0x450] sm:$0xff]
        %v1988 = vld [vmem:[%s1545 + $0x458] sm:$0xff]
        %v1989 = vld [vmem:[%s1545 + $0x460] sm:$0xff]
        %v1990 = vld [vmem:[%s1545 + $0x468] sm:$0xff]
        %v1991 = vld [vmem:[%s1545 + $0x470] sm:$0xff]
        %v1992 = vld [vmem:[%s1545 + $0x478] sm:$0xff]
        %v1993 = vld [vmem:[%s1545 + $0x480] sm:$0xff]
        %v1994 = vld [vmem:[%s1545 + $0x488] sm:$0xff]
        %v1995 = vld [vmem:[%s1545 + $0x490] sm:$0xff]
        %v1996 = vld [vmem:[%s1545 + $0x498] sm:$0xff]
        %v1997 = vld [vmem:[%s1545 + $0x4a0] sm:$0xff]
        %v1998 = vld [vmem:[%s1545 + $0x4a8] sm:$0xff]
        %v1999 = vld [vmem:[%s1545 + $0x4b0] sm:$0xff]
        %v2000 = vld [vmem:[%s1545 + $0x4b8] sm:$0xff]
        %v2001 = vld [vmem:[%s1545 + $0x4c0] sm:$0xff]
        %v2002 = vld [vmem:[%s1545 + $0x4c8] sm:$0xff]
        %v2003 = vld [vmem:[%s1545 + $0x4d0] sm:$0xff]
        %v2004 = vld [vmem:[%s1545 + $0x4d8] sm:$0xff]
        %v2005 = vld [vmem:[%s1545 + $0x4e0] sm:$0xff]
        %v2006 = vld [vmem:[%s1545 + $0x4e8] sm:$0xff]
        %v2007 = vld [vmem:[%s1545 + $0x4f0] sm:$0xff]
        %v2008 = vld [vmem:[%s1545 + $0x4f8] sm:$0xff]
        %v2009 = vld [vmem:[%s1545 + $0x500] sm:$0xff]
        %v2010 = vld [vmem:[%s1545 + $0x508] sm:$0xff]
        %v2011 = vld [vmem:[%s1545 + $0x510] sm:$0xff]
        %v2012 = vld [vmem:[%s1545 + $0x518] sm:$0xff]
        %v2013 = vld [vmem:[%s1545 + $0x520] sm:$0xff]
        %v2014 = vld [vmem:[%s1545 + $0x528] sm:$0xff]
        %v2015 = vld [vmem:[%s1545 + $0x530] sm:$0xff]
        %v2016 = vld [vmem:[%s1545 + $0x538] sm:$0xff]
        %v2017 = vld [vmem:[%s1545 + $0x540] sm:$0xff]
        %v2018 = vld [vmem:[%s1545 + $0x548] sm:$0xff]
        %v2019 = vld [vmem:[%s1545 + $0x550] sm:$0xff]
        %v2020 = vld [vmem:[%s1545 + $0x558] sm:$0xff]
        %v2021 = vld [vmem:[%s1545 + $0x560] sm:$0xff]
        %v2022 = vld [vmem:[%s1545 + $0x568] sm:$0xff]
        %v2023 = vld [vmem:[%s1545 + $0x570] sm:$0xff]
        %v2024 = vld [vmem:[%s1545 + $0x578] sm:$0xff]
        %v2025 = vld [vmem:[%s1545 + $0x580] sm:$0xff]
        %v2026 = vld [vmem:[%s1545 + $0x588] sm:$0xff]
        %v2027 = vld [vmem:[%s1545 + $0x590] sm:$0xff]
        %v2028 = vld [vmem:[%s1545 + $0x598] sm:$0xff]
        %v2029 = vld [vmem:[%s1545 + $0x5a0] sm:$0xff]
        %v2030 = vld [vmem:[%s1545 + $0x5a8] sm:$0xff]
        %v2031 = vld [vmem:[%s1545 + $0x5b0] sm:$0xff]
        %v2032 = vld [vmem:[%s1545 + $0x5b8] sm:$0xff]
        %v2033 = vld [vmem:[%s1545 + $0x5c0] sm:$0xff]
        %v2034 = vld [vmem:[%s1545 + $0x5c8] sm:$0xff]
        %v2035 = vld [vmem:[%s1545 + $0x5d0] sm:$0xff]
        %v2036 = vld [vmem:[%s1545 + $0x5d8] sm:$0xff]
        %v2037 = vld [vmem:[%s1545 + $0x5e0] sm:$0xff]
        %v2038 = vld [vmem:[%s1545 + $0x5e8] sm:$0xff]
        %v2039 = vld [vmem:[%s1545 + $0x5f0] sm:$0xff]
        %v2040 = vld [vmem:[%s1545 + $0x5f8] sm:$0xff]
        %v2041 = vld [vmem:[%s1545 + $0x600] sm:$0xff]
        %v2042 = vld [vmem:[%s1545 + $0x608] sm:$0xff]
        %v2043 = vld [vmem:[%s1545 + $0x610] sm:$0xff]
        %v2044 = vld [vmem:[%s1545 + $0x618] sm:$0xff]
        %v2045 = vld [vmem:[%s1545 + $0x620] sm:$0xff]
        %v2046 = vld [vmem:[%s1545 + $0x628] sm:$0xff]
        %v2047 = vld [vmem:[%s1545 + $0x630] sm:$0xff]
        %v2048 = vld [vmem:[%s1545 + $0x638] sm:$0xff]
        %v2049 = vld [vmem:[%s1545 + $0x640] sm:$0xff]
        %v2050 = vld [vmem:[%s1545 + $0x648] sm:$0xff]
        %v2051 = vld [vmem:[%s1545 + $0x650] sm:$0xff]
        %v2052 = vld [vmem:[%s1545 + $0x658] sm:$0xff]
        %v2053 = vld [vmem:[%s1545 + $0x660] sm:$0xff]
        %v2054 = vld [vmem:[%s1545 + $0x668] sm:$0xff]
        %v2055 = vld [vmem:[%s1545 + $0x670] sm:$0xff]
        %v2056 = vld [vmem:[%s1545 + $0x678] sm:$0xff]
        %v2057 = vld [vmem:[%s1545 + $0x680] sm:$0xff]
        %v2058 = vld [vmem:[%s1545 + $0x688] sm:$0xff]
        %v2059 = vld [vmem:[%s1545 + $0x690] sm:$0xff]
        %v2060 = vld [vmem:[%s1545 + $0x698] sm:$0xff]
        %v2061 = vld [vmem:[%s1545 + $0x6a0] sm:$0xff]
        %v2062 = vld [vmem:[%s1545 + $0x6a8] sm:$0xff]
        %v2063 = vld [vmem:[%s1545 + $0x6b0] sm:$0xff]
        %v2064 = vld [vmem:[%s1545 + $0x6b8] sm:$0xff]
        %v2065 = vld [vmem:[%s1545 + $0x6c0] sm:$0xff]
        %v2066 = vld [vmem:[%s1545 + $0x6c8] sm:$0xff]
        %v2067 = vld [vmem:[%s1545 + $0x6d0] sm:$0xff]
        %v2068 = vld [vmem:[%s1545 + $0x6d8] sm:$0xff]
        %v2069 = vld [vmem:[%s1545 + $0x6e0] sm:$0xff]
        %v2070 = vld [vmem:[%s1545 + $0x6e8] sm:$0xff]
        %v2071 = vld [vmem:[%s1545 + $0x6f0] sm:$0xff]
        %v2072 = vld [vmem:[%s1545 + $0x6f8] sm:$0xff]
        %v2073 = vld [vmem:[%s1545 + $0x700] sm:$0xff]
        %v2074 = vld [vmem:[%s1545 + $0x708] sm:$0xff]
        %v2075 = vld [vmem:[%s1545 + $0x710] sm:$0xff]
        %v2076 = vld [vmem:[%s1545 + $0x718] sm:$0xff]
        %v2077 = vld [vmem:[%s1545 + $0x720] sm:$0xff]
        %v2078 = vld [vmem:[%s1545 + $0x728] sm:$0xff]
        %v2079 = vld [vmem:[%s1545 + $0x730] sm:$0xff]
        %v2080 = vld [vmem:[%s1545 + $0x738] sm:$0xff]
        %v2081 = vld [vmem:[%s1545 + $0x740] sm:$0xff]
        %v2082 = vld [vmem:[%s1545 + $0x748] sm:$0xff]
        %v2083 = vld [vmem:[%s1545 + $0x750] sm:$0xff]
        %v2084 = vld [vmem:[%s1545 + $0x758] sm:$0xff]
        %v2085 = vld [vmem:[%s1545 + $0x760] sm:$0xff]
        %v2086 = vld [vmem:[%s1545 + $0x768] sm:$0xff]
        %v2087 = vld [vmem:[%s1545 + $0x770] sm:$0xff]
        %v2088 = vld [vmem:[%s1545 + $0x778] sm:$0xff]
        %v2089 = vld [vmem:[%s1545 + $0x780] sm:$0xff]
        %v2090 = vld [vmem:[%s1545 + $0x788] sm:$0xff]
        %v2091 = vld [vmem:[%s1545 + $0x790] sm:$0xff]
        %v2092 = vld [vmem:[%s1545 + $0x798] sm:$0xff]
        %v2093 = vld [vmem:[%s1545 + $0x7a0] sm:$0xff]
        %v2094 = vld [vmem:[%s1545 + $0x7a8] sm:$0xff]
        %v2095 = vld [vmem:[%s1545 + $0x7b0] sm:$0xff]
        %v2096 = vld [vmem:[%s1545 + $0x7b8] sm:$0xff]
        %v2097 = vld [vmem:[%s1545 + $0x7c0] sm:$0xff]
        %v2098 = vld [vmem:[%s1545 + $0x7c8] sm:$0xff]
        %v2099 = vld [vmem:[%s1545 + $0x7d0] sm:$0xff]
        %v2100 = vld [vmem:[%s1545 + $0x7d8] sm:$0xff]
        %v2101 = vld [vmem:[%s1545 + $0x7e0] sm:$0xff]
        %v2102 = vld [vmem:[%s1545 + $0x7e8] sm:$0xff]
        %v2103 = vld [vmem:[%s1545 + $0x7f0] sm:$0xff]
        %v2104 = vld [vmem:[%s1545 + $0x7f8] sm:$0xff]
        %v2105 = vld [vmem:[%s1545 + $0x800] sm:$0xff]
        %v2106 = vld [vmem:[%s1545 + $0x808] sm:$0xff]
        %v2107 = vld [vmem:[%s1545 + $0x810] sm:$0xff]
        %v2108 = vld [vmem:[%s1545 + $0x818] sm:$0xff]
        %v2109 = vld [vmem:[%s1545 + $0x820] sm:$0xff]
        %v2110 = vld [vmem:[%s1545 + $0x828] sm:$0xff]
        %v2111 = vld [vmem:[%s1545 + $0x830] sm:$0xff]
        %v2112 = vld [vmem:[%s1545 + $0x838] sm:$0xff]
        %v2113 = vld [vmem:[%s1545 + $0x840] sm:$0xff]
        %v2114 = vld [vmem:[%s1545 + $0x848] sm:$0xff]
        %v2115 = vld [vmem:[%s1545 + $0x850] sm:$0xff]
        %v2116 = vld [vmem:[%s1545 + $0x858] sm:$0xff]
        %v2117 = vld [vmem:[%s1545 + $0x860] sm:$0xff]
        %v2118 = vld [vmem:[%s1545 + $0x868] sm:$0xff]
        %v2119 = vld [vmem:[%s1545 + $0x870] sm:$0xff]
        %v2120 = vld [vmem:[%s1545 + $0x878] sm:$0xff]
        %v2121 = vld [vmem:[%s1545 + $0x880] sm:$0xff]
        %v2122 = vld [vmem:[%s1545 + $0x888] sm:$0xff]
        %v2123 = vld [vmem:[%s1545 + $0x890] sm:$0xff]
        %v2124 = vld [vmem:[%s1545 + $0x898] sm:$0xff]
        %v2125 = vld [vmem:[%s1545 + $0x8a0] sm:$0xff]
        %v2126 = vld [vmem:[%s1545 + $0x8a8] sm:$0xff]
        %v2127 = vld [vmem:[%s1545 + $0x8b0] sm:$0xff]
        %v2128 = vld [vmem:[%s1545 + $0x8b8] sm:$0xff]
        %v2129 = vld [vmem:[%s1545 + $0x8c0] sm:$0xff]
        %v2130 = vld [vmem:[%s1545 + $0x8c8] sm:$0xff]
        %v2131 = vld [vmem:[%s1545 + $0x8d0] sm:$0xff]
        %v2132 = vld [vmem:[%s1545 + $0x8d8] sm:$0xff]
        %v2133 = vld [vmem:[%s1545 + $0x8e0] sm:$0xff]
        %v2134 = vld [vmem:[%s1545 + $0x8e8] sm:$0xff]
        %v2135 = vld [vmem:[%s1545 + $0x8f0] sm:$0xff]
        %v2136 = vld [vmem:[%s1545 + $0x8f8] sm:$0xff]
        %v2137 = vld [vmem:[%s1545 + $0x900] sm:$0xff]
        %v2138 = vld [vmem:[%s1545 + $0x908] sm:$0xff]
        %v2139 = vld [vmem:[%s1545 + $0x910] sm:$0xff]
        %v2140 = vld [vmem:[%s1545 + $0x918] sm:$0xff]
        %v2141 = vld [vmem:[%s1545 + $0x920] sm:$0xff]
        %v2142 = vld [vmem:[%s1545 + $0x928] sm:$0xff]
        %v2143 = vld [vmem:[%s1545 + $0x930] sm:$0xff]
        %v2144 = vld [vmem:[%s1545 + $0x938] sm:$0xff]
        %v2145 = vld [vmem:[%s1545 + $0x940] sm:$0xff]
        %v2146 = vld [vmem:[%s1545 + $0x948] sm:$0xff]
        %v2147 = vld [vmem:[%s1545 + $0x950] sm:$0xff]
        %v2148 = vld [vmem:[%s1545 + $0x958] sm:$0xff]
        %v2149 = vld [vmem:[%s1545 + $0x960] sm:$0xff]
        %v2150 = vld [vmem:[%s1545 + $0x968] sm:$0xff]
        %v2151 = vld [vmem:[%s1545 + $0x970] sm:$0xff]
        %v2152 = vld [vmem:[%s1545 + $0x978] sm:$0xff]
        %v2153 = vld [vmem:[%s1545 + $0x980] sm:$0xff]
        %v2154 = vld [vmem:[%s1545 + $0x988] sm:$0xff]
        %v2155 = vld [vmem:[%s1545 + $0x990] sm:$0xff]
        %v2156 = vld [vmem:[%s1545 + $0x998] sm:$0xff]
        %v2157 = vld [vmem:[%s1545 + $0x9a0] sm:$0xff]
        %v2158 = vld [vmem:[%s1545 + $0x9a8] sm:$0xff]
        %v2159 = vld [vmem:[%s1545 + $0x9b0] sm:$0xff]
        %v2160 = vld [vmem:[%s1545 + $0x9b8] sm:$0xff]
        %v2161 = vld [vmem:[%s1545 + $0x9c0] sm:$0xff]
        %v2162 = vld [vmem:[%s1545 + $0x9c8] sm:$0xff]
        %v2163 = vld [vmem:[%s1545 + $0x9d0] sm:$0xff]
        %v2164 = vld [vmem:[%s1545 + $0x9d8] sm:$0xff]
        %v2165 = vld [vmem:[%s1545 + $0x9e0] sm:$0xff]
        %v2166 = vld [vmem:[%s1545 + $0x9e8] sm:$0xff]
        %v2167 = vld [vmem:[%s1545 + $0x9f0] sm:$0xff]
        %v2168 = vld [vmem:[%s1545 + $0x9f8] sm:$0xff]
        %v2169 = vld [vmem:[%s1545 + $0xa00] sm:$0xff]
        %v2170 = vld [vmem:[%s1545 + $0xa08] sm:$0xff]
        %v2171 = vld [vmem:[%s1545 + $0xa10] sm:$0xff]
        %v2172 = vld [vmem:[%s1545 + $0xa18] sm:$0xff]
        %v2173 = vld [vmem:[%s1545 + $0xa20] sm:$0xff]
        %v2174 = vld [vmem:[%s1545 + $0xa28] sm:$0xff]
        %v2175 = vld [vmem:[%s1545 + $0xa30] sm:$0xff]
        %v2176 = vld [vmem:[%s1545 + $0xa38] sm:$0xff]
        %v2177 = vld [vmem:[%s1545 + $0xa40] sm:$0xff]
        %v2178 = vld [vmem:[%s1545 + $0xa48] sm:$0xff]
        %v2179 = vld [vmem:[%s1545 + $0xa50] sm:$0xff]
        %v2180 = vld [vmem:[%s1545 + $0xa58] sm:$0xff]
        %v2181 = vld [vmem:[%s1545 + $0xa60] sm:$0xff]
        %v2182 = vld [vmem:[%s1545 + $0xa68] sm:$0xff]
        %v2183 = vld [vmem:[%s1545 + $0xa70] sm:$0xff]
        %v2184 = vld [vmem:[%s1545 + $0xa78] sm:$0xff]
        %v2185 = vld [vmem:[%s1545 + $0xa80] sm:$0xff]
        %v2186 = vld [vmem:[%s1545 + $0xa88] sm:$0xff]
        %v2187 = vld [vmem:[%s1545 + $0xa90] sm:$0xff]
        %v2188 = vld [vmem:[%s1545 + $0xa98] sm:$0xff]
        %v2189 = vld [vmem:[%s1545 + $0xaa0] sm:$0xff]
        %v2190 = vld [vmem:[%s1545 + $0xaa8] sm:$0xff]
        %v2191 = vld [vmem:[%s1545 + $0xab0] sm:$0xff]
        %v2192 = vld [vmem:[%s1545 + $0xab8] sm:$0xff]
        %v2193 = vld [vmem:[%s1545 + $0xac0] sm:$0xff]
        %v2194 = vld [vmem:[%s1545 + $0xac8] sm:$0xff]
        %v2195 = vld [vmem:[%s1545 + $0xad0] sm:$0xff]
        %v2196 = vld [vmem:[%s1545 + $0xad8] sm:$0xff]
        %v2197 = vld [vmem:[%s1545 + $0xae0] sm:$0xff]
        %v2198 = vld [vmem:[%s1545 + $0xae8] sm:$0xff]
        %v2199 = vld [vmem:[%s1545 + $0xaf0] sm:$0xff]
        %v2200 = vld [vmem:[%s1545 + $0xaf8] sm:$0xff]
        %v2201 = vld [vmem:[%s1545 + $0xb00] sm:$0xff]
        %v2202 = vld [vmem:[%s1545 + $0xb08] sm:$0xff]
        %v2203 = vld [vmem:[%s1545 + $0xb10] sm:$0xff]
        %v2204 = vld [vmem:[%s1545 + $0xb18] sm:$0xff]
        %v2205 = vld [vmem:[%s1545 + $0xb20] sm:$0xff]
        %v2206 = vld [vmem:[%s1545 + $0xb28] sm:$0xff]
        %v2207 = vld [vmem:[%s1545 + $0xb30] sm:$0xff]
        %v2208 = vld [vmem:[%s1545 + $0xb38] sm:$0xff]
        %v2209 = vld [vmem:[%s1545 + $0xb40] sm:$0xff]
        %v2210 = vld [vmem:[%s1545 + $0xb48] sm:$0xff]
        %v2211 = vld [vmem:[%s1545 + $0xb50] sm:$0xff]
        %v2212 = vld [vmem:[%s1545 + $0xb58] sm:$0xff]
        %v2213 = vld [vmem:[%s1545 + $0xb60] sm:$0xff]
        %v2214 = vld [vmem:[%s1545 + $0xb68] sm:$0xff]
        %v2215 = vld [vmem:[%s1545 + $0xb70] sm:$0xff]
        %v2216 = vld [vmem:[%s1545 + $0xb78] sm:$0xff]
        %v2217 = vld [vmem:[%s1545 + $0xb80] sm:$0xff]
        %v2218 = vld [vmem:[%s1545 + $0xb88] sm:$0xff]
        %v2219 = vld [vmem:[%s1545 + $0xb90] sm:$0xff]
        %v2220 = vld [vmem:[%s1545 + $0xb98] sm:$0xff]
        %v2221 = vld [vmem:[%s1545 + $0xba0] sm:$0xff]
        %v2222 = vld [vmem:[%s1545 + $0xba8] sm:$0xff]
        %v2223 = vld [vmem:[%s1545 + $0xbb0] sm:$0xff]
        %v2224 = vld [vmem:[%s1545 + $0xbb8] sm:$0xff]
        %v2225 = vld [vmem:[%s1545 + $0xbc0] sm:$0xff]
        %v2226 = vld [vmem:[%s1545 + $0xbc8] sm:$0xff]
        %v2227 = vld [vmem:[%s1545 + $0xbd0] sm:$0xff]
        %v2228 = vld [vmem:[%s1545 + $0xbd8] sm:$0xff]
        %v2229 = vld [vmem:[%s1545 + $0xbe0] sm:$0xff]
        %v2230 = vld [vmem:[%s1545 + $0xbe8] sm:$0xff]
        %v2231 = vld [vmem:[%s1545 + $0xbf0] sm:$0xff]
        %v2232 = vld [vmem:[%s1545 + $0xbf8] sm:$0xff]
        %v2233 = vld [vmem:[%s1545 + $0xc00] sm:$0xff]
        %v2234 = vld [vmem:[%s1545 + $0xc08] sm:$0xff]
        %v2235 = vld [vmem:[%s1545 + $0xc10] sm:$0xff]
        %v2236 = vld [vmem:[%s1545 + $0xc18] sm:$0xff]
        %v2237 = vld [vmem:[%s1545 + $0xc20] sm:$0xff]
        %v2238 = vld [vmem:[%s1545 + $0xc28] sm:$0xff]
        %v2239 = vld [vmem:[%s1545 + $0xc30] sm:$0xff]
        %v2240 = vld [vmem:[%s1545 + $0xc38] sm:$0xff]
        %v2241 = vld [vmem:[%s1545 + $0xc40] sm:$0xff]
        %v2242 = vld [vmem:[%s1545 + $0xc48] sm:$0xff]
        %v2243 = vld [vmem:[%s1545 + $0xc50] sm:$0xff]
        %v2244 = vld [vmem:[%s1545 + $0xc58] sm:$0xff]
        %v2245 = vld [vmem:[%s1545 + $0xc60] sm:$0xff]
        %v2246 = vld [vmem:[%s1545 + $0xc68] sm:$0xff]
        %v2247 = vld [vmem:[%s1545 + $0xc70] sm:$0xff]
        %v2248 = vld [vmem:[%s1545 + $0xc78] sm:$0xff]
        %v2249 = vld [vmem:[%s1545 + $0xc80] sm:$0xff]
        %v2250 = vld [vmem:[%s1545 + $0xc88] sm:$0xff]
        %v2251 = vld [vmem:[%s1545 + $0xc90] sm:$0xff]
        %v2252 = vld [vmem:[%s1545 + $0xc98] sm:$0xff]
        %v2253 = vld [vmem:[%s1545 + $0xca0] sm:$0xff]
        %v2254 = vld [vmem:[%s1545 + $0xca8] sm:$0xff]
        %v2255 = vld [vmem:[%s1545 + $0xcb0] sm:$0xff]
        %v2256 = vld [vmem:[%s1545 + $0xcb8] sm:$0xff]
        %v2257 = vld [vmem:[%s1545 + $0xcc0] sm:$0xff]
        %v2258 = vld [vmem:[%s1545 + $0xcc8] sm:$0xff]
        %v2259 = vld [vmem:[%s1545 + $0xcd0] sm:$0xff]
        %v2260 = vld [vmem:[%s1545 + $0xcd8] sm:$0xff]
        %v2261 = vld [vmem:[%s1545 + $0xce0] sm:$0xff]
        %v2262 = vld [vmem:[%s1545 + $0xce8] sm:$0xff]
        %v2263 = vld [vmem:[%s1545 + $0xcf0] sm:$0xff]
        %v2264 = vld [vmem:[%s1545 + $0xcf8] sm:$0xff]
        %v2265 = vld [vmem:[%s1545 + $0xd00] sm:$0xff]
        %v2266 = vld [vmem:[%s1545 + $0xd08] sm:$0xff]
        %v2267 = vld [vmem:[%s1545 + $0xd10] sm:$0xff]
        %v2268 = vld [vmem:[%s1545 + $0xd18] sm:$0xff]
        %v2269 = vld [vmem:[%s1545 + $0xd20] sm:$0xff]
        %v2270 = vld [vmem:[%s1545 + $0xd28] sm:$0xff]
        %v2271 = vld [vmem:[%s1545 + $0xd30] sm:$0xff]
        %v2272 = vld [vmem:[%s1545 + $0xd38] sm:$0xff]
        %v2273 = vld [vmem:[%s1545 + $0xd40] sm:$0xff]
        %v2274 = vld [vmem:[%s1545 + $0xd48] sm:$0xff]
        %v2275 = vld [vmem:[%s1545 + $0xd50] sm:$0xff]
        %v2276 = vld [vmem:[%s1545 + $0xd58] sm:$0xff]
        %v2277 = vld [vmem:[%s1545 + $0xd60] sm:$0xff]
        %v2278 = vld [vmem:[%s1545 + $0xd68] sm:$0xff]
        %v2279 = vld [vmem:[%s1545 + $0xd70] sm:$0xff]
        %v2280 = vld [vmem:[%s1545 + $0xd78] sm:$0xff]
        %v2281 = vld [vmem:[%s1545 + $0xd80] sm:$0xff]
        %v2282 = vld [vmem:[%s1545 + $0xd88] sm:$0xff]
        %v2283 = vld [vmem:[%s1545 + $0xd90] sm:$0xff]
        %v2284 = vld [vmem:[%s1545 + $0xd98] sm:$0xff]
        %v2285 = vld [vmem:[%s1545 + $0xda0] sm:$0xff]
        %v2286 = vld [vmem:[%s1545 + $0xda8] sm:$0xff]
        %v2287 = vld [vmem:[%s1545 + $0xdb0] sm:$0xff]
        %v2288 = vld [vmem:[%s1545 + $0xdb8] sm:$0xff]
        %v2289 = vld [vmem:[%s1545 + $0xdc0] sm:$0xff]
        %v2290 = vld [vmem:[%s1545 + $0xdc8] sm:$0xff]
        %v2291 = vld [vmem:[%s1545 + $0xdd0] sm:$0xff]
        %v2292 = vld [vmem:[%s1545 + $0xdd8] sm:$0xff]
        %v2293 = vld [vmem:[%s1545 + $0xde0] sm:$0xff]
        %v2294 = vld [vmem:[%s1545 + $0xde8] sm:$0xff]
        %v2295 = vld [vmem:[%s1545 + $0xdf0] sm:$0xff]
        %v2296 = vld [vmem:[%s1545 + $0xdf8] sm:$0xff]
        %v2297 = vld [vmem:[%s1545 + $0xe00] sm:$0xff]
        %v2298 = vld [vmem:[%s1545 + $0xe08] sm:$0xff]
        %v2299 = vld [vmem:[%s1545 + $0xe10] sm:$0xff]
        %v2300 = vld [vmem:[%s1545 + $0xe18] sm:$0xff]
        %v2301 = vld [vmem:[%s1545 + $0xe20] sm:$0xff]
        %v2302 = vld [vmem:[%s1545 + $0xe28] sm:$0xff]
        %v2303 = vld [vmem:[%s1545 + $0xe30] sm:$0xff]
        %v2304 = vld [vmem:[%s1545 + $0xe38] sm:$0xff]
        %v2305 = vld [vmem:[%s1545 + $0xe40] sm:$0xff]
        %v2306 = vld [vmem:[%s1545 + $0xe48] sm:$0xff]
        %v2307 = vld [vmem:[%s1545 + $0xe50] sm:$0xff]
        %v2308 = vld [vmem:[%s1545 + $0xe58] sm:$0xff]
        %v2309 = vld [vmem:[%s1545 + $0xe60] sm:$0xff]
        %v2310 = vld [vmem:[%s1545 + $0xe68] sm:$0xff]
        %v2311 = vld [vmem:[%s1545 + $0xe70] sm:$0xff]
        %v2312 = vld [vmem:[%s1545 + $0xe78] sm:$0xff]
        %v2313 = vld [vmem:[%s1545 + $0xe80] sm:$0xff]
        %v2314 = vld [vmem:[%s1545 + $0xe88] sm:$0xff]
        %v2315 = vld [vmem:[%s1545 + $0xe90] sm:$0xff]
        %v2316 = vld [vmem:[%s1545 + $0xe98] sm:$0xff]
        %v2317 = vld [vmem:[%s1545 + $0xea0] sm:$0xff]
        %v2318 = vld [vmem:[%s1545 + $0xea8] sm:$0xff]
        %v2319 = vld [vmem:[%s1545 + $0xeb0] sm:$0xff]
        %v2320 = vld [vmem:[%s1545 + $0xeb8] sm:$0xff]
        %v2321 = vld [vmem:[%s1545 + $0xec0] sm:$0xff]
        %v2322 = vld [vmem:[%s1545 + $0xec8] sm:$0xff]
        %v2323 = vld [vmem:[%s1545 + $0xed0] sm:$0xff]
        %v2324 = vld [vmem:[%s1545 + $0xed8] sm:$0xff]
        %v2325 = vld [vmem:[%s1545 + $0xee0] sm:$0xff]
        %v2326 = vld [vmem:[%s1545 + $0xee8] sm:$0xff]
        %v2327 = vld [vmem:[%s1545 + $0xef0] sm:$0xff]
        %v2328 = vld [vmem:[%s1545 + $0xef8] sm:$0xff]
        %v2329 = vld [vmem:[%s1545 + $0xf00] sm:$0xff]
        %v2330 = vld [vmem:[%s1545 + $0xf08] sm:$0xff]
        %v2331 = vld [vmem:[%s1545 + $0xf10] sm:$0xff]
        %v2332 = vld [vmem:[%s1545 + $0xf18] sm:$0xff]
        %v2333 = vld [vmem:[%s1545 + $0xf20] sm:$0xff]
        %v2334 = vld [vmem:[%s1545 + $0xf28] sm:$0xff]
        %v2335 = vld [vmem:[%s1545 + $0xf30] sm:$0xff]
        %v2336 = vld [vmem:[%s1545 + $0xf38] sm:$0xff]
        %v2337 = vld [vmem:[%s1545 + $0xf40] sm:$0xff]
        %v2338 = vld [vmem:[%s1545 + $0xf48] sm:$0xff]
        %v2339 = vld [vmem:[%s1545 + $0xf50] sm:$0xff]
        %v2340 = vld [vmem:[%s1545 + $0xf58] sm:$0xff]
        %v2341 = vld [vmem:[%s1545 + $0xf60] sm:$0xff]
        %v2342 = vld [vmem:[%s1545 + $0xf68] sm:$0xff]
        %v2343 = vld [vmem:[%s1545 + $0xf70] sm:$0xff]
        %v2344 = vld [vmem:[%s1545 + $0xf78] sm:$0xff]
        %v2345 = vld [vmem:[%s1545 + $0xf80] sm:$0xff]
        %v2346 = vld [vmem:[%s1545 + $0xf88] sm:$0xff]
        %v2347 = vld [vmem:[%s1545 + $0xf90] sm:$0xff]
        %v2348 = vld [vmem:[%s1545 + $0xf98] sm:$0xff]
        %v2349 = vld [vmem:[%s1545 + $0xfa0] sm:$0xff]
        %v2350 = vld [vmem:[%s1545 + $0xfa8] sm:$0xff]
        %v2351 = vld [vmem:[%s1545 + $0xfb0] sm:$0xff]
        %v2352 = vld [vmem:[%s1545 + $0xfb8] sm:$0xff]
        %v2353 = vld [vmem:[%s1545 + $0xfc0] sm:$0xff]
        %v2354 = vld [vmem:[%s1545 + $0xfc8] sm:$0xff]
        %v2355 = vld [vmem:[%s1545 + $0xfd0] sm:$0xff]
        %v2356 = vld [vmem:[%s1545 + $0xfd8] sm:$0xff]
        %v2357 = vld [vmem:[%s1545 + $0xfe0] sm:$0xff]
        %v2358 = vld [vmem:[%s1545 + $0xfe8] sm:$0xff]
        %v2359 = vld [vmem:[%s1545 + $0xff0] sm:$0xff]
        %v2360 = vld [vmem:[%s1545 + $0xff8] sm:$0xff]
        %v2361 = vunpack.c.l.bf16 %v1589
        %v2362 = vunpack.c.h.bf16 %v1589
        %v2363 = vunpack.c.l.bf16 %v1590
        %v2364 = vunpack.c.h.bf16 %v1590
        %v2365 = vunpack.c.l.bf16 %v1591
        %v2366 = vunpack.c.h.bf16 %v1591
        %v2367 = vunpack.c.l.bf16 %v1592
        %v2368 = vunpack.c.h.bf16 %v1592
        %2369 = vmatprep.subr.mxu0 %v1654
        %2370 = vmatpush1.msra.mxu0 %v1653
        %2371 = vmatprep.subr.mxu0 %v1650
        %2372 = vmatpush1.msra.mxu0 %v1649
        %2373 = vmatprep.subr.mxu0 %v1646
        %2374 = vmatpush1.msra.mxu0 %v1645
        %2375 = vmatprep.subr.mxu0 %v1642
        %2376 = vmatpush1.msra.mxu0 %v1641
        %2377 = vmatprep.subr.mxu0 %v1638
        %2378 = vmatpush1.msra.mxu0 %v1637
        %2379 = vmatprep.subr.mxu0 %v1634
        %2380 = vmatpush1.msra.mxu0 %v1633
        %2381 = vmatprep.subr.mxu0 %v1630
        %2382 = vmatpush1.msra.mxu0 %v1629
        %2383 = vmatprep.subr.mxu0 %v1626
        %2384 = vmatpush1.msra.mxu0 %v1625
        %2385 = vmatprep.subr.mxu0 %v1622
        %2386 = vmatpush1.msra.mxu0 %v1621
        %2387 = vmatprep.subr.mxu0 %v1618
        %2388 = vmatpush1.msra.mxu0 %v1617
        %2389 = vmatprep.subr.mxu0 %v1614
        %2390 = vmatpush1.msra.mxu0 %v1613
        %2391 = vmatprep.subr.mxu0 %v1610
        %2392 = vmatpush1.msra.mxu0 %v1609
        %2393 = vmatprep.subr.mxu0 %v1606
        %2394 = vmatpush1.msra.mxu0 %v1605
        %2395 = vmatprep.subr.mxu0 %v1602
        %2396 = vmatpush1.msra.mxu0 %v1601
        %2397 = vmatprep.subr.mxu0 %v1598
        %2398 = vmatpush1.msra.mxu0 %v1597
        %2399 = vmatprep.subr.mxu0 %v1594
        %2400 = vmatpush1.msra.mxu0 %v1593
        %2401 = vmatprep.subr.mxu0 %v1718
        %2402 = vmatpush2.msra.mxu0 %v1717
        %2403 = vmatprep.subr.mxu0 %v1714
        %2404 = vmatpush2.msra.mxu0 %v1713
        %2405 = vmatprep.subr.mxu0 %v1710
        %2406 = vmatpush2.msra.mxu0 %v1709
        %2407 = vmatprep.subr.mxu0 %v1706
        %2408 = vmatpush2.msra.mxu0 %v1705
        %2409 = vmatprep.subr.mxu0 %v1702
        %2410 = vmatpush2.msra.mxu0 %v1701
        %2411 = vmatprep.subr.mxu0 %v1698
        %2412 = vmatpush2.msra.mxu0 %v1697
        %2413 = vmatprep.subr.mxu0 %v1694
        %2414 = vmatpush2.msra.mxu0 %v1693
        %2415 = vmatprep.subr.mxu0 %v1690
        %2416 = vmatpush2.msra.mxu0 %v1689
        %2417 = vmatprep.subr.mxu0 %v1686
        %2418 = vmatpush2.msra.mxu0 %v1685
        %2419 = vmatprep.subr.mxu0 %v1682
        %2420 = vmatpush2.msra.mxu0 %v1681
        %2421 = vmatprep.subr.mxu0 %v1678
        %2422 = vmatpush2.msra.mxu0 %v1677
        %2423 = vmatprep.subr.mxu0 %v1674
        %2424 = vmatpush2.msra.mxu0 %v1673
        %2425 = vmatprep.subr.mxu0 %v1670
        %2426 = vmatpush2.msra.mxu0 %v1669
        %2427 = vmatprep.subr.mxu0 %v1666
        %2428 = vmatpush2.msra.mxu0 %v1665
        %2429 = vmatprep.subr.mxu0 %v1662
        %2430 = vmatpush2.msra.mxu0 %v1661
        %2431 = vmatprep.subr.mxu0 %v1658
        %2432 = vmatpush2.msra.mxu0 %v1657
        %2433 = vmatprep.mubr.f32.mxu0 %v2362
        %2434 = vmatmul.mubr.f32.gmra.mxu0 %v2361
        %v2435 = vpop.f32.mrf.mxu0
        %v2436 = vadd.f32 0.0, %v2435
        %v2437 = vpop.f32.mrf.mxu0
        %v2438 = vadd.f32 0.0, %v2437
        %2439 = vmatprep.mubr.f32.mxu0 %v2366
        %2440 = vmatmul.mubr.f32.gmra.mxu0 %v2365
        %v2441 = vpop.f32.mrf.mxu0
        %v2442 = vadd.f32 0.0, %v2441
        %v2443 = vpop.f32.mrf.mxu0
        %v2444 = vadd.f32 0.0, %v2443
        %2445 = vdwg.mxu0
        %2446 = vmatprep.subr.mxu0 %v1782
        %2447 = vmatpush1.msra.mxu0 %v1781
        %2448 = vmatprep.subr.mxu0 %v1778
        %2449 = vmatpush1.msra.mxu0 %v1777
        %2450 = vmatprep.subr.mxu0 %v1774
        %2451 = vmatpush1.msra.mxu0 %v1773
        %2452 = vmatprep.subr.mxu0 %v1770
        %2453 = vmatpush1.msra.mxu0 %v1769
        %2454 = vmatprep.subr.mxu0 %v1766
        %2455 = vmatpush1.msra.mxu0 %v1765
        %2456 = vmatprep.subr.mxu0 %v1762
        %2457 = vmatpush1.msra.mxu0 %v1761
        %2458 = vmatprep.subr.mxu0 %v1758
        %2459 = vmatpush1.msra.mxu0 %v1757
        %2460 = vmatprep.subr.mxu0 %v1754
        %2461 = vmatpush1.msra.mxu0 %v1753
        %2462 = vmatprep.subr.mxu0 %v1750
        %2463 = vmatpush1.msra.mxu0 %v1749
        %2464 = vmatprep.subr.mxu0 %v1746
        %2465 = vmatpush1.msra.mxu0 %v1745
        %2466 = vmatprep.subr.mxu0 %v1742
        %2467 = vmatpush1.msra.mxu0 %v1741
        %2468 = vmatprep.subr.mxu0 %v1738
        %2469 = vmatpush1.msra.mxu0 %v1737
        %2470 = vmatprep.subr.mxu0 %v1734
        %2471 = vmatpush1.msra.mxu0 %v1733
        %2472 = vmatprep.subr.mxu0 %v1730
        %2473 = vmatpush1.msra.mxu0 %v1729
        %2474 = vmatprep.subr.mxu0 %v1726
        %2475 = vmatpush1.msra.mxu0 %v1725
        %2476 = vmatprep.subr.mxu0 %v1722
        %2477 = vmatpush1.msra.mxu0 %v1721
        %2478 = vmatprep.subr.mxu0 %v1846
        %2479 = vmatpush2.msra.mxu0 %v1845
        %2480 = vmatprep.subr.mxu0 %v1842
        %2481 = vmatpush2.msra.mxu0 %v1841
        %2482 = vmatprep.subr.mxu0 %v1838
        %2483 = vmatpush2.msra.mxu0 %v1837
        %2484 = vmatprep.subr.mxu0 %v1834
        %2485 = vmatpush2.msra.mxu0 %v1833
        %2486 = vmatprep.subr.mxu0 %v1830
        %2487 = vmatpush2.msra.mxu0 %v1829
        %2488 = vmatprep.subr.mxu0 %v1826
        %2489 = vmatpush2.msra.mxu0 %v1825
        %2490 = vmatprep.subr.mxu0 %v1822
        %2491 = vmatpush2.msra.mxu0 %v1821
        %2492 = vmatprep.subr.mxu0 %v1818
        %2493 = vmatpush2.msra.mxu0 %v1817
        %2494 = vmatprep.subr.mxu0 %v1814
        %2495 = vmatpush2.msra.mxu0 %v1813
        %2496 = vmatprep.subr.mxu0 %v1810
        %2497 = vmatpush2.msra.mxu0 %v1809
        %2498 = vmatprep.subr.mxu0 %v1806
        %2499 = vmatpush2.msra.mxu0 %v1805
        %2500 = vmatprep.subr.mxu0 %v1802
        %2501 = vmatpush2.msra.mxu0 %v1801
        %2502 = vmatprep.subr.mxu0 %v1798
        %2503 = vmatpush2.msra.mxu0 %v1797
        %2504 = vmatprep.subr.mxu0 %v1794
        %2505 = vmatpush2.msra.mxu0 %v1793
        %2506 = vmatprep.subr.mxu0 %v1790
        %2507 = vmatpush2.msra.mxu0 %v1789
        %2508 = vmatprep.subr.mxu0 %v1786
        %2509 = vmatpush2.msra.mxu0 %v1785
        %2510 = vmatprep.mubr.f32.mxu0 %v2364
        %2511 = vmatmul.mubr.f32.gmra.mxu0 %v2363
        %v2512 = vpop.f32.mrf.mxu0
        %v2513 = vadd.f32 %v2436, %v2512
        %v2514 = vpop.f32.mrf.mxu0
        %v2515 = vadd.f32 %v2438, %v2514
        %2516 = vmatprep.mubr.f32.mxu0 %v2368
        %2517 = vmatmul.mubr.f32.gmra.mxu0 %v2367
        %v2518 = vpop.f32.mrf.mxu0
        %v2519 = vadd.f32 %v2442, %v2518
        %v2520 = vpop.f32.mrf.mxu0
        %v2521 = vadd.f32 %v2444, %v2520
        %2522 = vdwg.mxu0
        %2523 = vmatprep.subr.mxu0 %v1656
        %2524 = vmatpush1.msra.mxu0 %v1655
        %2525 = vmatprep.subr.mxu0 %v1652
        %2526 = vmatpush1.msra.mxu0 %v1651
        %2527 = vmatprep.subr.mxu0 %v1648
        %2528 = vmatpush1.msra.mxu0 %v1647
        %2529 = vmatprep.subr.mxu0 %v1644
        %2530 = vmatpush1.msra.mxu0 %v1643
        %2531 = vmatprep.subr.mxu0 %v1640
        %2532 = vmatpush1.msra.mxu0 %v1639
        %2533 = vmatprep.subr.mxu0 %v1636
        %2534 = vmatpush1.msra.mxu0 %v1635
        %2535 = vmatprep.subr.mxu0 %v1632
        %2536 = vmatpush1.msra.mxu0 %v1631
        %2537 = vmatprep.subr.mxu0 %v1628
        %2538 = vmatpush1.msra.mxu0 %v1627
        %2539 = vmatprep.subr.mxu0 %v1624
        %2540 = vmatpush1.msra.mxu0 %v1623
        %2541 = vmatprep.subr.mxu0 %v1620
        %2542 = vmatpush1.msra.mxu0 %v1619
        %2543 = vmatprep.subr.mxu0 %v1616
        %2544 = vmatpush1.msra.mxu0 %v1615
        %2545 = vmatprep.subr.mxu0 %v1612
        %2546 = vmatpush1.msra.mxu0 %v1611
        %2547 = vmatprep.subr.mxu0 %v1608
        %2548 = vmatpush1.msra.mxu0 %v1607
        %2549 = vmatprep.subr.mxu0 %v1604
        %2550 = vmatpush1.msra.mxu0 %v1603
        %2551 = vmatprep.subr.mxu0 %v1600
        %2552 = vmatpush1.msra.mxu0 %v1599
        %2553 = vmatprep.subr.mxu0 %v1596
        %2554 = vmatpush1.msra.mxu0 %v1595
        %2555 = vmatprep.subr.mxu0 %v1720
        %2556 = vmatpush2.msra.mxu0 %v1719
        %2557 = vmatprep.subr.mxu0 %v1716
        %2558 = vmatpush2.msra.mxu0 %v1715
        %2559 = vmatprep.subr.mxu0 %v1712
        %2560 = vmatpush2.msra.mxu0 %v1711
        %2561 = vmatprep.subr.mxu0 %v1708
        %2562 = vmatpush2.msra.mxu0 %v1707
        %2563 = vmatprep.subr.mxu0 %v1704
        %2564 = vmatpush2.msra.mxu0 %v1703
        %2565 = vmatprep.subr.mxu0 %v1700
        %2566 = vmatpush2.msra.mxu0 %v1699
        %2567 = vmatprep.subr.mxu0 %v1696
        %2568 = vmatpush2.msra.mxu0 %v1695
        %2569 = vmatprep.subr.mxu0 %v1692
        %2570 = vmatpush2.msra.mxu0 %v1691
        %2571 = vmatprep.subr.mxu0 %v1688
        %2572 = vmatpush2.msra.mxu0 %v1687
        %2573 = vmatprep.subr.mxu0 %v1684
        %2574 = vmatpush2.msra.mxu0 %v1683
        %2575 = vmatprep.subr.mxu0 %v1680
        %2576 = vmatpush2.msra.mxu0 %v1679
        %2577 = vmatprep.subr.mxu0 %v1676
        %2578 = vmatpush2.msra.mxu0 %v1675
        %2579 = vmatprep.subr.mxu0 %v1672
        %2580 = vmatpush2.msra.mxu0 %v1671
        %2581 = vmatprep.subr.mxu0 %v1668
        %2582 = vmatpush2.msra.mxu0 %v1667
        %2583 = vmatprep.subr.mxu0 %v1664
        %2584 = vmatpush2.msra.mxu0 %v1663
        %2585 = vmatprep.subr.mxu0 %v1660
        %2586 = vmatpush2.msra.mxu0 %v1659
        %2587 = vmatprep.mubr.f32.mxu0 %v2362
        %2588 = vmatmul.mubr.f32.gmra.mxu0 %v2361
        %v2589 = vpop.f32.mrf.mxu0
        %v2590 = vadd.f32 0.0, %v2589
        %v2591 = vpop.f32.mrf.mxu0
        %v2592 = vadd.f32 0.0, %v2591
        %2593 = vmatprep.mubr.f32.mxu0 %v2366
        %2594 = vmatmul.mubr.f32.gmra.mxu0 %v2365
        %v2595 = vpop.f32.mrf.mxu0
        %v2596 = vadd.f32 0.0, %v2595
        %v2597 = vpop.f32.mrf.mxu0
        %v2598 = vadd.f32 0.0, %v2597
        %2599 = vdwg.mxu0
        %2600 = vmatprep.subr.mxu0 %v1784
        %2601 = vmatpush1.msra.mxu0 %v1783
        %2602 = vmatprep.subr.mxu0 %v1780
        %2603 = vmatpush1.msra.mxu0 %v1779
        %2604 = vmatprep.subr.mxu0 %v1776
        %2605 = vmatpush1.msra.mxu0 %v1775
        %2606 = vmatprep.subr.mxu0 %v1772
        %2607 = vmatpush1.msra.mxu0 %v1771
        %2608 = vmatprep.subr.mxu0 %v1768
        %2609 = vmatpush1.msra.mxu0 %v1767
        %2610 = vmatprep.subr.mxu0 %v1764
        %2611 = vmatpush1.msra.mxu0 %v1763
        %2612 = vmatprep.subr.mxu0 %v1760
        %2613 = vmatpush1.msra.mxu0 %v1759
        %2614 = vmatprep.subr.mxu0 %v1756
        %2615 = vmatpush1.msra.mxu0 %v1755
        %2616 = vmatprep.subr.mxu0 %v1752
        %2617 = vmatpush1.msra.mxu0 %v1751
        %2618 = vmatprep.subr.mxu0 %v1748
        %2619 = vmatpush1.msra.mxu0 %v1747
        %2620 = vmatprep.subr.mxu0 %v1744
        %2621 = vmatpush1.msra.mxu0 %v1743
        %2622 = vmatprep.subr.mxu0 %v1740
        %2623 = vmatpush1.msra.mxu0 %v1739
        %2624 = vmatprep.subr.mxu0 %v1736
        %2625 = vmatpush1.msra.mxu0 %v1735
        %2626 = vmatprep.subr.mxu0 %v1732
        %2627 = vmatpush1.msra.mxu0 %v1731
        %2628 = vmatprep.subr.mxu0 %v1728
        %2629 = vmatpush1.msra.mxu0 %v1727
        %2630 = vmatprep.subr.mxu0 %v1724
        %2631 = vmatpush1.msra.mxu0 %v1723
        %2632 = vmatprep.subr.mxu0 %v1848
        %2633 = vmatpush2.msra.mxu0 %v1847
        %2634 = vmatprep.subr.mxu0 %v1844
        %2635 = vmatpush2.msra.mxu0 %v1843
        %2636 = vmatprep.subr.mxu0 %v1840
        %2637 = vmatpush2.msra.mxu0 %v1839
        %2638 = vmatprep.subr.mxu0 %v1836
        %2639 = vmatpush2.msra.mxu0 %v1835
        %2640 = vmatprep.subr.mxu0 %v1832
        %2641 = vmatpush2.msra.mxu0 %v1831
        %2642 = vmatprep.subr.mxu0 %v1828
        %2643 = vmatpush2.msra.mxu0 %v1827
        %2644 = vmatprep.subr.mxu0 %v1824
        %2645 = vmatpush2.msra.mxu0 %v1823
        %2646 = vmatprep.subr.mxu0 %v1820
        %2647 = vmatpush2.msra.mxu0 %v1819
        %2648 = vmatprep.subr.mxu0 %v1816
        %2649 = vmatpush2.msra.mxu0 %v1815
        %2650 = vmatprep.subr.mxu0 %v1812
        %2651 = vmatpush2.msra.mxu0 %v1811
        %2652 = vmatprep.subr.mxu0 %v1808
        %2653 = vmatpush2.msra.mxu0 %v1807
        %2654 = vmatprep.subr.mxu0 %v1804
        %2655 = vmatpush2.msra.mxu0 %v1803
        %2656 = vmatprep.subr.mxu0 %v1800
        %2657 = vmatpush2.msra.mxu0 %v1799
        %2658 = vmatprep.subr.mxu0 %v1796
        %2659 = vmatpush2.msra.mxu0 %v1795
        %2660 = vmatprep.subr.mxu0 %v1792
        %2661 = vmatpush2.msra.mxu0 %v1791
        %2662 = vmatprep.subr.mxu0 %v1788
        %2663 = vmatpush2.msra.mxu0 %v1787
        %2664 = vmatprep.mubr.f32.mxu0 %v2364
        %2665 = vmatmul.mubr.f32.gmra.mxu0 %v2363
        %v2666 = vpop.f32.mrf.mxu0
        %v2667 = vadd.f32 %v2590, %v2666
        %v2668 = vpop.f32.mrf.mxu0
        %v2669 = vadd.f32 %v2592, %v2668
        %2670 = vmatprep.mubr.f32.mxu0 %v2368
        %2671 = vmatmul.mubr.f32.gmra.mxu0 %v2367
        %v2672 = vpop.f32.mrf.mxu0
        %v2673 = vadd.f32 %v2596, %v2672
        %v2674 = vpop.f32.mrf.mxu0
        %v2675 = vadd.f32 %v2598, %v2674
        %2676 = vdwg.mxu0
        %v2677 = vmul.f32 %v2513, %v2513
        %v2678 = vmul.f32 %v2515, %v2515
        %v2679 = vmul.f32 %v2667, %v2667
        %v2680 = vmul.f32 %v2669, %v2669
        %v2681 = vrot.slane %v2677, 4
        %v2682 = vadd.f32 %v2677, %v2681
        %v2683 = vrot.slane %v2682, 2
        %v2684 = vadd.f32 %v2682, %v2683
        %v2685 = vrot.slane %v2684, 1
        %v2686 = vadd.f32 %v2684, %v2685
        %v2687 = vrot.slane %v2678, 4
        %v2688 = vadd.f32 %v2678, %v2687
        %v2689 = vrot.slane %v2688, 2
        %v2690 = vadd.f32 %v2688, %v2689
        %v2691 = vrot.slane %v2690, 1
        %v2692 = vadd.f32 %v2690, %v2691
        %v2693 = vrot.slane %v2679, 4
        %v2694 = vadd.f32 %v2679, %v2693
        %v2695 = vrot.slane %v2694, 2
        %v2696 = vadd.f32 %v2694, %v2695
        %v2697 = vrot.slane %v2696, 1
        %v2698 = vadd.f32 %v2696, %v2697
        %v2699 = vrot.slane %v2680, 4
        %v2700 = vadd.f32 %v2680, %v2699
        %v2701 = vrot.slane %v2700, 2
        %v2702 = vadd.f32 %v2700, %v2701
        %v2703 = vrot.slane %v2702, 1
        %v2704 = vadd.f32 %v2702, %v2703
        %v2705 = vmax.f32 %v2686, 1e-24
        %v2706 = vmax.f32 %v2692, 1e-24
        %v2707 = vmax.f32 %v2698, 1e-24
        %v2708 = vmax.f32 %v2704, 1e-24
        %v2709 = vrsqrt.pop %v2705
        %v2710 = vrsqrt.pop %v2706
        %v2711 = vrsqrt.pop %v2707
        %v2712 = vrsqrt.pop %v2708
        %v2713 = vmul.f32 %v2513, %v2709
        %v2714 = vmul.f32 %v2515, %v2710
        %v2715 = vmul.f32 %v2667, %v2711
        %v2716 = vmul.f32 %v2669, %v2712
        %v2717 = vmul.f32 %v2519, %v2519
        %v2718 = vmul.f32 %v2521, %v2521
        %v2719 = vmul.f32 %v2673, %v2673
        %v2720 = vmul.f32 %v2675, %v2675
        %v2721 = vrot.slane %v2717, 4
        %v2722 = vadd.f32 %v2717, %v2721
        %v2723 = vrot.slane %v2722, 2
        %v2724 = vadd.f32 %v2722, %v2723
        %v2725 = vrot.slane %v2724, 1
        %v2726 = vadd.f32 %v2724, %v2725
        %v2727 = vrot.slane %v2718, 4
        %v2728 = vadd.f32 %v2718, %v2727
        %v2729 = vrot.slane %v2728, 2
        %v2730 = vadd.f32 %v2728, %v2729
        %v2731 = vrot.slane %v2730, 1
        %v2732 = vadd.f32 %v2730, %v2731
        %v2733 = vrot.slane %v2719, 4
        %v2734 = vadd.f32 %v2719, %v2733
        %v2735 = vrot.slane %v2734, 2
        %v2736 = vadd.f32 %v2734, %v2735
        %v2737 = vrot.slane %v2736, 1
        %v2738 = vadd.f32 %v2736, %v2737
        %v2739 = vrot.slane %v2720, 4
        %v2740 = vadd.f32 %v2720, %v2739
        %v2741 = vrot.slane %v2740, 2
        %v2742 = vadd.f32 %v2740, %v2741
        %v2743 = vrot.slane %v2742, 1
        %v2744 = vadd.f32 %v2742, %v2743
        %v2745 = vmax.f32 %v2726, 1e-24
        %v2746 = vmax.f32 %v2732, 1e-24
        %v2747 = vmax.f32 %v2738, 1e-24
        %v2748 = vmax.f32 %v2744, 1e-24
        %v2749 = vrsqrt.pop %v2745
        %v2750 = vrsqrt.pop %v2746
        %v2751 = vrsqrt.pop %v2747
        %v2752 = vrsqrt.pop %v2748
        %v2753 = vmul.f32 %v2519, %v2749
        %v2754 = vmul.f32 %v2521, %v2750
        %v2755 = vmul.f32 %v2673, %v2751
        %v2756 = vmul.f32 %v2675, %v2752
        %v2757 = vsub.f32 %v2713, %v2753
        %v2758 = vsub.f32 %v2714, %v2754
        %v2759 = vsub.f32 %v2715, %v2755
        %v2760 = vsub.f32 %v2716, %v2756
        %v2761 = vmul.f32 %v2757, %v2757
        %v2762 = vmul.f32 %v2758, %v2758
        %v2763 = vmul.f32 %v2759, %v2759
        %v2764 = vmul.f32 %v2760, %v2760
        %v2765 = vrot.slane %v2761, 4
        %v2766 = vadd.f32 %v2761, %v2765
        %v2767 = vrot.slane %v2766, 2
        %v2768 = vadd.f32 %v2766, %v2767
        %v2769 = vrot.slane %v2768, 1
        %v2770 = vadd.f32 %v2768, %v2769
        %v2771 = vrot.slane %v2762, 4
        %v2772 = vadd.f32 %v2762, %v2771
        %v2773 = vrot.slane %v2772, 2
        %v2774 = vadd.f32 %v2772, %v2773
        %v2775 = vrot.slane %v2774, 1
        %v2776 = vadd.f32 %v2774, %v2775
        %v2777 = vrot.slane %v2763, 4
        %v2778 = vadd.f32 %v2763, %v2777
        %v2779 = vrot.slane %v2778, 2
        %v2780 = vadd.f32 %v2778, %v2779
        %v2781 = vrot.slane %v2780, 1
        %v2782 = vadd.f32 %v2780, %v2781
        %v2783 = vrot.slane %v2764, 4
        %v2784 = vadd.f32 %v2764, %v2783
        %v2785 = vrot.slane %v2784, 2
        %v2786 = vadd.f32 %v2784, %v2785
        %v2787 = vrot.slane %v2786, 1
        %v2788 = vadd.f32 %v2786, %v2787
        %v2789 = vmul.f32 %v2770, 0.5
        %v2790 = vmul.f32 %v2776, 0.5
        %v2791 = vmul.f32 %v2782, 0.5
        %v2792 = vmul.f32 %v2788, 0.5
        %2793 = vmatprep.subr.mxu0 %v1970
        %2794 = vmatpush1.msra.mxu0 %v1969
        %2795 = vmatprep.subr.mxu0 %v1962
        %2796 = vmatpush1.msra.mxu0 %v1961
        %2797 = vmatprep.subr.mxu0 %v1954
        %2798 = vmatpush1.msra.mxu0 %v1953
        %2799 = vmatprep.subr.mxu0 %v1946
        %2800 = vmatpush1.msra.mxu0 %v1945
        %2801 = vmatprep.subr.mxu0 %v1938
        %2802 = vmatpush1.msra.mxu0 %v1937
        %2803 = vmatprep.subr.mxu0 %v1930
        %2804 = vmatpush1.msra.mxu0 %v1929
        %2805 = vmatprep.subr.mxu0 %v1922
        %2806 = vmatpush1.msra.mxu0 %v1921
        %2807 = vmatprep.subr.mxu0 %v1914
        %2808 = vmatpush1.msra.mxu0 %v1913
        %2809 = vmatprep.subr.mxu0 %v1906
        %2810 = vmatpush1.msra.mxu0 %v1905
        %2811 = vmatprep.subr.mxu0 %v1898
        %2812 = vmatpush1.msra.mxu0 %v1897
        %2813 = vmatprep.subr.mxu0 %v1890
        %2814 = vmatpush1.msra.mxu0 %v1889
        %2815 = vmatprep.subr.mxu0 %v1882
        %2816 = vmatpush1.msra.mxu0 %v1881
        %2817 = vmatprep.subr.mxu0 %v1874
        %2818 = vmatpush1.msra.mxu0 %v1873
        %2819 = vmatprep.subr.mxu0 %v1866
        %2820 = vmatpush1.msra.mxu0 %v1865
        %2821 = vmatprep.subr.mxu0 %v1858
        %2822 = vmatpush1.msra.mxu0 %v1857
        %2823 = vmatprep.subr.mxu0 %v1850
        %2824 = vmatpush1.msra.mxu0 %v1849
        %2825 = vmatprep.subr.mxu0 %v2098
        %2826 = vmatpush2.msra.mxu0 %v2097
        %2827 = vmatprep.subr.mxu0 %v2090
        %2828 = vmatpush2.msra.mxu0 %v2089
        %2829 = vmatprep.subr.mxu0 %v2082
        %2830 = vmatpush2.msra.mxu0 %v2081
        %2831 = vmatprep.subr.mxu0 %v2074
        %2832 = vmatpush2.msra.mxu0 %v2073
        %2833 = vmatprep.subr.mxu0 %v2066
        %2834 = vmatpush2.msra.mxu0 %v2065
        %2835 = vmatprep.subr.mxu0 %v2058
        %2836 = vmatpush2.msra.mxu0 %v2057
        %2837 = vmatprep.subr.mxu0 %v2050
        %2838 = vmatpush2.msra.mxu0 %v2049
        %2839 = vmatprep.subr.mxu0 %v2042
        %2840 = vmatpush2.msra.mxu0 %v2041
        %2841 = vmatprep.subr.mxu0 %v2034
        %2842 = vmatpush2.msra.mxu0 %v2033
        %2843 = vmatprep.subr.mxu0 %v2026
        %2844 = vmatpush2.msra.mxu0 %v2025
        %2845 = vmatprep.subr.mxu0 %v2018
        %2846 = vmatpush2.msra.mxu0 %v2017
        %2847 = vmatprep.subr.mxu0 %v2010
        %2848 = vmatpush2.msra.mxu0 %v2009
        %2849 = vmatprep.subr.mxu0 %v2002
        %2850 = vmatpush2.msra.mxu0 %v2001
        %2851 = vmatprep.subr.mxu0 %v1994
        %2852 = vmatpush2.msra.mxu0 %v1993
        %2853 = vmatprep.subr.mxu0 %v1986
        %2854 = vmatpush2.msra.mxu0 %v1985
        %2855 = vmatprep.subr.mxu0 %v1978
        %2856 = vmatpush2.msra.mxu0 %v1977
        %2857 = vmatprep.mubr.f32.mxu0 %v2790
        %2858 = vmatmul.mubr.f32.gmra.mxu0 %v2789
        %v2859 = vpop.f32.mrf.mxu0
        %v2860 = vadd.f32 0.0, %v2859
        %v2861 = vpop.f32.mrf.mxu0
        %v2862 = vadd.f32 0.0, %v2861
        %2863 = vdwg.mxu0
        %2864 = vmatprep.subr.mxu0 %v2226
        %2865 = vmatpush1.msra.mxu0 %v2225
        %2866 = vmatprep.subr.mxu0 %v2218
        %2867 = vmatpush1.msra.mxu0 %v2217
        %2868 = vmatprep.subr.mxu0 %v2210
        %2869 = vmatpush1.msra.mxu0 %v2209
        %2870 = vmatprep.subr.mxu0 %v2202
        %2871 = vmatpush1.msra.mxu0 %v2201
        %2872 = vmatprep.subr.mxu0 %v2194
        %2873 = vmatpush1.msra.mxu0 %v2193
        %2874 = vmatprep.subr.mxu0 %v2186
        %2875 = vmatpush1.msra.mxu0 %v2185
        %2876 = vmatprep.subr.mxu0 %v2178
        %2877 = vmatpush1.msra.mxu0 %v2177
        %2878 = vmatprep.subr.mxu0 %v2170
        %2879 = vmatpush1.msra.mxu0 %v2169
        %2880 = vmatprep.subr.mxu0 %v2162
        %2881 = vmatpush1.msra.mxu0 %v2161
        %2882 = vmatprep.subr.mxu0 %v2154
        %2883 = vmatpush1.msra.mxu0 %v2153
        %2884 = vmatprep.subr.mxu0 %v2146
        %2885 = vmatpush1.msra.mxu0 %v2145
        %2886 = vmatprep.subr.mxu0 %v2138
        %2887 = vmatpush1.msra.mxu0 %v2137
        %2888 = vmatprep.subr.mxu0 %v2130
        %2889 = vmatpush1.msra.mxu0 %v2129
        %2890 = vmatprep.subr.mxu0 %v2122
        %2891 = vmatpush1.msra.mxu0 %v2121
        %2892 = vmatprep.subr.mxu0 %v2114
        %2893 = vmatpush1.msra.mxu0 %v2113
        %2894 = vmatprep.subr.mxu0 %v2106
        %2895 = vmatpush1.msra.mxu0 %v2105
        %2896 = vmatprep.subr.mxu0 %v2354
        %2897 = vmatpush2.msra.mxu0 %v2353
        %2898 = vmatprep.subr.mxu0 %v2346
        %2899 = vmatpush2.msra.mxu0 %v2345
        %2900 = vmatprep.subr.mxu0 %v2338
        %2901 = vmatpush2.msra.mxu0 %v2337
        %2902 = vmatprep.subr.mxu0 %v2330
        %2903 = vmatpush2.msra.mxu0 %v2329
        %2904 = vmatprep.subr.mxu0 %v2322
        %2905 = vmatpush2.msra.mxu0 %v2321
        %2906 = vmatprep.subr.mxu0 %v2314
        %2907 = vmatpush2.msra.mxu0 %v2313
        %2908 = vmatprep.subr.mxu0 %v2306
        %2909 = vmatpush2.msra.mxu0 %v2305
        %2910 = vmatprep.subr.mxu0 %v2298
        %2911 = vmatpush2.msra.mxu0 %v2297
        %2912 = vmatprep.subr.mxu0 %v2290
        %2913 = vmatpush2.msra.mxu0 %v2289
        %2914 = vmatprep.subr.mxu0 %v2282
        %2915 = vmatpush2.msra.mxu0 %v2281
        %2916 = vmatprep.subr.mxu0 %v2274
        %2917 = vmatpush2.msra.mxu0 %v2273
        %2918 = vmatprep.subr.mxu0 %v2266
        %2919 = vmatpush2.msra.mxu0 %v2265
        %2920 = vmatprep.subr.mxu0 %v2258
        %2921 = vmatpush2.msra.mxu0 %v2257
        %2922 = vmatprep.subr.mxu0 %v2250
        %2923 = vmatpush2.msra.mxu0 %v2249
        %2924 = vmatprep.subr.mxu0 %v2242
        %2925 = vmatpush2.msra.mxu0 %v2241
        %2926 = vmatprep.subr.mxu0 %v2234
        %2927 = vmatpush2.msra.mxu0 %v2233
        %2928 = vmatprep.mubr.f32.mxu0 %v2792
        %2929 = vmatmul.mubr.f32.gmra.mxu0 %v2791
        %v2930 = vpop.f32.mrf.mxu0
        %v2931 = vadd.f32 %v2860, %v2930
        %v2932 = vpop.f32.mrf.mxu0
        %v2933 = vadd.f32 %v2862, %v2932
        %2934 = vdwg.mxu0
        %2935 = vmatprep.subr.mxu0 %v1972
        %2936 = vmatpush1.msra.mxu0 %v1971
        %2937 = vmatprep.subr.mxu0 %v1964
        %2938 = vmatpush1.msra.mxu0 %v1963
        %2939 = vmatprep.subr.mxu0 %v1956
        %2940 = vmatpush1.msra.mxu0 %v1955
        %2941 = vmatprep.subr.mxu0 %v1948
        %2942 = vmatpush1.msra.mxu0 %v1947
        %2943 = vmatprep.subr.mxu0 %v1940
        %2944 = vmatpush1.msra.mxu0 %v1939
        %2945 = vmatprep.subr.mxu0 %v1932
        %2946 = vmatpush1.msra.mxu0 %v1931
        %2947 = vmatprep.subr.mxu0 %v1924
        %2948 = vmatpush1.msra.mxu0 %v1923
        %2949 = vmatprep.subr.mxu0 %v1916
        %2950 = vmatpush1.msra.mxu0 %v1915
        %2951 = vmatprep.subr.mxu0 %v1908
        %2952 = vmatpush1.msra.mxu0 %v1907
        %2953 = vmatprep.subr.mxu0 %v1900
        %2954 = vmatpush1.msra.mxu0 %v1899
        %2955 = vmatprep.subr.mxu0 %v1892
        %2956 = vmatpush1.msra.mxu0 %v1891
        %2957 = vmatprep.subr.mxu0 %v1884
        %2958 = vmatpush1.msra.mxu0 %v1883
        %2959 = vmatprep.subr.mxu0 %v1876
        %2960 = vmatpush1.msra.mxu0 %v1875
        %2961 = vmatprep.subr.mxu0 %v1868
        %2962 = vmatpush1.msra.mxu0 %v1867
        %2963 = vmatprep.subr.mxu0 %v1860
        %2964 = vmatpush1.msra.mxu0 %v1859
        %2965 = vmatprep.subr.mxu0 %v1852
        %2966 = vmatpush1.msra.mxu0 %v1851
        %2967 = vmatprep.subr.mxu0 %v2100
        %2968 = vmatpush2.msra.mxu0 %v2099
        %2969 = vmatprep.subr.mxu0 %v2092
        %2970 = vmatpush2.msra.mxu0 %v2091
        %2971 = vmatprep.subr.mxu0 %v2084
        %2972 = vmatpush2.msra.mxu0 %v2083
        %2973 = vmatprep.subr.mxu0 %v2076
        %2974 = vmatpush2.msra.mxu0 %v2075
        %2975 = vmatprep.subr.mxu0 %v2068
        %2976 = vmatpush2.msra.mxu0 %v2067
        %2977 = vmatprep.subr.mxu0 %v2060
        %2978 = vmatpush2.msra.mxu0 %v2059
        %2979 = vmatprep.subr.mxu0 %v2052
        %2980 = vmatpush2.msra.mxu0 %v2051
        %2981 = vmatprep.subr.mxu0 %v2044
        %2982 = vmatpush2.msra.mxu0 %v2043
        %2983 = vmatprep.subr.mxu0 %v2036
        %2984 = vmatpush2.msra.mxu0 %v2035
        %2985 = vmatprep.subr.mxu0 %v2028
        %2986 = vmatpush2.msra.mxu0 %v2027
        %2987 = vmatprep.subr.mxu0 %v2020
        %2988 = vmatpush2.msra.mxu0 %v2019
        %2989 = vmatprep.subr.mxu0 %v2012
        %2990 = vmatpush2.msra.mxu0 %v2011
        %2991 = vmatprep.subr.mxu0 %v2004
        %2992 = vmatpush2.msra.mxu0 %v2003
        %2993 = vmatprep.subr.mxu0 %v1996
        %2994 = vmatpush2.msra.mxu0 %v1995
        %2995 = vmatprep.subr.mxu0 %v1988
        %2996 = vmatpush2.msra.mxu0 %v1987
        %2997 = vmatprep.subr.mxu0 %v1980
        %2998 = vmatpush2.msra.mxu0 %v1979
        %2999 = vmatprep.mubr.f32.mxu0 %v2790
        %3000 = vmatmul.mubr.f32.gmra.mxu0 %v2789
        %v3001 = vpop.f32.mrf.mxu0
        %v3002 = vadd.f32 0.0, %v3001
        %v3003 = vpop.f32.mrf.mxu0
        %v3004 = vadd.f32 0.0, %v3003
        %3005 = vdwg.mxu0
        %3006 = vmatprep.subr.mxu0 %v2228
        %3007 = vmatpush1.msra.mxu0 %v2227
        %3008 = vmatprep.subr.mxu0 %v2220
        %3009 = vmatpush1.msra.mxu0 %v2219
        %3010 = vmatprep.subr.mxu0 %v2212
        %3011 = vmatpush1.msra.mxu0 %v2211
        %3012 = vmatprep.subr.mxu0 %v2204
        %3013 = vmatpush1.msra.mxu0 %v2203
        %3014 = vmatprep.subr.mxu0 %v2196
        %3015 = vmatpush1.msra.mxu0 %v2195
        %3016 = vmatprep.subr.mxu0 %v2188
        %3017 = vmatpush1.msra.mxu0 %v2187
        %3018 = vmatprep.subr.mxu0 %v2180
        %3019 = vmatpush1.msra.mxu0 %v2179
        %3020 = vmatprep.subr.mxu0 %v2172
        %3021 = vmatpush1.msra.mxu0 %v2171
        %3022 = vmatprep.subr.mxu0 %v2164
        %3023 = vmatpush1.msra.mxu0 %v2163
        %3024 = vmatprep.subr.mxu0 %v2156
        %3025 = vmatpush1.msra.mxu0 %v2155
        %3026 = vmatprep.subr.mxu0 %v2148
        %3027 = vmatpush1.msra.mxu0 %v2147
        %3028 = vmatprep.subr.mxu0 %v2140
        %3029 = vmatpush1.msra.mxu0 %v2139
        %3030 = vmatprep.subr.mxu0 %v2132
        %3031 = vmatpush1.msra.mxu0 %v2131
        %3032 = vmatprep.subr.mxu0 %v2124
        %3033 = vmatpush1.msra.mxu0 %v2123
        %3034 = vmatprep.subr.mxu0 %v2116
        %3035 = vmatpush1.msra.mxu0 %v2115
        %3036 = vmatprep.subr.mxu0 %v2108
        %3037 = vmatpush1.msra.mxu0 %v2107
        %3038 = vmatprep.subr.mxu0 %v2356
        %3039 = vmatpush2.msra.mxu0 %v2355
        %3040 = vmatprep.subr.mxu0 %v2348
        %3041 = vmatpush2.msra.mxu0 %v2347
        %3042 = vmatprep.subr.mxu0 %v2340
        %3043 = vmatpush2.msra.mxu0 %v2339
        %3044 = vmatprep.subr.mxu0 %v2332
        %3045 = vmatpush2.msra.mxu0 %v2331
        %3046 = vmatprep.subr.mxu0 %v2324
        %3047 = vmatpush2.msra.mxu0 %v2323
        %3048 = vmatprep.subr.mxu0 %v2316
        %3049 = vmatpush2.msra.mxu0 %v2315
        %3050 = vmatprep.subr.mxu0 %v2308
        %3051 = vmatpush2.msra.mxu0 %v2307
        %3052 = vmatprep.subr.mxu0 %v2300
        %3053 = vmatpush2.msra.mxu0 %v2299
        %3054 = vmatprep.subr.mxu0 %v2292
        %3055 = vmatpush2.msra.mxu0 %v2291
        %3056 = vmatprep.subr.mxu0 %v2284
        %3057 = vmatpush2.msra.mxu0 %v2283
        %3058 = vmatprep.subr.mxu0 %v2276
        %3059 = vmatpush2.msra.mxu0 %v2275
        %3060 = vmatprep.subr.mxu0 %v2268
        %3061 = vmatpush2.msra.mxu0 %v2267
        %3062 = vmatprep.subr.mxu0 %v2260
        %3063 = vmatpush2.msra.mxu0 %v2259
        %3064 = vmatprep.subr.mxu0 %v2252
        %3065 = vmatpush2.msra.mxu0 %v2251
        %3066 = vmatprep.subr.mxu0 %v2244
        %3067 = vmatpush2.msra.mxu0 %v2243
        %3068 = vmatprep.subr.mxu0 %v2236
        %3069 = vmatpush2.msra.mxu0 %v2235
        %3070 = vmatprep.mubr.f32.mxu0 %v2792
        %3071 = vmatmul.mubr.f32.gmra.mxu0 %v2791
        %v3072 = vpop.f32.mrf.mxu0
        %v3073 = vadd.f32 %v3002, %v3072
        %v3074 = vpop.f32.mrf.mxu0
        %v3075 = vadd.f32 %v3004, %v3074
        %3076 = vdwg.mxu0
        %3077 = vmatprep.subr.mxu0 %v1974
        %3078 = vmatpush1.msra.mxu0 %v1973
        %3079 = vmatprep.subr.mxu0 %v1966
        %3080 = vmatpush1.msra.mxu0 %v1965
        %3081 = vmatprep.subr.mxu0 %v1958
        %3082 = vmatpush1.msra.mxu0 %v1957
        %3083 = vmatprep.subr.mxu0 %v1950
        %3084 = vmatpush1.msra.mxu0 %v1949
        %3085 = vmatprep.subr.mxu0 %v1942
        %3086 = vmatpush1.msra.mxu0 %v1941
        %3087 = vmatprep.subr.mxu0 %v1934
        %3088 = vmatpush1.msra.mxu0 %v1933
        %3089 = vmatprep.subr.mxu0 %v1926
        %3090 = vmatpush1.msra.mxu0 %v1925
        %3091 = vmatprep.subr.mxu0 %v1918
        %3092 = vmatpush1.msra.mxu0 %v1917
        %3093 = vmatprep.subr.mxu0 %v1910
        %3094 = vmatpush1.msra.mxu0 %v1909
        %3095 = vmatprep.subr.mxu0 %v1902
        %3096 = vmatpush1.msra.mxu0 %v1901
        %3097 = vmatprep.subr.mxu0 %v1894
        %3098 = vmatpush1.msra.mxu0 %v1893
        %3099 = vmatprep.subr.mxu0 %v1886
        %3100 = vmatpush1.msra.mxu0 %v1885
        %3101 = vmatprep.subr.mxu0 %v1878
        %3102 = vmatpush1.msra.mxu0 %v1877
        %3103 = vmatprep.subr.mxu0 %v1870
        %3104 = vmatpush1.msra.mxu0 %v1869
        %3105 = vmatprep.subr.mxu0 %v1862
        %3106 = vmatpush1.msra.mxu0 %v1861
        %3107 = vmatprep.subr.mxu0 %v1854
        %3108 = vmatpush1.msra.mxu0 %v1853
        %3109 = vmatprep.subr.mxu0 %v2102
        %3110 = vmatpush2.msra.mxu0 %v2101
        %3111 = vmatprep.subr.mxu0 %v2094
        %3112 = vmatpush2.msra.mxu0 %v2093
        %3113 = vmatprep.subr.mxu0 %v2086
        %3114 = vmatpush2.msra.mxu0 %v2085
        %3115 = vmatprep.subr.mxu0 %v2078
        %3116 = vmatpush2.msra.mxu0 %v2077
        %3117 = vmatprep.subr.mxu0 %v2070
        %3118 = vmatpush2.msra.mxu0 %v2069
        %3119 = vmatprep.subr.mxu0 %v2062
        %3120 = vmatpush2.msra.mxu0 %v2061
        %3121 = vmatprep.subr.mxu0 %v2054
        %3122 = vmatpush2.msra.mxu0 %v2053
        %3123 = vmatprep.subr.mxu0 %v2046
        %3124 = vmatpush2.msra.mxu0 %v2045
        %3125 = vmatprep.subr.mxu0 %v2038
        %3126 = vmatpush2.msra.mxu0 %v2037
        %3127 = vmatprep.subr.mxu0 %v2030
        %3128 = vmatpush2.msra.mxu0 %v2029
        %3129 = vmatprep.subr.mxu0 %v2022
        %3130 = vmatpush2.msra.mxu0 %v2021
        %3131 = vmatprep.subr.mxu0 %v2014
        %3132 = vmatpush2.msra.mxu0 %v2013
        %3133 = vmatprep.subr.mxu0 %v2006
        %3134 = vmatpush2.msra.mxu0 %v2005
        %3135 = vmatprep.subr.mxu0 %v1998
        %3136 = vmatpush2.msra.mxu0 %v1997
        %3137 = vmatprep.subr.mxu0 %v1990
        %3138 = vmatpush2.msra.mxu0 %v1989
        %3139 = vmatprep.subr.mxu0 %v1982
        %3140 = vmatpush2.msra.mxu0 %v1981
        %3141 = vmatprep.mubr.f32.mxu0 %v2790
        %3142 = vmatmul.mubr.f32.gmra.mxu0 %v2789
        %v3143 = vpop.f32.mrf.mxu0
        %v3144 = vadd.f32 0.0, %v3143
        %v3145 = vpop.f32.mrf.mxu0
        %v3146 = vadd.f32 0.0, %v3145
        %3147 = vdwg.mxu0
        %3148 = vmatprep.subr.mxu0 %v2230
        %3149 = vmatpush1.msra.mxu0 %v2229
        %3150 = vmatprep.subr.mxu0 %v2222
        %3151 = vmatpush1.msra.mxu0 %v2221
        %3152 = vmatprep.subr.mxu0 %v2214
        %3153 = vmatpush1.msra.mxu0 %v2213
        %3154 = vmatprep.subr.mxu0 %v2206
        %3155 = vmatpush1.msra.mxu0 %v2205
        %3156 = vmatprep.subr.mxu0 %v2198
        %3157 = vmatpush1.msra.mxu0 %v2197
        %3158 = vmatprep.subr.mxu0 %v2190
        %3159 = vmatpush1.msra.mxu0 %v2189
        %3160 = vmatprep.subr.mxu0 %v2182
        %3161 = vmatpush1.msra.mxu0 %v2181
        %3162 = vmatprep.subr.mxu0 %v2174
        %3163 = vmatpush1.msra.mxu0 %v2173
        %3164 = vmatprep.subr.mxu0 %v2166
        %3165 = vmatpush1.msra.mxu0 %v2165
        %3166 = vmatprep.subr.mxu0 %v2158
        %3167 = vmatpush1.msra.mxu0 %v2157
        %3168 = vmatprep.subr.mxu0 %v2150
        %3169 = vmatpush1.msra.mxu0 %v2149
        %3170 = vmatprep.subr.mxu0 %v2142
        %3171 = vmatpush1.msra.mxu0 %v2141
        %3172 = vmatprep.subr.mxu0 %v2134
        %3173 = vmatpush1.msra.mxu0 %v2133
        %3174 = vmatprep.subr.mxu0 %v2126
        %3175 = vmatpush1.msra.mxu0 %v2125
        %3176 = vmatprep.subr.mxu0 %v2118
        %3177 = vmatpush1.msra.mxu0 %v2117
        %3178 = vmatprep.subr.mxu0 %v2110
        %3179 = vmatpush1.msra.mxu0 %v2109
        %3180 = vmatprep.subr.mxu0 %v2358
        %3181 = vmatpush2.msra.mxu0 %v2357
        %3182 = vmatprep.subr.mxu0 %v2350
        %3183 = vmatpush2.msra.mxu0 %v2349
        %3184 = vmatprep.subr.mxu0 %v2342
        %3185 = vmatpush2.msra.mxu0 %v2341
        %3186 = vmatprep.subr.mxu0 %v2334
        %3187 = vmatpush2.msra.mxu0 %v2333
        %3188 = vmatprep.subr.mxu0 %v2326
        %3189 = vmatpush2.msra.mxu0 %v2325
        %3190 = vmatprep.subr.mxu0 %v2318
        %3191 = vmatpush2.msra.mxu0 %v2317
        %3192 = vmatprep.subr.mxu0 %v2310
        %3193 = vmatpush2.msra.mxu0 %v2309
        %3194 = vmatprep.subr.mxu0 %v2302
        %3195 = vmatpush2.msra.mxu0 %v2301
        %3196 = vmatprep.subr.mxu0 %v2294
        %3197 = vmatpush2.msra.mxu0 %v2293
        %3198 = vmatprep.subr.mxu0 %v2286
        %3199 = vmatpush2.msra.mxu0 %v2285
        %3200 = vmatprep.subr.mxu0 %v2278
        %3201 = vmatpush2.msra.mxu0 %v2277
        %3202 = vmatprep.subr.mxu0 %v2270
        %3203 = vmatpush2.msra.mxu0 %v2269
        %3204 = vmatprep.subr.mxu0 %v2262
        %3205 = vmatpush2.msra.mxu0 %v2261
        %3206 = vmatprep.subr.mxu0 %v2254
        %3207 = vmatpush2.msra.mxu0 %v2253
        %3208 = vmatprep.subr.mxu0 %v2246
        %3209 = vmatpush2.msra.mxu0 %v2245
        %3210 = vmatprep.subr.mxu0 %v2238
        %3211 = vmatpush2.msra.mxu0 %v2237
        %3212 = vmatprep.mubr.f32.mxu0 %v2792
        %3213 = vmatmul.mubr.f32.gmra.mxu0 %v2791
        %v3214 = vpop.f32.mrf.mxu0
        %v3215 = vadd.f32 %v3144, %v3214
        %v3216 = vpop.f32.mrf.mxu0
        %v3217 = vadd.f32 %v3146, %v3216
        %3218 = vdwg.mxu0
        %3219 = vmatprep.subr.mxu0 %v1976
        %3220 = vmatpush1.msra.mxu0 %v1975
        %3221 = vmatprep.subr.mxu0 %v1968
        %3222 = vmatpush1.msra.mxu0 %v1967
        %3223 = vmatprep.subr.mxu0 %v1960
        %3224 = vmatpush1.msra.mxu0 %v1959
        %3225 = vmatprep.subr.mxu0 %v1952
        %3226 = vmatpush1.msra.mxu0 %v1951
        %3227 = vmatprep.subr.mxu0 %v1944
        %3228 = vmatpush1.msra.mxu0 %v1943
        %3229 = vmatprep.subr.mxu0 %v1936
        %3230 = vmatpush1.msra.mxu0 %v1935
        %3231 = vmatprep.subr.mxu0 %v1928
        %3232 = vmatpush1.msra.mxu0 %v1927
        %3233 = vmatprep.subr.mxu0 %v1920
        %3234 = vmatpush1.msra.mxu0 %v1919
        %3235 = vmatprep.subr.mxu0 %v1912
        %3236 = vmatpush1.msra.mxu0 %v1911
        %3237 = vmatprep.subr.mxu0 %v1904
        %3238 = vmatpush1.msra.mxu0 %v1903
        %3239 = vmatprep.subr.mxu0 %v1896
        %3240 = vmatpush1.msra.mxu0 %v1895
        %3241 = vmatprep.subr.mxu0 %v1888
        %3242 = vmatpush1.msra.mxu0 %v1887
        %3243 = vmatprep.subr.mxu0 %v1880
        %3244 = vmatpush1.msra.mxu0 %v1879
        %3245 = vmatprep.subr.mxu0 %v1872
        %3246 = vmatpush1.msra.mxu0 %v1871
        %3247 = vmatprep.subr.mxu0 %v1864
        %3248 = vmatpush1.msra.mxu0 %v1863
        %3249 = vmatprep.subr.mxu0 %v1856
        %3250 = vmatpush1.msra.mxu0 %v1855
        %3251 = vmatprep.subr.mxu0 %v2104
        %3252 = vmatpush2.msra.mxu0 %v2103
        %3253 = vmatprep.subr.mxu0 %v2096
        %3254 = vmatpush2.msra.mxu0 %v2095
        %3255 = vmatprep.subr.mxu0 %v2088
        %3256 = vmatpush2.msra.mxu0 %v2087
        %3257 = vmatprep.subr.mxu0 %v2080
        %3258 = vmatpush2.msra.mxu0 %v2079
        %3259 = vmatprep.subr.mxu0 %v2072
        %3260 = vmatpush2.msra.mxu0 %v2071
        %3261 = vmatprep.subr.mxu0 %v2064
        %3262 = vmatpush2.msra.mxu0 %v2063
        %3263 = vmatprep.subr.mxu0 %v2056
        %3264 = vmatpush2.msra.mxu0 %v2055
        %3265 = vmatprep.subr.mxu0 %v2048
        %3266 = vmatpush2.msra.mxu0 %v2047
        %3267 = vmatprep.subr.mxu0 %v2040
        %3268 = vmatpush2.msra.mxu0 %v2039
        %3269 = vmatprep.subr.mxu0 %v2032
        %3270 = vmatpush2.msra.mxu0 %v2031
        %3271 = vmatprep.subr.mxu0 %v2024
        %3272 = vmatpush2.msra.mxu0 %v2023
        %3273 = vmatprep.subr.mxu0 %v2016
        %3274 = vmatpush2.msra.mxu0 %v2015
        %3275 = vmatprep.subr.mxu0 %v2008
        %3276 = vmatpush2.msra.mxu0 %v2007
        %3277 = vmatprep.subr.mxu0 %v2000
        %3278 = vmatpush2.msra.mxu0 %v1999
        %3279 = vmatprep.subr.mxu0 %v1992
        %3280 = vmatpush2.msra.mxu0 %v1991
        %3281 = vmatprep.subr.mxu0 %v1984
        %3282 = vmatpush2.msra.mxu0 %v1983
        %3283 = vmatprep.mubr.f32.mxu0 %v2790
        %3284 = vmatmul.mubr.f32.gmra.mxu0 %v2789
        %v3285 = vpop.f32.mrf.mxu0
        %v3286 = vadd.f32 0.0, %v3285
        %v3287 = vpop.f32.mrf.mxu0
        %v3288 = vadd.f32 0.0, %v3287
        %3289 = vdwg.mxu0
        %3290 = vmatprep.subr.mxu0 %v2232
        %3291 = vmatpush1.msra.mxu0 %v2231
        %3292 = vmatprep.subr.mxu0 %v2224
        %3293 = vmatpush1.msra.mxu0 %v2223
        %3294 = vmatprep.subr.mxu0 %v2216
        %3295 = vmatpush1.msra.mxu0 %v2215
        %3296 = vmatprep.subr.mxu0 %v2208
        %3297 = vmatpush1.msra.mxu0 %v2207
        %3298 = vmatprep.subr.mxu0 %v2200
        %3299 = vmatpush1.msra.mxu0 %v2199
        %3300 = vmatprep.subr.mxu0 %v2192
        %3301 = vmatpush1.msra.mxu0 %v2191
        %3302 = vmatprep.subr.mxu0 %v2184
        %3303 = vmatpush1.msra.mxu0 %v2183
        %3304 = vmatprep.subr.mxu0 %v2176
        %3305 = vmatpush1.msra.mxu0 %v2175
        %3306 = vmatprep.subr.mxu0 %v2168
        %3307 = vmatpush1.msra.mxu0 %v2167
        %3308 = vmatprep.subr.mxu0 %v2160
        %3309 = vmatpush1.msra.mxu0 %v2159
        %3310 = vmatprep.subr.mxu0 %v2152
        %3311 = vmatpush1.msra.mxu0 %v2151
        %3312 = vmatprep.subr.mxu0 %v2144
        %3313 = vmatpush1.msra.mxu0 %v2143
        %3314 = vmatprep.subr.mxu0 %v2136
        %3315 = vmatpush1.msra.mxu0 %v2135
        %3316 = vmatprep.subr.mxu0 %v2128
        %3317 = vmatpush1.msra.mxu0 %v2127
        %3318 = vmatprep.subr.mxu0 %v2120
        %3319 = vmatpush1.msra.mxu0 %v2119
        %3320 = vmatprep.subr.mxu0 %v2112
        %3321 = vmatpush1.msra.mxu0 %v2111
        %3322 = vmatprep.subr.mxu0 %v2360
        %3323 = vmatpush2.msra.mxu0 %v2359
        %3324 = vmatprep.subr.mxu0 %v2352
        %3325 = vmatpush2.msra.mxu0 %v2351
        %3326 = vmatprep.subr.mxu0 %v2344
        %3327 = vmatpush2.msra.mxu0 %v2343
        %3328 = vmatprep.subr.mxu0 %v2336
        %3329 = vmatpush2.msra.mxu0 %v2335
        %3330 = vmatprep.subr.mxu0 %v2328
        %3331 = vmatpush2.msra.mxu0 %v2327
        %3332 = vmatprep.subr.mxu0 %v2320
        %3333 = vmatpush2.msra.mxu0 %v2319
        %3334 = vmatprep.subr.mxu0 %v2312
        %3335 = vmatpush2.msra.mxu0 %v2311
        %3336 = vmatprep.subr.mxu0 %v2304
        %3337 = vmatpush2.msra.mxu0 %v2303
        %3338 = vmatprep.subr.mxu0 %v2296
        %3339 = vmatpush2.msra.mxu0 %v2295
        %3340 = vmatprep.subr.mxu0 %v2288
        %3341 = vmatpush2.msra.mxu0 %v2287
        %3342 = vmatprep.subr.mxu0 %v2280
        %3343 = vmatpush2.msra.mxu0 %v2279
        %3344 = vmatprep.subr.mxu0 %v2272
        %3345 = vmatpush2.msra.mxu0 %v2271
        %3346 = vmatprep.subr.mxu0 %v2264
        %3347 = vmatpush2.msra.mxu0 %v2263
        %3348 = vmatprep.subr.mxu0 %v2256
        %3349 = vmatpush2.msra.mxu0 %v2255
        %3350 = vmatprep.subr.mxu0 %v2248
        %3351 = vmatpush2.msra.mxu0 %v2247
        %3352 = vmatprep.subr.mxu0 %v2240
        %3353 = vmatpush2.msra.mxu0 %v2239
        %3354 = vmatprep.mubr.f32.mxu0 %v2792
        %3355 = vmatmul.mubr.f32.gmra.mxu0 %v2791
        %v3356 = vpop.f32.mrf.mxu0
        %v3357 = vadd.f32 %v3286, %v3356
        %v3358 = vpop.f32.mrf.mxu0
        %v3359 = vadd.f32 %v3288, %v3358
        %3360 = vdwg.mxu0
        %v3361 = vld [vmem:[%s1] sm:$0xf]
        %v3362 = vld [vmem:[%s1 + $0x4] sm:$0xf]
        %v3363 = vld [vmem:[%s1 + $0x8] sm:$0xf]
        %v3364 = vld [vmem:[%s1 + $0xc] sm:$0xf]
        %v3365 = vld [vmem:[%s3] sm:$0xff]
        %v3366 = vld [vmem:[%s3 + $0x8] sm:$0xff]
        %v3367 = vld [vmem:[%s3 + $0x10] sm:$0xff]
        %v3368 = vld [vmem:[%s3 + $0x18] sm:$0xff]
        %v3369 = vld [vmem:[%s3 + $0x20] sm:$0xff]
        %v3370 = vld [vmem:[%s3 + $0x28] sm:$0xff]
        %v3371 = vld [vmem:[%s3 + $0x30] sm:$0xff]
        %v3372 = vld [vmem:[%s3 + $0x38] sm:$0xff]
        %v3373 = vld [vmem:[%s3 + $0x40] sm:$0xff]
        %v3374 = vld [vmem:[%s3 + $0x48] sm:$0xff]
        %v3375 = vld [vmem:[%s3 + $0x50] sm:$0xff]
        %v3376 = vld [vmem:[%s3 + $0x58] sm:$0xff]
        %v3377 = vld [vmem:[%s3 + $0x60] sm:$0xff]
        %v3378 = vld [vmem:[%s3 + $0x68] sm:$0xff]
        %v3379 = vld [vmem:[%s3 + $0x70] sm:$0xff]
        %v3380 = vld [vmem:[%s3 + $0x78] sm:$0xff]
        %v3381 = vld [vmem:[%s1552] sm:$0xff]
        %v3382 = vld [vmem:[%s1552 + $0x8] sm:$0xff]
        %v3383 = vld [vmem:[%s1552 + $0x10] sm:$0xff]
        %v3384 = vld [vmem:[%s1552 + $0x18] sm:$0xff]
        %v3385 = vld [vmem:[%s1552 + $0x20] sm:$0xff]
        %v3386 = vld [vmem:[%s1552 + $0x28] sm:$0xff]
        %v3387 = vld [vmem:[%s1552 + $0x30] sm:$0xff]
        %v3388 = vld [vmem:[%s1552 + $0x38] sm:$0xff]
        %v3389 = vld [vmem:[%s1552 + $0x40] sm:$0xff]
        %v3390 = vld [vmem:[%s1552 + $0x48] sm:$0xff]
        %v3391 = vld [vmem:[%s1552 + $0x50] sm:$0xff]
        %v3392 = vld [vmem:[%s1552 + $0x58] sm:$0xff]
        %v3393 = vld [vmem:[%s1552 + $0x60] sm:$0xff]
        %v3394 = vld [vmem:[%s1552 + $0x68] sm:$0xff]
        %v3395 = vld [vmem:[%s1552 + $0x70] sm:$0xff]
        %v3396 = vld [vmem:[%s1552 + $0x78] sm:$0xff]
        %v3397 = vld [vmem:[%s1552 + $0x80] sm:$0xff]
        %v3398 = vld [vmem:[%s1552 + $0x88] sm:$0xff]
        %v3399 = vld [vmem:[%s1552 + $0x90] sm:$0xff]
        %v3400 = vld [vmem:[%s1552 + $0x98] sm:$0xff]
        %v3401 = vld [vmem:[%s1552 + $0xa0] sm:$0xff]
        %v3402 = vld [vmem:[%s1552 + $0xa8] sm:$0xff]
        %v3403 = vld [vmem:[%s1552 + $0xb0] sm:$0xff]
        %v3404 = vld [vmem:[%s1552 + $0xb8] sm:$0xff]
        %v3405 = vld [vmem:[%s1552 + $0xc0] sm:$0xff]
        %v3406 = vld [vmem:[%s1552 + $0xc8] sm:$0xff]
        %v3407 = vld [vmem:[%s1552 + $0xd0] sm:$0xff]
        %v3408 = vld [vmem:[%s1552 + $0xd8] sm:$0xff]
        %v3409 = vld [vmem:[%s1552 + $0xe0] sm:$0xff]
        %v3410 = vld [vmem:[%s1552 + $0xe8] sm:$0xff]
        %v3411 = vld [vmem:[%s1552 + $0xf0] sm:$0xff]
        %v3412 = vld [vmem:[%s1552 + $0xf8] sm:$0xff]
        %v3413 = vld [vmem:[%s1552 + $0x100] sm:$0xff]
        %v3414 = vld [vmem:[%s1552 + $0x108] sm:$0xff]
        %v3415 = vld [vmem:[%s1552 + $0x110] sm:$0xff]
        %v3416 = vld [vmem:[%s1552 + $0x118] sm:$0xff]
        %v3417 = vld [vmem:[%s1552 + $0x120] sm:$0xff]
        %v3418 = vld [vmem:[%s1552 + $0x128] sm:$0xff]
        %v3419 = vld [vmem:[%s1552 + $0x130] sm:$0xff]
        %v3420 = vld [vmem:[%s1552 + $0x138] sm:$0xff]
        %v3421 = vld [vmem:[%s1552 + $0x140] sm:$0xff]
        %v3422 = vld [vmem:[%s1552 + $0x148] sm:$0xff]
        %v3423 = vld [vmem:[%s1552 + $0x150] sm:$0xff]
        %v3424 = vld [vmem:[%s1552 + $0x158] sm:$0xff]
        %v3425 = vld [vmem:[%s1552 + $0x160] sm:$0xff]
        %v3426 = vld [vmem:[%s1552 + $0x168] sm:$0xff]
        %v3427 = vld [vmem:[%s1552 + $0x170] sm:$0xff]
        %v3428 = vld [vmem:[%s1552 + $0x178] sm:$0xff]
        %v3429 = vld [vmem:[%s1552 + $0x180] sm:$0xff]
        %v3430 = vld [vmem:[%s1552 + $0x188] sm:$0xff]
        %v3431 = vld [vmem:[%s1552 + $0x190] sm:$0xff]
        %v3432 = vld [vmem:[%s1552 + $0x198] sm:$0xff]
        %v3433 = vld [vmem:[%s1552 + $0x1a0] sm:$0xff]
        %v3434 = vld [vmem:[%s1552 + $0x1a8] sm:$0xff]
        %v3435 = vld [vmem:[%s1552 + $0x1b0] sm:$0xff]
        %v3436 = vld [vmem:[%s1552 + $0x1b8] sm:$0xff]
        %v3437 = vld [vmem:[%s1552 + $0x1c0] sm:$0xff]
        %v3438 = vld [vmem:[%s1552 + $0x1c8] sm:$0xff]
        %v3439 = vld [vmem:[%s1552 + $0x1d0] sm:$0xff]
        %v3440 = vld [vmem:[%s1552 + $0x1d8] sm:$0xff]
        %v3441 = vld [vmem:[%s1552 + $0x1e0] sm:$0xff]
        %v3442 = vld [vmem:[%s1552 + $0x1e8] sm:$0xff]
        %v3443 = vld [vmem:[%s1552 + $0x1f0] sm:$0xff]
        %v3444 = vld [vmem:[%s1552 + $0x1f8] sm:$0xff]
        %v3445 = vld [vmem:[%s1552 + $0x200] sm:$0xff]
        %v3446 = vld [vmem:[%s1552 + $0x208] sm:$0xff]
        %v3447 = vld [vmem:[%s1552 + $0x210] sm:$0xff]
        %v3448 = vld [vmem:[%s1552 + $0x218] sm:$0xff]
        %v3449 = vld [vmem:[%s1552 + $0x220] sm:$0xff]
        %v3450 = vld [vmem:[%s1552 + $0x228] sm:$0xff]
        %v3451 = vld [vmem:[%s1552 + $0x230] sm:$0xff]
        %v3452 = vld [vmem:[%s1552 + $0x238] sm:$0xff]
        %v3453 = vld [vmem:[%s1552 + $0x240] sm:$0xff]
        %v3454 = vld [vmem:[%s1552 + $0x248] sm:$0xff]
        %v3455 = vld [vmem:[%s1552 + $0x250] sm:$0xff]
        %v3456 = vld [vmem:[%s1552 + $0x258] sm:$0xff]
        %v3457 = vld [vmem:[%s1552 + $0x260] sm:$0xff]
        %v3458 = vld [vmem:[%s1552 + $0x268] sm:$0xff]
        %v3459 = vld [vmem:[%s1552 + $0x270] sm:$0xff]
        %v3460 = vld [vmem:[%s1552 + $0x278] sm:$0xff]
        %v3461 = vld [vmem:[%s1552 + $0x280] sm:$0xff]
        %v3462 = vld [vmem:[%s1552 + $0x288] sm:$0xff]
        %v3463 = vld [vmem:[%s1552 + $0x290] sm:$0xff]
        %v3464 = vld [vmem:[%s1552 + $0x298] sm:$0xff]
        %v3465 = vld [vmem:[%s1552 + $0x2a0] sm:$0xff]
        %v3466 = vld [vmem:[%s1552 + $0x2a8] sm:$0xff]
        %v3467 = vld [vmem:[%s1552 + $0x2b0] sm:$0xff]
        %v3468 = vld [vmem:[%s1552 + $0x2b8] sm:$0xff]
        %v3469 = vld [vmem:[%s1552 + $0x2c0] sm:$0xff]
        %v3470 = vld [vmem:[%s1552 + $0x2c8] sm:$0xff]
        %v3471 = vld [vmem:[%s1552 + $0x2d0] sm:$0xff]
        %v3472 = vld [vmem:[%s1552 + $0x2d8] sm:$0xff]
        %v3473 = vld [vmem:[%s1552 + $0x2e0] sm:$0xff]
        %v3474 = vld [vmem:[%s1552 + $0x2e8] sm:$0xff]
        %v3475 = vld [vmem:[%s1552 + $0x2f0] sm:$0xff]
        %v3476 = vld [vmem:[%s1552 + $0x2f8] sm:$0xff]
        %v3477 = vld [vmem:[%s1552 + $0x300] sm:$0xff]
        %v3478 = vld [vmem:[%s1552 + $0x308] sm:$0xff]
        %v3479 = vld [vmem:[%s1552 + $0x310] sm:$0xff]
        %v3480 = vld [vmem:[%s1552 + $0x318] sm:$0xff]
        %v3481 = vld [vmem:[%s1552 + $0x320] sm:$0xff]
        %v3482 = vld [vmem:[%s1552 + $0x328] sm:$0xff]
        %v3483 = vld [vmem:[%s1552 + $0x330] sm:$0xff]
        %v3484 = vld [vmem:[%s1552 + $0x338] sm:$0xff]
        %v3485 = vld [vmem:[%s1552 + $0x340] sm:$0xff]
        %v3486 = vld [vmem:[%s1552 + $0x348] sm:$0xff]
        %v3487 = vld [vmem:[%s1552 + $0x350] sm:$0xff]
        %v3488 = vld [vmem:[%s1552 + $0x358] sm:$0xff]
        %v3489 = vld [vmem:[%s1552 + $0x360] sm:$0xff]
        %v3490 = vld [vmem:[%s1552 + $0x368] sm:$0xff]
        %v3491 = vld [vmem:[%s1552 + $0x370] sm:$0xff]
        %v3492 = vld [vmem:[%s1552 + $0x378] sm:$0xff]
        %v3493 = vld [vmem:[%s1552 + $0x380] sm:$0xff]
        %v3494 = vld [vmem:[%s1552 + $0x388] sm:$0xff]
        %v3495 = vld [vmem:[%s1552 + $0x390] sm:$0xff]
        %v3496 = vld [vmem:[%s1552 + $0x398] sm:$0xff]
        %v3497 = vld [vmem:[%s1552 + $0x3a0] sm:$0xff]
        %v3498 = vld [vmem:[%s1552 + $0x3a8] sm:$0xff]
        %v3499 = vld [vmem:[%s1552 + $0x3b0] sm:$0xff]
        %v3500 = vld [vmem:[%s1552 + $0x3b8] sm:$0xff]
        %v3501 = vld [vmem:[%s1552 + $0x3c0] sm:$0xff]
        %v3502 = vld [vmem:[%s1552 + $0x3c8] sm:$0xff]
        %v3503 = vld [vmem:[%s1552 + $0x3d0] sm:$0xff]
        %v3504 = vld [vmem:[%s1552 + $0x3d8] sm:$0xff]
        %v3505 = vld [vmem:[%s1552 + $0x3e0] sm:$0xff]
        %v3506 = vld [vmem:[%s1552 + $0x3e8] sm:$0xff]
        %v3507 = vld [vmem:[%s1552 + $0x3f0] sm:$0xff]
        %v3508 = vld [vmem:[%s1552 + $0x3f8] sm:$0xff]
        %v3509 = vunpack.c.l.bf16 %v3361
        %v3510 = vunpack.c.l.bf16 %v3362
        %v3511 = vunpack.c.l.bf16 %v3363
        %v3512 = vunpack.c.l.bf16 %v3364
        %3513 = vmatprep.subr.mxu0 0.0
        %3514 = vmatpush1.msra.mxu0 %v3380
        %3515 = vmatprep.subr.mxu0 0.0
        %3516 = vmatpush1.msra.mxu0 %v3379
        %3517 = vmatprep.subr.mxu0 0.0
        %3518 = vmatpush1.msra.mxu0 %v3378
        %3519 = vmatprep.subr.mxu0 0.0
        %3520 = vmatpush1.msra.mxu0 %v3377
        %3521 = vmatprep.subr.mxu0 0.0
        %3522 = vmatpush1.msra.mxu0 %v3376
        %3523 = vmatprep.subr.mxu0 0.0
        %3524 = vmatpush1.msra.mxu0 %v3375
        %3525 = vmatprep.subr.mxu0 0.0
        %3526 = vmatpush1.msra.mxu0 %v3374
        %3527 = vmatprep.subr.mxu0 0.0
        %3528 = vmatpush1.msra.mxu0 %v3373
        %3529 = vmatprep.subr.mxu0 0.0
        %3530 = vmatpush1.msra.mxu0 %v3372
        %3531 = vmatprep.subr.mxu0 0.0
        %3532 = vmatpush1.msra.mxu0 %v3371
        %3533 = vmatprep.subr.mxu0 0.0
        %3534 = vmatpush1.msra.mxu0 %v3370
        %3535 = vmatprep.subr.mxu0 0.0
        %3536 = vmatpush1.msra.mxu0 %v3369
        %3537 = vmatprep.subr.mxu0 0.0
        %3538 = vmatpush1.msra.mxu0 %v3368
        %3539 = vmatprep.subr.mxu0 0.0
        %3540 = vmatpush1.msra.mxu0 %v3367
        %3541 = vmatprep.subr.mxu0 0.0
        %3542 = vmatpush1.msra.mxu0 %v3366
        %3543 = vmatprep.subr.mxu0 0.0
        %3544 = vmatpush1.msra.mxu0 %v3365
        %3545 = vmatprep.subr.mxu0 0.0
        %3546 = vmatpush2.msra.mxu0 0.0
        %3547 = vmatprep.subr.mxu0 0.0
        %3548 = vmatpush2.msra.mxu0 0.0
        %3549 = vmatprep.subr.mxu0 0.0
        %3550 = vmatpush2.msra.mxu0 0.0
        %3551 = vmatprep.subr.mxu0 0.0
        %3552 = vmatpush2.msra.mxu0 0.0
        %3553 = vmatprep.subr.mxu0 0.0
        %3554 = vmatpush2.msra.mxu0 0.0
        %3555 = vmatprep.subr.mxu0 0.0
        %3556 = vmatpush2.msra.mxu0 0.0
        %3557 = vmatprep.subr.mxu0 0.0
        %3558 = vmatpush2.msra.mxu0 0.0
        %3559 = vmatprep.subr.mxu0 0.0
        %3560 = vmatpush2.msra.mxu0 0.0
        %3561 = vmatprep.subr.mxu0 0.0
        %3562 = vmatpush2.msra.mxu0 0.0
        %3563 = vmatprep.subr.mxu0 0.0
        %3564 = vmatpush2.msra.mxu0 0.0
        %3565 = vmatprep.subr.mxu0 0.0
        %3566 = vmatpush2.msra.mxu0 0.0
        %3567 = vmatprep.subr.mxu0 0.0
        %3568 = vmatpush2.msra.mxu0 0.0
        %3569 = vmatprep.subr.mxu0 0.0
        %3570 = vmatpush2.msra.mxu0 0.0
        %3571 = vmatprep.subr.mxu0 0.0
        %3572 = vmatpush2.msra.mxu0 0.0
        %3573 = vmatprep.subr.mxu0 0.0
        %3574 = vmatpush2.msra.mxu0 0.0
        %3575 = vmatprep.subr.mxu0 0.0
        %3576 = vmatpush2.msra.mxu0 0.0
        %3577 = vmatprep.mubr.f32.mxu0 0.0
        %3578 = vmatmul.mubr.f32.gmra.mxu0 %v3509
        %v3579 = vpop.f32.mrf.mxu0
        %v3580 = vadd.f32 0.0, %v3579
        %v3581 = vpop.f32.mrf.mxu0
        %3582 = vmatprep.mubr.f32.mxu0 0.0
        %3583 = vmatmul.mubr.f32.gmra.mxu0 %v3510
        %v3584 = vpop.f32.mrf.mxu0
        %v3585 = vadd.f32 0.0, %v3584
        %v3586 = vpop.f32.mrf.mxu0
        %3587 = vmatprep.mubr.f32.mxu0 0.0
        %3588 = vmatmul.mubr.f32.gmra.mxu0 %v3511
        %v3589 = vpop.f32.mrf.mxu0
        %v3590 = vadd.f32 0.0, %v3589
        %v3591 = vpop.f32.mrf.mxu0
        %3592 = vmatprep.mubr.f32.mxu0 0.0
        %3593 = vmatmul.mubr.f32.gmra.mxu0 %v3512
        %v3594 = vpop.f32.mrf.mxu0
        %v3595 = vadd.f32 0.0, %v3594
        %v3596 = vpop.f32.mrf.mxu0
        %3597 = vdwg.mxu0
        %v3598 = vmul.f32 %v3580, %v3580
        %v3599 = vmul.f32 %v3585, %v3585
        %v3600 = vadd.f32 %v3598, %v3599
        %v3601 = vrot.slane %v3600, 4
        %v3602 = vadd.f32 %v3600, %v3601
        %v3603 = vrot.slane %v3602, 2
        %v3604 = vadd.f32 %v3602, %v3603
        %v3605 = vrot.slane %v3604, 1
        %v3606 = vadd.f32 %v3604, %v3605
        %v3607 = vmax.f32 %v3606, 1e-24
        %v3608 = vrsqrt.pop %v3607
        %v3609 = vmul.f32 %v3580, %v3608
        %v3610 = vmul.f32 %v3585, %v3608
        %v3611 = vmul.f32 %v3590, %v3590
        %v3612 = vmul.f32 %v3595, %v3595
        %v3613 = vadd.f32 %v3611, %v3612
        %v3614 = vrot.slane %v3613, 4
        %v3615 = vadd.f32 %v3613, %v3614
        %v3616 = vrot.slane %v3615, 2
        %v3617 = vadd.f32 %v3615, %v3616
        %v3618 = vrot.slane %v3617, 1
        %v3619 = vadd.f32 %v3617, %v3618
        %v3620 = vmax.f32 %v3619, 1e-24
        %v3621 = vrsqrt.pop %v3620
        %v3622 = vmul.f32 %v3590, %v3621
        %v3623 = vmul.f32 %v3595, %v3621
        %v3624 = vsub.f32 %v3609, %v3622
        %v3625 = vsub.f32 %v3610, %v3623
        %v3626 = vmul.f32 %v3624, %v3624
        %v3627 = vmul.f32 %v3625, %v3625
        %v3628 = vadd.f32 %v3626, %v3627
        %v3629 = vrot.slane %v3628, 4
        %v3630 = vadd.f32 %v3628, %v3629
        %v3631 = vrot.slane %v3630, 2
        %v3632 = vadd.f32 %v3630, %v3631
        %v3633 = vrot.slane %v3632, 1
        %v3634 = vadd.f32 %v3632, %v3633
        %v3635 = vmul.f32 %v3634, 0.5
        %3636 = vmatprep.subr.mxu0 %v3502
        %3637 = vmatpush1.msra.mxu0 %v3501
        %3638 = vmatprep.subr.mxu0 %v3494
        %3639 = vmatpush1.msra.mxu0 %v3493
        %3640 = vmatprep.subr.mxu0 %v3486
        %3641 = vmatpush1.msra.mxu0 %v3485
        %3642 = vmatprep.subr.mxu0 %v3478
        %3643 = vmatpush1.msra.mxu0 %v3477
        %3644 = vmatprep.subr.mxu0 %v3470
        %3645 = vmatpush1.msra.mxu0 %v3469
        %3646 = vmatprep.subr.mxu0 %v3462
        %3647 = vmatpush1.msra.mxu0 %v3461
        %3648 = vmatprep.subr.mxu0 %v3454
        %3649 = vmatpush1.msra.mxu0 %v3453
        %3650 = vmatprep.subr.mxu0 %v3446
        %3651 = vmatpush1.msra.mxu0 %v3445
        %3652 = vmatprep.subr.mxu0 %v3438
        %3653 = vmatpush1.msra.mxu0 %v3437
        %3654 = vmatprep.subr.mxu0 %v3430
        %3655 = vmatpush1.msra.mxu0 %v3429
        %3656 = vmatprep.subr.mxu0 %v3422
        %3657 = vmatpush1.msra.mxu0 %v3421
        %3658 = vmatprep.subr.mxu0 %v3414
        %3659 = vmatpush1.msra.mxu0 %v3413
        %3660 = vmatprep.subr.mxu0 %v3406
        %3661 = vmatpush1.msra.mxu0 %v3405
        %3662 = vmatprep.subr.mxu0 %v3398
        %3663 = vmatpush1.msra.mxu0 %v3397
        %3664 = vmatprep.subr.mxu0 %v3390
        %3665 = vmatpush1.msra.mxu0 %v3389
        %3666 = vmatprep.subr.mxu0 %v3382
        %3667 = vmatpush1.msra.mxu0 %v3381
        %3668 = vmatprep.subr.mxu0 0.0
        %3669 = vmatpush2.msra.mxu0 0.0
        %3670 = vmatprep.subr.mxu0 0.0
        %3671 = vmatpush2.msra.mxu0 0.0
        %3672 = vmatprep.subr.mxu0 0.0
        %3673 = vmatpush2.msra.mxu0 0.0
        %3674 = vmatprep.subr.mxu0 0.0
        %3675 = vmatpush2.msra.mxu0 0.0
        %3676 = vmatprep.subr.mxu0 0.0
        %3677 = vmatpush2.msra.mxu0 0.0
        %3678 = vmatprep.subr.mxu0 0.0
        %3679 = vmatpush2.msra.mxu0 0.0
        %3680 = vmatprep.subr.mxu0 0.0
        %3681 = vmatpush2.msra.mxu0 0.0
        %3682 = vmatprep.subr.mxu0 0.0
        %3683 = vmatpush2.msra.mxu0 0.0
        %3684 = vmatprep.subr.mxu0 0.0
        %3685 = vmatpush2.msra.mxu0 0.0
        %3686 = vmatprep.subr.mxu0 0.0
        %3687 = vmatpush2.msra.mxu0 0.0
        %3688 = vmatprep.subr.mxu0 0.0
        %3689 = vmatpush2.msra.mxu0 0.0
        %3690 = vmatprep.subr.mxu0 0.0
        %3691 = vmatpush2.msra.mxu0 0.0
        %3692 = vmatprep.subr.mxu0 0.0
        %3693 = vmatpush2.msra.mxu0 0.0
        %3694 = vmatprep.subr.mxu0 0.0
        %3695 = vmatpush2.msra.mxu0 0.0
        %3696 = vmatprep.subr.mxu0 0.0
        %3697 = vmatpush2.msra.mxu0 0.0
        %3698 = vmatprep.subr.mxu0 0.0
        %3699 = vmatpush2.msra.mxu0 0.0
        %3700 = vmatprep.mubr.f32.mxu0 0.0
        %3701 = vmatmul.mubr.f32.gmra.mxu0 %v3635
        %v3702 = vpop.f32.mrf.mxu0
        %v3703 = vadd.f32 0.0, %v3702
        %v3704 = vpop.f32.mrf.mxu0
        %v3705 = vadd.f32 0.0, %v3704
        %3706 = vdwg.mxu0
        %3707 = vmatprep.subr.mxu0 %v3504
        %3708 = vmatpush1.msra.mxu0 %v3503
        %3709 = vmatprep.subr.mxu0 %v3496
        %3710 = vmatpush1.msra.mxu0 %v3495
        %3711 = vmatprep.subr.mxu0 %v3488
        %3712 = vmatpush1.msra.mxu0 %v3487
        %3713 = vmatprep.subr.mxu0 %v3480
        %3714 = vmatpush1.msra.mxu0 %v3479
        %3715 = vmatprep.subr.mxu0 %v3472
        %3716 = vmatpush1.msra.mxu0 %v3471
        %3717 = vmatprep.subr.mxu0 %v3464
        %3718 = vmatpush1.msra.mxu0 %v3463
        %3719 = vmatprep.subr.mxu0 %v3456
        %3720 = vmatpush1.msra.mxu0 %v3455
        %3721 = vmatprep.subr.mxu0 %v3448
        %3722 = vmatpush1.msra.mxu0 %v3447
        %3723 = vmatprep.subr.mxu0 %v3440
        %3724 = vmatpush1.msra.mxu0 %v3439
        %3725 = vmatprep.subr.mxu0 %v3432
        %3726 = vmatpush1.msra.mxu0 %v3431
        %3727 = vmatprep.subr.mxu0 %v3424
        %3728 = vmatpush1.msra.mxu0 %v3423
        %3729 = vmatprep.subr.mxu0 %v3416
        %3730 = vmatpush1.msra.mxu0 %v3415
        %3731 = vmatprep.subr.mxu0 %v3408
        %3732 = vmatpush1.msra.mxu0 %v3407
        %3733 = vmatprep.subr.mxu0 %v3400
        %3734 = vmatpush1.msra.mxu0 %v3399
        %3735 = vmatprep.subr.mxu0 %v3392
        %3736 = vmatpush1.msra.mxu0 %v3391
        %3737 = vmatprep.subr.mxu0 %v3384
        %3738 = vmatpush1.msra.mxu0 %v3383
        %3739 = vmatprep.subr.mxu0 0.0
        %3740 = vmatpush2.msra.mxu0 0.0
        %3741 = vmatprep.subr.mxu0 0.0
        %3742 = vmatpush2.msra.mxu0 0.0
        %3743 = vmatprep.subr.mxu0 0.0
        %3744 = vmatpush2.msra.mxu0 0.0
        %3745 = vmatprep.subr.mxu0 0.0
        %3746 = vmatpush2.msra.mxu0 0.0
        %3747 = vmatprep.subr.mxu0 0.0
        %3748 = vmatpush2.msra.mxu0 0.0
        %3749 = vmatprep.subr.mxu0 0.0
        %3750 = vmatpush2.msra.mxu0 0.0
        %3751 = vmatprep.subr.mxu0 0.0
        %3752 = vmatpush2.msra.mxu0 0.0
        %3753 = vmatprep.subr.mxu0 0.0
        %3754 = vmatpush2.msra.mxu0 0.0
        %3755 = vmatprep.subr.mxu0 0.0
        %3756 = vmatpush2.msra.mxu0 0.0
        %3757 = vmatprep.subr.mxu0 0.0
        %3758 = vmatpush2.msra.mxu0 0.0
        %3759 = vmatprep.subr.mxu0 0.0
        %3760 = vmatpush2.msra.mxu0 0.0
        %3761 = vmatprep.subr.mxu0 0.0
        %3762 = vmatpush2.msra.mxu0 0.0
        %3763 = vmatprep.subr.mxu0 0.0
        %3764 = vmatpush2.msra.mxu0 0.0
        %3765 = vmatprep.subr.mxu0 0.0
        %3766 = vmatpush2.msra.mxu0 0.0
        %3767 = vmatprep.subr.mxu0 0.0
        %3768 = vmatpush2.msra.mxu0 0.0
        %3769 = vmatprep.subr.mxu0 0.0
        %3770 = vmatpush2.msra.mxu0 0.0
        %3771 = vmatprep.mubr.f32.mxu0 0.0
        %3772 = vmatmul.mubr.f32.gmra.mxu0 %v3635
        %v3773 = vpop.f32.mrf.mxu0
        %v3774 = vadd.f32 0.0, %v3773
        %v3775 = vpop.f32.mrf.mxu0
        %v3776 = vadd.f32 0.0, %v3775
        %3777 = vdwg.mxu0
        %3778 = vmatprep.subr.mxu0 %v3506
        %3779 = vmatpush1.msra.mxu0 %v3505
        %3780 = vmatprep.subr.mxu0 %v3498
        %3781 = vmatpush1.msra.mxu0 %v3497
        %3782 = vmatprep.subr.mxu0 %v3490
        %3783 = vmatpush1.msra.mxu0 %v3489
        %3784 = vmatprep.subr.mxu0 %v3482
        %3785 = vmatpush1.msra.mxu0 %v3481
        %3786 = vmatprep.subr.mxu0 %v3474
        %3787 = vmatpush1.msra.mxu0 %v3473
        %3788 = vmatprep.subr.mxu0 %v3466
        %3789 = vmatpush1.msra.mxu0 %v3465
        %3790 = vmatprep.subr.mxu0 %v3458
        %3791 = vmatpush1.msra.mxu0 %v3457
        %3792 = vmatprep.subr.mxu0 %v3450
        %3793 = vmatpush1.msra.mxu0 %v3449
        %3794 = vmatprep.subr.mxu0 %v3442
        %3795 = vmatpush1.msra.mxu0 %v3441
        %3796 = vmatprep.subr.mxu0 %v3434
        %3797 = vmatpush1.msra.mxu0 %v3433
        %3798 = vmatprep.subr.mxu0 %v3426
        %3799 = vmatpush1.msra.mxu0 %v3425
        %3800 = vmatprep.subr.mxu0 %v3418
        %3801 = vmatpush1.msra.mxu0 %v3417
        %3802 = vmatprep.subr.mxu0 %v3410
        %3803 = vmatpush1.msra.mxu0 %v3409
        %3804 = vmatprep.subr.mxu0 %v3402
        %3805 = vmatpush1.msra.mxu0 %v3401
        %3806 = vmatprep.subr.mxu0 %v3394
        %3807 = vmatpush1.msra.mxu0 %v3393
        %3808 = vmatprep.subr.mxu0 %v3386
        %3809 = vmatpush1.msra.mxu0 %v3385
        %3810 = vmatprep.subr.mxu0 0.0
        %3811 = vmatpush2.msra.mxu0 0.0
        %3812 = vmatprep.subr.mxu0 0.0
        %3813 = vmatpush2.msra.mxu0 0.0
        %3814 = vmatprep.subr.mxu0 0.0
        %3815 = vmatpush2.msra.mxu0 0.0
        %3816 = vmatprep.subr.mxu0 0.0
        %3817 = vmatpush2.msra.mxu0 0.0
        %3818 = vmatprep.subr.mxu0 0.0
        %3819 = vmatpush2.msra.mxu0 0.0
        %3820 = vmatprep.subr.mxu0 0.0
        %3821 = vmatpush2.msra.mxu0 0.0
        %3822 = vmatprep.subr.mxu0 0.0
        %3823 = vmatpush2.msra.mxu0 0.0
        %3824 = vmatprep.subr.mxu0 0.0
        %3825 = vmatpush2.msra.mxu0 0.0
        %3826 = vmatprep.subr.mxu0 0.0
        %3827 = vmatpush2.msra.mxu0 0.0
        %3828 = vmatprep.subr.mxu0 0.0
        %3829 = vmatpush2.msra.mxu0 0.0
        %3830 = vmatprep.subr.mxu0 0.0
        %3831 = vmatpush2.msra.mxu0 0.0
        %3832 = vmatprep.subr.mxu0 0.0
        %3833 = vmatpush2.msra.mxu0 0.0
        %3834 = vmatprep.subr.mxu0 0.0
        %3835 = vmatpush2.msra.mxu0 0.0
        %3836 = vmatprep.subr.mxu0 0.0
        %3837 = vmatpush2.msra.mxu0 0.0
        %3838 = vmatprep.subr.mxu0 0.0
        %3839 = vmatpush2.msra.mxu0 0.0
        %3840 = vmatprep.subr.mxu0 0.0
        %3841 = vmatpush2.msra.mxu0 0.0
        %3842 = vmatprep.mubr.f32.mxu0 0.0
        %3843 = vmatmul.mubr.f32.gmra.mxu0 %v3635
        %v3844 = vpop.f32.mrf.mxu0
        %v3845 = vadd.f32 0.0, %v3844
        %v3846 = vpop.f32.mrf.mxu0
        %v3847 = vadd.f32 0.0, %v3846
        %3848 = vdwg.mxu0
        %3849 = vmatprep.subr.mxu0 %v3508
        %3850 = vmatpush1.msra.mxu0 %v3507
        %3851 = vmatprep.subr.mxu0 %v3500
        %3852 = vmatpush1.msra.mxu0 %v3499
        %3853 = vmatprep.subr.mxu0 %v3492
        %3854 = vmatpush1.msra.mxu0 %v3491
        %3855 = vmatprep.subr.mxu0 %v3484
        %3856 = vmatpush1.msra.mxu0 %v3483
        %3857 = vmatprep.subr.mxu0 %v3476
        %3858 = vmatpush1.msra.mxu0 %v3475
        %3859 = vmatprep.subr.mxu0 %v3468
        %3860 = vmatpush1.msra.mxu0 %v3467
        %3861 = vmatprep.subr.mxu0 %v3460
        %3862 = vmatpush1.msra.mxu0 %v3459
        %3863 = vmatprep.subr.mxu0 %v3452
        %3864 = vmatpush1.msra.mxu0 %v3451
        %3865 = vmatprep.subr.mxu0 %v3444
        %3866 = vmatpush1.msra.mxu0 %v3443
        %3867 = vmatprep.subr.mxu0 %v3436
        %3868 = vmatpush1.msra.mxu0 %v3435
        %3869 = vmatprep.subr.mxu0 %v3428
        %3870 = vmatpush1.msra.mxu0 %v3427
        %3871 = vmatprep.subr.mxu0 %v3420
        %3872 = vmatpush1.msra.mxu0 %v3419
        %3873 = vmatprep.subr.mxu0 %v3412
        %3874 = vmatpush1.msra.mxu0 %v3411
        %3875 = vmatprep.subr.mxu0 %v3404
        %3876 = vmatpush1.msra.mxu0 %v3403
        %3877 = vmatprep.subr.mxu0 %v3396
        %3878 = vmatpush1.msra.mxu0 %v3395
        %3879 = vmatprep.subr.mxu0 %v3388
        %3880 = vmatpush1.msra.mxu0 %v3387
        %3881 = vmatprep.subr.mxu0 0.0
        %3882 = vmatpush2.msra.mxu0 0.0
        %3883 = vmatprep.subr.mxu0 0.0
        %3884 = vmatpush2.msra.mxu0 0.0
        %3885 = vmatprep.subr.mxu0 0.0
        %3886 = vmatpush2.msra.mxu0 0.0
        %3887 = vmatprep.subr.mxu0 0.0
        %3888 = vmatpush2.msra.mxu0 0.0
        %3889 = vmatprep.subr.mxu0 0.0
        %3890 = vmatpush2.msra.mxu0 0.0
        %3891 = vmatprep.subr.mxu0 0.0
        %3892 = vmatpush2.msra.mxu0 0.0
        %3893 = vmatprep.subr.mxu0 0.0
        %3894 = vmatpush2.msra.mxu0 0.0
        %3895 = vmatprep.subr.mxu0 0.0
        %3896 = vmatpush2.msra.mxu0 0.0
        %3897 = vmatprep.subr.mxu0 0.0
        %3898 = vmatpush2.msra.mxu0 0.0
        %3899 = vmatprep.subr.mxu0 0.0
        %3900 = vmatpush2.msra.mxu0 0.0
        %3901 = vmatprep.subr.mxu0 0.0
        %3902 = vmatpush2.msra.mxu0 0.0
        %3903 = vmatprep.subr.mxu0 0.0
        %3904 = vmatpush2.msra.mxu0 0.0
        %3905 = vmatprep.subr.mxu0 0.0
        %3906 = vmatpush2.msra.mxu0 0.0
        %3907 = vmatprep.subr.mxu0 0.0
        %3908 = vmatpush2.msra.mxu0 0.0
        %3909 = vmatprep.subr.mxu0 0.0
        %3910 = vmatpush2.msra.mxu0 0.0
        %3911 = vmatprep.subr.mxu0 0.0
        %3912 = vmatpush2.msra.mxu0 0.0
        %3913 = vmatprep.mubr.f32.mxu0 0.0
        %3914 = vmatmul.mubr.f32.gmra.mxu0 %v3635
        %v3915 = vpop.f32.mrf.mxu0
        %v3916 = vadd.f32 0.0, %v3915
        %v3917 = vpop.f32.mrf.mxu0
        %v3918 = vadd.f32 0.0, %v3917
        %3919 = vdwg.mxu0
        %v3920 = vmul.f32 %v2931, %v3703
        %v3921 = vmul.f32 %v2933, %v3705
        %v3922 = vmul.f32 %v3073, %v3774
        %v3923 = vmul.f32 %v3075, %v3776
        %v3924 = vmul.f32 %v3215, %v3845
        %v3925 = vmul.f32 %v3217, %v3847
        %v3926 = vmul.f32 %v3357, %v3916
        %v3927 = vmul.f32 %v3359, %v3918
        %v3936 = vcombine.low %v3920, %v3921
        %v3937 = vcombine.low %v3922, %v3923
        %v3938 = vcombine.low %v3924, %v3925
        %v3939 = vcombine.low %v3926, %v3927
        %v3941 = vunpack.c.l.s4 1966171168
        %v3942 = vunpack.c.0.s8 %v3941
        %v3943 = vlaneseq
        %v3944 = vshrl.u32 %v3943, 7
        %v3945 = vsub.s32 %v3942, %v3944
        %v3946 = vrot.slane %v3936, %v3945
        %v3948 = vunpack.c.l.s4 1966171168
        %v3949 = vunpack.c.0.s8 %v3948
        %v3950 = vlaneseq
        %v3951 = vshrl.u32 %v3950, 7
        %v3952 = vsub.s32 %v3949, %v3951
        %v3953 = vrot.slane %v3937, %v3952
        %v3955 = vunpack.c.l.s4 1966171168
        %v3956 = vunpack.c.0.s8 %v3955
        %v3957 = vlaneseq
        %v3958 = vshrl.u32 %v3957, 7
        %v3959 = vsub.s32 %v3956, %v3958
        %v3960 = vrot.slane %v3938, %v3959
        %v3962 = vunpack.c.l.s4 1966171168
        %v3963 = vunpack.c.0.s8 %v3962
        %v3964 = vlaneseq
        %v3965 = vshrl.u32 %v3964, 7
        %v3966 = vsub.s32 %v3963, %v3965
        %v3967 = vrot.slane %v3939, %v3966
        %v3968 = vcombine.low %v3946, %v3953
        %v3969 = vcombine.low %v3960, %v3967
        %v3971 = vunpack.c.l.s4 1966171168
        %v3972 = vunpack.c.0.s8 %v3971
        %v3973 = vlaneseq
        %v3974 = vshrl.u32 %v3973, 7
        %v3975 = vsub.s32 %v3972, %v3974
        %v3976 = vrot.slane %v3968, %v3975
        %v3978 = vunpack.c.l.s4 1966171168
        %v3979 = vunpack.c.0.s8 %v3978
        %v3980 = vlaneseq
        %v3981 = vshrl.u32 %v3980, 7
        %v3982 = vsub.s32 %v3979, %v3981
        %v3983 = vrot.slane %v3969, %v3982
        %v3984 = vcombine.low %v3976, %v3983
        %3986 = vst [vmem:[%s1587] sm:$0xff] %v3984
        %s3987 = smul.u32 8, %s17
        %p3988 = scmp.lt.s32.totalorder %s3987, 15
        %s3989 = scalar_select %p3988, %s3987, 15
        %s3990 = scalar_lea.vmem %s6, %s3989
        // Predicated region
        $region91: #{stfpm_forward.5} parent=81 // pred_check
          %p3991 = pneg %p171
        $region92: #{stfpm_forward.5} parent=81 // pred_check_branch
          %3993 = sbr.rel (%p3991) target = $region94
        $region93: #{stfpm_forward.5} parent=81 // pred_region
          %s3994 = smul.u32 8, %s17
        $region94: #{stfpm_forward.5} parent=81 // pred_fallthru
          _
      $region82: #{stfpm_forward.5} parent=5 // pred_fallthru
        _
      %p3995 = scmp.le.s32.totalorder 2, %s12
      // Predicated region
      $region95: #{stfpm_forward.5} parent=5 // pred_check
        %p3996 = pneg %p3995
      $region96: #{stfpm_forward.5} parent=5 // pred_check_branch
        %3998 = sbr.rel (%p3996) target = $region98
      $region97: #{stfpm_forward.5} parent=5 // pred_region
        %s3999 = ssub.s32 %s12, 2
        // Predicated region
        $region99: #{stfpm_forward.5} parent=97 // pred_check
          %p4000 = pneg %p177
        $region100: #{stfpm_forward.5} parent=97 // pred_check_branch
          %4002 = sbr.rel (%p4000) target = $region102
        $region101: #{stfpm_forward.5} parent=97 // pred_region
          %s4003 = smul.u32 8, %s18
          %p4004 = scmp.lt.s32.totalorder %s4003, 15
          %s4005 = scalar_select %p4004, %s4003, 15
          %s4006 = scalar_lea.vmem %s6, %s4005
        $region102: #{stfpm_forward.5} parent=97 // pred_fallthru
          _
      $region98: #{stfpm_forward.5} parent=5 // pred_fallthru
        _
    $region6: #{stfpm_forward.5} parent=1 // loop_footer
      %s16 = sadd.s32 1, %s12
    $region7: #{stfpm_forward.5} parent=1 // loop_footer_branch
      %11 = sbr.rel target = $region3
    $region8: #{stfpm_forward.5} parent=1 // loop_exit
      _

</llo_original>
